<compile_context>
chip_gen: v7x
topology: tpu7x:2x2x1
jax: 0.10.0
libtpu: 0.0.40
codegen_flags: <defaults>
</compile_context>

<pallas_src>
import functools

import jax
import jax.numpy as jnp
import numpy as np
from jax import lax
from jax.experimental import pallas as pl
from jax.experimental.pallas import tpu as pltpu

BATCH = 2
H_IN = W_IN = 80   # 80x80 input -> conv stack yields 64*5*5 = 1600 features for fc1


# ---------------------------------------------------------------------------
# Fused forward kernel
# ---------------------------------------------------------------------------

def _deepq_kernel(pm_ref, w1_ref, w2_ref, b2_ref, w3_ref, b3_ref,
                  wf_ref, bf_ref, wo_ref, bo_ref, out_ref, a1_ref, x3_ref, *, batch):
    f32, bf16 = jnp.float32, jnp.bfloat16
    B = batch
    nblk = 120 * B          # rows per 2x2 pool-offset block: (pw, parity r, h_half, b)
    nrw = 12 * B            # rows per pw group: (r, h_half, b)

    # ---- conv1 (+bias via the ones-feature) as ONE MXU matmul; 2x2 max-pool = max over the
    #      4 pool-offset row blocks; ReLU.  Padding rows (invalid pooled h) come out exactly 0.
    z = jnp.dot(pm_ref[...], w1_ref[...], preferred_element_type=f32)      # [4*nblk, 32]
    pooled = jnp.maximum(jnp.maximum(z[0:nblk], z[nblk:2 * nblk]),
                         jnp.maximum(z[2 * nblk:3 * nblk], z[3 * nblk:4 * nblk]))
    pooled = jnp.maximum(pooled, 0.0)                                       # [nblk, 32] f32

    # ---- corner turn: rows (pw, r, hh, b) -> rows (r, hh, b), lanes (w_pad = pw+1, c).
    #      10 static lane-block stores into pre-zeroed scratch (lane blocks 0 and 11 = W pad).
    a1_ref[...] = jnp.zeros_like(a1_ref)
    for pw in range(10):
        a1_ref[:, (pw + 1) * 32:(pw + 2) * 32] = pooled[pw * nrw:(pw + 1) * nrw, :]

    # ---- conv2 (k=4, s=2, p=1): 4 H-tap matmuls vs W-unrolled weights, 2-way accumulation ----
    def tap2(kh):
        a_, r_ = kh // 2, kh % 2                 # padded h = 2*oy + kh = 2*(oy + a_) + r_
        start = (r_ * 6 + a_) * B
        lhs = a1_ref[start:start + 5 * B, :].astype(bf16)                   # [5B, 384]
        return jnp.dot(lhs, w2_ref[kh], preferred_element_type=f32)          # [5B, 320]

    p0 = tap2(0)
    p1 = tap2(1)
    p0 = p0 + tap2(2)
    p1 = p1 + tap2(3)
    x2 = jnp.maximum(p0 + p1 + b2_ref[...], 0.0)                             # [5B, 320] f32

    # ---- conv3 (k=3, s=1, p=1): padded input lives in a pre-zeroed scratch; 3 H-tap matmuls ----
    x3_ref[...] = jnp.zeros_like(x3_ref)
    x3_ref[B:6 * B, 64:384] = x2          # rows = (h_pad = oy+1, b); lanes = (w_pad = ow+1, c)

    def tap3(kh):
        lhs = x3_ref[kh * B:kh * B + 5 * B, :].astype(bf16)                  # [5B, 448]
        return jnp.dot(lhs, w3_ref[kh], preferred_element_type=f32)           # [5B, 320]

    q0 = tap3(0)
    q1 = tap3(1)
    q0 = q0 + tap3(2)
    a3 = jnp.maximum(q0 + q1 + b3_ref[...], 0.0)                              # [5B, 320] f32

    # ---- fc1 (+ReLU); the PyTorch NCHW flatten is folded into wf; 2-way accumulation ----
    def tapf(oh):
        lhs = a3[oh * B:(oh + 1) * B, :].astype(bf16)                         # [B, 320]
        return jnp.dot(lhs, wf_ref[oh], preferred_element_type=f32)            # [B, 256]

    h0 = tapf(0)
    h1 = tapf(1)
    h0 = h0 + tapf(2)
    h1 = h1 + tapf(3)
    h0 = h0 + tapf(4)
    h = jnp.maximum(h0 + h1 + bf_ref[...], 0.0).astype(bf16)                   # [B, 256]

    # ---- out layer (N padded to 128 lanes; real logits are columns 0..1) ----
    out_ref[...] = jnp.dot(h, wo_ref[...], preferred_element_type=f32) + bo_ref[...]


# ---------------------------------------------------------------------------
# Parameters + one-time layout preparation (hoisted out of the jitted forward)
# ---------------------------------------------------------------------------

def init_params(key):
    ks = jax.random.split(key, 10)
    s = 0.05
    return {
        "conv1_w": s * jax.random.normal(ks[0], (32, 4, 8, 8), jnp.float32),
        "conv1_b": s * jax.random.normal(ks[1], (32,), jnp.float32),
        "conv2_w": s * jax.random.normal(ks[2], (64, 32, 4, 4), jnp.float32),
        "conv2_b": s * jax.random.normal(ks[3], (64,), jnp.float32),
        "conv3_w": s * jax.random.normal(ks[4], (64, 64, 3, 3), jnp.float32),
        "conv3_b": s * jax.random.normal(ks[5], (64,), jnp.float32),
        "fc1_w": s * jax.random.normal(ks[6], (256, 1600), jnp.float32),
        "fc1_b": s * jax.random.normal(ks[7], (256,), jnp.float32),
        "out_w": s * jax.random.normal(ks[8], (2, 256), jnp.float32),
        "out_b": s * jax.random.normal(ks[9], (2,), jnp.float32),
    }


def prepare_params(params):
    """All weight transposes / unrolling / padding, done once at init time (batch-independent)."""
    bf16, f32 = jnp.bfloat16, jnp.float32

    # conv1: im2col weight, feature order (kh, kw, ci); row 256 = bias (paired with ones-feature).
    w1 = np.zeros((257, 32), np.float32)
    w1[:256] = np.transpose(np.asarray(params["conv1_w"]), (2, 3, 1, 0)).reshape(256, 32)
    w1[256] = np.asarray(params["conv1_b"])

    # conv2 (k=4, s=2, p=1) W-unrolled per kh tap:
    #   rows = (w_pad in 0..11, ci), cols = (ow in 0..4, co), w_pad = 2*ow + kw.
    w2 = np.asarray(params["conv2_w"])                       # [64, 32, 4, 4]
    W2U = np.zeros((4, 12 * 32, 5 * 64), np.float32)
    for kh in range(4):
        for ow in range(5):
            for kw in range(4):
                wp = 2 * ow + kw
                W2U[kh, wp * 32:(wp + 1) * 32, ow * 64:(ow + 1) * 64] = w2[:, :, kh, kw].T
    b2 = np.tile(np.asarray(params["conv2_b"]), 5).reshape(1, 320)

    # conv3 (k=3, s=1, p=1) W-unrolled per kh tap:
    #   rows = (w_pad in 0..6, ci), cols = (ow in 0..4, co), w_pad = ow + kw.
    w3 = np.asarray(params["conv3_w"])                       # [64, 64, 3, 3]
    W3U = np.zeros((3, 7 * 64, 5 * 64), np.float32)
    for kh in range(3):
        for ow in range(5):
            for kw in range(3):
                wp = ow + kw
                W3U[kh, wp * 64:(wp + 1) * 64, ow * 64:(ow + 1) * 64] = w3[:, :, kh, kw].T
    b3 = np.tile(np.asarray(params["conv3_b"]), 5).reshape(1, 320)

    # fc1: fold the PyTorch NCHW flatten (f = co*25 + oh*5 + ow) into the weight.
    fc1 = np.asarray(params["fc1_w"]).reshape(256, 64, 5, 5)        # [n, co, oh, ow]
    WF = np.transpose(fc1, (2, 3, 1, 0)).reshape(5, 5 * 64, 256)    # [oh, (ow, co), n]
    bfc = np.asarray(params["fc1_b"]).reshape(1, 256)

    # out: transpose, pad N from 2 -> 128 lanes.
    WO = np.zeros((256, 128), np.float32)
    WO[:, :2] = np.asarray(params["out_w"]).T
    BO = np.zeros((1, 128), np.float32)
    BO[0, :2] = np.asarray(params["out_b"])

    return {
        "w1": jnp.asarray(w1, bf16),
        "w2": jnp.asarray(W2U, bf16), "b2": jnp.asarray(b2, f32),
        "w3": jnp.asarray(W3U, bf16), "b3": jnp.asarray(b3, f32),
        "wf": jnp.asarray(WF, bf16), "bf": jnp.asarray(bfc, f32),
        "wo": jnp.asarray(WO, bf16), "bo": jnp.asarray(BO, f32),
    }


# ---------------------------------------------------------------------------
# Forward pass
# ---------------------------------------------------------------------------

def _conv1_patches(x_nchw):
    """im2col for conv1 (k=8, s=4, p=2) with an appended ones-feature (carries the bias).

    Row order: (pool-offset i*2+j; pw, parity r, h_half hh, b).  Rows whose pooled h is
    conv2 padding (ph = -1 or 10) are all-zero (incl. the ones-feature), so they stay exactly
    zero after the in-kernel bias+ReLU.
    """
    B = x_nchw.shape[0]
    x = jnp.transpose(x_nchw, (0, 2, 3, 1)).astype(jnp.bfloat16)      # bf16 BEFORE the glue
    xp = jnp.pad(x, ((0, 0), (2, 2), (2, 2), (0, 0)))                 # [B, 84, 84, 4]
    taps = [xp[:, kh:kh + 80:4, kw:kw + 80:4, :]
            for kh in range(8) for kw in range(8)]                    # each [B, 20, 20, 4]
    p = jnp.stack(taps, axis=3).reshape(B, 20, 20, 256)               # features = (kh, kw, ci)
    ones = jnp.ones((B, 20, 20, 1), jnp.bfloat16)
    p = jnp.concatenate([p, ones], axis=-1)                           # [B, 20, 20, 257]
    p = p.reshape(B, 10, 2, 10, 2, 257)                               # (b, ph, i, pw, j, f)
    p = jnp.pad(p, ((0, 0), (1, 1), (0, 0), (0, 0), (0, 0), (0, 0)))  # ph_pad = ph+1 in 0..11
    p = p.reshape(B, 6, 2, 2, 10, 2, 257)                             # (b, hh, r, i, pw, j, f)
    p = jnp.transpose(p, (3, 5, 4, 2, 1, 0, 6))                       # (i, j, pw, r, hh, b, f)
    return p.reshape(4 * 120 * B, 257)


def _zero_idx(i, *, ndim):
    return (0,) * ndim


@jax.jit
def deep_network_forward(prep, x_nchw):
    """x_nchw: [B, 4, 80, 80] float32 -> [B, 2] float32."""
    B = x_nchw.shape[0]
    pmat = _conv1_patches(x_nchw)
    args = (pmat, prep["w1"], prep["w2"], prep["b2"], prep["w3"], prep["b3"],
            prep["wf"], prep["bf"], prep["wo"], prep["bo"])
    in_specs = [pl.BlockSpec(a.shape, functools.partial(_zero_idx, ndim=a.ndim))
                for a in args]

    out = pl.pallas_call(
        functools.partial(_deepq_kernel, batch=B),
        out_shape=jax.ShapeDtypeStruct((B, 128), jnp.float32),
        grid=(1,),
        in_specs=in_specs,
        out_specs=pl.BlockSpec((B, 128), lambda i: (0, 0)),
        scratch_shapes=[
            pltpu.VMEM((12 * B, 12 * 32), jnp.float32),   # a1: conv2 input, (r, hh, b) x (w_pad, c)
            pltpu.VMEM((7 * B, 7 * 64), jnp.float32),     # x3: conv3 padded input
        ],
        compiler_params=pltpu.CompilerParams(
            dimension_semantics=("arbitrary",),
            vmem_limit_bytes=32 * 1024 * 1024),
    )(*args)
    return out[:, :2]


# ---------------------------------------------------------------------------
# Independent f32 reference (XLA) for a loose sanity check
# ---------------------------------------------------------------------------

def reference_forward(p, x):
    hi = lax.Precision.HIGHEST
    dn = ("NCHW", "OIHW", "NCHW")
    y = lax.conv_general_dilated(x, p["conv1_w"], (4, 4), ((2, 2), (2, 2)),
                                 dimension_numbers=dn, precision=hi)
    y = jax.nn.relu(y + p["conv1_b"][None, :, None, None])
    B = y.shape[0]
    y = y.reshape(B, 32, 10, 2, 10, 2).max(axis=(3, 5))
    y = lax.conv_general_dilated(y, p["conv2_w"], (2, 2), ((1, 1), (1, 1)),
                                 dimension_numbers=dn, precision=hi)
    y = jax.nn.relu(y + p["conv2_b"][None, :, None, None])
    y = lax.conv_general_dilated(y, p["conv3_w"], (1, 1), ((1, 1), (1, 1)),
                                 dimension_numbers=dn, precision=hi)
    y = jax.nn.relu(y + p["conv3_b"][None, :, None, None])
    y = y.reshape(B, -1)
    y = jax.nn.relu(jnp.dot(y, p["fc1_w"].T, precision=hi) + p["fc1_b"])
    return jnp.dot(y, p["out_w"].T, precision=hi) + p["out_b"]


if __name__ == "__main__":
    key = jax.random.PRNGKey(0)
    k_param, k_input = jax.random.split(key)

    params = init_params(k_param)
    prep = prepare_params(params)
    x = jax.random.normal(k_input, (BATCH, 4, H_IN, W_IN), jnp.float32)

    y = jax.block_until_ready(deep_network_forward(prep, x))
    assert y.shape == (BATCH, 2) and y.dtype == jnp.float32

    # Loose check vs an f32 XLA reference (kernel matmuls intentionally run in bf16).
    y_ref = jax.block_until_ready(reference_forward(params, x))
    err = float(jnp.max(jnp.abs(y - y_ref)))
    assert err < 0.2, f"max |err| vs reference = {err}"

    print("KERNEL_OK")
</pallas_src>

<mosaic_0001>
module attributes {stable_mosaic.version = 11 : i64} {
  func.func @_deepq_kernel(%arg0: i32, %arg1: memref<960x257xbf16, #tpu.memory_space<vmem>>, %arg2: memref<257x32xbf16, #tpu.memory_space<vmem>>, %arg3: memref<4x384x320xbf16, #tpu.memory_space<vmem>>, %arg4: memref<1x320xf32, #tpu.memory_space<vmem>>, %arg5: memref<3x448x320xbf16, #tpu.memory_space<vmem>>, %arg6: memref<1x320xf32, #tpu.memory_space<vmem>>, %arg7: memref<5x320x256xbf16, #tpu.memory_space<vmem>>, %arg8: memref<1x256xf32, #tpu.memory_space<vmem>>, %arg9: memref<256x128xbf16, #tpu.memory_space<vmem>>, %arg10: memref<1x128xf32, #tpu.memory_space<vmem>>, %arg11: memref<2x128xf32, #tpu.memory_space<vmem>>, %arg12: memref<24x384xf32, #tpu.memory_space<vmem>>, %arg13: memref<14x448xf32, #tpu.memory_space<vmem>>) attributes {dimension_semantics = [#tpu.dimension_semantics<arbitrary>], iteration_bounds = array<i64: 1>, scalar_prefetch = 0 : i64, scratch_operands = 2 : i64, tpu.core_type = #tpu.core_type<tc>, window_params = [{pipeline_mode = #tpu.pipeline_mode<synchronous>, transform_indices = @transform_0, window_bounds = array<i64: 960, 257>}, {pipeline_mode = #tpu.pipeline_mode<synchronous>, transform_indices = @transform_1, window_bounds = array<i64: 257, 32>}, {pipeline_mode = #tpu.pipeline_mode<synchronous>, transform_indices = @transform_2, window_bounds = array<i64: 4, 384, 320>}, {pipeline_mode = #tpu.pipeline_mode<synchronous>, transform_indices = @transform_3, window_bounds = array<i64: 1, 320>}, {pipeline_mode = #tpu.pipeline_mode<synchronous>, transform_indices = @transform_4, window_bounds = array<i64: 3, 448, 320>}, {pipeline_mode = #tpu.pipeline_mode<synchronous>, transform_indices = @transform_5, window_bounds = array<i64: 1, 320>}, {pipeline_mode = #tpu.pipeline_mode<synchronous>, transform_indices = @transform_6, window_bounds = array<i64: 5, 320, 256>}, {pipeline_mode = #tpu.pipeline_mode<synchronous>, transform_indices = @transform_7, window_bounds = array<i64: 1, 256>}, {pipeline_mode = #tpu.pipeline_mode<synchronous>, transform_indices = @transform_8, window_bounds = array<i64: 256, 128>}, {pipeline_mode = #tpu.pipeline_mode<synchronous>, transform_indices = @transform_9, window_bounds = array<i64: 1, 128>}, {pipeline_mode = #tpu.pipeline_mode<synchronous>, transform_indices = @transform_10, window_bounds = array<i64: 2, 128>}]} {
    %c0 = arith.constant 0 : index
    %c0_0 = arith.constant 0 : index
    %0 = vector.load %arg1[%c0, %c0_0] : memref<960x257xbf16, #tpu.memory_space<vmem>>, vector<960x257xbf16>
    %c0_1 = arith.constant 0 : index
    %c0_2 = arith.constant 0 : index
    %1 = vector.load %arg2[%c0_1, %c0_2] : memref<257x32xbf16, #tpu.memory_space<vmem>>, vector<257x32xbf16>
    %cst = arith.constant dense<0.000000e+00> : vector<960x32xf32>
    %2 = tpu.matmul %0, %1, %cst {dimension_numbers = #tpu.dot_dimension_numbers<[1], [0], [0], [1], [0, 0, 1, 1], [], []>} : vector<960x257xbf16>, vector<257x32xbf16>, vector<960x32xf32> -> vector<960x32xf32>
    %3 = vector.extract_strided_slice %2 {offsets = [0, 0], sizes = [240, 32], strides = [1, 1]} : vector<960x32xf32> to vector<240x32xf32>
    %4 = vector.extract_strided_slice %2 {offsets = [240, 0], sizes = [240, 32], strides = [1, 1]} : vector<960x32xf32> to vector<240x32xf32>
    %5 = arith.maximumf %3, %4 : vector<240x32xf32>
    %6 = vector.extract_strided_slice %2 {offsets = [480, 0], sizes = [240, 32], strides = [1, 1]} : vector<960x32xf32> to vector<240x32xf32>
    %7 = vector.extract_strided_slice %2 {offsets = [720, 0], sizes = [240, 32], strides = [1, 1]} : vector<960x32xf32> to vector<240x32xf32>
    %8 = arith.maximumf %6, %7 : vector<240x32xf32>
    %9 = arith.maximumf %5, %8 : vector<240x32xf32>
    %cst_3 = arith.constant 0.000000e+00 : f32
    %10 = vector.broadcast %cst_3 : f32 to vector<240x32xf32>
    %11 = arith.maximumf %9, %10 : vector<240x32xf32>
    %cst_4 = arith.constant 0.000000e+00 : f32
    %12 = vector.broadcast %cst_4 : f32 to vector<24x384xf32>
    %c0_5 = arith.constant 0 : index
    %c0_6 = arith.constant 0 : index
    %13 = vector.load %arg12[%c0_5, %c0_6] : memref<24x384xf32, #tpu.memory_space<vmem>>, vector<24x384xf32>
    tpu.vector_store %arg12[%c0_5, %c0_6], %12 {strides = array<i32>} : memref<24x384xf32, #tpu.memory_space<vmem>>, vector<24x384xf32>,
    %14 = vector.extract_strided_slice %11 {offsets = [0, 0], sizes = [24, 32], strides = [1, 1]} : vector<240x32xf32> to vector<24x32xf32>
    %c0_7 = arith.constant 0 : index
    %c32 = arith.constant 32 : index
    %15 = vector.load %arg12[%c0_7, %c32] : memref<24x384xf32, #tpu.memory_space<vmem>>, vector<24x32xf32>
    tpu.vector_store %arg12[%c0_7, %c32], %14 {strides = array<i32>} : memref<24x384xf32, #tpu.memory_space<vmem>>, vector<24x32xf32>,
    %16 = vector.extract_strided_slice %11 {offsets = [24, 0], sizes = [24, 32], strides = [1, 1]} : vector<240x32xf32> to vector<24x32xf32>
    %c0_8 = arith.constant 0 : index
    %c64 = arith.constant 64 : index
    %17 = vector.load %arg12[%c0_8, %c64] : memref<24x384xf32, #tpu.memory_space<vmem>>, vector<24x32xf32>
    tpu.vector_store %arg12[%c0_8, %c64], %16 {strides = array<i32>} : memref<24x384xf32, #tpu.memory_space<vmem>>, vector<24x32xf32>,
    %18 = vector.extract_strided_slice %11 {offsets = [48, 0], sizes = [24, 32], strides = [1, 1]} : vector<240x32xf32> to vector<24x32xf32>
    %c0_9 = arith.constant 0 : index
    %c96 = arith.constant 96 : index
    %19 = vector.load %arg12[%c0_9, %c96] : memref<24x384xf32, #tpu.memory_space<vmem>>, vector<24x32xf32>
    tpu.vector_store %arg12[%c0_9, %c96], %18 {strides = array<i32>} : memref<24x384xf32, #tpu.memory_space<vmem>>, vector<24x32xf32>,
    %20 = vector.extract_strided_slice %11 {offsets = [72, 0], sizes = [24, 32], strides = [1, 1]} : vector<240x32xf32> to vector<24x32xf32>
    %c0_10 = arith.constant 0 : index
    %c128 = arith.constant 128 : index
    %21 = vector.load %arg12[%c0_10, %c128] : memref<24x384xf32, #tpu.memory_space<vmem>>, vector<24x32xf32>
    tpu.vector_store %arg12[%c0_10, %c128], %20 {strides = array<i32>} : memref<24x384xf32, #tpu.memory_space<vmem>>, vector<24x32xf32>,
    %22 = vector.extract_strided_slice %11 {offsets = [96, 0], sizes = [24, 32], strides = [1, 1]} : vector<240x32xf32> to vector<24x32xf32>
    %c0_11 = arith.constant 0 : index
    %c160 = arith.constant 160 : index
    %23 = vector.load %arg12[%c0_11, %c160] : memref<24x384xf32, #tpu.memory_space<vmem>>, vector<24x32xf32>
    tpu.vector_store %arg12[%c0_11, %c160], %22 {strides = array<i32>} : memref<24x384xf32, #tpu.memory_space<vmem>>, vector<24x32xf32>,
    %24 = vector.extract_strided_slice %11 {offsets = [120, 0], sizes = [24, 32], strides = [1, 1]} : vector<240x32xf32> to vector<24x32xf32>
    %c0_12 = arith.constant 0 : index
    %c192 = arith.constant 192 : index
    %25 = vector.load %arg12[%c0_12, %c192] : memref<24x384xf32, #tpu.memory_space<vmem>>, vector<24x32xf32>
    tpu.vector_store %arg12[%c0_12, %c192], %24 {strides = array<i32>} : memref<24x384xf32, #tpu.memory_space<vmem>>, vector<24x32xf32>,
    %26 = vector.extract_strided_slice %11 {offsets = [144, 0], sizes = [24, 32], strides = [1, 1]} : vector<240x32xf32> to vector<24x32xf32>
    %c0_13 = arith.constant 0 : index
    %c224 = arith.constant 224 : index
    %27 = vector.load %arg12[%c0_13, %c224] : memref<24x384xf32, #tpu.memory_space<vmem>>, vector<24x32xf32>
    tpu.vector_store %arg12[%c0_13, %c224], %26 {strides = array<i32>} : memref<24x384xf32, #tpu.memory_space<vmem>>, vector<24x32xf32>,
    %28 = vector.extract_strided_slice %11 {offsets = [168, 0], sizes = [24, 32], strides = [1, 1]} : vector<240x32xf32> to vector<24x32xf32>
    %c0_14 = arith.constant 0 : index
    %c256 = arith.constant 256 : index
    %29 = vector.load %arg12[%c0_14, %c256] : memref<24x384xf32, #tpu.memory_space<vmem>>, vector<24x32xf32>
    tpu.vector_store %arg12[%c0_14, %c256], %28 {strides = array<i32>} : memref<24x384xf32, #tpu.memory_space<vmem>>, vector<24x32xf32>,
    %30 = vector.extract_strided_slice %11 {offsets = [192, 0], sizes = [24, 32], strides = [1, 1]} : vector<240x32xf32> to vector<24x32xf32>
    %c0_15 = arith.constant 0 : index
    %c288 = arith.constant 288 : index
    %31 = vector.load %arg12[%c0_15, %c288] : memref<24x384xf32, #tpu.memory_space<vmem>>, vector<24x32xf32>
    tpu.vector_store %arg12[%c0_15, %c288], %30 {strides = array<i32>} : memref<24x384xf32, #tpu.memory_space<vmem>>, vector<24x32xf32>,
    %32 = vector.extract_strided_slice %11 {offsets = [216, 0], sizes = [24, 32], strides = [1, 1]} : vector<240x32xf32> to vector<24x32xf32>
    %c0_16 = arith.constant 0 : index
    %c320 = arith.constant 320 : index
    %33 = vector.load %arg12[%c0_16, %c320] : memref<24x384xf32, #tpu.memory_space<vmem>>, vector<24x32xf32>
    tpu.vector_store %arg12[%c0_16, %c320], %32 {strides = array<i32>} : memref<24x384xf32, #tpu.memory_space<vmem>>, vector<24x32xf32>,
    %c0_17 = arith.constant 0 : index
    %c0_18 = arith.constant 0 : index
    %34 = vector.load %arg12[%c0_17, %c0_18] : memref<24x384xf32, #tpu.memory_space<vmem>>, vector<10x384xf32>
    %35 = arith.truncf %34 : vector<10x384xf32> to vector<10x384xbf16>
    %c0_19 = arith.constant 0 : index
    %c0_20 = arith.constant 0 : index
    %c0_21 = arith.constant 0 : index
    %36 = vector.load %arg3[%c0_19, %c0_20, %c0_21] : memref<4x384x320xbf16, #tpu.memory_space<vmem>>, vector<1x384x320xbf16>
    %37 = vector.shape_cast %36 : vector<1x384x320xbf16> to vector<384x320xbf16>
    %cst_22 = arith.constant dense<0.000000e+00> : vector<10x320xf32>
    %38 = tpu.matmul %35, %37, %cst_22 {dimension_numbers = #tpu.dot_dimension_numbers<[1], [0], [0], [1], [0, 0, 1, 1], [], []>} : vector<10x384xbf16>, vector<384x320xbf16>, vector<10x320xf32> -> vector<10x320xf32>
    %c12 = arith.constant 12 : index
    %c0_23 = arith.constant 0 : index
    %39 = vector.load %arg12[%c12, %c0_23] : memref<24x384xf32, #tpu.memory_space<vmem>>, vector<10x384xf32>
    %40 = arith.truncf %39 : vector<10x384xf32> to vector<10x384xbf16>
    %c1 = arith.constant 1 : index
    %c0_24 = arith.constant 0 : index
    %c0_25 = arith.constant 0 : index
    %41 = vector.load %arg3[%c1, %c0_24, %c0_25] : memref<4x384x320xbf16, #tpu.memory_space<vmem>>, vector<1x384x320xbf16>
    %42 = vector.shape_cast %41 : vector<1x384x320xbf16> to vector<384x320xbf16>
    %cst_26 = arith.constant dense<0.000000e+00> : vector<10x320xf32>
    %43 = tpu.matmul %40, %42, %cst_26 {dimension_numbers = #tpu.dot_dimension_numbers<[1], [0], [0], [1], [0, 0, 1, 1], [], []>} : vector<10x384xbf16>, vector<384x320xbf16>, vector<10x320xf32> -> vector<10x320xf32>
    %c2 = arith.constant 2 : index
    %c0_27 = arith.constant 0 : index
    %44 = vector.load %arg12[%c2, %c0_27] : memref<24x384xf32, #tpu.memory_space<vmem>>, vector<10x384xf32>
    %45 = arith.truncf %44 : vector<10x384xf32> to vector<10x384xbf16>
    %c2_28 = arith.constant 2 : index
    %c0_29 = arith.constant 0 : index
    %c0_30 = arith.constant 0 : index
    %46 = vector.load %arg3[%c2_28, %c0_29, %c0_30] : memref<4x384x320xbf16, #tpu.memory_space<vmem>>, vector<1x384x320xbf16>
    %47 = vector.shape_cast %46 : vector<1x384x320xbf16> to vector<384x320xbf16>
    %cst_31 = arith.constant dense<0.000000e+00> : vector<10x320xf32>
    %48 = tpu.matmul %45, %47, %cst_31 {dimension_numbers = #tpu.dot_dimension_numbers<[1], [0], [0], [1], [0, 0, 1, 1], [], []>} : vector<10x384xbf16>, vector<384x320xbf16>, vector<10x320xf32> -> vector<10x320xf32>
    %49 = arith.addf %38, %48 : vector<10x320xf32>
    %c14 = arith.constant 14 : index
    %c0_32 = arith.constant 0 : index
    %50 = vector.load %arg12[%c14, %c0_32] : memref<24x384xf32, #tpu.memory_space<vmem>>, vector<10x384xf32>
    %51 = arith.truncf %50 : vector<10x384xf32> to vector<10x384xbf16>
    %c3 = arith.constant 3 : index
    %c0_33 = arith.constant 0 : index
    %c0_34 = arith.constant 0 : index
    %52 = vector.load %arg3[%c3, %c0_33, %c0_34] : memref<4x384x320xbf16, #tpu.memory_space<vmem>>, vector<1x384x320xbf16>
    %53 = vector.shape_cast %52 : vector<1x384x320xbf16> to vector<384x320xbf16>
    %cst_35 = arith.constant dense<0.000000e+00> : vector<10x320xf32>
    %54 = tpu.matmul %51, %53, %cst_35 {dimension_numbers = #tpu.dot_dimension_numbers<[1], [0], [0], [1], [0, 0, 1, 1], [], []>} : vector<10x384xbf16>, vector<384x320xbf16>, vector<10x320xf32> -> vector<10x320xf32>
    %55 = arith.addf %43, %54 : vector<10x320xf32>
    %56 = arith.addf %49, %55 : vector<10x320xf32>
    %c0_36 = arith.constant 0 : index
    %c0_37 = arith.constant 0 : index
    %57 = vector.load %arg4[%c0_36, %c0_37] : memref<1x320xf32, #tpu.memory_space<vmem>>, vector<1x320xf32>
    %58 = vector.broadcast %57 : vector<1x320xf32> to vector<10x320xf32>
    %59 = arith.addf %56, %58 : vector<10x320xf32>
    %cst_38 = arith.constant 0.000000e+00 : f32
    %60 = vector.broadcast %cst_38 : f32 to vector<10x320xf32>
    %61 = arith.maximumf %59, %60 : vector<10x320xf32>
    %cst_39 = arith.constant 0.000000e+00 : f32
    %62 = vector.broadcast %cst_39 : f32 to vector<14x448xf32>
    %c0_40 = arith.constant 0 : index
    %c0_41 = arith.constant 0 : index
    %63 = vector.load %arg13[%c0_40, %c0_41] : memref<14x448xf32, #tpu.memory_space<vmem>>, vector<14x448xf32>
    tpu.vector_store %arg13[%c0_40, %c0_41], %62 {strides = array<i32>} : memref<14x448xf32, #tpu.memory_space<vmem>>, vector<14x448xf32>,
    %c2_42 = arith.constant 2 : index
    %c64_43 = arith.constant 64 : index
    %64 = vector.load %arg13[%c2_42, %c64_43] : memref<14x448xf32, #tpu.memory_space<vmem>>, vector<10x320xf32>
    tpu.vector_store %arg13[%c2_42, %c64_43], %61 {strides = array<i32>} : memref<14x448xf32, #tpu.memory_space<vmem>>, vector<10x320xf32>,
    %c0_44 = arith.constant 0 : index
    %c0_45 = arith.constant 0 : index
    %65 = vector.load %arg13[%c0_44, %c0_45] : memref<14x448xf32, #tpu.memory_space<vmem>>, vector<10x448xf32>
    %66 = arith.truncf %65 : vector<10x448xf32> to vector<10x448xbf16>
    %c0_46 = arith.constant 0 : index
    %c0_47 = arith.constant 0 : index
    %c0_48 = arith.constant 0 : index
    %67 = vector.load %arg5[%c0_46, %c0_47, %c0_48] : memref<3x448x320xbf16, #tpu.memory_space<vmem>>, vector<1x448x320xbf16>
    %68 = vector.shape_cast %67 : vector<1x448x320xbf16> to vector<448x320xbf16>
    %cst_49 = arith.constant dense<0.000000e+00> : vector<10x320xf32>
    %69 = tpu.matmul %66, %68, %cst_49 {dimension_numbers = #tpu.dot_dimension_numbers<[1], [0], [0], [1], [0, 0, 1, 1], [], []>} : vector<10x448xbf16>, vector<448x320xbf16>, vector<10x320xf32> -> vector<10x320xf32>
    %c2_50 = arith.constant 2 : index
    %c0_51 = arith.constant 0 : index
    %70 = vector.load %arg13[%c2_50, %c0_51] : memref<14x448xf32, #tpu.memory_space<vmem>>, vector<10x448xf32>
    %71 = arith.truncf %70 : vector<10x448xf32> to vector<10x448xbf16>
    %c1_52 = arith.constant 1 : index
    %c0_53 = arith.constant 0 : index
    %c0_54 = arith.constant 0 : index
    %72 = vector.load %arg5[%c1_52, %c0_53, %c0_54] : memref<3x448x320xbf16, #tpu.memory_space<vmem>>, vector<1x448x320xbf16>
    %73 = vector.shape_cast %72 : vector<1x448x320xbf16> to vector<448x320xbf16>
    %cst_55 = arith.constant dense<0.000000e+00> : vector<10x320xf32>
    %74 = tpu.matmul %71, %73, %cst_55 {dimension_numbers = #tpu.dot_dimension_numbers<[1], [0], [0], [1], [0, 0, 1, 1], [], []>} : vector<10x448xbf16>, vector<448x320xbf16>, vector<10x320xf32> -> vector<10x320xf32>
    %c4 = arith.constant 4 : index
    %c0_56 = arith.constant 0 : index
    %75 = vector.load %arg13[%c4, %c0_56] : memref<14x448xf32, #tpu.memory_space<vmem>>, vector<10x448xf32>
    %76 = arith.truncf %75 : vector<10x448xf32> to vector<10x448xbf16>
    %c2_57 = arith.constant 2 : index
    %c0_58 = arith.constant 0 : index
    %c0_59 = arith.constant 0 : index
    %77 = vector.load %arg5[%c2_57, %c0_58, %c0_59] : memref<3x448x320xbf16, #tpu.memory_space<vmem>>, vector<1x448x320xbf16>
    %78 = vector.shape_cast %77 : vector<1x448x320xbf16> to vector<448x320xbf16>
    %cst_60 = arith.constant dense<0.000000e+00> : vector<10x320xf32>
    %79 = tpu.matmul %76, %78, %cst_60 {dimension_numbers = #tpu.dot_dimension_numbers<[1], [0], [0], [1], [0, 0, 1, 1], [], []>} : vector<10x448xbf16>, vector<448x320xbf16>, vector<10x320xf32> -> vector<10x320xf32>
    %80 = arith.addf %69, %79 : vector<10x320xf32>
    %81 = arith.addf %80, %74 : vector<10x320xf32>
    %c0_61 = arith.constant 0 : index
    %c0_62 = arith.constant 0 : index
    %82 = vector.load %arg6[%c0_61, %c0_62] : memref<1x320xf32, #tpu.memory_space<vmem>>, vector<1x320xf32>
    %83 = vector.broadcast %82 : vector<1x320xf32> to vector<10x320xf32>
    %84 = arith.addf %81, %83 : vector<10x320xf32>
    %cst_63 = arith.constant 0.000000e+00 : f32
    %85 = vector.broadcast %cst_63 : f32 to vector<10x320xf32>
    %86 = arith.maximumf %84, %85 : vector<10x320xf32>
    %87 = vector.extract_strided_slice %86 {offsets = [0, 0], sizes = [2, 320], strides = [1, 1]} : vector<10x320xf32> to vector<2x320xf32>
    %88 = arith.truncf %87 : vector<2x320xf32> to vector<2x320xbf16>
    %c0_64 = arith.constant 0 : index
    %c0_65 = arith.constant 0 : index
    %c0_66 = arith.constant 0 : index
    %89 = vector.load %arg7[%c0_64, %c0_65, %c0_66] : memref<5x320x256xbf16, #tpu.memory_space<vmem>>, vector<1x320x256xbf16>
    %90 = vector.shape_cast %89 : vector<1x320x256xbf16> to vector<320x256xbf16>
    %cst_67 = arith.constant dense<0.000000e+00> : vector<2x256xf32>
    %91 = tpu.matmul %88, %90, %cst_67 {dimension_numbers = #tpu.dot_dimension_numbers<[1], [0], [0], [1], [0, 0, 1, 1], [], []>} : vector<2x320xbf16>, vector<320x256xbf16>, vector<2x256xf32> -> vector<2x256xf32>
    %92 = vector.extract_strided_slice %86 {offsets = [2, 0], sizes = [2, 320], strides = [1, 1]} : vector<10x320xf32> to vector<2x320xf32>
    %93 = arith.truncf %92 : vector<2x320xf32> to vector<2x320xbf16>
    %c1_68 = arith.constant 1 : index
    %c0_69 = arith.constant 0 : index
    %c0_70 = arith.constant 0 : index
    %94 = vector.load %arg7[%c1_68, %c0_69, %c0_70] : memref<5x320x256xbf16, #tpu.memory_space<vmem>>, vector<1x320x256xbf16>
    %95 = vector.shape_cast %94 : vector<1x320x256xbf16> to vector<320x256xbf16>
    %cst_71 = arith.constant dense<0.000000e+00> : vector<2x256xf32>
    %96 = tpu.matmul %93, %95, %cst_71 {dimension_numbers = #tpu.dot_dimension_numbers<[1], [0], [0], [1], [0, 0, 1, 1], [], []>} : vector<2x320xbf16>, vector<320x256xbf16>, vector<2x256xf32> -> vector<2x256xf32>
    %97 = vector.extract_strided_slice %86 {offsets = [4, 0], sizes = [2, 320], strides = [1, 1]} : vector<10x320xf32> to vector<2x320xf32>
    %98 = arith.truncf %97 : vector<2x320xf32> to vector<2x320xbf16>
    %c2_72 = arith.constant 2 : index
    %c0_73 = arith.constant 0 : index
    %c0_74 = arith.constant 0 : index
    %99 = vector.load %arg7[%c2_72, %c0_73, %c0_74] : memref<5x320x256xbf16, #tpu.memory_space<vmem>>, vector<1x320x256xbf16>
    %100 = vector.shape_cast %99 : vector<1x320x256xbf16> to vector<320x256xbf16>
    %cst_75 = arith.constant dense<0.000000e+00> : vector<2x256xf32>
    %101 = tpu.matmul %98, %100, %cst_75 {dimension_numbers = #tpu.dot_dimension_numbers<[1], [0], [0], [1], [0, 0, 1, 1], [], []>} : vector<2x320xbf16>, vector<320x256xbf16>, vector<2x256xf32> -> vector<2x256xf32>
    %102 = arith.addf %91, %101 : vector<2x256xf32>
    %103 = vector.extract_strided_slice %86 {offsets = [6, 0], sizes = [2, 320], strides = [1, 1]} : vector<10x320xf32> to vector<2x320xf32>
    %104 = arith.truncf %103 : vector<2x320xf32> to vector<2x320xbf16>
    %c3_76 = arith.constant 3 : index
    %c0_77 = arith.constant 0 : index
    %c0_78 = arith.constant 0 : index
    %105 = vector.load %arg7[%c3_76, %c0_77, %c0_78] : memref<5x320x256xbf16, #tpu.memory_space<vmem>>, vector<1x320x256xbf16>
    %106 = vector.shape_cast %105 : vector<1x320x256xbf16> to vector<320x256xbf16>
    %cst_79 = arith.constant dense<0.000000e+00> : vector<2x256xf32>
    %107 = tpu.matmul %104, %106, %cst_79 {dimension_numbers = #tpu.dot_dimension_numbers<[1], [0], [0], [1], [0, 0, 1, 1], [], []>} : vector<2x320xbf16>, vector<320x256xbf16>, vector<2x256xf32> -> vector<2x256xf32>
    %108 = arith.addf %96, %107 : vector<2x256xf32>
    %109 = vector.extract_strided_slice %86 {offsets = [8, 0], sizes = [2, 320], strides = [1, 1]} : vector<10x320xf32> to vector<2x320xf32>
    %110 = arith.truncf %109 : vector<2x320xf32> to vector<2x320xbf16>
    %c4_80 = arith.constant 4 : index
    %c0_81 = arith.constant 0 : index
    %c0_82 = arith.constant 0 : index
    %111 = vector.load %arg7[%c4_80, %c0_81, %c0_82] : memref<5x320x256xbf16, #tpu.memory_space<vmem>>, vector<1x320x256xbf16>
    %112 = vector.shape_cast %111 : vector<1x320x256xbf16> to vector<320x256xbf16>
    %cst_83 = arith.constant dense<0.000000e+00> : vector<2x256xf32>
    %113 = tpu.matmul %110, %112, %cst_83 {dimension_numbers = #tpu.dot_dimension_numbers<[1], [0], [0], [1], [0, 0, 1, 1], [], []>} : vector<2x320xbf16>, vector<320x256xbf16>, vector<2x256xf32> -> vector<2x256xf32>
    %114 = arith.addf %102, %113 : vector<2x256xf32>
    %115 = arith.addf %114, %108 : vector<2x256xf32>
    %c0_84 = arith.constant 0 : index
    %c0_85 = arith.constant 0 : index
    %116 = vector.load %arg8[%c0_84, %c0_85] : memref<1x256xf32, #tpu.memory_space<vmem>>, vector<1x256xf32>
    %117 = vector.broadcast %116 : vector<1x256xf32> to vector<2x256xf32>
    %118 = arith.addf %115, %117 : vector<2x256xf32>
    %cst_86 = arith.constant 0.000000e+00 : f32
    %119 = vector.broadcast %cst_86 : f32 to vector<2x256xf32>
    %120 = arith.maximumf %118, %119 : vector<2x256xf32>
    %121 = arith.truncf %120 : vector<2x256xf32> to vector<2x256xbf16>
    %c0_87 = arith.constant 0 : index
    %c0_88 = arith.constant 0 : index
    %122 = vector.load %arg9[%c0_87, %c0_88] : memref<256x128xbf16, #tpu.memory_space<vmem>>, vector<256x128xbf16>
    %cst_89 = arith.constant dense<0.000000e+00> : vector<2x128xf32>
    %123 = tpu.matmul %121, %122, %cst_89 {dimension_numbers = #tpu.dot_dimension_numbers<[1], [0], [0], [1], [0, 0, 1, 1], [], []>} : vector<2x256xbf16>, vector<256x128xbf16>, vector<2x128xf32> -> vector<2x128xf32>
    %c0_90 = arith.constant 0 : index
    %c0_91 = arith.constant 0 : index
    %124 = vector.load %arg10[%c0_90, %c0_91] : memref<1x128xf32, #tpu.memory_space<vmem>>, vector<1x128xf32>
    %125 = vector.broadcast %124 : vector<1x128xf32> to vector<2x128xf32>
    %126 = arith.addf %123, %125 : vector<2x128xf32>
    %c0_92 = arith.constant 0 : index
    %c0_93 = arith.constant 0 : index
    %127 = vector.load %arg11[%c0_92, %c0_93] : memref<2x128xf32, #tpu.memory_space<vmem>>, vector<2x128xf32>
    tpu.vector_store %arg11[%c0_92, %c0_93], %126 {strides = array<i32>} : memref<2x128xf32, #tpu.memory_space<vmem>>, vector<2x128xf32>,
    return
  }
  func.func @transform_0(%arg0: i32) -> (i32, i32) {
    %c0_i32 = arith.constant 0 : i32
    %c0_i32_0 = arith.constant 0 : i32
    %c0_i32_1 = arith.constant 0 : i32
    return %c0_i32, %c0_i32_0 : i32, i32
  }
  func.func @transform_1(%arg0: i32) -> (i32, i32) {
    %c0_i32 = arith.constant 0 : i32
    %c0_i32_0 = arith.constant 0 : i32
    %c0_i32_1 = arith.constant 0 : i32
    return %c0_i32, %c0_i32_0 : i32, i32
  }
  func.func @transform_2(%arg0: i32) -> (i32, i32, i32) {
    %c0_i32 = arith.constant 0 : i32
    %c0_i32_0 = arith.constant 0 : i32
    %c0_i32_1 = arith.constant 0 : i32
    %c0_i32_2 = arith.constant 0 : i32
    return %c0_i32, %c0_i32_0, %c0_i32_1 : i32, i32, i32
  }
  func.func @transform_3(%arg0: i32) -> (i32, i32) {
    %c0_i32 = arith.constant 0 : i32
    %c0_i32_0 = arith.constant 0 : i32
    %c0_i32_1 = arith.constant 0 : i32
    return %c0_i32, %c0_i32_0 : i32, i32
  }
  func.func @transform_4(%arg0: i32) -> (i32, i32, i32) {
    %c0_i32 = arith.constant 0 : i32
    %c0_i32_0 = arith.constant 0 : i32
    %c0_i32_1 = arith.constant 0 : i32
    %c0_i32_2 = arith.constant 0 : i32
    return %c0_i32, %c0_i32_0, %c0_i32_1 : i32, i32, i32
  }
  func.func @transform_5(%arg0: i32) -> (i32, i32) {
    %c0_i32 = arith.constant 0 : i32
    %c0_i32_0 = arith.constant 0 : i32
    %c0_i32_1 = arith.constant 0 : i32
    return %c0_i32, %c0_i32_0 : i32, i32
  }
  func.func @transform_6(%arg0: i32) -> (i32, i32, i32) {
    %c0_i32 = arith.constant 0 : i32
    %c0_i32_0 = arith.constant 0 : i32
    %c0_i32_1 = arith.constant 0 : i32
    %c0_i32_2 = arith.constant 0 : i32
    return %c0_i32, %c0_i32_0, %c0_i32_1 : i32, i32, i32
  }
  func.func @transform_7(%arg0: i32) -> (i32, i32) {
    %c0_i32 = arith.constant 0 : i32
    %c0_i32_0 = arith.constant 0 : i32
    %c0_i32_1 = arith.constant 0 : i32
    return %c0_i32, %c0_i32_0 : i32, i32
  }
  func.func @transform_8(%arg0: i32) -> (i32, i32) {
    %c0_i32 = arith.constant 0 : i32
    %c0_i32_0 = arith.constant 0 : i32
    %c0_i32_1 = arith.constant 0 : i32
    return %c0_i32, %c0_i32_0 : i32, i32
  }
  func.func @transform_9(%arg0: i32) -> (i32, i32) {
    %c0_i32 = arith.constant 0 : i32
    %c0_i32_0 = arith.constant 0 : i32
    %c0_i32_1 = arith.constant 0 : i32
    return %c0_i32, %c0_i32_0 : i32, i32
  }
  func.func @transform_10(%arg0: i32) -> (i32, i32) {
    %c0_i32 = arith.constant 0 : i32
    %c0_i32_0 = arith.constant 0 : i32
    %c0_i32_1 = arith.constant 0 : i32
    return %c0_i32, %c0_i32_0 : i32, i32
  }
}

</mosaic_0001>

<llo_original>
// kernel: deep_network_forward.1
$region0: #{deep_network_forward.1}
  #allocation0 [shape = 'u32[]', space=smem, size = 0x4, offset = 0x4, fixed_abs, tag = 'smem constant byte address 0x4 - core index']
  #allocation1 [shape = 'u32[144,128]{1,0:T(1,128)}', space=vmem, size = 0x12000, scoped, tag = 'internal scratch']
  #allocation2 [shape = 'f32[24,384]{1,0:T(8,128)}', space=vmem, size = 0x9000, scoped, tag = 'scratch operand']
  #allocation3 [shape = 'f32[14,448]{1,0:T(8,128)}', space=vmem, size = 0x8000, scoped, tag = 'scratch operand']
  %s0 = inlined_call_operand.vmem [shape: bf16[960,257], index: 0, kind: input, shape index: {}]
  %s1 = inlined_call_operand.vmem [shape: bf16[257,32], index: 1, kind: input, shape index: {}]
  %s2 = inlined_call_operand.vmem [shape: bf16[4,384,320], index: 2, kind: input, shape index: {}]
  %s3 = inlined_call_operand.vmem [shape: f32[1,320], index: 3, kind: input, shape index: {}]
  %s4 = inlined_call_operand.vmem [shape: bf16[3,448,320], index: 4, kind: input, shape index: {}]
  %s5 = inlined_call_operand.vmem [shape: f32[1,320], index: 5, kind: input, shape index: {}]
  %s6 = inlined_call_operand.vmem [shape: bf16[5,320,256], index: 6, kind: input, shape index: {}]
  %s7 = inlined_call_operand.vmem [shape: f32[1,256], index: 7, kind: input, shape index: {}]
  %s8 = inlined_call_operand.vmem [shape: bf16[256,128], index: 8, kind: input, shape index: {}]
  %s9 = inlined_call_operand.vmem [shape: f32[1,128], index: 9, kind: input, shape index: {}]
  %s10 = inlined_call_operand.hbm [shape: f32[2,128], index: 10, kind: output, shape index: {}]
  %s11 = sld [smem:[#allocation0]]
  $region50: #{deep_network_forward.1} parent=0
    _
  %s13 = ssub.s32 1, %s11
  %s14 = scalar_select 0, %s13, %s11
  $region1: #{deep_network_forward.1} parent=0
    #allocation4 [shape = 'u8[1024]{0}', space=vmem, size = 0x400, scoped, tag = 'output window, operand 0, single buffered']
    #allocation5 [shape = 's32[1]{0}', space=sflag, size = 0x4, scoped, tag = 'scoped memory for deep_network_forward.1']
    %15 = vsyncpa [#allocation5], 0
    // Predicated region
    $region2: #{deep_network_forward.1} parent=1 // pred_check
      _
    $region3: #{deep_network_forward.1} parent=1 // pred_check_branch
      %17 = sbr.rel (0) target = $region5
    $region4: #{deep_network_forward.1} parent=1 // pred_region
      _
    $region5: #{deep_network_forward.1} parent=1 // pred_fallthru
      _
    // Predicated region
    $region6: #{deep_network_forward.1} parent=1 // pred_check
      _
    $region7: #{deep_network_forward.1} parent=1 // pred_check_branch
      %19 = sbr.rel (0) target = $region9
    $region8: #{deep_network_forward.1} parent=1 // pred_region
      _
    $region9: #{deep_network_forward.1} parent=1 // pred_fallthru
      _
    // Predicated region
    $region10: #{deep_network_forward.1} parent=1 // pred_check
      _
    $region11: #{deep_network_forward.1} parent=1 // pred_check_branch
      %21 = sbr.rel (0) target = $region13
    $region12: #{deep_network_forward.1} parent=1 // pred_region
      _
    $region13: #{deep_network_forward.1} parent=1 // pred_fallthru
      _
    // Predicated region
    $region14: #{deep_network_forward.1} parent=1 // pred_check
      _
    $region15: #{deep_network_forward.1} parent=1 // pred_check_branch
      %23 = sbr.rel (0) target = $region17
    $region16: #{deep_network_forward.1} parent=1 // pred_region
      _
    $region17: #{deep_network_forward.1} parent=1 // pred_fallthru
      _
    // Predicated region
    $region18: #{deep_network_forward.1} parent=1 // pred_check
      _
    $region19: #{deep_network_forward.1} parent=1 // pred_check_branch
      %25 = sbr.rel (0) target = $region21
    $region20: #{deep_network_forward.1} parent=1 // pred_region
      _
    $region21: #{deep_network_forward.1} parent=1 // pred_fallthru
      _
    // Predicated region
    $region22: #{deep_network_forward.1} parent=1 // pred_check
      _
    $region23: #{deep_network_forward.1} parent=1 // pred_check_branch
      %27 = sbr.rel (0) target = $region25
    $region24: #{deep_network_forward.1} parent=1 // pred_region
      _
    $region25: #{deep_network_forward.1} parent=1 // pred_fallthru
      _
    // Predicated region
    $region26: #{deep_network_forward.1} parent=1 // pred_check
      _
    $region27: #{deep_network_forward.1} parent=1 // pred_check_branch
      %29 = sbr.rel (0) target = $region29
    $region28: #{deep_network_forward.1} parent=1 // pred_region
      _
    $region29: #{deep_network_forward.1} parent=1 // pred_fallthru
      _
    // Predicated region
    $region30: #{deep_network_forward.1} parent=1 // pred_check
      _
    $region31: #{deep_network_forward.1} parent=1 // pred_check_branch
      %31 = sbr.rel (0) target = $region33
    $region32: #{deep_network_forward.1} parent=1 // pred_region
      _
    $region33: #{deep_network_forward.1} parent=1 // pred_fallthru
      _
    // Predicated region
    $region34: #{deep_network_forward.1} parent=1 // pred_check
      _
    $region35: #{deep_network_forward.1} parent=1 // pred_check_branch
      %33 = sbr.rel (0) target = $region37
    $region36: #{deep_network_forward.1} parent=1 // pred_region
      _
    $region37: #{deep_network_forward.1} parent=1 // pred_fallthru
      _
    // Predicated region
    $region38: #{deep_network_forward.1} parent=1 // pred_check
      _
    $region39: #{deep_network_forward.1} parent=1 // pred_check_branch
      %35 = sbr.rel (0) target = $region41
    $region40: #{deep_network_forward.1} parent=1 // pred_region
      _
    $region41: #{deep_network_forward.1} parent=1 // pred_fallthru
      _
    %v37 = vld [vmem:[%s0] sm:$0xff]
    %v38 = vld [vmem:[%s0 + $0x8] sm:$0xf]
    %v39 = vld [vmem:[%s0 + $0xc] sm:$0xff]
    %v40 = vld [vmem:[%s0 + $0x14] sm:$0xf]
    %v41 = vld [vmem:[%s0 + $0x18] sm:$0xff]
    %v42 = vld [vmem:[%s0 + $0x20] sm:$0xf]
    %v43 = vld [vmem:[%s0 + $0x24] sm:$0xff]
    %v44 = vld [vmem:[%s0 + $0x2c] sm:$0xf]
    %v45 = vld [vmem:[%s0 + $0x30] sm:$0xff]
    %v46 = vld [vmem:[%s0 + $0x38] sm:$0xf]
    %v47 = vld [vmem:[%s0 + $0x3c] sm:$0xff]
    %v48 = vld [vmem:[%s0 + $0x44] sm:$0xf]
    %v49 = vld [vmem:[%s0 + $0x48] sm:$0xff]
    %v50 = vld [vmem:[%s0 + $0x50] sm:$0xf]
    %v51 = vld [vmem:[%s0 + $0x54] sm:$0xff]
    %v52 = vld [vmem:[%s0 + $0x5c] sm:$0xf]
    %v53 = vld [vmem:[%s0 + $0x60] sm:$0xff]
    %v54 = vld [vmem:[%s0 + $0x68] sm:$0xf]
    %v55 = vld [vmem:[%s0 + $0x6c] sm:$0xff]
    %v56 = vld [vmem:[%s0 + $0x74] sm:$0xf]
    %v57 = vld [vmem:[%s0 + $0x78] sm:$0xff]
    %v58 = vld [vmem:[%s0 + $0x80] sm:$0xf]
    %v59 = vld [vmem:[%s0 + $0x84] sm:$0xff]
    %v60 = vld [vmem:[%s0 + $0x8c] sm:$0xf]
    %v61 = vld [vmem:[%s0 + $0x90] sm:$0xff]
    %v62 = vld [vmem:[%s0 + $0x98] sm:$0xf]
    %v63 = vld [vmem:[%s0 + $0x9c] sm:$0xff]
    %v64 = vld [vmem:[%s0 + $0xa4] sm:$0xf]
    %v65 = vld [vmem:[%s0 + $0xa8] sm:$0xff]
    %v66 = vld [vmem:[%s0 + $0xb0] sm:$0xf]
    %v67 = vld [vmem:[%s0 + $0xb4] sm:$0xff]
    %v68 = vld [vmem:[%s0 + $0xbc] sm:$0xf]
    %v69 = vld [vmem:[%s0 + $0xc0] sm:$0xff]
    %v70 = vld [vmem:[%s0 + $0xc8] sm:$0xf]
    %v71 = vld [vmem:[%s0 + $0xcc] sm:$0xff]
    %v72 = vld [vmem:[%s0 + $0xd4] sm:$0xf]
    %v73 = vld [vmem:[%s0 + $0xd8] sm:$0xff]
    %v74 = vld [vmem:[%s0 + $0xe0] sm:$0xf]
    %v75 = vld [vmem:[%s0 + $0xe4] sm:$0xff]
    %v76 = vld [vmem:[%s0 + $0xec] sm:$0xf]
    %v77 = vld [vmem:[%s0 + $0xf0] sm:$0xff]
    %v78 = vld [vmem:[%s0 + $0xf8] sm:$0xf]
    %v79 = vld [vmem:[%s0 + $0xfc] sm:$0xff]
    %v80 = vld [vmem:[%s0 + $0x104] sm:$0xf]
    %v81 = vld [vmem:[%s0 + $0x108] sm:$0xff]
    %v82 = vld [vmem:[%s0 + $0x110] sm:$0xf]
    %v83 = vld [vmem:[%s0 + $0x114] sm:$0xff]
    %v84 = vld [vmem:[%s0 + $0x11c] sm:$0xf]
    %v85 = vld [vmem:[%s0 + $0x120] sm:$0xff]
    %v86 = vld [vmem:[%s0 + $0x128] sm:$0xf]
    %v87 = vld [vmem:[%s0 + $0x12c] sm:$0xff]
    %v88 = vld [vmem:[%s0 + $0x134] sm:$0xf]
    %v89 = vld [vmem:[%s0 + $0x138] sm:$0xff]
    %v90 = vld [vmem:[%s0 + $0x140] sm:$0xf]
    %v91 = vld [vmem:[%s0 + $0x144] sm:$0xff]
    %v92 = vld [vmem:[%s0 + $0x14c] sm:$0xf]
    %v93 = vld [vmem:[%s0 + $0x150] sm:$0xff]
    %v94 = vld [vmem:[%s0 + $0x158] sm:$0xf]
    %v95 = vld [vmem:[%s0 + $0x15c] sm:$0xff]
    %v96 = vld [vmem:[%s0 + $0x164] sm:$0xf]
    %v97 = vld [vmem:[%s0 + $0x168] sm:$0xff]
    %v98 = vld [vmem:[%s0 + $0x170] sm:$0xf]
    %v99 = vld [vmem:[%s0 + $0x174] sm:$0xff]
    %v100 = vld [vmem:[%s0 + $0x17c] sm:$0xf]
    %v101 = vld [vmem:[%s0 + $0x180] sm:$0xff]
    %v102 = vld [vmem:[%s0 + $0x188] sm:$0xf]
    %v103 = vld [vmem:[%s0 + $0x18c] sm:$0xff]
    %v104 = vld [vmem:[%s0 + $0x194] sm:$0xf]
    %v105 = vld [vmem:[%s0 + $0x198] sm:$0xff]
    %v106 = vld [vmem:[%s0 + $0x1a0] sm:$0xf]
    %v107 = vld [vmem:[%s0 + $0x1a4] sm:$0xff]
    %v108 = vld [vmem:[%s0 + $0x1ac] sm:$0xf]
    %v109 = vld [vmem:[%s0 + $0x1b0] sm:$0xff]
    %v110 = vld [vmem:[%s0 + $0x1b8] sm:$0xf]
    %v111 = vld [vmem:[%s0 + $0x1bc] sm:$0xff]
    %v112 = vld [vmem:[%s0 + $0x1c4] sm:$0xf]
    %v113 = vld [vmem:[%s0 + $0x1c8] sm:$0xff]
    %v114 = vld [vmem:[%s0 + $0x1d0] sm:$0xf]
    %v115 = vld [vmem:[%s0 + $0x1d4] sm:$0xff]
    %v116 = vld [vmem:[%s0 + $0x1dc] sm:$0xf]
    %v117 = vld [vmem:[%s0 + $0x1e0] sm:$0xff]
    %v118 = vld [vmem:[%s0 + $0x1e8] sm:$0xf]
    %v119 = vld [vmem:[%s0 + $0x1ec] sm:$0xff]
    %v120 = vld [vmem:[%s0 + $0x1f4] sm:$0xf]
    %v121 = vld [vmem:[%s0 + $0x1f8] sm:$0xff]
    %v122 = vld [vmem:[%s0 + $0x200] sm:$0xf]
    %v123 = vld [vmem:[%s0 + $0x204] sm:$0xff]
    %v124 = vld [vmem:[%s0 + $0x20c] sm:$0xf]
    %v125 = vld [vmem:[%s0 + $0x210] sm:$0xff]
    %v126 = vld [vmem:[%s0 + $0x218] sm:$0xf]
    %v127 = vld [vmem:[%s0 + $0x21c] sm:$0xff]
    %v128 = vld [vmem:[%s0 + $0x224] sm:$0xf]
    %v129 = vld [vmem:[%s0 + $0x228] sm:$0xff]
    %v130 = vld [vmem:[%s0 + $0x230] sm:$0xf]
    %v131 = vld [vmem:[%s0 + $0x234] sm:$0xff]
    %v132 = vld [vmem:[%s0 + $0x23c] sm:$0xf]
    %v133 = vld [vmem:[%s0 + $0x240] sm:$0xff]
    %v134 = vld [vmem:[%s0 + $0x248] sm:$0xf]
    %v135 = vld [vmem:[%s0 + $0x24c] sm:$0xff]
    %v136 = vld [vmem:[%s0 + $0x254] sm:$0xf]
    %v137 = vld [vmem:[%s0 + $0x258] sm:$0xff]
    %v138 = vld [vmem:[%s0 + $0x260] sm:$0xf]
    %v139 = vld [vmem:[%s0 + $0x264] sm:$0xff]
    %v140 = vld [vmem:[%s0 + $0x26c] sm:$0xf]
    %v141 = vld [vmem:[%s0 + $0x270] sm:$0xff]
    %v142 = vld [vmem:[%s0 + $0x278] sm:$0xf]
    %v143 = vld [vmem:[%s0 + $0x27c] sm:$0xff]
    %v144 = vld [vmem:[%s0 + $0x284] sm:$0xf]
    %v145 = vld [vmem:[%s0 + $0x288] sm:$0xff]
    %v146 = vld [vmem:[%s0 + $0x290] sm:$0xf]
    %v147 = vld [vmem:[%s0 + $0x294] sm:$0xff]
    %v148 = vld [vmem:[%s0 + $0x29c] sm:$0xf]
    %v149 = vld [vmem:[%s0 + $0x2a0] sm:$0xff]
    %v150 = vld [vmem:[%s0 + $0x2a8] sm:$0xf]
    %v151 = vld [vmem:[%s0 + $0x2ac] sm:$0xff]
    %v152 = vld [vmem:[%s0 + $0x2b4] sm:$0xf]
    %v153 = vld [vmem:[%s0 + $0x2b8] sm:$0xff]
    %v154 = vld [vmem:[%s0 + $0x2c0] sm:$0xf]
    %v155 = vld [vmem:[%s0 + $0x2c4] sm:$0xff]
    %v156 = vld [vmem:[%s0 + $0x2cc] sm:$0xf]
    %v157 = vld [vmem:[%s0 + $0x2d0] sm:$0xff]
    %v158 = vld [vmem:[%s0 + $0x2d8] sm:$0xf]
    %v159 = vld [vmem:[%s0 + $0x2dc] sm:$0xff]
    %v160 = vld [vmem:[%s0 + $0x2e4] sm:$0xf]
    %v161 = vld [vmem:[%s0 + $0x2e8] sm:$0xff]
    %v162 = vld [vmem:[%s0 + $0x2f0] sm:$0xf]
    %v163 = vld [vmem:[%s0 + $0x2f4] sm:$0xff]
    %v164 = vld [vmem:[%s0 + $0x2fc] sm:$0xf]
    %v165 = vld [vmem:[%s0 + $0x300] sm:$0xff]
    %v166 = vld [vmem:[%s0 + $0x308] sm:$0xf]
    %v167 = vld [vmem:[%s0 + $0x30c] sm:$0xff]
    %v168 = vld [vmem:[%s0 + $0x314] sm:$0xf]
    %v169 = vld [vmem:[%s0 + $0x318] sm:$0xff]
    %v170 = vld [vmem:[%s0 + $0x320] sm:$0xf]
    %v171 = vld [vmem:[%s0 + $0x324] sm:$0xff]
    %v172 = vld [vmem:[%s0 + $0x32c] sm:$0xf]
    %v173 = vld [vmem:[%s0 + $0x330] sm:$0xff]
    %v174 = vld [vmem:[%s0 + $0x338] sm:$0xf]
    %v175 = vld [vmem:[%s0 + $0x33c] sm:$0xff]
    %v176 = vld [vmem:[%s0 + $0x344] sm:$0xf]
    %v177 = vld [vmem:[%s0 + $0x348] sm:$0xff]
    %v178 = vld [vmem:[%s0 + $0x350] sm:$0xf]
    %v179 = vld [vmem:[%s0 + $0x354] sm:$0xff]
    %v180 = vld [vmem:[%s0 + $0x35c] sm:$0xf]
    %v181 = vld [vmem:[%s0 + $0x360] sm:$0xff]
    %v182 = vld [vmem:[%s0 + $0x368] sm:$0xf]
    %v183 = vld [vmem:[%s0 + $0x36c] sm:$0xff]
    %v184 = vld [vmem:[%s0 + $0x374] sm:$0xf]
    %v185 = vld [vmem:[%s0 + $0x378] sm:$0xff]
    %v186 = vld [vmem:[%s0 + $0x380] sm:$0xf]
    %v187 = vld [vmem:[%s0 + $0x384] sm:$0xff]
    %v188 = vld [vmem:[%s0 + $0x38c] sm:$0xf]
    %v189 = vld [vmem:[%s0 + $0x390] sm:$0xff]
    %v190 = vld [vmem:[%s0 + $0x398] sm:$0xf]
    %v191 = vld [vmem:[%s0 + $0x39c] sm:$0xff]
    %v192 = vld [vmem:[%s0 + $0x3a4] sm:$0xf]
    %v193 = vld [vmem:[%s0 + $0x3a8] sm:$0xff]
    %v194 = vld [vmem:[%s0 + $0x3b0] sm:$0xf]
    %v195 = vld [vmem:[%s0 + $0x3b4] sm:$0xff]
    %v196 = vld [vmem:[%s0 + $0x3bc] sm:$0xf]
    %v197 = vld [vmem:[%s0 + $0x3c0] sm:$0xff]
    %v198 = vld [vmem:[%s0 + $0x3c8] sm:$0xf]
    %v199 = vld [vmem:[%s0 + $0x3cc] sm:$0xff]
    %v200 = vld [vmem:[%s0 + $0x3d4] sm:$0xf]
    %v201 = vld [vmem:[%s0 + $0x3d8] sm:$0xff]
    %v202 = vld [vmem:[%s0 + $0x3e0] sm:$0xf]
    %v203 = vld [vmem:[%s0 + $0x3e4] sm:$0xff]
    %v204 = vld [vmem:[%s0 + $0x3ec] sm:$0xf]
    %v205 = vld [vmem:[%s0 + $0x3f0] sm:$0xff]
    %v206 = vld [vmem:[%s0 + $0x3f8] sm:$0xf]
    %v207 = vld [vmem:[%s0 + $0x3fc] sm:$0xff]
    %v208 = vld [vmem:[%s0 + $0x404] sm:$0xf]
    %v209 = vld [vmem:[%s0 + $0x408] sm:$0xff]
    %v210 = vld [vmem:[%s0 + $0x410] sm:$0xf]
    %v211 = vld [vmem:[%s0 + $0x414] sm:$0xff]
    %v212 = vld [vmem:[%s0 + $0x41c] sm:$0xf]
    %v213 = vld [vmem:[%s0 + $0x420] sm:$0xff]
    %v214 = vld [vmem:[%s0 + $0x428] sm:$0xf]
    %v215 = vld [vmem:[%s0 + $0x42c] sm:$0xff]
    %v216 = vld [vmem:[%s0 + $0x434] sm:$0xf]
    %v217 = vld [vmem:[%s0 + $0x438] sm:$0xff]
    %v218 = vld [vmem:[%s0 + $0x440] sm:$0xf]
    %v219 = vld [vmem:[%s0 + $0x444] sm:$0xff]
    %v220 = vld [vmem:[%s0 + $0x44c] sm:$0xf]
    %v221 = vld [vmem:[%s0 + $0x450] sm:$0xff]
    %v222 = vld [vmem:[%s0 + $0x458] sm:$0xf]
    %v223 = vld [vmem:[%s0 + $0x45c] sm:$0xff]
    %v224 = vld [vmem:[%s0 + $0x464] sm:$0xf]
    %v225 = vld [vmem:[%s0 + $0x468] sm:$0xff]
    %v226 = vld [vmem:[%s0 + $0x470] sm:$0xf]
    %v227 = vld [vmem:[%s0 + $0x474] sm:$0xff]
    %v228 = vld [vmem:[%s0 + $0x47c] sm:$0xf]
    %v229 = vld [vmem:[%s0 + $0x480] sm:$0xff]
    %v230 = vld [vmem:[%s0 + $0x488] sm:$0xf]
    %v231 = vld [vmem:[%s0 + $0x48c] sm:$0xff]
    %v232 = vld [vmem:[%s0 + $0x494] sm:$0xf]
    %v233 = vld [vmem:[%s0 + $0x498] sm:$0xff]
    %v234 = vld [vmem:[%s0 + $0x4a0] sm:$0xf]
    %v235 = vld [vmem:[%s0 + $0x4a4] sm:$0xff]
    %v236 = vld [vmem:[%s0 + $0x4ac] sm:$0xf]
    %v237 = vld [vmem:[%s0 + $0x4b0] sm:$0xff]
    %v238 = vld [vmem:[%s0 + $0x4b8] sm:$0xf]
    %v239 = vld [vmem:[%s0 + $0x4bc] sm:$0xff]
    %v240 = vld [vmem:[%s0 + $0x4c4] sm:$0xf]
    %v241 = vld [vmem:[%s0 + $0x4c8] sm:$0xff]
    %v242 = vld [vmem:[%s0 + $0x4d0] sm:$0xf]
    %v243 = vld [vmem:[%s0 + $0x4d4] sm:$0xff]
    %v244 = vld [vmem:[%s0 + $0x4dc] sm:$0xf]
    %v245 = vld [vmem:[%s0 + $0x4e0] sm:$0xff]
    %v246 = vld [vmem:[%s0 + $0x4e8] sm:$0xf]
    %v247 = vld [vmem:[%s0 + $0x4ec] sm:$0xff]
    %v248 = vld [vmem:[%s0 + $0x4f4] sm:$0xf]
    %v249 = vld [vmem:[%s0 + $0x4f8] sm:$0xff]
    %v250 = vld [vmem:[%s0 + $0x500] sm:$0xf]
    %v251 = vld [vmem:[%s0 + $0x504] sm:$0xff]
    %v252 = vld [vmem:[%s0 + $0x50c] sm:$0xf]
    %v253 = vld [vmem:[%s0 + $0x510] sm:$0xff]
    %v254 = vld [vmem:[%s0 + $0x518] sm:$0xf]
    %v255 = vld [vmem:[%s0 + $0x51c] sm:$0xff]
    %v256 = vld [vmem:[%s0 + $0x524] sm:$0xf]
    %v257 = vld [vmem:[%s0 + $0x528] sm:$0xff]
    %v258 = vld [vmem:[%s0 + $0x530] sm:$0xf]
    %v259 = vld [vmem:[%s0 + $0x534] sm:$0xff]
    %v260 = vld [vmem:[%s0 + $0x53c] sm:$0xf]
    %v261 = vld [vmem:[%s0 + $0x540] sm:$0xff]
    %v262 = vld [vmem:[%s0 + $0x548] sm:$0xf]
    %v263 = vld [vmem:[%s0 + $0x54c] sm:$0xff]
    %v264 = vld [vmem:[%s0 + $0x554] sm:$0xf]
    %v265 = vld [vmem:[%s0 + $0x558] sm:$0xff]
    %v266 = vld [vmem:[%s0 + $0x560] sm:$0xf]
    %v267 = vld [vmem:[%s0 + $0x564] sm:$0xff]
    %v268 = vld [vmem:[%s0 + $0x56c] sm:$0xf]
    %v269 = vld [vmem:[%s0 + $0x570] sm:$0xff]
    %v270 = vld [vmem:[%s0 + $0x578] sm:$0xf]
    %v271 = vld [vmem:[%s0 + $0x57c] sm:$0xff]
    %v272 = vld [vmem:[%s0 + $0x584] sm:$0xf]
    %v273 = vld [vmem:[%s0 + $0x588] sm:$0xff]
    %v274 = vld [vmem:[%s0 + $0x590] sm:$0xf]
    %v275 = vld [vmem:[%s0 + $0x594] sm:$0xff]
    %v276 = vld [vmem:[%s0 + $0x59c] sm:$0xf]
    %v277 = vld [vmem:[%s1] sm:$0xf]
    %v278 = vld [vmem:[%s1 + $0x4] sm:$0xf]
    %v279 = vld [vmem:[%s1 + $0x8] sm:$0xf]
    %v280 = vld [vmem:[%s1 + $0xc] sm:$0xf]
    %v281 = vld [vmem:[%s1 + $0x10] sm:$0xf]
    %v282 = vld [vmem:[%s1 + $0x14] sm:$0xf]
    %v283 = vld [vmem:[%s1 + $0x18] sm:$0xf]
    %v284 = vld [vmem:[%s1 + $0x1c] sm:$0xf]
    %v285 = vld [vmem:[%s1 + $0x20] sm:$0xf]
    %v286 = vld [vmem:[%s1 + $0x24] sm:$0xf]
    %v287 = vld [vmem:[%s1 + $0x28] sm:$0xf]
    %v288 = vld [vmem:[%s1 + $0x2c] sm:$0xf]
    %v289 = vld [vmem:[%s1 + $0x30] sm:$0xf]
    %v290 = vld [vmem:[%s1 + $0x34] sm:$0xf]
    %v291 = vld [vmem:[%s1 + $0x38] sm:$0xf]
    %v292 = vld [vmem:[%s1 + $0x3c] sm:$0xf]
    %v293 = vld [vmem:[%s1 + $0x40] sm:$0xf]
    %v294 = vld [vmem:[%s1 + $0x44] sm:$0xf]
    %v295 = vld [vmem:[%s1 + $0x48] sm:$0xf]
    %v296 = vld [vmem:[%s1 + $0x4c] sm:$0xf]
    %v297 = vld [vmem:[%s1 + $0x50] sm:$0xf]
    %v298 = vld [vmem:[%s1 + $0x54] sm:$0xf]
    %v299 = vld [vmem:[%s1 + $0x58] sm:$0xf]
    %v300 = vld [vmem:[%s1 + $0x5c] sm:$0xf]
    %v301 = vld [vmem:[%s1 + $0x60] sm:$0xf]
    %v302 = vld [vmem:[%s1 + $0x64] sm:$0xf]
    %v303 = vld [vmem:[%s1 + $0x68] sm:$0xf]
    %v304 = vld [vmem:[%s1 + $0x6c] sm:$0xf]
    %v305 = vld [vmem:[%s1 + $0x70] sm:$0xf]
    %v306 = vld [vmem:[%s1 + $0x74] sm:$0xf]
    %v307 = vld [vmem:[%s1 + $0x78] sm:$0xf]
    %v308 = vld [vmem:[%s1 + $0x7c] sm:$0xf]
    %v309 = vld [vmem:[%s1 + $0x80] sm:$0x1]
    %v550 = vunpack.c.l.b16 %v37
    %v551 = vunpack.c.h.b16 %v37
    %v552 = vunpack.c.l.b16 %v38
    %v553 = vunpack.c.l.b16 %v39
    %v554 = vunpack.c.h.b16 %v39
    %v555 = vunpack.c.l.b16 %v40
    %v556 = vunpack.c.l.b16 %v41
    %v557 = vunpack.c.h.b16 %v41
    %v558 = vunpack.c.l.b16 %v42
    %v559 = vunpack.c.l.b16 %v43
    %v560 = vunpack.c.h.b16 %v43
    %v561 = vunpack.c.l.b16 %v44
    %v562 = vunpack.c.l.b16 %v45
    %v563 = vunpack.c.h.b16 %v45
    %v564 = vunpack.c.l.b16 %v46
    %v565 = vunpack.c.l.b16 %v47
    %v566 = vunpack.c.h.b16 %v47
    %v567 = vunpack.c.l.b16 %v48
    %v568 = vunpack.c.l.b16 %v49
    %v569 = vunpack.c.h.b16 %v49
    %v570 = vunpack.c.l.b16 %v50
    %v571 = vunpack.c.l.b16 %v51
    %v572 = vunpack.c.h.b16 %v51
    %v573 = vunpack.c.l.b16 %v52
    %v574 = vunpack.c.l.b16 %v53
    %v575 = vunpack.c.h.b16 %v53
    %v576 = vunpack.c.l.b16 %v54
    %v577 = vunpack.c.l.b16 %v55
    %v578 = vunpack.c.h.b16 %v55
    %v579 = vunpack.c.l.b16 %v56
    %v580 = vunpack.c.l.b16 %v57
    %v581 = vunpack.c.h.b16 %v57
    %v582 = vunpack.c.l.b16 %v58
    %v583 = vunpack.c.l.b16 %v59
    %v584 = vunpack.c.h.b16 %v59
    %v585 = vunpack.c.l.b16 %v60
    %v586 = vunpack.c.l.b16 %v61
    %v587 = vunpack.c.h.b16 %v61
    %v588 = vunpack.c.l.b16 %v62
    %v589 = vunpack.c.l.b16 %v63
    %v590 = vunpack.c.h.b16 %v63
    %v591 = vunpack.c.l.b16 %v64
    %v592 = vunpack.c.l.b16 %v65
    %v593 = vunpack.c.h.b16 %v65
    %v594 = vunpack.c.l.b16 %v66
    %v595 = vunpack.c.l.b16 %v67
    %v596 = vunpack.c.h.b16 %v67
    %v597 = vunpack.c.l.b16 %v68
    %v598 = vunpack.c.l.b16 %v69
    %v599 = vunpack.c.h.b16 %v69
    %v600 = vunpack.c.l.b16 %v70
    %v601 = vunpack.c.l.b16 %v71
    %v602 = vunpack.c.h.b16 %v71
    %v603 = vunpack.c.l.b16 %v72
    %v604 = vunpack.c.l.b16 %v73
    %v605 = vunpack.c.h.b16 %v73
    %v606 = vunpack.c.l.b16 %v74
    %v607 = vunpack.c.l.b16 %v75
    %v608 = vunpack.c.h.b16 %v75
    %v609 = vunpack.c.l.b16 %v76
    %v610 = vunpack.c.l.b16 %v77
    %v611 = vunpack.c.h.b16 %v77
    %v612 = vunpack.c.l.b16 %v78
    %v613 = vunpack.c.l.b16 %v79
    %v614 = vunpack.c.h.b16 %v79
    %v615 = vunpack.c.l.b16 %v80
    %v616 = vunpack.c.l.b16 %v81
    %v617 = vunpack.c.h.b16 %v81
    %v618 = vunpack.c.l.b16 %v82
    %v619 = vunpack.c.l.b16 %v83
    %v620 = vunpack.c.h.b16 %v83
    %v621 = vunpack.c.l.b16 %v84
    %v622 = vunpack.c.l.b16 %v85
    %v623 = vunpack.c.h.b16 %v85
    %v624 = vunpack.c.l.b16 %v86
    %v625 = vunpack.c.l.b16 %v87
    %v626 = vunpack.c.h.b16 %v87
    %v627 = vunpack.c.l.b16 %v88
    %v628 = vunpack.c.l.b16 %v89
    %v629 = vunpack.c.h.b16 %v89
    %v630 = vunpack.c.l.b16 %v90
    %v631 = vunpack.c.l.b16 %v91
    %v632 = vunpack.c.h.b16 %v91
    %v633 = vunpack.c.l.b16 %v92
    %v634 = vunpack.c.l.b16 %v93
    %v635 = vunpack.c.h.b16 %v93
    %v636 = vunpack.c.l.b16 %v94
    %v637 = vunpack.c.l.b16 %v95
    %v638 = vunpack.c.h.b16 %v95
    %v639 = vunpack.c.l.b16 %v96
    %v640 = vunpack.c.l.b16 %v97
    %v641 = vunpack.c.h.b16 %v97
    %v642 = vunpack.c.l.b16 %v98
    %v643 = vunpack.c.l.b16 %v99
    %v644 = vunpack.c.h.b16 %v99
    %v645 = vunpack.c.l.b16 %v100
    %v646 = vunpack.c.l.b16 %v101
    %v647 = vunpack.c.h.b16 %v101
    %v648 = vunpack.c.l.b16 %v102
    %v649 = vunpack.c.l.b16 %v103
    %v650 = vunpack.c.h.b16 %v103
    %v651 = vunpack.c.l.b16 %v104
    %v652 = vunpack.c.l.b16 %v105
    %v653 = vunpack.c.h.b16 %v105
    %v654 = vunpack.c.l.b16 %v106
    %v655 = vunpack.c.l.b16 %v107
    %v656 = vunpack.c.h.b16 %v107
    %v657 = vunpack.c.l.b16 %v108
    %v658 = vunpack.c.l.b16 %v109
    %v659 = vunpack.c.h.b16 %v109
    %v660 = vunpack.c.l.b16 %v110
    %v661 = vunpack.c.l.b16 %v111
    %v662 = vunpack.c.h.b16 %v111
    %v663 = vunpack.c.l.b16 %v112
    %v664 = vunpack.c.l.b16 %v113
    %v665 = vunpack.c.h.b16 %v113
    %v666 = vunpack.c.l.b16 %v114
    %v667 = vunpack.c.l.b16 %v115
    %v668 = vunpack.c.h.b16 %v115
    %v669 = vunpack.c.l.b16 %v116
    %v670 = vunpack.c.l.b16 %v117
    %v671 = vunpack.c.h.b16 %v117
    %v672 = vunpack.c.l.b16 %v118
    %v673 = vunpack.c.l.b16 %v119
    %v674 = vunpack.c.h.b16 %v119
    %v675 = vunpack.c.l.b16 %v120
    %v676 = vunpack.c.l.b16 %v121
    %v677 = vunpack.c.h.b16 %v121
    %v678 = vunpack.c.l.b16 %v122
    %v679 = vunpack.c.l.b16 %v123
    %v680 = vunpack.c.h.b16 %v123
    %v681 = vunpack.c.l.b16 %v124
    %v682 = vunpack.c.l.b16 %v125
    %v683 = vunpack.c.h.b16 %v125
    %v684 = vunpack.c.l.b16 %v126
    %v685 = vunpack.c.l.b16 %v127
    %v686 = vunpack.c.h.b16 %v127
    %v687 = vunpack.c.l.b16 %v128
    %v688 = vunpack.c.l.b16 %v129
    %v689 = vunpack.c.h.b16 %v129
    %v690 = vunpack.c.l.b16 %v130
    %v691 = vunpack.c.l.b16 %v131
    %v692 = vunpack.c.h.b16 %v131
    %v693 = vunpack.c.l.b16 %v132
    %v694 = vunpack.c.l.b16 %v133
    %v695 = vunpack.c.h.b16 %v133
    %v696 = vunpack.c.l.b16 %v134
    %v697 = vunpack.c.l.b16 %v135
    %v698 = vunpack.c.h.b16 %v135
    %v699 = vunpack.c.l.b16 %v136
    %v700 = vunpack.c.l.b16 %v137
    %v701 = vunpack.c.h.b16 %v137
    %v702 = vunpack.c.l.b16 %v138
    %v703 = vunpack.c.l.b16 %v139
    %v704 = vunpack.c.h.b16 %v139
    %v705 = vunpack.c.l.b16 %v140
    %v706 = vunpack.c.l.b16 %v141
    %v707 = vunpack.c.h.b16 %v141
    %v708 = vunpack.c.l.b16 %v142
    %v709 = vunpack.c.l.b16 %v143
    %v710 = vunpack.c.h.b16 %v143
    %v711 = vunpack.c.l.b16 %v144
    %v712 = vunpack.c.l.b16 %v145
    %v713 = vunpack.c.h.b16 %v145
    %v714 = vunpack.c.l.b16 %v146
    %v715 = vunpack.c.l.b16 %v147
    %v716 = vunpack.c.h.b16 %v147
    %v717 = vunpack.c.l.b16 %v148
    %v718 = vunpack.c.l.b16 %v149
    %v719 = vunpack.c.h.b16 %v149
    %v720 = vunpack.c.l.b16 %v150
    %v721 = vunpack.c.l.b16 %v151
    %v722 = vunpack.c.h.b16 %v151
    %v723 = vunpack.c.l.b16 %v152
    %v724 = vunpack.c.l.b16 %v153
    %v725 = vunpack.c.h.b16 %v153
    %v726 = vunpack.c.l.b16 %v154
    %v727 = vunpack.c.l.b16 %v155
    %v728 = vunpack.c.h.b16 %v155
    %v729 = vunpack.c.l.b16 %v156
    %v730 = vunpack.c.l.b16 %v157
    %v731 = vunpack.c.h.b16 %v157
    %v732 = vunpack.c.l.b16 %v158
    %v733 = vunpack.c.l.b16 %v159
    %v734 = vunpack.c.h.b16 %v159
    %v735 = vunpack.c.l.b16 %v160
    %v736 = vunpack.c.l.b16 %v161
    %v737 = vunpack.c.h.b16 %v161
    %v738 = vunpack.c.l.b16 %v162
    %v739 = vunpack.c.l.b16 %v163
    %v740 = vunpack.c.h.b16 %v163
    %v741 = vunpack.c.l.b16 %v164
    %v742 = vunpack.c.l.b16 %v165
    %v743 = vunpack.c.h.b16 %v165
    %v744 = vunpack.c.l.b16 %v166
    %v745 = vunpack.c.l.b16 %v167
    %v746 = vunpack.c.h.b16 %v167
    %v747 = vunpack.c.l.b16 %v168
    %v748 = vunpack.c.l.b16 %v169
    %v749 = vunpack.c.h.b16 %v169
    %v750 = vunpack.c.l.b16 %v170
    %v751 = vunpack.c.l.b16 %v171
    %v752 = vunpack.c.h.b16 %v171
    %v753 = vunpack.c.l.b16 %v172
    %v754 = vunpack.c.l.b16 %v173
    %v755 = vunpack.c.h.b16 %v173
    %v756 = vunpack.c.l.b16 %v174
    %v757 = vunpack.c.l.b16 %v175
    %v758 = vunpack.c.h.b16 %v175
    %v759 = vunpack.c.l.b16 %v176
    %v760 = vunpack.c.l.b16 %v177
    %v761 = vunpack.c.h.b16 %v177
    %v762 = vunpack.c.l.b16 %v178
    %v763 = vunpack.c.l.b16 %v179
    %v764 = vunpack.c.h.b16 %v179
    %v765 = vunpack.c.l.b16 %v180
    %v766 = vunpack.c.l.b16 %v181
    %v767 = vunpack.c.h.b16 %v181
    %v768 = vunpack.c.l.b16 %v182
    %v769 = vunpack.c.l.b16 %v183
    %v770 = vunpack.c.h.b16 %v183
    %v771 = vunpack.c.l.b16 %v184
    %v772 = vunpack.c.l.b16 %v185
    %v773 = vunpack.c.h.b16 %v185
    %v774 = vunpack.c.l.b16 %v186
    %v775 = vunpack.c.l.b16 %v187
    %v776 = vunpack.c.h.b16 %v187
    %v777 = vunpack.c.l.b16 %v188
    %v778 = vunpack.c.l.b16 %v189
    %v779 = vunpack.c.h.b16 %v189
    %v780 = vunpack.c.l.b16 %v190
    %v781 = vunpack.c.l.b16 %v191
    %v782 = vunpack.c.h.b16 %v191
    %v783 = vunpack.c.l.b16 %v192
    %v784 = vunpack.c.l.b16 %v193
    %v785 = vunpack.c.h.b16 %v193
    %v786 = vunpack.c.l.b16 %v194
    %v787 = vunpack.c.l.b16 %v195
    %v788 = vunpack.c.h.b16 %v195
    %v789 = vunpack.c.l.b16 %v196
    %v790 = vunpack.c.l.b16 %v197
    %v791 = vunpack.c.h.b16 %v197
    %v792 = vunpack.c.l.b16 %v198
    %v793 = vunpack.c.l.b16 %v199
    %v794 = vunpack.c.h.b16 %v199
    %v795 = vunpack.c.l.b16 %v200
    %v796 = vunpack.c.l.b16 %v201
    %v797 = vunpack.c.h.b16 %v201
    %v798 = vunpack.c.l.b16 %v202
    %v799 = vunpack.c.l.b16 %v203
    %v800 = vunpack.c.h.b16 %v203
    %v801 = vunpack.c.l.b16 %v204
    %v802 = vunpack.c.l.b16 %v205
    %v803 = vunpack.c.h.b16 %v205
    %v804 = vunpack.c.l.b16 %v206
    %v805 = vunpack.c.l.b16 %v207
    %v806 = vunpack.c.h.b16 %v207
    %v807 = vunpack.c.l.b16 %v208
    %v808 = vunpack.c.l.b16 %v209
    %v809 = vunpack.c.h.b16 %v209
    %v810 = vunpack.c.l.b16 %v210
    %v811 = vunpack.c.l.b16 %v211
    %v812 = vunpack.c.h.b16 %v211
    %v813 = vunpack.c.l.b16 %v212
    %v814 = vunpack.c.l.b16 %v213
    %v815 = vunpack.c.h.b16 %v213
    %v816 = vunpack.c.l.b16 %v214
    %v817 = vunpack.c.l.b16 %v215
    %v818 = vunpack.c.h.b16 %v215
    %v819 = vunpack.c.l.b16 %v216
    %v820 = vunpack.c.l.b16 %v217
    %v821 = vunpack.c.h.b16 %v217
    %v822 = vunpack.c.l.b16 %v218
    %v823 = vunpack.c.l.b16 %v219
    %v824 = vunpack.c.h.b16 %v219
    %v825 = vunpack.c.l.b16 %v220
    %v826 = vunpack.c.l.b16 %v221
    %v827 = vunpack.c.h.b16 %v221
    %v828 = vunpack.c.l.b16 %v222
    %v829 = vunpack.c.l.b16 %v223
    %v830 = vunpack.c.h.b16 %v223
    %v831 = vunpack.c.l.b16 %v224
    %v832 = vunpack.c.l.b16 %v225
    %v833 = vunpack.c.h.b16 %v225
    %v834 = vunpack.c.l.b16 %v226
    %v835 = vunpack.c.l.b16 %v227
    %v836 = vunpack.c.h.b16 %v227
    %v837 = vunpack.c.l.b16 %v228
    %v838 = vunpack.c.l.b16 %v229
    %v839 = vunpack.c.h.b16 %v229
    %v840 = vunpack.c.l.b16 %v230
    %v841 = vunpack.c.l.b16 %v231
    %v842 = vunpack.c.h.b16 %v231
    %v843 = vunpack.c.l.b16 %v232
    %v844 = vunpack.c.l.b16 %v233
    %v845 = vunpack.c.h.b16 %v233
    %v846 = vunpack.c.l.b16 %v234
    %v847 = vunpack.c.l.b16 %v235
    %v848 = vunpack.c.h.b16 %v235
    %v849 = vunpack.c.l.b16 %v236
    %v850 = vunpack.c.l.b16 %v237
    %v851 = vunpack.c.h.b16 %v237
    %v852 = vunpack.c.l.b16 %v238
    %v853 = vunpack.c.l.b16 %v239
    %v854 = vunpack.c.h.b16 %v239
    %v855 = vunpack.c.l.b16 %v240
    %v856 = vunpack.c.l.b16 %v241
    %v857 = vunpack.c.h.b16 %v241
    %v858 = vunpack.c.l.b16 %v242
    %v859 = vunpack.c.l.b16 %v243
    %v860 = vunpack.c.h.b16 %v243
    %v861 = vunpack.c.l.b16 %v244
    %v862 = vunpack.c.l.b16 %v245
    %v863 = vunpack.c.h.b16 %v245
    %v864 = vunpack.c.l.b16 %v246
    %v865 = vunpack.c.l.b16 %v247
    %v866 = vunpack.c.h.b16 %v247
    %v867 = vunpack.c.l.b16 %v248
    %v868 = vunpack.c.l.b16 %v249
    %v869 = vunpack.c.h.b16 %v249
    %v870 = vunpack.c.l.b16 %v250
    %v871 = vunpack.c.l.b16 %v251
    %v872 = vunpack.c.h.b16 %v251
    %v873 = vunpack.c.l.b16 %v252
    %v874 = vunpack.c.l.b16 %v253
    %v875 = vunpack.c.h.b16 %v253
    %v876 = vunpack.c.l.b16 %v254
    %v877 = vunpack.c.l.b16 %v255
    %v878 = vunpack.c.h.b16 %v255
    %v879 = vunpack.c.l.b16 %v256
    %v880 = vunpack.c.l.b16 %v257
    %v881 = vunpack.c.h.b16 %v257
    %v882 = vunpack.c.l.b16 %v258
    %v883 = vunpack.c.l.b16 %v259
    %v884 = vunpack.c.h.b16 %v259
    %v885 = vunpack.c.l.b16 %v260
    %v886 = vunpack.c.l.b16 %v261
    %v887 = vunpack.c.h.b16 %v261
    %v888 = vunpack.c.l.b16 %v262
    %v889 = vunpack.c.l.b16 %v263
    %v890 = vunpack.c.h.b16 %v263
    %v891 = vunpack.c.l.b16 %v264
    %v892 = vunpack.c.l.b16 %v265
    %v893 = vunpack.c.h.b16 %v265
    %v894 = vunpack.c.l.b16 %v266
    %v895 = vunpack.c.l.b16 %v267
    %v896 = vunpack.c.h.b16 %v267
    %v897 = vunpack.c.l.b16 %v268
    %v898 = vunpack.c.l.b16 %v269
    %v899 = vunpack.c.h.b16 %v269
    %v900 = vunpack.c.l.b16 %v270
    %v901 = vunpack.c.l.b16 %v271
    %v902 = vunpack.c.h.b16 %v271
    %v903 = vunpack.c.l.b16 %v272
    %v904 = vunpack.c.l.b16 %v273
    %v905 = vunpack.c.h.b16 %v273
    %v906 = vunpack.c.l.b16 %v274
    %v907 = vunpack.c.l.b16 %v275
    %v908 = vunpack.c.h.b16 %v275
    %v909 = vunpack.c.l.b16 %v276
    %v910 = vpack.c.b16 %v553, %v550
    %v911 = vpack.c.b16 %v554, %v551
    %v912 = vpack.c.b16 %v555, %v552
    %v913 = vpack.c.b16 %v559, %v556
    %v914 = vpack.c.b16 %v560, %v557
    %v915 = vpack.c.b16 %v561, %v558
    %v916 = vpack.c.b16 %v565, %v562
    %v917 = vpack.c.b16 %v566, %v563
    %v918 = vpack.c.b16 %v567, %v564
    %v919 = vpack.c.b16 %v571, %v568
    %v920 = vpack.c.b16 %v572, %v569
    %v921 = vpack.c.b16 %v573, %v570
    %v922 = vpack.c.b16 %v577, %v574
    %v923 = vpack.c.b16 %v578, %v575
    %v924 = vpack.c.b16 %v579, %v576
    %v925 = vpack.c.b16 %v583, %v580
    %v926 = vpack.c.b16 %v584, %v581
    %v927 = vpack.c.b16 %v585, %v582
    %v928 = vpack.c.b16 %v589, %v586
    %v929 = vpack.c.b16 %v590, %v587
    %v930 = vpack.c.b16 %v591, %v588
    %v931 = vpack.c.b16 %v595, %v592
    %v932 = vpack.c.b16 %v596, %v593
    %v933 = vpack.c.b16 %v597, %v594
    %v934 = vpack.c.b16 %v601, %v598
    %v935 = vpack.c.b16 %v602, %v599
    %v936 = vpack.c.b16 %v603, %v600
    %v937 = vpack.c.b16 %v607, %v604
    %v938 = vpack.c.b16 %v608, %v605
    %v939 = vpack.c.b16 %v609, %v606
    %v940 = vpack.c.b16 %v613, %v610
    %v941 = vpack.c.b16 %v614, %v611
    %v942 = vpack.c.b16 %v615, %v612
    %v943 = vpack.c.b16 %v619, %v616
    %v944 = vpack.c.b16 %v620, %v617
    %v945 = vpack.c.b16 %v621, %v618
    %v946 = vpack.c.b16 %v625, %v622
    %v947 = vpack.c.b16 %v626, %v623
    %v948 = vpack.c.b16 %v627, %v624
    %v949 = vpack.c.b16 %v631, %v628
    %v950 = vpack.c.b16 %v632, %v629
    %v951 = vpack.c.b16 %v633, %v630
    %v952 = vpack.c.b16 %v637, %v634
    %v953 = vpack.c.b16 %v638, %v635
    %v954 = vpack.c.b16 %v639, %v636
    %v955 = vpack.c.b16 %v643, %v640
    %v956 = vpack.c.b16 %v644, %v641
    %v957 = vpack.c.b16 %v645, %v642
    %v958 = vpack.c.b16 %v649, %v646
    %v959 = vpack.c.b16 %v650, %v647
    %v960 = vpack.c.b16 %v651, %v648
    %v961 = vpack.c.b16 %v655, %v652
    %v962 = vpack.c.b16 %v656, %v653
    %v963 = vpack.c.b16 %v657, %v654
    %v964 = vpack.c.b16 %v661, %v658
    %v965 = vpack.c.b16 %v662, %v659
    %v966 = vpack.c.b16 %v663, %v660
    %v967 = vpack.c.b16 %v667, %v664
    %v968 = vpack.c.b16 %v668, %v665
    %v969 = vpack.c.b16 %v669, %v666
    %v970 = vpack.c.b16 %v673, %v670
    %v971 = vpack.c.b16 %v674, %v671
    %v972 = vpack.c.b16 %v675, %v672
    %v973 = vpack.c.b16 %v679, %v676
    %v974 = vpack.c.b16 %v680, %v677
    %v975 = vpack.c.b16 %v681, %v678
    %v976 = vpack.c.b16 %v685, %v682
    %v977 = vpack.c.b16 %v686, %v683
    %v978 = vpack.c.b16 %v687, %v684
    %v979 = vpack.c.b16 %v691, %v688
    %v980 = vpack.c.b16 %v692, %v689
    %v981 = vpack.c.b16 %v693, %v690
    %v982 = vpack.c.b16 %v697, %v694
    %v983 = vpack.c.b16 %v698, %v695
    %v984 = vpack.c.b16 %v699, %v696
    %v985 = vpack.c.b16 %v703, %v700
    %v986 = vpack.c.b16 %v704, %v701
    %v987 = vpack.c.b16 %v705, %v702
    %v988 = vpack.c.b16 %v709, %v706
    %v989 = vpack.c.b16 %v710, %v707
    %v990 = vpack.c.b16 %v711, %v708
    %v991 = vpack.c.b16 %v715, %v712
    %v992 = vpack.c.b16 %v716, %v713
    %v993 = vpack.c.b16 %v717, %v714
    %v994 = vpack.c.b16 %v721, %v718
    %v995 = vpack.c.b16 %v722, %v719
    %v996 = vpack.c.b16 %v723, %v720
    %v997 = vpack.c.b16 %v727, %v724
    %v998 = vpack.c.b16 %v728, %v725
    %v999 = vpack.c.b16 %v729, %v726
    %v1000 = vpack.c.b16 %v733, %v730
    %v1001 = vpack.c.b16 %v734, %v731
    %v1002 = vpack.c.b16 %v735, %v732
    %v1003 = vpack.c.b16 %v739, %v736
    %v1004 = vpack.c.b16 %v740, %v737
    %v1005 = vpack.c.b16 %v741, %v738
    %v1006 = vpack.c.b16 %v745, %v742
    %v1007 = vpack.c.b16 %v746, %v743
    %v1008 = vpack.c.b16 %v747, %v744
    %v1009 = vpack.c.b16 %v751, %v748
    %v1010 = vpack.c.b16 %v752, %v749
    %v1011 = vpack.c.b16 %v753, %v750
    %v1012 = vpack.c.b16 %v757, %v754
    %v1013 = vpack.c.b16 %v758, %v755
    %v1014 = vpack.c.b16 %v759, %v756
    %v1015 = vpack.c.b16 %v763, %v760
    %v1016 = vpack.c.b16 %v764, %v761
    %v1017 = vpack.c.b16 %v765, %v762
    %v1018 = vpack.c.b16 %v769, %v766
    %v1019 = vpack.c.b16 %v770, %v767
    %v1020 = vpack.c.b16 %v771, %v768
    %v1021 = vpack.c.b16 %v775, %v772
    %v1022 = vpack.c.b16 %v776, %v773
    %v1023 = vpack.c.b16 %v777, %v774
    %v1024 = vpack.c.b16 %v781, %v778
    %v1025 = vpack.c.b16 %v782, %v779
    %v1026 = vpack.c.b16 %v783, %v780
    %v1027 = vpack.c.b16 %v787, %v784
    %v1028 = vpack.c.b16 %v788, %v785
    %v1029 = vpack.c.b16 %v789, %v786
    %v1030 = vpack.c.b16 %v793, %v790
    %v1031 = vpack.c.b16 %v794, %v791
    %v1032 = vpack.c.b16 %v795, %v792
    %v1033 = vpack.c.b16 %v799, %v796
    %v1034 = vpack.c.b16 %v800, %v797
    %v1035 = vpack.c.b16 %v801, %v798
    %v1036 = vpack.c.b16 %v805, %v802
    %v1037 = vpack.c.b16 %v806, %v803
    %v1038 = vpack.c.b16 %v807, %v804
    %v1039 = vpack.c.b16 %v811, %v808
    %v1040 = vpack.c.b16 %v812, %v809
    %v1041 = vpack.c.b16 %v813, %v810
    %v1042 = vpack.c.b16 %v817, %v814
    %v1043 = vpack.c.b16 %v818, %v815
    %v1044 = vpack.c.b16 %v819, %v816
    %v1045 = vpack.c.b16 %v823, %v820
    %v1046 = vpack.c.b16 %v824, %v821
    %v1047 = vpack.c.b16 %v825, %v822
    %v1048 = vpack.c.b16 %v829, %v826
    %v1049 = vpack.c.b16 %v830, %v827
    %v1050 = vpack.c.b16 %v831, %v828
    %v1051 = vpack.c.b16 %v835, %v832
    %v1052 = vpack.c.b16 %v836, %v833
    %v1053 = vpack.c.b16 %v837, %v834
    %v1054 = vpack.c.b16 %v841, %v838
    %v1055 = vpack.c.b16 %v842, %v839
    %v1056 = vpack.c.b16 %v843, %v840
    %v1057 = vpack.c.b16 %v847, %v844
    %v1058 = vpack.c.b16 %v848, %v845
    %v1059 = vpack.c.b16 %v849, %v846
    %v1060 = vpack.c.b16 %v853, %v850
    %v1061 = vpack.c.b16 %v854, %v851
    %v1062 = vpack.c.b16 %v855, %v852
    %v1063 = vpack.c.b16 %v859, %v856
    %v1064 = vpack.c.b16 %v860, %v857
    %v1065 = vpack.c.b16 %v861, %v858
    %v1066 = vpack.c.b16 %v865, %v862
    %v1067 = vpack.c.b16 %v866, %v863
    %v1068 = vpack.c.b16 %v867, %v864
    %v1069 = vpack.c.b16 %v871, %v868
    %v1070 = vpack.c.b16 %v872, %v869
    %v1071 = vpack.c.b16 %v873, %v870
    %v1072 = vpack.c.b16 %v877, %v874
    %v1073 = vpack.c.b16 %v878, %v875
    %v1074 = vpack.c.b16 %v879, %v876
    %v1075 = vpack.c.b16 %v883, %v880
    %v1076 = vpack.c.b16 %v884, %v881
    %v1077 = vpack.c.b16 %v885, %v882
    %v1078 = vpack.c.b16 %v889, %v886
    %v1079 = vpack.c.b16 %v890, %v887
    %v1080 = vpack.c.b16 %v891, %v888
    %v1081 = vpack.c.b16 %v895, %v892
    %v1082 = vpack.c.b16 %v896, %v893
    %v1083 = vpack.c.b16 %v897, %v894
    %v1084 = vpack.c.b16 %v901, %v898
    %v1085 = vpack.c.b16 %v902, %v899
    %v1086 = vpack.c.b16 %v903, %v900
    %v1087 = vpack.c.b16 %v907, %v904
    %v1088 = vpack.c.b16 %v908, %v905
    %v1089 = vpack.c.b16 %v909, %v906
    %v1243 = vunpack.c.l.b16 %v277
    %v1244 = vunpack.c.l.b16 %v278
    %v1245 = vunpack.c.l.b16 %v279
    %v1246 = vunpack.c.l.b16 %v280
    %v1247 = vunpack.c.l.b16 %v281
    %v1248 = vunpack.c.l.b16 %v282
    %v1249 = vunpack.c.l.b16 %v283
    %v1250 = vunpack.c.l.b16 %v284
    %v1251 = vunpack.c.l.b16 %v285
    %v1252 = vunpack.c.l.b16 %v286
    %v1253 = vunpack.c.l.b16 %v287
    %v1254 = vunpack.c.l.b16 %v288
    %v1255 = vunpack.c.l.b16 %v289
    %v1256 = vunpack.c.l.b16 %v290
    %v1257 = vunpack.c.l.b16 %v291
    %v1258 = vunpack.c.l.b16 %v292
    %v1259 = vunpack.c.l.b16 %v293
    %v1260 = vunpack.c.l.b16 %v294
    %v1261 = vunpack.c.l.b16 %v295
    %v1262 = vunpack.c.l.b16 %v296
    %v1263 = vunpack.c.l.b16 %v297
    %v1264 = vunpack.c.l.b16 %v298
    %v1265 = vunpack.c.l.b16 %v299
    %v1266 = vunpack.c.l.b16 %v300
    %v1267 = vunpack.c.l.b16 %v301
    %v1268 = vunpack.c.l.b16 %v302
    %v1269 = vunpack.c.l.b16 %v303
    %v1270 = vunpack.c.l.b16 %v304
    %v1271 = vunpack.c.l.b16 %v305
    %v1272 = vunpack.c.l.b16 %v306
    %v1273 = vunpack.c.l.b16 %v307
    %v1274 = vunpack.c.l.b16 %v308
    %v1275 = vunpack.c.l.b16 %v309
    %v1276 = vpack.c.b16 %v1244, %v1243
    %v1277 = vpack.c.b16 %v1246, %v1245
    %v1278 = vpack.c.b16 %v1248, %v1247
    %v1279 = vpack.c.b16 %v1250, %v1249
    %v1280 = vpack.c.b16 %v1252, %v1251
    %v1281 = vpack.c.b16 %v1254, %v1253
    %v1282 = vpack.c.b16 %v1256, %v1255
    %v1283 = vpack.c.b16 %v1258, %v1257
    %v1284 = vpack.c.b16 %v1260, %v1259
    %v1285 = vpack.c.b16 %v1262, %v1261
    %v1286 = vpack.c.b16 %v1264, %v1263
    %v1287 = vpack.c.b16 %v1266, %v1265
    %v1288 = vpack.c.b16 %v1268, %v1267
    %v1289 = vpack.c.b16 %v1270, %v1269
    %v1290 = vpack.c.b16 %v1272, %v1271
    %v1291 = vpack.c.b16 %v1274, %v1273
    %v1292 = vpack.c.b16 %v1275, %v1275
    %vm1309 = vcmask 7168
    %v1311 = vsel %vm1309, %v912, 0
    %v1314 = vsel %vm1309, %v915, 0
    %v1317 = vsel %vm1309, %v918, 0
    %v1320 = vsel %vm1309, %v921, 0
    %v1323 = vsel %vm1309, %v924, 0
    %v1326 = vsel %vm1309, %v927, 0
    %v1329 = vsel %vm1309, %v930, 0
    %v1332 = vsel %vm1309, %v933, 0
    %v1335 = vsel %vm1309, %v936, 0
    %v1338 = vsel %vm1309, %v939, 0
    %v1341 = vsel %vm1309, %v942, 0
    %v1344 = vsel %vm1309, %v945, 0
    %v1347 = vsel %vm1309, %v948, 0
    %v1350 = vsel %vm1309, %v951, 0
    %v1353 = vsel %vm1309, %v954, 0
    %v1356 = vsel %vm1309, %v957, 0
    %v1359 = vsel %vm1309, %v960, 0
    %v1362 = vsel %vm1309, %v963, 0
    %v1365 = vsel %vm1309, %v966, 0
    %v1368 = vsel %vm1309, %v969, 0
    %v1371 = vsel %vm1309, %v972, 0
    %v1374 = vsel %vm1309, %v975, 0
    %v1377 = vsel %vm1309, %v978, 0
    %v1380 = vsel %vm1309, %v981, 0
    %v1383 = vsel %vm1309, %v984, 0
    %v1386 = vsel %vm1309, %v987, 0
    %v1389 = vsel %vm1309, %v990, 0
    %v1392 = vsel %vm1309, %v993, 0
    %v1395 = vsel %vm1309, %v996, 0
    %v1398 = vsel %vm1309, %v999, 0
    %v1401 = vsel %vm1309, %v1002, 0
    %v1404 = vsel %vm1309, %v1005, 0
    %v1407 = vsel %vm1309, %v1008, 0
    %v1410 = vsel %vm1309, %v1011, 0
    %v1413 = vsel %vm1309, %v1014, 0
    %v1416 = vsel %vm1309, %v1017, 0
    %v1419 = vsel %vm1309, %v1020, 0
    %v1422 = vsel %vm1309, %v1023, 0
    %v1425 = vsel %vm1309, %v1026, 0
    %v1428 = vsel %vm1309, %v1029, 0
    %v1431 = vsel %vm1309, %v1032, 0
    %v1434 = vsel %vm1309, %v1035, 0
    %v1437 = vsel %vm1309, %v1038, 0
    %v1440 = vsel %vm1309, %v1041, 0
    %v1443 = vsel %vm1309, %v1044, 0
    %v1446 = vsel %vm1309, %v1047, 0
    %v1449 = vsel %vm1309, %v1050, 0
    %v1452 = vsel %vm1309, %v1053, 0
    %v1455 = vsel %vm1309, %v1056, 0
    %v1458 = vsel %vm1309, %v1059, 0
    %v1461 = vsel %vm1309, %v1062, 0
    %v1464 = vsel %vm1309, %v1065, 0
    %v1467 = vsel %vm1309, %v1068, 0
    %v1470 = vsel %vm1309, %v1071, 0
    %v1473 = vsel %vm1309, %v1074, 0
    %v1476 = vsel %vm1309, %v1077, 0
    %v1479 = vsel %vm1309, %v1080, 0
    %v1482 = vsel %vm1309, %v1083, 0
    %v1485 = vsel %vm1309, %v1086, 0
    %v1488 = vsel %vm1309, %v1089, 0
    %vm1490 = vcmask 1040384
    %v1491 = vsel 0, 4294967295, 65535
    %v1492 = vsel %vm1490, %v1491, 0
    %v1494 = vand.u32 %v1292, %v1492
    %1496 = vmatprep.subr.bf16.mxu0 0
    %1497 = vmatpush1.bf16.msra.mxu0 %v1276
    %1498 = vmatprep.subr.bf16.mxu0 0
    %1499 = vmatpush1.bf16.msra.mxu0 %v1277
    %1500 = vmatprep.subr.bf16.mxu0 0
    %1501 = vmatpush1.bf16.msra.mxu0 %v1278
    %1502 = vmatprep.subr.bf16.mxu0 0
    %1503 = vmatpush1.bf16.msra.mxu0 %v1279
    %1504 = vmatprep.subr.bf16.mxu0 0
    %1505 = vmatpush1.bf16.msra.mxu0 %v1280
    %1506 = vmatprep.subr.bf16.mxu0 0
    %1507 = vmatpush1.bf16.msra.mxu0 %v1281
    %1508 = vmatprep.subr.bf16.mxu0 0
    %1509 = vmatpush1.bf16.msra.mxu0 %v1282
    %1510 = vmatprep.subr.bf16.mxu0 0
    %1511 = vmatpush1.bf16.msra.mxu0 %v1283
    %1512 = vmatprep.subr.bf16.mxu0 0
    %1513 = vmatpush1.bf16.msra.mxu0 %v1284
    %1514 = vmatprep.subr.bf16.mxu0 0
    %1515 = vmatpush1.bf16.msra.mxu0 %v1285
    %1516 = vmatprep.subr.bf16.mxu0 0
    %1517 = vmatpush1.bf16.msra.mxu0 %v1286
    %1518 = vmatprep.subr.bf16.mxu0 0
    %1519 = vmatpush1.bf16.msra.mxu0 %v1287
    %1520 = vmatprep.subr.bf16.mxu0 0
    %1521 = vmatpush1.bf16.msra.mxu0 %v1288
    %1522 = vmatprep.subr.bf16.mxu0 0
    %1523 = vmatpush1.bf16.msra.mxu0 %v1289
    %1524 = vmatprep.subr.bf16.mxu0 0
    %1525 = vmatpush1.bf16.msra.mxu0 %v1290
    %1526 = vmatprep.subr.bf16.mxu0 0
    %1527 = vmatpush1.bf16.msra.mxu0 %v1291
    %1528 = vmatprep.mubr.bf16.mxu0 %v911
    %1529 = vmatmul.mubr.bf16.gmra.mrb[0].mxu0 %v910
    %v1530 = vpop.f32.mrb[0].mxu0
    %v1531 = vadd.f32 0.0, %v1530
    %v1532 = vpop.f32.mrb[0].mxu0
    %v1533 = vpop.f32.mrb[0].mxu0
    %v1534 = vadd.f32 0.0, %v1533
    %v1535 = vpop.f32.mrb[0].mxu0
    %1536 = vmatprep.mubr.bf16.mxu0 %v914
    %1537 = vmatmul.mubr.bf16.gmra.mrb[0].mxu0 %v913
    %v1538 = vpop.f32.mrb[0].mxu0
    %v1539 = vadd.f32 0.0, %v1538
    %v1540 = vpop.f32.mrb[0].mxu0
    %v1541 = vpop.f32.mrb[0].mxu0
    %v1542 = vadd.f32 0.0, %v1541
    %v1543 = vpop.f32.mrb[0].mxu0
    %1544 = vmatprep.mubr.bf16.mxu0 %v917
    %1545 = vmatmul.mubr.bf16.gmra.mrb[0].mxu0 %v916
    %v1546 = vpop.f32.mrb[0].mxu0
    %v1547 = vadd.f32 0.0, %v1546
    %v1548 = vpop.f32.mrb[0].mxu0
    %v1549 = vpop.f32.mrb[0].mxu0
    %v1550 = vadd.f32 0.0, %v1549
    %v1551 = vpop.f32.mrb[0].mxu0
    %1552 = vmatprep.mubr.bf16.mxu0 %v920
    %1553 = vmatmul.mubr.bf16.gmra.mrb[0].mxu0 %v919
    %v1554 = vpop.f32.mrb[0].mxu0
    %v1555 = vadd.f32 0.0, %v1554
    %v1556 = vpop.f32.mrb[0].mxu0
    %v1557 = vpop.f32.mrb[0].mxu0
    %v1558 = vadd.f32 0.0, %v1557
    %v1559 = vpop.f32.mrb[0].mxu0
    %1560 = vmatprep.mubr.bf16.mxu0 %v923
    %1561 = vmatmul.mubr.bf16.gmra.mrb[0].mxu0 %v922
    %v1562 = vpop.f32.mrb[0].mxu0
    %v1563 = vadd.f32 0.0, %v1562
    %v1564 = vpop.f32.mrb[0].mxu0
    %v1565 = vpop.f32.mrb[0].mxu0
    %v1566 = vadd.f32 0.0, %v1565
    %v1567 = vpop.f32.mrb[0].mxu0
    %1568 = vmatprep.mubr.bf16.mxu0 %v926
    %1569 = vmatmul.mubr.bf16.gmra.mrb[0].mxu0 %v925
    %v1570 = vpop.f32.mrb[0].mxu0
    %v1571 = vadd.f32 0.0, %v1570
    %v1572 = vpop.f32.mrb[0].mxu0
    %v1573 = vpop.f32.mrb[0].mxu0
    %v1574 = vadd.f32 0.0, %v1573
    %v1575 = vpop.f32.mrb[0].mxu0
    %1576 = vmatprep.mubr.bf16.mxu0 %v929
    %1577 = vmatmul.mubr.bf16.gmra.mrb[0].mxu0 %v928
    %v1578 = vpop.f32.mrb[0].mxu0
    %v1579 = vadd.f32 0.0, %v1578
    %v1580 = vpop.f32.mrb[0].mxu0
    %v1581 = vpop.f32.mrb[0].mxu0
    %v1582 = vadd.f32 0.0, %v1581
    %v1583 = vpop.f32.mrb[0].mxu0
    %1584 = vmatprep.mubr.bf16.mxu0 %v932
    %1585 = vmatmul.mubr.bf16.gmra.mrb[0].mxu0 %v931
    %v1586 = vpop.f32.mrb[0].mxu0
    %v1587 = vadd.f32 0.0, %v1586
    %v1588 = vpop.f32.mrb[0].mxu0
    %v1589 = vpop.f32.mrb[0].mxu0
    %v1590 = vadd.f32 0.0, %v1589
    %v1591 = vpop.f32.mrb[0].mxu0
    %1592 = vmatprep.mubr.bf16.mxu0 %v935
    %1593 = vmatmul.mubr.bf16.gmra.mrb[0].mxu0 %v934
    %v1594 = vpop.f32.mrb[0].mxu0
    %v1595 = vadd.f32 0.0, %v1594
    %v1596 = vpop.f32.mrb[0].mxu0
    %v1597 = vpop.f32.mrb[0].mxu0
    %v1598 = vadd.f32 0.0, %v1597
    %v1599 = vpop.f32.mrb[0].mxu0
    %1600 = vmatprep.mubr.bf16.mxu0 %v938
    %1601 = vmatmul.mubr.bf16.gmra.mrb[0].mxu0 %v937
    %v1602 = vpop.f32.mrb[0].mxu0
    %v1603 = vadd.f32 0.0, %v1602
    %v1604 = vpop.f32.mrb[0].mxu0
    %v1605 = vpop.f32.mrb[0].mxu0
    %v1606 = vadd.f32 0.0, %v1605
    %v1607 = vpop.f32.mrb[0].mxu0
    %1608 = vmatprep.mubr.bf16.mxu0 %v941
    %1609 = vmatmul.mubr.bf16.gmra.mrb[0].mxu0 %v940
    %v1610 = vpop.f32.mrb[0].mxu0
    %v1611 = vadd.f32 0.0, %v1610
    %v1612 = vpop.f32.mrb[0].mxu0
    %v1613 = vpop.f32.mrb[0].mxu0
    %v1614 = vadd.f32 0.0, %v1613
    %v1615 = vpop.f32.mrb[0].mxu0
    %1616 = vmatprep.mubr.bf16.mxu0 %v944
    %1617 = vmatmul.mubr.bf16.gmra.mrb[0].mxu0 %v943
    %v1618 = vpop.f32.mrb[0].mxu0
    %v1619 = vadd.f32 0.0, %v1618
    %v1620 = vpop.f32.mrb[0].mxu0
    %v1621 = vpop.f32.mrb[0].mxu0
    %v1622 = vadd.f32 0.0, %v1621
    %v1623 = vpop.f32.mrb[0].mxu0
    %1624 = vmatprep.mubr.bf16.mxu0 %v947
    %1625 = vmatmul.mubr.bf16.gmra.mrb[0].mxu0 %v946
    %v1626 = vpop.f32.mrb[0].mxu0
    %v1627 = vadd.f32 0.0, %v1626
    %v1628 = vpop.f32.mrb[0].mxu0
    %v1629 = vpop.f32.mrb[0].mxu0
    %v1630 = vadd.f32 0.0, %v1629
    %v1631 = vpop.f32.mrb[0].mxu0
    %1632 = vmatprep.mubr.bf16.mxu0 %v950
    %1633 = vmatmul.mubr.bf16.gmra.mrb[0].mxu0 %v949
    %v1634 = vpop.f32.mrb[0].mxu0
    %v1635 = vadd.f32 0.0, %v1634
    %v1636 = vpop.f32.mrb[0].mxu0
    %v1637 = vpop.f32.mrb[0].mxu0
    %v1638 = vadd.f32 0.0, %v1637
    %v1639 = vpop.f32.mrb[0].mxu0
    %1640 = vmatprep.mubr.bf16.mxu0 %v953
    %1641 = vmatmul.mubr.bf16.gmra.mrb[0].mxu0 %v952
    %v1642 = vpop.f32.mrb[0].mxu0
    %v1643 = vadd.f32 0.0, %v1642
    %v1644 = vpop.f32.mrb[0].mxu0
    %v1645 = vpop.f32.mrb[0].mxu0
    %v1646 = vadd.f32 0.0, %v1645
    %v1647 = vpop.f32.mrb[0].mxu0
    %1648 = vmatprep.mubr.bf16.mxu0 %v956
    %1649 = vmatmul.mubr.bf16.gmra.mrb[0].mxu0 %v955
    %v1650 = vpop.f32.mrb[0].mxu0
    %v1651 = vadd.f32 0.0, %v1650
    %v1652 = vpop.f32.mrb[0].mxu0
    %v1653 = vpop.f32.mrb[0].mxu0
    %v1654 = vadd.f32 0.0, %v1653
    %v1655 = vpop.f32.mrb[0].mxu0
    %1656 = vmatprep.mubr.bf16.mxu0 %v959
    %1657 = vmatmul.mubr.bf16.gmra.mrb[0].mxu0 %v958
    %v1658 = vpop.f32.mrb[0].mxu0
    %v1659 = vadd.f32 0.0, %v1658
    %v1660 = vpop.f32.mrb[0].mxu0
    %v1661 = vpop.f32.mrb[0].mxu0
    %v1662 = vadd.f32 0.0, %v1661
    %v1663 = vpop.f32.mrb[0].mxu0
    %1664 = vmatprep.mubr.bf16.mxu0 %v962
    %1665 = vmatmul.mubr.bf16.gmra.mrb[0].mxu0 %v961
    %v1666 = vpop.f32.mrb[0].mxu0
    %v1667 = vadd.f32 0.0, %v1666
    %v1668 = vpop.f32.mrb[0].mxu0
    %v1669 = vpop.f32.mrb[0].mxu0
    %v1670 = vadd.f32 0.0, %v1669
    %v1671 = vpop.f32.mrb[0].mxu0
    %1672 = vmatprep.mubr.bf16.mxu0 %v965
    %1673 = vmatmul.mubr.bf16.gmra.mrb[0].mxu0 %v964
    %v1674 = vpop.f32.mrb[0].mxu0
    %v1675 = vadd.f32 0.0, %v1674
    %v1676 = vpop.f32.mrb[0].mxu0
    %v1677 = vpop.f32.mrb[0].mxu0
    %v1678 = vadd.f32 0.0, %v1677
    %v1679 = vpop.f32.mrb[0].mxu0
    %1680 = vmatprep.mubr.bf16.mxu0 %v968
    %1681 = vmatmul.mubr.bf16.gmra.mrb[0].mxu0 %v967
    %v1682 = vpop.f32.mrb[0].mxu0
    %v1683 = vadd.f32 0.0, %v1682
    %v1684 = vpop.f32.mrb[0].mxu0
    %v1685 = vpop.f32.mrb[0].mxu0
    %v1686 = vadd.f32 0.0, %v1685
    %v1687 = vpop.f32.mrb[0].mxu0
    %1688 = vmatprep.mubr.bf16.mxu0 %v971
    %1689 = vmatmul.mubr.bf16.gmra.mrb[0].mxu0 %v970
    %v1690 = vpop.f32.mrb[0].mxu0
    %v1691 = vadd.f32 0.0, %v1690
    %v1692 = vpop.f32.mrb[0].mxu0
    %v1693 = vpop.f32.mrb[0].mxu0
    %v1694 = vadd.f32 0.0, %v1693
    %v1695 = vpop.f32.mrb[0].mxu0
    %1696 = vmatprep.mubr.bf16.mxu0 %v974
    %1697 = vmatmul.mubr.bf16.gmra.mrb[0].mxu0 %v973
    %v1698 = vpop.f32.mrb[0].mxu0
    %v1699 = vadd.f32 0.0, %v1698
    %v1700 = vpop.f32.mrb[0].mxu0
    %v1701 = vpop.f32.mrb[0].mxu0
    %v1702 = vadd.f32 0.0, %v1701
    %v1703 = vpop.f32.mrb[0].mxu0
    %1704 = vmatprep.mubr.bf16.mxu0 %v977
    %1705 = vmatmul.mubr.bf16.gmra.mrb[0].mxu0 %v976
    %v1706 = vpop.f32.mrb[0].mxu0
    %v1707 = vadd.f32 0.0, %v1706
    %v1708 = vpop.f32.mrb[0].mxu0
    %v1709 = vpop.f32.mrb[0].mxu0
    %v1710 = vadd.f32 0.0, %v1709
    %v1711 = vpop.f32.mrb[0].mxu0
    %1712 = vmatprep.mubr.bf16.mxu0 %v980
    %1713 = vmatmul.mubr.bf16.gmra.mrb[0].mxu0 %v979
    %v1714 = vpop.f32.mrb[0].mxu0
    %v1715 = vadd.f32 0.0, %v1714
    %v1716 = vpop.f32.mrb[0].mxu0
    %v1717 = vpop.f32.mrb[0].mxu0
    %v1718 = vadd.f32 0.0, %v1717
    %v1719 = vpop.f32.mrb[0].mxu0
    %1720 = vmatprep.mubr.bf16.mxu0 %v983
    %1721 = vmatmul.mubr.bf16.gmra.mrb[0].mxu0 %v982
    %v1722 = vpop.f32.mrb[0].mxu0
    %v1723 = vadd.f32 0.0, %v1722
    %v1724 = vpop.f32.mrb[0].mxu0
    %v1725 = vpop.f32.mrb[0].mxu0
    %v1726 = vadd.f32 0.0, %v1725
    %v1727 = vpop.f32.mrb[0].mxu0
    %1728 = vmatprep.mubr.bf16.mxu0 %v986
    %1729 = vmatmul.mubr.bf16.gmra.mrb[0].mxu0 %v985
    %v1730 = vpop.f32.mrb[0].mxu0
    %v1731 = vadd.f32 0.0, %v1730
    %v1732 = vpop.f32.mrb[0].mxu0
    %v1733 = vpop.f32.mrb[0].mxu0
    %v1734 = vadd.f32 0.0, %v1733
    %v1735 = vpop.f32.mrb[0].mxu0
    %1736 = vmatprep.mubr.bf16.mxu0 %v989
    %1737 = vmatmul.mubr.bf16.gmra.mrb[0].mxu0 %v988
    %v1738 = vpop.f32.mrb[0].mxu0
    %v1739 = vadd.f32 0.0, %v1738
    %v1740 = vpop.f32.mrb[0].mxu0
    %v1741 = vpop.f32.mrb[0].mxu0
    %v1742 = vadd.f32 0.0, %v1741
    %v1743 = vpop.f32.mrb[0].mxu0
    %1744 = vmatprep.mubr.bf16.mxu0 %v992
    %1745 = vmatmul.mubr.bf16.gmra.mrb[0].mxu0 %v991
    %v1746 = vpop.f32.mrb[0].mxu0
    %v1747 = vadd.f32 0.0, %v1746
    %v1748 = vpop.f32.mrb[0].mxu0
    %v1749 = vpop.f32.mrb[0].mxu0
    %v1750 = vadd.f32 0.0, %v1749
    %v1751 = vpop.f32.mrb[0].mxu0
    %1752 = vmatprep.mubr.bf16.mxu0 %v995
    %1753 = vmatmul.mubr.bf16.gmra.mrb[0].mxu0 %v994
    %v1754 = vpop.f32.mrb[0].mxu0
    %v1755 = vadd.f32 0.0, %v1754
    %v1756 = vpop.f32.mrb[0].mxu0
    %v1757 = vpop.f32.mrb[0].mxu0
    %v1758 = vadd.f32 0.0, %v1757
    %v1759 = vpop.f32.mrb[0].mxu0
    %1760 = vmatprep.mubr.bf16.mxu0 %v998
    %1761 = vmatmul.mubr.bf16.gmra.mrb[0].mxu0 %v997
    %v1762 = vpop.f32.mrb[0].mxu0
    %v1763 = vadd.f32 0.0, %v1762
    %v1764 = vpop.f32.mrb[0].mxu0
    %v1765 = vpop.f32.mrb[0].mxu0
    %v1766 = vadd.f32 0.0, %v1765
    %v1767 = vpop.f32.mrb[0].mxu0
    %1768 = vmatprep.mubr.bf16.mxu0 %v1001
    %1769 = vmatmul.mubr.bf16.gmra.mrb[0].mxu0 %v1000
    %v1770 = vpop.f32.mrb[0].mxu0
    %v1771 = vadd.f32 0.0, %v1770
    %v1772 = vpop.f32.mrb[0].mxu0
    %v1773 = vpop.f32.mrb[0].mxu0
    %v1774 = vadd.f32 0.0, %v1773
    %v1775 = vpop.f32.mrb[0].mxu0
    %1776 = vmatprep.mubr.bf16.mxu0 %v1004
    %1777 = vmatmul.mubr.bf16.gmra.mrb[0].mxu0 %v1003
    %v1778 = vpop.f32.mrb[0].mxu0
    %v1779 = vadd.f32 0.0, %v1778
    %v1780 = vpop.f32.mrb[0].mxu0
    %v1781 = vpop.f32.mrb[0].mxu0
    %v1782 = vadd.f32 0.0, %v1781
    %v1783 = vpop.f32.mrb[0].mxu0
    %1784 = vmatprep.mubr.bf16.mxu0 %v1007
    %1785 = vmatmul.mubr.bf16.gmra.mrb[0].mxu0 %v1006
    %v1786 = vpop.f32.mrb[0].mxu0
    %v1787 = vadd.f32 0.0, %v1786
    %v1788 = vpop.f32.mrb[0].mxu0
    %v1789 = vpop.f32.mrb[0].mxu0
    %v1790 = vadd.f32 0.0, %v1789
    %v1791 = vpop.f32.mrb[0].mxu0
    %1792 = vmatprep.mubr.bf16.mxu0 %v1010
    %1793 = vmatmul.mubr.bf16.gmra.mrb[0].mxu0 %v1009
    %v1794 = vpop.f32.mrb[0].mxu0
    %v1795 = vadd.f32 0.0, %v1794
    %v1796 = vpop.f32.mrb[0].mxu0
    %v1797 = vpop.f32.mrb[0].mxu0
    %v1798 = vadd.f32 0.0, %v1797
    %v1799 = vpop.f32.mrb[0].mxu0
    %1800 = vmatprep.mubr.bf16.mxu0 %v1013
    %1801 = vmatmul.mubr.bf16.gmra.mrb[0].mxu0 %v1012
    %v1802 = vpop.f32.mrb[0].mxu0
    %v1803 = vadd.f32 0.0, %v1802
    %v1804 = vpop.f32.mrb[0].mxu0
    %v1805 = vpop.f32.mrb[0].mxu0
    %v1806 = vadd.f32 0.0, %v1805
    %v1807 = vpop.f32.mrb[0].mxu0
    %1808 = vmatprep.mubr.bf16.mxu0 %v1016
    %1809 = vmatmul.mubr.bf16.gmra.mrb[0].mxu0 %v1015
    %v1810 = vpop.f32.mrb[0].mxu0
    %v1811 = vadd.f32 0.0, %v1810
    %v1812 = vpop.f32.mrb[0].mxu0
    %v1813 = vpop.f32.mrb[0].mxu0
    %v1814 = vadd.f32 0.0, %v1813
    %v1815 = vpop.f32.mrb[0].mxu0
    %1816 = vmatprep.mubr.bf16.mxu0 %v1019
    %1817 = vmatmul.mubr.bf16.gmra.mrb[0].mxu0 %v1018
    %v1818 = vpop.f32.mrb[0].mxu0
    %v1819 = vadd.f32 0.0, %v1818
    %v1820 = vpop.f32.mrb[0].mxu0
    %v1821 = vpop.f32.mrb[0].mxu0
    %v1822 = vadd.f32 0.0, %v1821
    %v1823 = vpop.f32.mrb[0].mxu0
    %1824 = vmatprep.mubr.bf16.mxu0 %v1022
    %1825 = vmatmul.mubr.bf16.gmra.mrb[0].mxu0 %v1021
    %v1826 = vpop.f32.mrb[0].mxu0
    %v1827 = vadd.f32 0.0, %v1826
    %v1828 = vpop.f32.mrb[0].mxu0
    %v1829 = vpop.f32.mrb[0].mxu0
    %v1830 = vadd.f32 0.0, %v1829
    %v1831 = vpop.f32.mrb[0].mxu0
    %1832 = vmatprep.mubr.bf16.mxu0 %v1025
    %1833 = vmatmul.mubr.bf16.gmra.mrb[0].mxu0 %v1024
    %v1834 = vpop.f32.mrb[0].mxu0
    %v1835 = vadd.f32 0.0, %v1834
    %v1836 = vpop.f32.mrb[0].mxu0
    %v1837 = vpop.f32.mrb[0].mxu0
    %v1838 = vadd.f32 0.0, %v1837
    %v1839 = vpop.f32.mrb[0].mxu0
    %1840 = vmatprep.mubr.bf16.mxu0 %v1028
    %1841 = vmatmul.mubr.bf16.gmra.mrb[0].mxu0 %v1027
    %v1842 = vpop.f32.mrb[0].mxu0
    %v1843 = vadd.f32 0.0, %v1842
    %v1844 = vpop.f32.mrb[0].mxu0
    %v1845 = vpop.f32.mrb[0].mxu0
    %v1846 = vadd.f32 0.0, %v1845
    %v1847 = vpop.f32.mrb[0].mxu0
    %1848 = vmatprep.mubr.bf16.mxu0 %v1031
    %1849 = vmatmul.mubr.bf16.gmra.mrb[0].mxu0 %v1030
    %v1850 = vpop.f32.mrb[0].mxu0
    %v1851 = vadd.f32 0.0, %v1850
    %v1852 = vpop.f32.mrb[0].mxu0
    %v1853 = vpop.f32.mrb[0].mxu0
    %v1854 = vadd.f32 0.0, %v1853
    %v1855 = vpop.f32.mrb[0].mxu0
    %1856 = vmatprep.mubr.bf16.mxu0 %v1034
    %1857 = vmatmul.mubr.bf16.gmra.mrb[0].mxu0 %v1033
    %v1858 = vpop.f32.mrb[0].mxu0
    %v1859 = vadd.f32 0.0, %v1858
    %v1860 = vpop.f32.mrb[0].mxu0
    %v1861 = vpop.f32.mrb[0].mxu0
    %v1862 = vadd.f32 0.0, %v1861
    %v1863 = vpop.f32.mrb[0].mxu0
    %1864 = vmatprep.mubr.bf16.mxu0 %v1037
    %1865 = vmatmul.mubr.bf16.gmra.mrb[0].mxu0 %v1036
    %v1866 = vpop.f32.mrb[0].mxu0
    %v1867 = vadd.f32 0.0, %v1866
    %v1868 = vpop.f32.mrb[0].mxu0
    %v1869 = vpop.f32.mrb[0].mxu0
    %v1870 = vadd.f32 0.0, %v1869
    %v1871 = vpop.f32.mrb[0].mxu0
    %1872 = vmatprep.mubr.bf16.mxu0 %v1040
    %1873 = vmatmul.mubr.bf16.gmra.mrb[0].mxu0 %v1039
    %v1874 = vpop.f32.mrb[0].mxu0
    %v1875 = vadd.f32 0.0, %v1874
    %v1876 = vpop.f32.mrb[0].mxu0
    %v1877 = vpop.f32.mrb[0].mxu0
    %v1878 = vadd.f32 0.0, %v1877
    %v1879 = vpop.f32.mrb[0].mxu0
    %1880 = vmatprep.mubr.bf16.mxu0 %v1043
    %1881 = vmatmul.mubr.bf16.gmra.mrb[0].mxu0 %v1042
    %v1882 = vpop.f32.mrb[0].mxu0
    %v1883 = vadd.f32 0.0, %v1882
    %v1884 = vpop.f32.mrb[0].mxu0
    %v1885 = vpop.f32.mrb[0].mxu0
    %v1886 = vadd.f32 0.0, %v1885
    %v1887 = vpop.f32.mrb[0].mxu0
    %1888 = vmatprep.mubr.bf16.mxu0 %v1046
    %1889 = vmatmul.mubr.bf16.gmra.mrb[0].mxu0 %v1045
    %v1890 = vpop.f32.mrb[0].mxu0
    %v1891 = vadd.f32 0.0, %v1890
    %v1892 = vpop.f32.mrb[0].mxu0
    %v1893 = vpop.f32.mrb[0].mxu0
    %v1894 = vadd.f32 0.0, %v1893
    %v1895 = vpop.f32.mrb[0].mxu0
    %1896 = vmatprep.mubr.bf16.mxu0 %v1049
    %1897 = vmatmul.mubr.bf16.gmra.mrb[0].mxu0 %v1048
    %v1898 = vpop.f32.mrb[0].mxu0
    %v1899 = vadd.f32 0.0, %v1898
    %v1900 = vpop.f32.mrb[0].mxu0
    %v1901 = vpop.f32.mrb[0].mxu0
    %v1902 = vadd.f32 0.0, %v1901
    %v1903 = vpop.f32.mrb[0].mxu0
    %1904 = vmatprep.mubr.bf16.mxu0 %v1052
    %1905 = vmatmul.mubr.bf16.gmra.mrb[0].mxu0 %v1051
    %v1906 = vpop.f32.mrb[0].mxu0
    %v1907 = vadd.f32 0.0, %v1906
    %v1908 = vpop.f32.mrb[0].mxu0
    %v1909 = vpop.f32.mrb[0].mxu0
    %v1910 = vadd.f32 0.0, %v1909
    %v1911 = vpop.f32.mrb[0].mxu0
    %1912 = vmatprep.mubr.bf16.mxu0 %v1055
    %1913 = vmatmul.mubr.bf16.gmra.mrb[0].mxu0 %v1054
    %v1914 = vpop.f32.mrb[0].mxu0
    %v1915 = vadd.f32 0.0, %v1914
    %v1916 = vpop.f32.mrb[0].mxu0
    %v1917 = vpop.f32.mrb[0].mxu0
    %v1918 = vadd.f32 0.0, %v1917
    %v1919 = vpop.f32.mrb[0].mxu0
    %1920 = vmatprep.mubr.bf16.mxu0 %v1058
    %1921 = vmatmul.mubr.bf16.gmra.mrb[0].mxu0 %v1057
    %v1922 = vpop.f32.mrb[0].mxu0
    %v1923 = vadd.f32 0.0, %v1922
    %v1924 = vpop.f32.mrb[0].mxu0
    %v1925 = vpop.f32.mrb[0].mxu0
    %v1926 = vadd.f32 0.0, %v1925
    %v1927 = vpop.f32.mrb[0].mxu0
    %1928 = vmatprep.mubr.bf16.mxu0 %v1061
    %1929 = vmatmul.mubr.bf16.gmra.mrb[0].mxu0 %v1060
    %v1930 = vpop.f32.mrb[0].mxu0
    %v1931 = vadd.f32 0.0, %v1930
    %v1932 = vpop.f32.mrb[0].mxu0
    %v1933 = vpop.f32.mrb[0].mxu0
    %v1934 = vadd.f32 0.0, %v1933
    %v1935 = vpop.f32.mrb[0].mxu0
    %1936 = vmatprep.mubr.bf16.mxu0 %v1064
    %1937 = vmatmul.mubr.bf16.gmra.mrb[0].mxu0 %v1063
    %v1938 = vpop.f32.mrb[0].mxu0
    %v1939 = vadd.f32 0.0, %v1938
    %v1940 = vpop.f32.mrb[0].mxu0
    %v1941 = vpop.f32.mrb[0].mxu0
    %v1942 = vadd.f32 0.0, %v1941
    %v1943 = vpop.f32.mrb[0].mxu0
    %1944 = vmatprep.mubr.bf16.mxu0 %v1067
    %1945 = vmatmul.mubr.bf16.gmra.mrb[0].mxu0 %v1066
    %v1946 = vpop.f32.mrb[0].mxu0
    %v1947 = vadd.f32 0.0, %v1946
    %v1948 = vpop.f32.mrb[0].mxu0
    %v1949 = vpop.f32.mrb[0].mxu0
    %v1950 = vadd.f32 0.0, %v1949
    %v1951 = vpop.f32.mrb[0].mxu0
    %1952 = vmatprep.mubr.bf16.mxu0 %v1070
    %1953 = vmatmul.mubr.bf16.gmra.mrb[0].mxu0 %v1069
    %v1954 = vpop.f32.mrb[0].mxu0
    %v1955 = vadd.f32 0.0, %v1954
    %v1956 = vpop.f32.mrb[0].mxu0
    %v1957 = vpop.f32.mrb[0].mxu0
    %v1958 = vadd.f32 0.0, %v1957
    %v1959 = vpop.f32.mrb[0].mxu0
    %1960 = vmatprep.mubr.bf16.mxu0 %v1073
    %1961 = vmatmul.mubr.bf16.gmra.mrb[0].mxu0 %v1072
    %v1962 = vpop.f32.mrb[0].mxu0
    %v1963 = vadd.f32 0.0, %v1962
    %v1964 = vpop.f32.mrb[0].mxu0
    %v1965 = vpop.f32.mrb[0].mxu0
    %v1966 = vadd.f32 0.0, %v1965
    %v1967 = vpop.f32.mrb[0].mxu0
    %1968 = vmatprep.mubr.bf16.mxu0 %v1076
    %1969 = vmatmul.mubr.bf16.gmra.mrb[0].mxu0 %v1075
    %v1970 = vpop.f32.mrb[0].mxu0
    %v1971 = vadd.f32 0.0, %v1970
    %v1972 = vpop.f32.mrb[0].mxu0
    %v1973 = vpop.f32.mrb[0].mxu0
    %v1974 = vadd.f32 0.0, %v1973
    %v1975 = vpop.f32.mrb[0].mxu0
    %1976 = vmatprep.mubr.bf16.mxu0 %v1079
    %1977 = vmatmul.mubr.bf16.gmra.mrb[0].mxu0 %v1078
    %v1978 = vpop.f32.mrb[0].mxu0
    %v1979 = vadd.f32 0.0, %v1978
    %v1980 = vpop.f32.mrb[0].mxu0
    %v1981 = vpop.f32.mrb[0].mxu0
    %v1982 = vadd.f32 0.0, %v1981
    %v1983 = vpop.f32.mrb[0].mxu0
    %1984 = vmatprep.mubr.bf16.mxu0 %v1082
    %1985 = vmatmul.mubr.bf16.gmra.mrb[0].mxu0 %v1081
    %v1986 = vpop.f32.mrb[0].mxu0
    %v1987 = vadd.f32 0.0, %v1986
    %v1988 = vpop.f32.mrb[0].mxu0
    %v1989 = vpop.f32.mrb[0].mxu0
    %v1990 = vadd.f32 0.0, %v1989
    %v1991 = vpop.f32.mrb[0].mxu0
    %1992 = vmatprep.mubr.bf16.mxu0 %v1085
    %1993 = vmatmul.mubr.bf16.gmra.mrb[0].mxu0 %v1084
    %v1994 = vpop.f32.mrb[0].mxu0
    %v1995 = vadd.f32 0.0, %v1994
    %v1996 = vpop.f32.mrb[0].mxu0
    %v1997 = vpop.f32.mrb[0].mxu0
    %v1998 = vadd.f32 0.0, %v1997
    %v1999 = vpop.f32.mrb[0].mxu0
    %2000 = vmatprep.mubr.bf16.mxu0 %v1088
    %2001 = vmatmul.mubr.bf16.gmra.mrb[0].mxu0 %v1087
    %v2002 = vpop.f32.mrb[0].mxu0
    %v2003 = vadd.f32 0.0, %v2002
    %v2004 = vpop.f32.mrb[0].mxu0
    %v2005 = vpop.f32.mrb[0].mxu0
    %v2006 = vadd.f32 0.0, %v2005
    %v2007 = vpop.f32.mrb[0].mxu0
    %2008 = vdwg.mxu0
    %2009 = vmatprep.subr.bf16.mxu0 0
    %2010 = vmatpush1.bf16.msra.mxu0 %v1494
    %2011 = vmatprep.subr.bf16.mxu0 0
    %2012 = vmatpush1.bf16.msra.mxu0 0
    %2013 = vmatprep.subr.bf16.mxu0 0
    %2014 = vmatpush1.bf16.msra.mxu0 0
    %2015 = vmatprep.subr.bf16.mxu0 0
    %2016 = vmatpush1.bf16.msra.mxu0 0
    %2017 = vmatprep.subr.bf16.mxu0 0
    %2018 = vmatpush1.bf16.msra.mxu0 0
    %2019 = vmatprep.subr.bf16.mxu0 0
    %2020 = vmatpush1.bf16.msra.mxu0 0
    %2021 = vmatprep.subr.bf16.mxu0 0
    %2022 = vmatpush1.bf16.msra.mxu0 0
    %2023 = vmatprep.subr.bf16.mxu0 0
    %2024 = vmatpush1.bf16.msra.mxu0 0
    %2025 = vmatprep.subr.bf16.mxu0 0
    %2026 = vmatpush1.bf16.msra.mxu0 0
    %2027 = vmatprep.subr.bf16.mxu0 0
    %2028 = vmatpush1.bf16.msra.mxu0 0
    %2029 = vmatprep.subr.bf16.mxu0 0
    %2030 = vmatpush1.bf16.msra.mxu0 0
    %2031 = vmatprep.subr.bf16.mxu0 0
    %2032 = vmatpush1.bf16.msra.mxu0 0
    %2033 = vmatprep.subr.bf16.mxu0 0
    %2034 = vmatpush1.bf16.msra.mxu0 0
    %2035 = vmatprep.subr.bf16.mxu0 0
    %2036 = vmatpush1.bf16.msra.mxu0 0
    %2037 = vmatprep.subr.bf16.mxu0 0
    %2038 = vmatpush1.bf16.msra.mxu0 0
    %2039 = vmatprep.subr.bf16.mxu0 0
    %2040 = vmatpush1.bf16.msra.mxu0 0
    %2041 = vmatprep.mubr.bf16.mxu0 0
    %2042 = vmatmul.mubr.bf16.gmra.mrb[0].mxu0 %v1311
    %v2043 = vpop.f32.mrb[0].mxu0
    %v2044 = vadd.f32 %v1531, %v2043
    %v2045 = vpop.f32.mrb[0].mxu0
    %v2046 = vpop.f32.mrb[0].mxu0
    %v2047 = vadd.f32 %v1534, %v2046
    %v2048 = vpop.f32.mrb[0].mxu0
    %2049 = vmatprep.mubr.bf16.mxu0 0
    %2050 = vmatmul.mubr.bf16.gmra.mrb[0].mxu0 %v1314
    %v2051 = vpop.f32.mrb[0].mxu0
    %v2052 = vadd.f32 %v1539, %v2051
    %v2053 = vpop.f32.mrb[0].mxu0
    %v2054 = vpop.f32.mrb[0].mxu0
    %v2055 = vadd.f32 %v1542, %v2054
    %v2056 = vpop.f32.mrb[0].mxu0
    %2057 = vmatprep.mubr.bf16.mxu0 0
    %2058 = vmatmul.mubr.bf16.gmra.mrb[0].mxu0 %v1317
    %v2059 = vpop.f32.mrb[0].mxu0
    %v2060 = vadd.f32 %v1547, %v2059
    %v2061 = vpop.f32.mrb[0].mxu0
    %v2062 = vpop.f32.mrb[0].mxu0
    %v2063 = vadd.f32 %v1550, %v2062
    %v2064 = vpop.f32.mrb[0].mxu0
    %2065 = vmatprep.mubr.bf16.mxu0 0
    %2066 = vmatmul.mubr.bf16.gmra.mrb[0].mxu0 %v1320
    %v2067 = vpop.f32.mrb[0].mxu0
    %v2068 = vadd.f32 %v1555, %v2067
    %v2069 = vpop.f32.mrb[0].mxu0
    %v2070 = vpop.f32.mrb[0].mxu0
    %v2071 = vadd.f32 %v1558, %v2070
    %v2072 = vpop.f32.mrb[0].mxu0
    %2073 = vmatprep.mubr.bf16.mxu0 0
    %2074 = vmatmul.mubr.bf16.gmra.mrb[0].mxu0 %v1323
    %v2075 = vpop.f32.mrb[0].mxu0
    %v2076 = vadd.f32 %v1563, %v2075
    %v2077 = vpop.f32.mrb[0].mxu0
    %v2078 = vpop.f32.mrb[0].mxu0
    %v2079 = vadd.f32 %v1566, %v2078
    %v2080 = vpop.f32.mrb[0].mxu0
    %2081 = vmatprep.mubr.bf16.mxu0 0
    %2082 = vmatmul.mubr.bf16.gmra.mrb[0].mxu0 %v1326
    %v2083 = vpop.f32.mrb[0].mxu0
    %v2084 = vadd.f32 %v1571, %v2083
    %v2085 = vpop.f32.mrb[0].mxu0
    %v2086 = vpop.f32.mrb[0].mxu0
    %v2087 = vadd.f32 %v1574, %v2086
    %v2088 = vpop.f32.mrb[0].mxu0
    %2089 = vmatprep.mubr.bf16.mxu0 0
    %2090 = vmatmul.mubr.bf16.gmra.mrb[0].mxu0 %v1329
    %v2091 = vpop.f32.mrb[0].mxu0
    %v2092 = vadd.f32 %v1579, %v2091
    %v2093 = vpop.f32.mrb[0].mxu0
    %v2094 = vpop.f32.mrb[0].mxu0
    %v2095 = vadd.f32 %v1582, %v2094
    %v2096 = vpop.f32.mrb[0].mxu0
    %2097 = vmatprep.mubr.bf16.mxu0 0
    %2098 = vmatmul.mubr.bf16.gmra.mrb[0].mxu0 %v1332
    %v2099 = vpop.f32.mrb[0].mxu0
    %v2100 = vadd.f32 %v1587, %v2099
    %v2101 = vpop.f32.mrb[0].mxu0
    %v2102 = vpop.f32.mrb[0].mxu0
    %v2103 = vadd.f32 %v1590, %v2102
    %v2104 = vpop.f32.mrb[0].mxu0
    %2105 = vmatprep.mubr.bf16.mxu0 0
    %2106 = vmatmul.mubr.bf16.gmra.mrb[0].mxu0 %v1335
    %v2107 = vpop.f32.mrb[0].mxu0
    %v2108 = vadd.f32 %v1595, %v2107
    %v2109 = vpop.f32.mrb[0].mxu0
    %v2110 = vpop.f32.mrb[0].mxu0
    %v2111 = vadd.f32 %v1598, %v2110
    %v2112 = vpop.f32.mrb[0].mxu0
    %2113 = vmatprep.mubr.bf16.mxu0 0
    %2114 = vmatmul.mubr.bf16.gmra.mrb[0].mxu0 %v1338
    %v2115 = vpop.f32.mrb[0].mxu0
    %v2116 = vadd.f32 %v1603, %v2115
    %v2117 = vpop.f32.mrb[0].mxu0
    %v2118 = vpop.f32.mrb[0].mxu0
    %v2119 = vadd.f32 %v1606, %v2118
    %v2120 = vpop.f32.mrb[0].mxu0
    %2121 = vmatprep.mubr.bf16.mxu0 0
    %2122 = vmatmul.mubr.bf16.gmra.mrb[0].mxu0 %v1341
    %v2123 = vpop.f32.mrb[0].mxu0
    %v2124 = vadd.f32 %v1611, %v2123
    %v2125 = vpop.f32.mrb[0].mxu0
    %v2126 = vpop.f32.mrb[0].mxu0
    %v2127 = vadd.f32 %v1614, %v2126
    %v2128 = vpop.f32.mrb[0].mxu0
    %2129 = vmatprep.mubr.bf16.mxu0 0
    %2130 = vmatmul.mubr.bf16.gmra.mrb[0].mxu0 %v1344
    %v2131 = vpop.f32.mrb[0].mxu0
    %v2132 = vadd.f32 %v1619, %v2131
    %v2133 = vpop.f32.mrb[0].mxu0
    %v2134 = vpop.f32.mrb[0].mxu0
    %v2135 = vadd.f32 %v1622, %v2134
    %v2136 = vpop.f32.mrb[0].mxu0
    %2137 = vmatprep.mubr.bf16.mxu0 0
    %2138 = vmatmul.mubr.bf16.gmra.mrb[0].mxu0 %v1347
    %v2139 = vpop.f32.mrb[0].mxu0
    %v2140 = vadd.f32 %v1627, %v2139
    %v2141 = vpop.f32.mrb[0].mxu0
    %v2142 = vpop.f32.mrb[0].mxu0
    %v2143 = vadd.f32 %v1630, %v2142
    %v2144 = vpop.f32.mrb[0].mxu0
    %2145 = vmatprep.mubr.bf16.mxu0 0
    %2146 = vmatmul.mubr.bf16.gmra.mrb[0].mxu0 %v1350
    %v2147 = vpop.f32.mrb[0].mxu0
    %v2148 = vadd.f32 %v1635, %v2147
    %v2149 = vpop.f32.mrb[0].mxu0
    %v2150 = vpop.f32.mrb[0].mxu0
    %v2151 = vadd.f32 %v1638, %v2150
    %v2152 = vpop.f32.mrb[0].mxu0
    %2153 = vmatprep.mubr.bf16.mxu0 0
    %2154 = vmatmul.mubr.bf16.gmra.mrb[0].mxu0 %v1353
    %v2155 = vpop.f32.mrb[0].mxu0
    %v2156 = vadd.f32 %v1643, %v2155
    %v2157 = vpop.f32.mrb[0].mxu0
    %v2158 = vpop.f32.mrb[0].mxu0
    %v2159 = vadd.f32 %v1646, %v2158
    %v2160 = vpop.f32.mrb[0].mxu0
    %2161 = vmatprep.mubr.bf16.mxu0 0
    %2162 = vmatmul.mubr.bf16.gmra.mrb[0].mxu0 %v1356
    %v2163 = vpop.f32.mrb[0].mxu0
    %v2164 = vadd.f32 %v1651, %v2163
    %v2165 = vpop.f32.mrb[0].mxu0
    %v2166 = vpop.f32.mrb[0].mxu0
    %v2167 = vadd.f32 %v1654, %v2166
    %v2168 = vpop.f32.mrb[0].mxu0
    %2169 = vmatprep.mubr.bf16.mxu0 0
    %2170 = vmatmul.mubr.bf16.gmra.mrb[0].mxu0 %v1359
    %v2171 = vpop.f32.mrb[0].mxu0
    %v2172 = vadd.f32 %v1659, %v2171
    %v2173 = vpop.f32.mrb[0].mxu0
    %v2174 = vpop.f32.mrb[0].mxu0
    %v2175 = vadd.f32 %v1662, %v2174
    %v2176 = vpop.f32.mrb[0].mxu0
    %2177 = vmatprep.mubr.bf16.mxu0 0
    %2178 = vmatmul.mubr.bf16.gmra.mrb[0].mxu0 %v1362
    %v2179 = vpop.f32.mrb[0].mxu0
    %v2180 = vadd.f32 %v1667, %v2179
    %v2181 = vpop.f32.mrb[0].mxu0
    %v2182 = vpop.f32.mrb[0].mxu0
    %v2183 = vadd.f32 %v1670, %v2182
    %v2184 = vpop.f32.mrb[0].mxu0
    %2185 = vmatprep.mubr.bf16.mxu0 0
    %2186 = vmatmul.mubr.bf16.gmra.mrb[0].mxu0 %v1365
    %v2187 = vpop.f32.mrb[0].mxu0
    %v2188 = vadd.f32 %v1675, %v2187
    %v2189 = vpop.f32.mrb[0].mxu0
    %v2190 = vpop.f32.mrb[0].mxu0
    %v2191 = vadd.f32 %v1678, %v2190
    %v2192 = vpop.f32.mrb[0].mxu0
    %2193 = vmatprep.mubr.bf16.mxu0 0
    %2194 = vmatmul.mubr.bf16.gmra.mrb[0].mxu0 %v1368
    %v2195 = vpop.f32.mrb[0].mxu0
    %v2196 = vadd.f32 %v1683, %v2195
    %v2197 = vpop.f32.mrb[0].mxu0
    %v2198 = vpop.f32.mrb[0].mxu0
    %v2199 = vadd.f32 %v1686, %v2198
    %v2200 = vpop.f32.mrb[0].mxu0
    %2201 = vmatprep.mubr.bf16.mxu0 0
    %2202 = vmatmul.mubr.bf16.gmra.mrb[0].mxu0 %v1371
    %v2203 = vpop.f32.mrb[0].mxu0
    %v2204 = vadd.f32 %v1691, %v2203
    %v2205 = vpop.f32.mrb[0].mxu0
    %v2206 = vpop.f32.mrb[0].mxu0
    %v2207 = vadd.f32 %v1694, %v2206
    %v2208 = vpop.f32.mrb[0].mxu0
    %2209 = vmatprep.mubr.bf16.mxu0 0
    %2210 = vmatmul.mubr.bf16.gmra.mrb[0].mxu0 %v1374
    %v2211 = vpop.f32.mrb[0].mxu0
    %v2212 = vadd.f32 %v1699, %v2211
    %v2213 = vpop.f32.mrb[0].mxu0
    %v2214 = vpop.f32.mrb[0].mxu0
    %v2215 = vadd.f32 %v1702, %v2214
    %v2216 = vpop.f32.mrb[0].mxu0
    %2217 = vmatprep.mubr.bf16.mxu0 0
    %2218 = vmatmul.mubr.bf16.gmra.mrb[0].mxu0 %v1377
    %v2219 = vpop.f32.mrb[0].mxu0
    %v2220 = vadd.f32 %v1707, %v2219
    %v2221 = vpop.f32.mrb[0].mxu0
    %v2222 = vpop.f32.mrb[0].mxu0
    %v2223 = vadd.f32 %v1710, %v2222
    %v2224 = vpop.f32.mrb[0].mxu0
    %2225 = vmatprep.mubr.bf16.mxu0 0
    %2226 = vmatmul.mubr.bf16.gmra.mrb[0].mxu0 %v1380
    %v2227 = vpop.f32.mrb[0].mxu0
    %v2228 = vadd.f32 %v1715, %v2227
    %v2229 = vpop.f32.mrb[0].mxu0
    %v2230 = vpop.f32.mrb[0].mxu0
    %v2231 = vadd.f32 %v1718, %v2230
    %v2232 = vpop.f32.mrb[0].mxu0
    %2233 = vmatprep.mubr.bf16.mxu0 0
    %2234 = vmatmul.mubr.bf16.gmra.mrb[0].mxu0 %v1383
    %v2235 = vpop.f32.mrb[0].mxu0
    %v2236 = vadd.f32 %v1723, %v2235
    %v2237 = vpop.f32.mrb[0].mxu0
    %v2238 = vpop.f32.mrb[0].mxu0
    %v2239 = vadd.f32 %v1726, %v2238
    %v2240 = vpop.f32.mrb[0].mxu0
    %2241 = vmatprep.mubr.bf16.mxu0 0
    %2242 = vmatmul.mubr.bf16.gmra.mrb[0].mxu0 %v1386
    %v2243 = vpop.f32.mrb[0].mxu0
    %v2244 = vadd.f32 %v1731, %v2243
    %v2245 = vpop.f32.mrb[0].mxu0
    %v2246 = vpop.f32.mrb[0].mxu0
    %v2247 = vadd.f32 %v1734, %v2246
    %v2248 = vpop.f32.mrb[0].mxu0
    %2249 = vmatprep.mubr.bf16.mxu0 0
    %2250 = vmatmul.mubr.bf16.gmra.mrb[0].mxu0 %v1389
    %v2251 = vpop.f32.mrb[0].mxu0
    %v2252 = vadd.f32 %v1739, %v2251
    %v2253 = vpop.f32.mrb[0].mxu0
    %v2254 = vpop.f32.mrb[0].mxu0
    %v2255 = vadd.f32 %v1742, %v2254
    %v2256 = vpop.f32.mrb[0].mxu0
    %2257 = vmatprep.mubr.bf16.mxu0 0
    %2258 = vmatmul.mubr.bf16.gmra.mrb[0].mxu0 %v1392
    %v2259 = vpop.f32.mrb[0].mxu0
    %v2260 = vadd.f32 %v1747, %v2259
    %v2261 = vpop.f32.mrb[0].mxu0
    %v2262 = vpop.f32.mrb[0].mxu0
    %v2263 = vadd.f32 %v1750, %v2262
    %v2264 = vpop.f32.mrb[0].mxu0
    %2265 = vmatprep.mubr.bf16.mxu0 0
    %2266 = vmatmul.mubr.bf16.gmra.mrb[0].mxu0 %v1395
    %v2267 = vpop.f32.mrb[0].mxu0
    %v2268 = vadd.f32 %v1755, %v2267
    %v2269 = vpop.f32.mrb[0].mxu0
    %v2270 = vpop.f32.mrb[0].mxu0
    %v2271 = vadd.f32 %v1758, %v2270
    %v2272 = vpop.f32.mrb[0].mxu0
    %2273 = vmatprep.mubr.bf16.mxu0 0
    %2274 = vmatmul.mubr.bf16.gmra.mrb[0].mxu0 %v1398
    %v2275 = vpop.f32.mrb[0].mxu0
    %v2276 = vadd.f32 %v1763, %v2275
    %v2277 = vpop.f32.mrb[0].mxu0
    %v2278 = vpop.f32.mrb[0].mxu0
    %v2279 = vadd.f32 %v1766, %v2278
    %v2280 = vpop.f32.mrb[0].mxu0
    %2281 = vmatprep.mubr.bf16.mxu0 0
    %2282 = vmatmul.mubr.bf16.gmra.mrb[0].mxu0 %v1401
    %v2283 = vpop.f32.mrb[0].mxu0
    %v2284 = vadd.f32 %v1771, %v2283
    %v2285 = vpop.f32.mrb[0].mxu0
    %v2286 = vpop.f32.mrb[0].mxu0
    %v2287 = vadd.f32 %v1774, %v2286
    %v2288 = vpop.f32.mrb[0].mxu0
    %2289 = vmatprep.mubr.bf16.mxu0 0
    %2290 = vmatmul.mubr.bf16.gmra.mrb[0].mxu0 %v1404
    %v2291 = vpop.f32.mrb[0].mxu0
    %v2292 = vadd.f32 %v1779, %v2291
    %v2293 = vpop.f32.mrb[0].mxu0
    %v2294 = vpop.f32.mrb[0].mxu0
    %v2295 = vadd.f32 %v1782, %v2294
    %v2296 = vpop.f32.mrb[0].mxu0
    %2297 = vmatprep.mubr.bf16.mxu0 0
    %2298 = vmatmul.mubr.bf16.gmra.mrb[0].mxu0 %v1407
    %v2299 = vpop.f32.mrb[0].mxu0
    %v2300 = vadd.f32 %v1787, %v2299
    %v2301 = vpop.f32.mrb[0].mxu0
    %v2302 = vpop.f32.mrb[0].mxu0
    %v2303 = vadd.f32 %v1790, %v2302
    %v2304 = vpop.f32.mrb[0].mxu0
    %2305 = vmatprep.mubr.bf16.mxu0 0
    %2306 = vmatmul.mubr.bf16.gmra.mrb[0].mxu0 %v1410
    %v2307 = vpop.f32.mrb[0].mxu0
    %v2308 = vadd.f32 %v1795, %v2307
    %v2309 = vpop.f32.mrb[0].mxu0
    %v2310 = vpop.f32.mrb[0].mxu0
    %v2311 = vadd.f32 %v1798, %v2310
    %v2312 = vpop.f32.mrb[0].mxu0
    %2313 = vmatprep.mubr.bf16.mxu0 0
    %2314 = vmatmul.mubr.bf16.gmra.mrb[0].mxu0 %v1413
    %v2315 = vpop.f32.mrb[0].mxu0
    %v2316 = vadd.f32 %v1803, %v2315
    %v2317 = vpop.f32.mrb[0].mxu0
    %v2318 = vpop.f32.mrb[0].mxu0
    %v2319 = vadd.f32 %v1806, %v2318
    %v2320 = vpop.f32.mrb[0].mxu0
    %2321 = vmatprep.mubr.bf16.mxu0 0
    %2322 = vmatmul.mubr.bf16.gmra.mrb[0].mxu0 %v1416
    %v2323 = vpop.f32.mrb[0].mxu0
    %v2324 = vadd.f32 %v1811, %v2323
    %v2325 = vpop.f32.mrb[0].mxu0
    %v2326 = vpop.f32.mrb[0].mxu0
    %v2327 = vadd.f32 %v1814, %v2326
    %v2328 = vpop.f32.mrb[0].mxu0
    %2329 = vmatprep.mubr.bf16.mxu0 0
    %2330 = vmatmul.mubr.bf16.gmra.mrb[0].mxu0 %v1419
    %v2331 = vpop.f32.mrb[0].mxu0
    %v2332 = vadd.f32 %v1819, %v2331
    %v2333 = vpop.f32.mrb[0].mxu0
    %v2334 = vpop.f32.mrb[0].mxu0
    %v2335 = vadd.f32 %v1822, %v2334
    %v2336 = vpop.f32.mrb[0].mxu0
    %2337 = vmatprep.mubr.bf16.mxu0 0
    %2338 = vmatmul.mubr.bf16.gmra.mrb[0].mxu0 %v1422
    %v2339 = vpop.f32.mrb[0].mxu0
    %v2340 = vadd.f32 %v1827, %v2339
    %v2341 = vpop.f32.mrb[0].mxu0
    %v2342 = vpop.f32.mrb[0].mxu0
    %v2343 = vadd.f32 %v1830, %v2342
    %v2344 = vpop.f32.mrb[0].mxu0
    %2345 = vmatprep.mubr.bf16.mxu0 0
    %2346 = vmatmul.mubr.bf16.gmra.mrb[0].mxu0 %v1425
    %v2347 = vpop.f32.mrb[0].mxu0
    %v2348 = vadd.f32 %v1835, %v2347
    %v2349 = vpop.f32.mrb[0].mxu0
    %v2350 = vpop.f32.mrb[0].mxu0
    %v2351 = vadd.f32 %v1838, %v2350
    %v2352 = vpop.f32.mrb[0].mxu0
    %2353 = vmatprep.mubr.bf16.mxu0 0
    %2354 = vmatmul.mubr.bf16.gmra.mrb[0].mxu0 %v1428
    %v2355 = vpop.f32.mrb[0].mxu0
    %v2356 = vadd.f32 %v1843, %v2355
    %v2357 = vpop.f32.mrb[0].mxu0
    %v2358 = vpop.f32.mrb[0].mxu0
    %v2359 = vadd.f32 %v1846, %v2358
    %v2360 = vpop.f32.mrb[0].mxu0
    %2361 = vmatprep.mubr.bf16.mxu0 0
    %2362 = vmatmul.mubr.bf16.gmra.mrb[0].mxu0 %v1431
    %v2363 = vpop.f32.mrb[0].mxu0
    %v2364 = vadd.f32 %v1851, %v2363
    %v2365 = vpop.f32.mrb[0].mxu0
    %v2366 = vpop.f32.mrb[0].mxu0
    %v2367 = vadd.f32 %v1854, %v2366
    %v2368 = vpop.f32.mrb[0].mxu0
    %2369 = vmatprep.mubr.bf16.mxu0 0
    %2370 = vmatmul.mubr.bf16.gmra.mrb[0].mxu0 %v1434
    %v2371 = vpop.f32.mrb[0].mxu0
    %v2372 = vadd.f32 %v1859, %v2371
    %v2373 = vpop.f32.mrb[0].mxu0
    %v2374 = vpop.f32.mrb[0].mxu0
    %v2375 = vadd.f32 %v1862, %v2374
    %v2376 = vpop.f32.mrb[0].mxu0
    %2377 = vmatprep.mubr.bf16.mxu0 0
    %2378 = vmatmul.mubr.bf16.gmra.mrb[0].mxu0 %v1437
    %v2379 = vpop.f32.mrb[0].mxu0
    %v2380 = vadd.f32 %v1867, %v2379
    %v2381 = vpop.f32.mrb[0].mxu0
    %v2382 = vpop.f32.mrb[0].mxu0
    %v2383 = vadd.f32 %v1870, %v2382
    %v2384 = vpop.f32.mrb[0].mxu0
    %2385 = vmatprep.mubr.bf16.mxu0 0
    %2386 = vmatmul.mubr.bf16.gmra.mrb[0].mxu0 %v1440
    %v2387 = vpop.f32.mrb[0].mxu0
    %v2388 = vadd.f32 %v1875, %v2387
    %v2389 = vpop.f32.mrb[0].mxu0
    %v2390 = vpop.f32.mrb[0].mxu0
    %v2391 = vadd.f32 %v1878, %v2390
    %v2392 = vpop.f32.mrb[0].mxu0
    %2393 = vmatprep.mubr.bf16.mxu0 0
    %2394 = vmatmul.mubr.bf16.gmra.mrb[0].mxu0 %v1443
    %v2395 = vpop.f32.mrb[0].mxu0
    %v2396 = vadd.f32 %v1883, %v2395
    %v2397 = vpop.f32.mrb[0].mxu0
    %v2398 = vpop.f32.mrb[0].mxu0
    %v2399 = vadd.f32 %v1886, %v2398
    %v2400 = vpop.f32.mrb[0].mxu0
    %2401 = vmatprep.mubr.bf16.mxu0 0
    %2402 = vmatmul.mubr.bf16.gmra.mrb[0].mxu0 %v1446
    %v2403 = vpop.f32.mrb[0].mxu0
    %v2404 = vadd.f32 %v1891, %v2403
    %v2405 = vpop.f32.mrb[0].mxu0
    %v2406 = vpop.f32.mrb[0].mxu0
    %v2407 = vadd.f32 %v1894, %v2406
    %v2408 = vpop.f32.mrb[0].mxu0
    %2409 = vmatprep.mubr.bf16.mxu0 0
    %2410 = vmatmul.mubr.bf16.gmra.mrb[0].mxu0 %v1449
    %v2411 = vpop.f32.mrb[0].mxu0
    %v2412 = vadd.f32 %v1899, %v2411
    %v2413 = vpop.f32.mrb[0].mxu0
    %v2414 = vpop.f32.mrb[0].mxu0
    %v2415 = vadd.f32 %v1902, %v2414
    %v2416 = vpop.f32.mrb[0].mxu0
    %2417 = vmatprep.mubr.bf16.mxu0 0
    %2418 = vmatmul.mubr.bf16.gmra.mrb[0].mxu0 %v1452
    %v2419 = vpop.f32.mrb[0].mxu0
    %v2420 = vadd.f32 %v1907, %v2419
    %v2421 = vpop.f32.mrb[0].mxu0
    %v2422 = vpop.f32.mrb[0].mxu0
    %v2423 = vadd.f32 %v1910, %v2422
    %v2424 = vpop.f32.mrb[0].mxu0
    %2425 = vmatprep.mubr.bf16.mxu0 0
    %2426 = vmatmul.mubr.bf16.gmra.mrb[0].mxu0 %v1455
    %v2427 = vpop.f32.mrb[0].mxu0
    %v2428 = vadd.f32 %v1915, %v2427
    %v2429 = vpop.f32.mrb[0].mxu0
    %v2430 = vpop.f32.mrb[0].mxu0
    %v2431 = vadd.f32 %v1918, %v2430
    %v2432 = vpop.f32.mrb[0].mxu0
    %2433 = vmatprep.mubr.bf16.mxu0 0
    %2434 = vmatmul.mubr.bf16.gmra.mrb[0].mxu0 %v1458
    %v2435 = vpop.f32.mrb[0].mxu0
    %v2436 = vadd.f32 %v1923, %v2435
    %v2437 = vpop.f32.mrb[0].mxu0
    %v2438 = vpop.f32.mrb[0].mxu0
    %v2439 = vadd.f32 %v1926, %v2438
    %v2440 = vpop.f32.mrb[0].mxu0
    %2441 = vmatprep.mubr.bf16.mxu0 0
    %2442 = vmatmul.mubr.bf16.gmra.mrb[0].mxu0 %v1461
    %v2443 = vpop.f32.mrb[0].mxu0
    %v2444 = vadd.f32 %v1931, %v2443
    %v2445 = vpop.f32.mrb[0].mxu0
    %v2446 = vpop.f32.mrb[0].mxu0
    %v2447 = vadd.f32 %v1934, %v2446
    %v2448 = vpop.f32.mrb[0].mxu0
    %2449 = vmatprep.mubr.bf16.mxu0 0
    %2450 = vmatmul.mubr.bf16.gmra.mrb[0].mxu0 %v1464
    %v2451 = vpop.f32.mrb[0].mxu0
    %v2452 = vadd.f32 %v1939, %v2451
    %v2453 = vpop.f32.mrb[0].mxu0
    %v2454 = vpop.f32.mrb[0].mxu0
    %v2455 = vadd.f32 %v1942, %v2454
    %v2456 = vpop.f32.mrb[0].mxu0
    %2457 = vmatprep.mubr.bf16.mxu0 0
    %2458 = vmatmul.mubr.bf16.gmra.mrb[0].mxu0 %v1467
    %v2459 = vpop.f32.mrb[0].mxu0
    %v2460 = vadd.f32 %v1947, %v2459
    %v2461 = vpop.f32.mrb[0].mxu0
    %v2462 = vpop.f32.mrb[0].mxu0
    %v2463 = vadd.f32 %v1950, %v2462
    %v2464 = vpop.f32.mrb[0].mxu0
    %2465 = vmatprep.mubr.bf16.mxu0 0
    %2466 = vmatmul.mubr.bf16.gmra.mrb[0].mxu0 %v1470
    %v2467 = vpop.f32.mrb[0].mxu0
    %v2468 = vadd.f32 %v1955, %v2467
    %v2469 = vpop.f32.mrb[0].mxu0
    %v2470 = vpop.f32.mrb[0].mxu0
    %v2471 = vadd.f32 %v1958, %v2470
    %v2472 = vpop.f32.mrb[0].mxu0
    %2473 = vmatprep.mubr.bf16.mxu0 0
    %2474 = vmatmul.mubr.bf16.gmra.mrb[0].mxu0 %v1473
    %v2475 = vpop.f32.mrb[0].mxu0
    %v2476 = vadd.f32 %v1963, %v2475
    %v2477 = vpop.f32.mrb[0].mxu0
    %v2478 = vpop.f32.mrb[0].mxu0
    %v2479 = vadd.f32 %v1966, %v2478
    %v2480 = vpop.f32.mrb[0].mxu0
    %2481 = vmatprep.mubr.bf16.mxu0 0
    %2482 = vmatmul.mubr.bf16.gmra.mrb[0].mxu0 %v1476
    %v2483 = vpop.f32.mrb[0].mxu0
    %v2484 = vadd.f32 %v1971, %v2483
    %v2485 = vpop.f32.mrb[0].mxu0
    %v2486 = vpop.f32.mrb[0].mxu0
    %v2487 = vadd.f32 %v1974, %v2486
    %v2488 = vpop.f32.mrb[0].mxu0
    %2489 = vmatprep.mubr.bf16.mxu0 0
    %2490 = vmatmul.mubr.bf16.gmra.mrb[0].mxu0 %v1479
    %v2491 = vpop.f32.mrb[0].mxu0
    %v2492 = vadd.f32 %v1979, %v2491
    %v2493 = vpop.f32.mrb[0].mxu0
    %v2494 = vpop.f32.mrb[0].mxu0
    %v2495 = vadd.f32 %v1982, %v2494
    %v2496 = vpop.f32.mrb[0].mxu0
    %2497 = vmatprep.mubr.bf16.mxu0 0
    %2498 = vmatmul.mubr.bf16.gmra.mrb[0].mxu0 %v1482
    %v2499 = vpop.f32.mrb[0].mxu0
    %v2500 = vadd.f32 %v1987, %v2499
    %v2501 = vpop.f32.mrb[0].mxu0
    %v2502 = vpop.f32.mrb[0].mxu0
    %v2503 = vadd.f32 %v1990, %v2502
    %v2504 = vpop.f32.mrb[0].mxu0
    %2505 = vmatprep.mubr.bf16.mxu0 0
    %2506 = vmatmul.mubr.bf16.gmra.mrb[0].mxu0 %v1485
    %v2507 = vpop.f32.mrb[0].mxu0
    %v2508 = vadd.f32 %v1995, %v2507
    %v2509 = vpop.f32.mrb[0].mxu0
    %v2510 = vpop.f32.mrb[0].mxu0
    %v2511 = vadd.f32 %v1998, %v2510
    %v2512 = vpop.f32.mrb[0].mxu0
    %2513 = vmatprep.mubr.bf16.mxu0 0
    %2514 = vmatmul.mubr.bf16.gmra.mrb[0].mxu0 %v1488
    %v2515 = vpop.f32.mrb[0].mxu0
    %v2516 = vadd.f32 %v2003, %v2515
    %v2517 = vpop.f32.mrb[0].mxu0
    %v2518 = vpop.f32.mrb[0].mxu0
    %v2519 = vadd.f32 %v2006, %v2518
    %v2520 = vpop.f32.mrb[0].mxu0
    %2521 = vdwg.mxu0
    %v2522 = vmax.f32 %v2044, %v2164
    %v2523 = vmax.f32 %v2047, %v2167
    %v2524 = vmax.f32 %v2052, %v2172
    %v2525 = vmax.f32 %v2055, %v2175
    %v2526 = vmax.f32 %v2060, %v2180
    %v2527 = vmax.f32 %v2063, %v2183
    %v2528 = vmax.f32 %v2068, %v2188
    %v2529 = vmax.f32 %v2071, %v2191
    %v2530 = vmax.f32 %v2076, %v2196
    %v2531 = vmax.f32 %v2079, %v2199
    %v2532 = vmax.f32 %v2084, %v2204
    %v2533 = vmax.f32 %v2087, %v2207
    %v2534 = vmax.f32 %v2092, %v2212
    %v2535 = vmax.f32 %v2095, %v2215
    %v2536 = vmax.f32 %v2100, %v2220
    %v2537 = vmax.f32 %v2103, %v2223
    %v2538 = vmax.f32 %v2108, %v2228
    %v2539 = vmax.f32 %v2111, %v2231
    %v2540 = vmax.f32 %v2116, %v2236
    %v2541 = vmax.f32 %v2119, %v2239
    %v2542 = vmax.f32 %v2124, %v2244
    %v2543 = vmax.f32 %v2127, %v2247
    %v2544 = vmax.f32 %v2132, %v2252
    %v2545 = vmax.f32 %v2135, %v2255
    %v2546 = vmax.f32 %v2140, %v2260
    %v2547 = vmax.f32 %v2143, %v2263
    %v2548 = vmax.f32 %v2148, %v2268
    %v2549 = vmax.f32 %v2151, %v2271
    %v2550 = vmax.f32 %v2156, %v2276
    %v2551 = vmax.f32 %v2159, %v2279
    %v2552 = vmax.f32 %v2284, %v2404
    %v2553 = vmax.f32 %v2287, %v2407
    %v2554 = vmax.f32 %v2292, %v2412
    %v2555 = vmax.f32 %v2295, %v2415
    %v2556 = vmax.f32 %v2300, %v2420
    %v2557 = vmax.f32 %v2303, %v2423
    %v2558 = vmax.f32 %v2308, %v2428
    %v2559 = vmax.f32 %v2311, %v2431
    %v2560 = vmax.f32 %v2316, %v2436
    %v2561 = vmax.f32 %v2319, %v2439
    %v2562 = vmax.f32 %v2324, %v2444
    %v2563 = vmax.f32 %v2327, %v2447
    %v2564 = vmax.f32 %v2332, %v2452
    %v2565 = vmax.f32 %v2335, %v2455
    %v2566 = vmax.f32 %v2340, %v2460
    %v2567 = vmax.f32 %v2343, %v2463
    %v2568 = vmax.f32 %v2348, %v2468
    %v2569 = vmax.f32 %v2351, %v2471
    %v2570 = vmax.f32 %v2356, %v2476
    %v2571 = vmax.f32 %v2359, %v2479
    %v2572 = vmax.f32 %v2364, %v2484
    %v2573 = vmax.f32 %v2367, %v2487
    %v2574 = vmax.f32 %v2372, %v2492
    %v2575 = vmax.f32 %v2375, %v2495
    %v2576 = vmax.f32 %v2380, %v2500
    %v2577 = vmax.f32 %v2383, %v2503
    %v2578 = vmax.f32 %v2388, %v2508
    %v2579 = vmax.f32 %v2391, %v2511
    %v2580 = vmax.f32 %v2396, %v2516
    %v2581 = vmax.f32 %v2399, %v2519
    %v2582 = vmax.f32 %v2522, %v2552
    %v2583 = vmax.f32 %v2523, %v2553
    %v2584 = vmax.f32 %v2524, %v2554
    %v2585 = vmax.f32 %v2525, %v2555
    %v2586 = vmax.f32 %v2526, %v2556
    %v2587 = vmax.f32 %v2527, %v2557
    %v2588 = vmax.f32 %v2528, %v2558
    %v2589 = vmax.f32 %v2529, %v2559
    %v2590 = vmax.f32 %v2530, %v2560
    %v2591 = vmax.f32 %v2531, %v2561
    %v2592 = vmax.f32 %v2532, %v2562
    %v2593 = vmax.f32 %v2533, %v2563
    %v2594 = vmax.f32 %v2534, %v2564
    %v2595 = vmax.f32 %v2535, %v2565
    %v2596 = vmax.f32 %v2536, %v2566
    %v2597 = vmax.f32 %v2537, %v2567
    %v2598 = vmax.f32 %v2538, %v2568
    %v2599 = vmax.f32 %v2539, %v2569
    %v2600 = vmax.f32 %v2540, %v2570
    %v2601 = vmax.f32 %v2541, %v2571
    %v2602 = vmax.f32 %v2542, %v2572
    %v2603 = vmax.f32 %v2543, %v2573
    %v2604 = vmax.f32 %v2544, %v2574
    %v2605 = vmax.f32 %v2545, %v2575
    %v2606 = vmax.f32 %v2546, %v2576
    %v2607 = vmax.f32 %v2547, %v2577
    %v2608 = vmax.f32 %v2548, %v2578
    %v2609 = vmax.f32 %v2549, %v2579
    %v2610 = vmax.f32 %v2550, %v2580
    %v2611 = vmax.f32 %v2551, %v2581
    %v2612 = vmax.f32 %v2582, 0.0
    %v2613 = vmax.f32 %v2583, 0.0
    %v2614 = vmax.f32 %v2584, 0.0
    %v2615 = vmax.f32 %v2585, 0.0
    %v2616 = vmax.f32 %v2586, 0.0
    %v2617 = vmax.f32 %v2587, 0.0
    %v2618 = vmax.f32 %v2588, 0.0
    %v2619 = vmax.f32 %v2589, 0.0
    %v2620 = vmax.f32 %v2590, 0.0
    %v2621 = vmax.f32 %v2591, 0.0
    %v2622 = vmax.f32 %v2592, 0.0
    %v2623 = vmax.f32 %v2593, 0.0
    %v2624 = vmax.f32 %v2594, 0.0
    %v2625 = vmax.f32 %v2595, 0.0
    %v2626 = vmax.f32 %v2596, 0.0
    %v2627 = vmax.f32 %v2597, 0.0
    %v2628 = vmax.f32 %v2598, 0.0
    %v2629 = vmax.f32 %v2599, 0.0
    %v2630 = vmax.f32 %v2600, 0.0
    %v2631 = vmax.f32 %v2601, 0.0
    %v2632 = vmax.f32 %v2602, 0.0
    %v2633 = vmax.f32 %v2603, 0.0
    %v2634 = vmax.f32 %v2604, 0.0
    %v2635 = vmax.f32 %v2605, 0.0
    %v2636 = vmax.f32 %v2606, 0.0
    %v2637 = vmax.f32 %v2607, 0.0
    %v2638 = vmax.f32 %v2608, 0.0
    %v2639 = vmax.f32 %v2609, 0.0
    %v2640 = vmax.f32 %v2610, 0.0
    %v2641 = vmax.f32 %v2611, 0.0
    %2642 = vst [vmem:[#allocation2] sm:$0xff] 0.0
    %2643 = vst [vmem:[#allocation2 + $0x8] sm:$0xff] 0.0
    %2644 = vst [vmem:[#allocation2 + $0x10] sm:$0xff] 0.0
    %2645 = vst [vmem:[#allocation2 + $0x18] sm:$0xff] 0.0
    %2646 = vst [vmem:[#allocation2 + $0x20] sm:$0xff] 0.0
    %2647 = vst [vmem:[#allocation2 + $0x28] sm:$0xff] 0.0
    %2648 = vst [vmem:[#allocation2 + $0x30] sm:$0xff] 0.0
    %2649 = vst [vmem:[#allocation2 + $0x38] sm:$0xff] 0.0
    %2650 = vst [vmem:[#allocation2 + $0x40] sm:$0xff] 0.0
    %2654 = vrot.lane.b32.xlu0 %v2612, 32
    %v2655 = vpop.permute.xlu0 %2654
    %2656 = vrot.lane.b32.xlu0 %v2613, 32
    %v2657 = vpop.permute.xlu0 %2656
    %2658 = vrot.lane.b32.xlu0 %v2614, 32
    %v2659 = vpop.permute.xlu0 %2658
    %vm2663 = vcmask 523520
    %2664 = vst.msk [vmem:[#allocation2] sm:$0xff] %vm2663, %v2655
    %2665 = vst.msk [vmem:[#allocation2 + $0x18] sm:$0xff] %vm2663, %v2657
    %2666 = vst.msk [vmem:[#allocation2 + $0x30] sm:$0xff] %vm2663, %v2659
    %2670 = vrot.lane.b32.xlu0 %v2615, 64
    %v2671 = vpop.permute.xlu0 %2670
    %2672 = vrot.lane.b32.xlu0 %v2616, 64
    %v2673 = vpop.permute.xlu0 %2672
    %2674 = vrot.lane.b32.xlu0 %v2617, 64
    %v2675 = vpop.permute.xlu0 %2674
    %vm2679 = vcmask 785920
    %2680 = vst.msk [vmem:[#allocation2] sm:$0xff] %vm2679, %v2671
    %2681 = vst.msk [vmem:[#allocation2 + $0x18] sm:$0xff] %vm2679, %v2673
    %2682 = vst.msk [vmem:[#allocation2 + $0x30] sm:$0xff] %vm2679, %v2675
    %2686 = vrot.lane.b32.xlu0 %v2618, 96
    %v2687 = vpop.permute.xlu0 %2686
    %2688 = vrot.lane.b32.xlu0 %v2619, 96
    %v2689 = vpop.permute.xlu0 %2688
    %2690 = vrot.lane.b32.xlu0 %v2620, 96
    %v2691 = vpop.permute.xlu0 %2690
    %vm2695 = vcmask 1048320
    %2696 = vst.msk [vmem:[#allocation2] sm:$0xff] %vm2695, %v2687
    %2697 = vst.msk [vmem:[#allocation2 + $0x18] sm:$0xff] %vm2695, %v2689
    %2698 = vst.msk [vmem:[#allocation2 + $0x30] sm:$0xff] %vm2695, %v2691
    %vm2699 = vcmask 261120
    %2700 = vst.msk [vmem:[#allocation2 + $0x8] sm:$0xff] %vm2699, %v2621
    %2701 = vst.msk [vmem:[#allocation2 + $0x20] sm:$0xff] %vm2699, %v2622
    %2702 = vst.msk [vmem:[#allocation2 + $0x38] sm:$0xff] %vm2699, %v2623
    %2706 = vrot.lane.b32.xlu0 %v2624, 32
    %v2707 = vpop.permute.xlu0 %2706
    %2708 = vrot.lane.b32.xlu0 %v2625, 32
    %v2709 = vpop.permute.xlu0 %2708
    %2710 = vrot.lane.b32.xlu0 %v2626, 32
    %v2711 = vpop.permute.xlu0 %2710
    %2715 = vst.msk [vmem:[#allocation2 + $0x8] sm:$0xff] %vm2663, %v2707
    %2716 = vst.msk [vmem:[#allocation2 + $0x20] sm:$0xff] %vm2663, %v2709
    %2717 = vst.msk [vmem:[#allocation2 + $0x38] sm:$0xff] %vm2663, %v2711
    %2721 = vrot.lane.b32.xlu0 %v2627, 64
    %v2722 = vpop.permute.xlu0 %2721
    %2723 = vrot.lane.b32.xlu0 %v2628, 64
    %v2724 = vpop.permute.xlu0 %2723
    %2725 = vrot.lane.b32.xlu0 %v2629, 64
    %v2726 = vpop.permute.xlu0 %2725
    %2730 = vst.msk [vmem:[#allocation2 + $0x8] sm:$0xff] %vm2679, %v2722
    %2731 = vst.msk [vmem:[#allocation2 + $0x20] sm:$0xff] %vm2679, %v2724
    %2732 = vst.msk [vmem:[#allocation2 + $0x38] sm:$0xff] %vm2679, %v2726
    %2736 = vrot.lane.b32.xlu0 %v2630, 96
    %v2737 = vpop.permute.xlu0 %2736
    %2738 = vrot.lane.b32.xlu0 %v2631, 96
    %v2739 = vpop.permute.xlu0 %2738
    %2740 = vrot.lane.b32.xlu0 %v2632, 96
    %v2741 = vpop.permute.xlu0 %2740
    %2745 = vst.msk [vmem:[#allocation2 + $0x8] sm:$0xff] %vm2695, %v2737
    %2746 = vst.msk [vmem:[#allocation2 + $0x20] sm:$0xff] %vm2695, %v2739
    %2747 = vst.msk [vmem:[#allocation2 + $0x38] sm:$0xff] %vm2695, %v2741
    %2748 = vst.msk [vmem:[#allocation2 + $0x10] sm:$0xff] %vm2699, %v2633
    %2749 = vst.msk [vmem:[#allocation2 + $0x28] sm:$0xff] %vm2699, %v2634
    %2750 = vst.msk [vmem:[#allocation2 + $0x40] sm:$0xff] %vm2699, %v2635
    %2754 = vrot.lane.b32.xlu0 %v2636, 32
    %v2755 = vpop.permute.xlu0 %2754
    %2756 = vrot.lane.b32.xlu0 %v2637, 32
    %v2757 = vpop.permute.xlu0 %2756
    %2758 = vrot.lane.b32.xlu0 %v2638, 32
    %v2759 = vpop.permute.xlu0 %2758
    %2763 = vst.msk [vmem:[#allocation2 + $0x10] sm:$0xff] %vm2663, %v2755
    %2764 = vst.msk [vmem:[#allocation2 + $0x28] sm:$0xff] %vm2663, %v2757
    %2765 = vst.msk [vmem:[#allocation2 + $0x40] sm:$0xff] %vm2663, %v2759
    %2769 = vrot.lane.b32.xlu0 %v2639, 64
    %v2770 = vpop.permute.xlu0 %2769
    %2771 = vrot.lane.b32.xlu0 %v2640, 64
    %v2772 = vpop.permute.xlu0 %2771
    %2773 = vrot.lane.b32.xlu0 %v2641, 64
    %v2774 = vpop.permute.xlu0 %2773
    %2778 = vst.msk [vmem:[#allocation2 + $0x10] sm:$0xff] %vm2679, %v2770
    %2779 = vst.msk [vmem:[#allocation2 + $0x28] sm:$0xff] %vm2679, %v2772
    %2780 = vst.msk [vmem:[#allocation2 + $0x40] sm:$0xff] %vm2679, %v2774
    %v2781 = vld [vmem:[#allocation2] sm:$0xff]
    %v2782 = vld [vmem:[#allocation2 + $0x8] sm:$0xff]
    %v2783 = vld [vmem:[#allocation2 + $0x10] sm:$0xff]
    %v2784 = vld [vmem:[#allocation2 + $0x18] sm:$0x3]
    %v2785 = vld [vmem:[#allocation2 + $0x20] sm:$0x3]
    %v2786 = vld [vmem:[#allocation2 + $0x28] sm:$0x3]
    %v2787 = vpack.c.bf16 %v2784, %v2781
    %v2788 = vpack.c.bf16 %v2785, %v2782
    %v2789 = vpack.c.bf16 %v2786, %v2783
    %v2790 = vld [vmem:[%s2] sm:$0xff]
    %v2791 = vld [vmem:[%s2 + $0x8] sm:$0xf]
    %v2792 = vld [vmem:[%s2 + $0xc] sm:$0xff]
    %v2793 = vld [vmem:[%s2 + $0x14] sm:$0xf]
    %v2794 = vld [vmem:[%s2 + $0x18] sm:$0xff]
    %v2795 = vld [vmem:[%s2 + $0x20] sm:$0xf]
    %v2796 = vld [vmem:[%s2 + $0x24] sm:$0xff]
    %v2797 = vld [vmem:[%s2 + $0x2c] sm:$0xf]
    %v2798 = vld [vmem:[%s2 + $0x30] sm:$0xff]
    %v2799 = vld [vmem:[%s2 + $0x38] sm:$0xf]
    %v2800 = vld [vmem:[%s2 + $0x3c] sm:$0xff]
    %v2801 = vld [vmem:[%s2 + $0x44] sm:$0xf]
    %v2802 = vld [vmem:[%s2 + $0x48] sm:$0xff]
    %v2803 = vld [vmem:[%s2 + $0x50] sm:$0xf]
    %v2804 = vld [vmem:[%s2 + $0x54] sm:$0xff]
    %v2805 = vld [vmem:[%s2 + $0x5c] sm:$0xf]
    %v2806 = vld [vmem:[%s2 + $0x60] sm:$0xff]
    %v2807 = vld [vmem:[%s2 + $0x68] sm:$0xf]
    %v2808 = vld [vmem:[%s2 + $0x6c] sm:$0xff]
    %v2809 = vld [vmem:[%s2 + $0x74] sm:$0xf]
    %v2810 = vld [vmem:[%s2 + $0x78] sm:$0xff]
    %v2811 = vld [vmem:[%s2 + $0x80] sm:$0xf]
    %v2812 = vld [vmem:[%s2 + $0x84] sm:$0xff]
    %v2813 = vld [vmem:[%s2 + $0x8c] sm:$0xf]
    %v2814 = vld [vmem:[%s2 + $0x90] sm:$0xff]
    %v2815 = vld [vmem:[%s2 + $0x98] sm:$0xf]
    %v2816 = vld [vmem:[%s2 + $0x9c] sm:$0xff]
    %v2817 = vld [vmem:[%s2 + $0xa4] sm:$0xf]
    %v2818 = vld [vmem:[%s2 + $0xa8] sm:$0xff]
    %v2819 = vld [vmem:[%s2 + $0xb0] sm:$0xf]
    %v2820 = vld [vmem:[%s2 + $0xb4] sm:$0xff]
    %v2821 = vld [vmem:[%s2 + $0xbc] sm:$0xf]
    %v2822 = vld [vmem:[%s2 + $0xc0] sm:$0xff]
    %v2823 = vld [vmem:[%s2 + $0xc8] sm:$0xf]
    %v2824 = vld [vmem:[%s2 + $0xcc] sm:$0xff]
    %v2825 = vld [vmem:[%s2 + $0xd4] sm:$0xf]
    %v2826 = vld [vmem:[%s2 + $0xd8] sm:$0xff]
    %v2827 = vld [vmem:[%s2 + $0xe0] sm:$0xf]
    %v2828 = vld [vmem:[%s2 + $0xe4] sm:$0xff]
    %v2829 = vld [vmem:[%s2 + $0xec] sm:$0xf]
    %v2830 = vld [vmem:[%s2 + $0xf0] sm:$0xff]
    %v2831 = vld [vmem:[%s2 + $0xf8] sm:$0xf]
    %v2832 = vld [vmem:[%s2 + $0xfc] sm:$0xff]
    %v2833 = vld [vmem:[%s2 + $0x104] sm:$0xf]
    %v2834 = vld [vmem:[%s2 + $0x108] sm:$0xff]
    %v2835 = vld [vmem:[%s2 + $0x110] sm:$0xf]
    %v2836 = vld [vmem:[%s2 + $0x114] sm:$0xff]
    %v2837 = vld [vmem:[%s2 + $0x11c] sm:$0xf]
    %v2838 = vld [vmem:[%s2 + $0x120] sm:$0xff]
    %v2839 = vld [vmem:[%s2 + $0x128] sm:$0xf]
    %v2840 = vld [vmem:[%s2 + $0x12c] sm:$0xff]
    %v2841 = vld [vmem:[%s2 + $0x134] sm:$0xf]
    %v2842 = vld [vmem:[%s2 + $0x138] sm:$0xff]
    %v2843 = vld [vmem:[%s2 + $0x140] sm:$0xf]
    %v2844 = vld [vmem:[%s2 + $0x144] sm:$0xff]
    %v2845 = vld [vmem:[%s2 + $0x14c] sm:$0xf]
    %v2846 = vld [vmem:[%s2 + $0x150] sm:$0xff]
    %v2847 = vld [vmem:[%s2 + $0x158] sm:$0xf]
    %v2848 = vld [vmem:[%s2 + $0x15c] sm:$0xff]
    %v2849 = vld [vmem:[%s2 + $0x164] sm:$0xf]
    %v2850 = vld [vmem:[%s2 + $0x168] sm:$0xff]
    %v2851 = vld [vmem:[%s2 + $0x170] sm:$0xf]
    %v2852 = vld [vmem:[%s2 + $0x174] sm:$0xff]
    %v2853 = vld [vmem:[%s2 + $0x17c] sm:$0xf]
    %v2854 = vld [vmem:[%s2 + $0x180] sm:$0xff]
    %v2855 = vld [vmem:[%s2 + $0x188] sm:$0xf]
    %v2856 = vld [vmem:[%s2 + $0x18c] sm:$0xff]
    %v2857 = vld [vmem:[%s2 + $0x194] sm:$0xf]
    %v2858 = vld [vmem:[%s2 + $0x198] sm:$0xff]
    %v2859 = vld [vmem:[%s2 + $0x1a0] sm:$0xf]
    %v2860 = vld [vmem:[%s2 + $0x1a4] sm:$0xff]
    %v2861 = vld [vmem:[%s2 + $0x1ac] sm:$0xf]
    %v2862 = vld [vmem:[%s2 + $0x1b0] sm:$0xff]
    %v2863 = vld [vmem:[%s2 + $0x1b8] sm:$0xf]
    %v2864 = vld [vmem:[%s2 + $0x1bc] sm:$0xff]
    %v2865 = vld [vmem:[%s2 + $0x1c4] sm:$0xf]
    %v2866 = vld [vmem:[%s2 + $0x1c8] sm:$0xff]
    %v2867 = vld [vmem:[%s2 + $0x1d0] sm:$0xf]
    %v2868 = vld [vmem:[%s2 + $0x1d4] sm:$0xff]
    %v2869 = vld [vmem:[%s2 + $0x1dc] sm:$0xf]
    %v2870 = vld [vmem:[%s2 + $0x1e0] sm:$0xff]
    %v2871 = vld [vmem:[%s2 + $0x1e8] sm:$0xf]
    %v2872 = vld [vmem:[%s2 + $0x1ec] sm:$0xff]
    %v2873 = vld [vmem:[%s2 + $0x1f4] sm:$0xf]
    %v2874 = vld [vmem:[%s2 + $0x1f8] sm:$0xff]
    %v2875 = vld [vmem:[%s2 + $0x200] sm:$0xf]
    %v2876 = vld [vmem:[%s2 + $0x204] sm:$0xff]
    %v2877 = vld [vmem:[%s2 + $0x20c] sm:$0xf]
    %v2878 = vld [vmem:[%s2 + $0x210] sm:$0xff]
    %v2879 = vld [vmem:[%s2 + $0x218] sm:$0xf]
    %v2880 = vld [vmem:[%s2 + $0x21c] sm:$0xff]
    %v2881 = vld [vmem:[%s2 + $0x224] sm:$0xf]
    %v2882 = vld [vmem:[%s2 + $0x228] sm:$0xff]
    %v2883 = vld [vmem:[%s2 + $0x230] sm:$0xf]
    %v2884 = vld [vmem:[%s2 + $0x234] sm:$0xff]
    %v2885 = vld [vmem:[%s2 + $0x23c] sm:$0xf]
    %v2886 = vld [vmem:[#allocation2 + $0x18] sm:$0xf0]
    %v2887 = vld [vmem:[#allocation2 + $0x20] sm:$0xf0]
    %v2888 = vld [vmem:[#allocation2 + $0x28] sm:$0xf0]
    %v2889 = vld [vmem:[#allocation2 + $0x30] sm:$0x3f]
    %v2890 = vld [vmem:[#allocation2 + $0x38] sm:$0x3f]
    %v2891 = vld [vmem:[#allocation2 + $0x40] sm:$0x3f]
    %v2892 = vpack.c.bf16 %v2889, %v2886
    %v2893 = vpack.c.bf16 %v2890, %v2887
    %v2894 = vpack.c.bf16 %v2891, %v2888
    %s2895 = scalar_lea.vmem %s2, 576
    %v2896 = vld [vmem:[%s2895] sm:$0xff]
    %v2897 = vld [vmem:[%s2895 + $0x8] sm:$0xf]
    %v2898 = vld [vmem:[%s2895 + $0xc] sm:$0xff]
    %v2899 = vld [vmem:[%s2895 + $0x14] sm:$0xf]
    %v2900 = vld [vmem:[%s2895 + $0x18] sm:$0xff]
    %v2901 = vld [vmem:[%s2895 + $0x20] sm:$0xf]
    %v2902 = vld [vmem:[%s2895 + $0x24] sm:$0xff]
    %v2903 = vld [vmem:[%s2895 + $0x2c] sm:$0xf]
    %v2904 = vld [vmem:[%s2895 + $0x30] sm:$0xff]
    %v2905 = vld [vmem:[%s2895 + $0x38] sm:$0xf]
    %v2906 = vld [vmem:[%s2895 + $0x3c] sm:$0xff]
    %v2907 = vld [vmem:[%s2895 + $0x44] sm:$0xf]
    %v2908 = vld [vmem:[%s2895 + $0x48] sm:$0xff]
    %v2909 = vld [vmem:[%s2895 + $0x50] sm:$0xf]
    %v2910 = vld [vmem:[%s2895 + $0x54] sm:$0xff]
    %v2911 = vld [vmem:[%s2895 + $0x5c] sm:$0xf]
    %v2912 = vld [vmem:[%s2895 + $0x60] sm:$0xff]
    %v2913 = vld [vmem:[%s2895 + $0x68] sm:$0xf]
    %v2914 = vld [vmem:[%s2895 + $0x6c] sm:$0xff]
    %v2915 = vld [vmem:[%s2895 + $0x74] sm:$0xf]
    %v2916 = vld [vmem:[%s2895 + $0x78] sm:$0xff]
    %v2917 = vld [vmem:[%s2895 + $0x80] sm:$0xf]
    %v2918 = vld [vmem:[%s2895 + $0x84] sm:$0xff]
    %v2919 = vld [vmem:[%s2895 + $0x8c] sm:$0xf]
    %v2920 = vld [vmem:[%s2895 + $0x90] sm:$0xff]
    %v2921 = vld [vmem:[%s2895 + $0x98] sm:$0xf]
    %v2922 = vld [vmem:[%s2895 + $0x9c] sm:$0xff]
    %v2923 = vld [vmem:[%s2895 + $0xa4] sm:$0xf]
    %v2924 = vld [vmem:[%s2895 + $0xa8] sm:$0xff]
    %v2925 = vld [vmem:[%s2895 + $0xb0] sm:$0xf]
    %v2926 = vld [vmem:[%s2895 + $0xb4] sm:$0xff]
    %v2927 = vld [vmem:[%s2895 + $0xbc] sm:$0xf]
    %v2928 = vld [vmem:[%s2895 + $0xc0] sm:$0xff]
    %v2929 = vld [vmem:[%s2895 + $0xc8] sm:$0xf]
    %v2930 = vld [vmem:[%s2895 + $0xcc] sm:$0xff]
    %v2931 = vld [vmem:[%s2895 + $0xd4] sm:$0xf]
    %v2932 = vld [vmem:[%s2895 + $0xd8] sm:$0xff]
    %v2933 = vld [vmem:[%s2895 + $0xe0] sm:$0xf]
    %v2934 = vld [vmem:[%s2895 + $0xe4] sm:$0xff]
    %v2935 = vld [vmem:[%s2895 + $0xec] sm:$0xf]
    %v2936 = vld [vmem:[%s2895 + $0xf0] sm:$0xff]
    %v2937 = vld [vmem:[%s2895 + $0xf8] sm:$0xf]
    %v2938 = vld [vmem:[%s2895 + $0xfc] sm:$0xff]
    %v2939 = vld [vmem:[%s2895 + $0x104] sm:$0xf]
    %v2940 = vld [vmem:[%s2895 + $0x108] sm:$0xff]
    %v2941 = vld [vmem:[%s2895 + $0x110] sm:$0xf]
    %v2942 = vld [vmem:[%s2895 + $0x114] sm:$0xff]
    %v2943 = vld [vmem:[%s2895 + $0x11c] sm:$0xf]
    %v2944 = vld [vmem:[%s2895 + $0x120] sm:$0xff]
    %v2945 = vld [vmem:[%s2895 + $0x128] sm:$0xf]
    %v2946 = vld [vmem:[%s2895 + $0x12c] sm:$0xff]
    %v2947 = vld [vmem:[%s2895 + $0x134] sm:$0xf]
    %v2948 = vld [vmem:[%s2895 + $0x138] sm:$0xff]
    %v2949 = vld [vmem:[%s2895 + $0x140] sm:$0xf]
    %v2950 = vld [vmem:[%s2895 + $0x144] sm:$0xff]
    %v2951 = vld [vmem:[%s2895 + $0x14c] sm:$0xf]
    %v2952 = vld [vmem:[%s2895 + $0x150] sm:$0xff]
    %v2953 = vld [vmem:[%s2895 + $0x158] sm:$0xf]
    %v2954 = vld [vmem:[%s2895 + $0x15c] sm:$0xff]
    %v2955 = vld [vmem:[%s2895 + $0x164] sm:$0xf]
    %v2956 = vld [vmem:[%s2895 + $0x168] sm:$0xff]
    %v2957 = vld [vmem:[%s2895 + $0x170] sm:$0xf]
    %v2958 = vld [vmem:[%s2895 + $0x174] sm:$0xff]
    %v2959 = vld [vmem:[%s2895 + $0x17c] sm:$0xf]
    %v2960 = vld [vmem:[%s2895 + $0x180] sm:$0xff]
    %v2961 = vld [vmem:[%s2895 + $0x188] sm:$0xf]
    %v2962 = vld [vmem:[%s2895 + $0x18c] sm:$0xff]
    %v2963 = vld [vmem:[%s2895 + $0x194] sm:$0xf]
    %v2964 = vld [vmem:[%s2895 + $0x198] sm:$0xff]
    %v2965 = vld [vmem:[%s2895 + $0x1a0] sm:$0xf]
    %v2966 = vld [vmem:[%s2895 + $0x1a4] sm:$0xff]
    %v2967 = vld [vmem:[%s2895 + $0x1ac] sm:$0xf]
    %v2968 = vld [vmem:[%s2895 + $0x1b0] sm:$0xff]
    %v2969 = vld [vmem:[%s2895 + $0x1b8] sm:$0xf]
    %v2970 = vld [vmem:[%s2895 + $0x1bc] sm:$0xff]
    %v2971 = vld [vmem:[%s2895 + $0x1c4] sm:$0xf]
    %v2972 = vld [vmem:[%s2895 + $0x1c8] sm:$0xff]
    %v2973 = vld [vmem:[%s2895 + $0x1d0] sm:$0xf]
    %v2974 = vld [vmem:[%s2895 + $0x1d4] sm:$0xff]
    %v2975 = vld [vmem:[%s2895 + $0x1dc] sm:$0xf]
    %v2976 = vld [vmem:[%s2895 + $0x1e0] sm:$0xff]
    %v2977 = vld [vmem:[%s2895 + $0x1e8] sm:$0xf]
    %v2978 = vld [vmem:[%s2895 + $0x1ec] sm:$0xff]
    %v2979 = vld [vmem:[%s2895 + $0x1f4] sm:$0xf]
    %v2980 = vld [vmem:[%s2895 + $0x1f8] sm:$0xff]
    %v2981 = vld [vmem:[%s2895 + $0x200] sm:$0xf]
    %v2982 = vld [vmem:[%s2895 + $0x204] sm:$0xff]
    %v2983 = vld [vmem:[%s2895 + $0x20c] sm:$0xf]
    %v2984 = vld [vmem:[%s2895 + $0x210] sm:$0xff]
    %v2985 = vld [vmem:[%s2895 + $0x218] sm:$0xf]
    %v2986 = vld [vmem:[%s2895 + $0x21c] sm:$0xff]
    %v2987 = vld [vmem:[%s2895 + $0x224] sm:$0xf]
    %v2988 = vld [vmem:[%s2895 + $0x228] sm:$0xff]
    %v2989 = vld [vmem:[%s2895 + $0x230] sm:$0xf]
    %v2990 = vld [vmem:[%s2895 + $0x234] sm:$0xff]
    %v2991 = vld [vmem:[%s2895 + $0x23c] sm:$0xf]
    %v2992 = vld [vmem:[#allocation2] sm:$0xfc]
    %v2993 = vld [vmem:[#allocation2 + $0x8] sm:$0xfc]
    %v2994 = vld [vmem:[#allocation2 + $0x10] sm:$0xfc]
    %v2995 = vld [vmem:[#allocation2 + $0x18] sm:$0xf]
    %v2996 = vld [vmem:[#allocation2 + $0x20] sm:$0xf]
    %v2997 = vld [vmem:[#allocation2 + $0x28] sm:$0xf]
    %v2998 = vpack.c.bf16 %v2995, %v2992
    %v2999 = vpack.c.bf16 %v2996, %v2993
    %v3000 = vpack.c.bf16 %v2997, %v2994
    %s3001 = scalar_lea.vmem %s2, 1152
    %v3002 = vld [vmem:[%s3001] sm:$0xff]
    %v3003 = vld [vmem:[%s3001 + $0x8] sm:$0xf]
    %v3004 = vld [vmem:[%s3001 + $0xc] sm:$0xff]
    %v3005 = vld [vmem:[%s3001 + $0x14] sm:$0xf]
    %v3006 = vld [vmem:[%s3001 + $0x18] sm:$0xff]
    %v3007 = vld [vmem:[%s3001 + $0x20] sm:$0xf]
    %v3008 = vld [vmem:[%s3001 + $0x24] sm:$0xff]
    %v3009 = vld [vmem:[%s3001 + $0x2c] sm:$0xf]
    %v3010 = vld [vmem:[%s3001 + $0x30] sm:$0xff]
    %v3011 = vld [vmem:[%s3001 + $0x38] sm:$0xf]
    %v3012 = vld [vmem:[%s3001 + $0x3c] sm:$0xff]
    %v3013 = vld [vmem:[%s3001 + $0x44] sm:$0xf]
    %v3014 = vld [vmem:[%s3001 + $0x48] sm:$0xff]
    %v3015 = vld [vmem:[%s3001 + $0x50] sm:$0xf]
    %v3016 = vld [vmem:[%s3001 + $0x54] sm:$0xff]
    %v3017 = vld [vmem:[%s3001 + $0x5c] sm:$0xf]
    %v3018 = vld [vmem:[%s3001 + $0x60] sm:$0xff]
    %v3019 = vld [vmem:[%s3001 + $0x68] sm:$0xf]
    %v3020 = vld [vmem:[%s3001 + $0x6c] sm:$0xff]
    %v3021 = vld [vmem:[%s3001 + $0x74] sm:$0xf]
    %v3022 = vld [vmem:[%s3001 + $0x78] sm:$0xff]
    %v3023 = vld [vmem:[%s3001 + $0x80] sm:$0xf]
    %v3024 = vld [vmem:[%s3001 + $0x84] sm:$0xff]
    %v3025 = vld [vmem:[%s3001 + $0x8c] sm:$0xf]
    %v3026 = vld [vmem:[%s3001 + $0x90] sm:$0xff]
    %v3027 = vld [vmem:[%s3001 + $0x98] sm:$0xf]
    %v3028 = vld [vmem:[%s3001 + $0x9c] sm:$0xff]
    %v3029 = vld [vmem:[%s3001 + $0xa4] sm:$0xf]
    %v3030 = vld [vmem:[%s3001 + $0xa8] sm:$0xff]
    %v3031 = vld [vmem:[%s3001 + $0xb0] sm:$0xf]
    %v3032 = vld [vmem:[%s3001 + $0xb4] sm:$0xff]
    %v3033 = vld [vmem:[%s3001 + $0xbc] sm:$0xf]
    %v3034 = vld [vmem:[%s3001 + $0xc0] sm:$0xff]
    %v3035 = vld [vmem:[%s3001 + $0xc8] sm:$0xf]
    %v3036 = vld [vmem:[%s3001 + $0xcc] sm:$0xff]
    %v3037 = vld [vmem:[%s3001 + $0xd4] sm:$0xf]
    %v3038 = vld [vmem:[%s3001 + $0xd8] sm:$0xff]
    %v3039 = vld [vmem:[%s3001 + $0xe0] sm:$0xf]
    %v3040 = vld [vmem:[%s3001 + $0xe4] sm:$0xff]
    %v3041 = vld [vmem:[%s3001 + $0xec] sm:$0xf]
    %v3042 = vld [vmem:[%s3001 + $0xf0] sm:$0xff]
    %v3043 = vld [vmem:[%s3001 + $0xf8] sm:$0xf]
    %v3044 = vld [vmem:[%s3001 + $0xfc] sm:$0xff]
    %v3045 = vld [vmem:[%s3001 + $0x104] sm:$0xf]
    %v3046 = vld [vmem:[%s3001 + $0x108] sm:$0xff]
    %v3047 = vld [vmem:[%s3001 + $0x110] sm:$0xf]
    %v3048 = vld [vmem:[%s3001 + $0x114] sm:$0xff]
    %v3049 = vld [vmem:[%s3001 + $0x11c] sm:$0xf]
    %v3050 = vld [vmem:[%s3001 + $0x120] sm:$0xff]
    %v3051 = vld [vmem:[%s3001 + $0x128] sm:$0xf]
    %v3052 = vld [vmem:[%s3001 + $0x12c] sm:$0xff]
    %v3053 = vld [vmem:[%s3001 + $0x134] sm:$0xf]
    %v3054 = vld [vmem:[%s3001 + $0x138] sm:$0xff]
    %v3055 = vld [vmem:[%s3001 + $0x140] sm:$0xf]
    %v3056 = vld [vmem:[%s3001 + $0x144] sm:$0xff]
    %v3057 = vld [vmem:[%s3001 + $0x14c] sm:$0xf]
    %v3058 = vld [vmem:[%s3001 + $0x150] sm:$0xff]
    %v3059 = vld [vmem:[%s3001 + $0x158] sm:$0xf]
    %v3060 = vld [vmem:[%s3001 + $0x15c] sm:$0xff]
    %v3061 = vld [vmem:[%s3001 + $0x164] sm:$0xf]
    %v3062 = vld [vmem:[%s3001 + $0x168] sm:$0xff]
    %v3063 = vld [vmem:[%s3001 + $0x170] sm:$0xf]
    %v3064 = vld [vmem:[%s3001 + $0x174] sm:$0xff]
    %v3065 = vld [vmem:[%s3001 + $0x17c] sm:$0xf]
    %v3066 = vld [vmem:[%s3001 + $0x180] sm:$0xff]
    %v3067 = vld [vmem:[%s3001 + $0x188] sm:$0xf]
    %v3068 = vld [vmem:[%s3001 + $0x18c] sm:$0xff]
    %v3069 = vld [vmem:[%s3001 + $0x194] sm:$0xf]
    %v3070 = vld [vmem:[%s3001 + $0x198] sm:$0xff]
    %v3071 = vld [vmem:[%s3001 + $0x1a0] sm:$0xf]
    %v3072 = vld [vmem:[%s3001 + $0x1a4] sm:$0xff]
    %v3073 = vld [vmem:[%s3001 + $0x1ac] sm:$0xf]
    %v3074 = vld [vmem:[%s3001 + $0x1b0] sm:$0xff]
    %v3075 = vld [vmem:[%s3001 + $0x1b8] sm:$0xf]
    %v3076 = vld [vmem:[%s3001 + $0x1bc] sm:$0xff]
    %v3077 = vld [vmem:[%s3001 + $0x1c4] sm:$0xf]
    %v3078 = vld [vmem:[%s3001 + $0x1c8] sm:$0xff]
    %v3079 = vld [vmem:[%s3001 + $0x1d0] sm:$0xf]
    %v3080 = vld [vmem:[%s3001 + $0x1d4] sm:$0xff]
    %v3081 = vld [vmem:[%s3001 + $0x1dc] sm:$0xf]
    %v3082 = vld [vmem:[%s3001 + $0x1e0] sm:$0xff]
    %v3083 = vld [vmem:[%s3001 + $0x1e8] sm:$0xf]
    %v3084 = vld [vmem:[%s3001 + $0x1ec] sm:$0xff]
    %v3085 = vld [vmem:[%s3001 + $0x1f4] sm:$0xf]
    %v3086 = vld [vmem:[%s3001 + $0x1f8] sm:$0xff]
    %v3087 = vld [vmem:[%s3001 + $0x200] sm:$0xf]
    %v3088 = vld [vmem:[%s3001 + $0x204] sm:$0xff]
    %v3089 = vld [vmem:[%s3001 + $0x20c] sm:$0xf]
    %v3090 = vld [vmem:[%s3001 + $0x210] sm:$0xff]
    %v3091 = vld [vmem:[%s3001 + $0x218] sm:$0xf]
    %v3092 = vld [vmem:[%s3001 + $0x21c] sm:$0xff]
    %v3093 = vld [vmem:[%s3001 + $0x224] sm:$0xf]
    %v3094 = vld [vmem:[%s3001 + $0x228] sm:$0xff]
    %v3095 = vld [vmem:[%s3001 + $0x230] sm:$0xf]
    %v3096 = vld [vmem:[%s3001 + $0x234] sm:$0xff]
    %v3097 = vld [vmem:[%s3001 + $0x23c] sm:$0xf]
    %v3101 = vrot.slane %v2998, 1
    %v3102 = vrot.slane %v2999, 1
    %v3103 = vrot.slane %v3000, 1
    %v3203 = vunpack.c.l.b16 %v3002
    %v3204 = vunpack.c.h.b16 %v3002
    %v3205 = vunpack.c.l.b16 %v3003
    %v3206 = vunpack.c.l.b16 %v3004
    %v3207 = vunpack.c.h.b16 %v3004
    %v3208 = vunpack.c.l.b16 %v3005
    %v3209 = vunpack.c.l.b16 %v3006
    %v3210 = vunpack.c.h.b16 %v3006
    %v3211 = vunpack.c.l.b16 %v3007
    %v3212 = vunpack.c.l.b16 %v3008
    %v3213 = vunpack.c.h.b16 %v3008
    %v3214 = vunpack.c.l.b16 %v3009
    %v3215 = vunpack.c.l.b16 %v3010
    %v3216 = vunpack.c.h.b16 %v3010
    %v3217 = vunpack.c.l.b16 %v3011
    %v3218 = vunpack.c.l.b16 %v3012
    %v3219 = vunpack.c.h.b16 %v3012
    %v3220 = vunpack.c.l.b16 %v3013
    %v3221 = vunpack.c.l.b16 %v3014
    %v3222 = vunpack.c.h.b16 %v3014
    %v3223 = vunpack.c.l.b16 %v3015
    %v3224 = vunpack.c.l.b16 %v3016
    %v3225 = vunpack.c.h.b16 %v3016
    %v3226 = vunpack.c.l.b16 %v3017
    %v3227 = vunpack.c.l.b16 %v3018
    %v3228 = vunpack.c.h.b16 %v3018
    %v3229 = vunpack.c.l.b16 %v3019
    %v3230 = vunpack.c.l.b16 %v3020
    %v3231 = vunpack.c.h.b16 %v3020
    %v3232 = vunpack.c.l.b16 %v3021
    %v3233 = vunpack.c.l.b16 %v3022
    %v3234 = vunpack.c.h.b16 %v3022
    %v3235 = vunpack.c.l.b16 %v3023
    %v3236 = vunpack.c.l.b16 %v3024
    %v3237 = vunpack.c.h.b16 %v3024
    %v3238 = vunpack.c.l.b16 %v3025
    %v3239 = vunpack.c.l.b16 %v3026
    %v3240 = vunpack.c.h.b16 %v3026
    %v3241 = vunpack.c.l.b16 %v3027
    %v3242 = vunpack.c.l.b16 %v3028
    %v3243 = vunpack.c.h.b16 %v3028
    %v3244 = vunpack.c.l.b16 %v3029
    %v3245 = vunpack.c.l.b16 %v3030
    %v3246 = vunpack.c.h.b16 %v3030
    %v3247 = vunpack.c.l.b16 %v3031
    %v3248 = vunpack.c.l.b16 %v3032
    %v3249 = vunpack.c.h.b16 %v3032
    %v3250 = vunpack.c.l.b16 %v3033
    %v3251 = vunpack.c.l.b16 %v3034
    %v3252 = vunpack.c.h.b16 %v3034
    %v3253 = vunpack.c.l.b16 %v3035
    %v3254 = vunpack.c.l.b16 %v3036
    %v3255 = vunpack.c.h.b16 %v3036
    %v3256 = vunpack.c.l.b16 %v3037
    %v3257 = vunpack.c.l.b16 %v3038
    %v3258 = vunpack.c.h.b16 %v3038
    %v3259 = vunpack.c.l.b16 %v3039
    %v3260 = vunpack.c.l.b16 %v3040
    %v3261 = vunpack.c.h.b16 %v3040
    %v3262 = vunpack.c.l.b16 %v3041
    %v3263 = vunpack.c.l.b16 %v3042
    %v3264 = vunpack.c.h.b16 %v3042
    %v3265 = vunpack.c.l.b16 %v3043
    %v3266 = vunpack.c.l.b16 %v3044
    %v3267 = vunpack.c.h.b16 %v3044
    %v3268 = vunpack.c.l.b16 %v3045
    %v3269 = vunpack.c.l.b16 %v3046
    %v3270 = vunpack.c.h.b16 %v3046
    %v3271 = vunpack.c.l.b16 %v3047
    %v3272 = vunpack.c.l.b16 %v3048
    %v3273 = vunpack.c.h.b16 %v3048
    %v3274 = vunpack.c.l.b16 %v3049
    %v3275 = vunpack.c.l.b16 %v3050
    %v3276 = vunpack.c.h.b16 %v3050
    %v3277 = vunpack.c.l.b16 %v3051
    %v3278 = vunpack.c.l.b16 %v3052
    %v3279 = vunpack.c.h.b16 %v3052
    %v3280 = vunpack.c.l.b16 %v3053
    %v3281 = vunpack.c.l.b16 %v3054
    %v3282 = vunpack.c.h.b16 %v3054
    %v3283 = vunpack.c.l.b16 %v3055
    %v3284 = vunpack.c.l.b16 %v3056
    %v3285 = vunpack.c.h.b16 %v3056
    %v3286 = vunpack.c.l.b16 %v3057
    %v3287 = vunpack.c.l.b16 %v3058
    %v3288 = vunpack.c.h.b16 %v3058
    %v3289 = vunpack.c.l.b16 %v3059
    %v3290 = vunpack.c.l.b16 %v3060
    %v3291 = vunpack.c.h.b16 %v3060
    %v3292 = vunpack.c.l.b16 %v3061
    %v3293 = vunpack.c.l.b16 %v3062
    %v3294 = vunpack.c.h.b16 %v3062
    %v3295 = vunpack.c.l.b16 %v3063
    %v3296 = vunpack.c.l.b16 %v3064
    %v3297 = vunpack.c.h.b16 %v3064
    %v3298 = vunpack.c.l.b16 %v3065
    %v3299 = vunpack.c.l.b16 %v3066
    %v3300 = vunpack.c.h.b16 %v3066
    %v3301 = vunpack.c.l.b16 %v3067
    %v3302 = vunpack.c.l.b16 %v3068
    %v3303 = vunpack.c.h.b16 %v3068
    %v3304 = vunpack.c.l.b16 %v3069
    %v3305 = vunpack.c.l.b16 %v3070
    %v3306 = vunpack.c.h.b16 %v3070
    %v3307 = vunpack.c.l.b16 %v3071
    %v3308 = vunpack.c.l.b16 %v3072
    %v3309 = vunpack.c.h.b16 %v3072
    %v3310 = vunpack.c.l.b16 %v3073
    %v3311 = vunpack.c.l.b16 %v3074
    %v3312 = vunpack.c.h.b16 %v3074
    %v3313 = vunpack.c.l.b16 %v3075
    %v3314 = vunpack.c.l.b16 %v3076
    %v3315 = vunpack.c.h.b16 %v3076
    %v3316 = vunpack.c.l.b16 %v3077
    %v3317 = vunpack.c.l.b16 %v3078
    %v3318 = vunpack.c.h.b16 %v3078
    %v3319 = vunpack.c.l.b16 %v3079
    %v3320 = vunpack.c.l.b16 %v3080
    %v3321 = vunpack.c.h.b16 %v3080
    %v3322 = vunpack.c.l.b16 %v3081
    %v3323 = vunpack.c.l.b16 %v3082
    %v3324 = vunpack.c.h.b16 %v3082
    %v3325 = vunpack.c.l.b16 %v3083
    %v3326 = vunpack.c.l.b16 %v3084
    %v3327 = vunpack.c.h.b16 %v3084
    %v3328 = vunpack.c.l.b16 %v3085
    %v3329 = vunpack.c.l.b16 %v3086
    %v3330 = vunpack.c.h.b16 %v3086
    %v3331 = vunpack.c.l.b16 %v3087
    %v3332 = vunpack.c.l.b16 %v3088
    %v3333 = vunpack.c.h.b16 %v3088
    %v3334 = vunpack.c.l.b16 %v3089
    %v3335 = vunpack.c.l.b16 %v3090
    %v3336 = vunpack.c.h.b16 %v3090
    %v3337 = vunpack.c.l.b16 %v3091
    %v3338 = vunpack.c.l.b16 %v3092
    %v3339 = vunpack.c.h.b16 %v3092
    %v3340 = vunpack.c.l.b16 %v3093
    %v3341 = vunpack.c.l.b16 %v3094
    %v3342 = vunpack.c.h.b16 %v3094
    %v3343 = vunpack.c.l.b16 %v3095
    %v3344 = vunpack.c.l.b16 %v3096
    %v3345 = vunpack.c.h.b16 %v3096
    %v3346 = vunpack.c.l.b16 %v3097
    %v3347 = vpack.c.b16 %v3206, %v3203
    %v3348 = vpack.c.b16 %v3207, %v3204
    %v3349 = vpack.c.b16 %v3208, %v3205
    %v3350 = vpack.c.b16 %v3212, %v3209
    %v3351 = vpack.c.b16 %v3213, %v3210
    %v3352 = vpack.c.b16 %v3214, %v3211
    %v3353 = vpack.c.b16 %v3218, %v3215
    %v3354 = vpack.c.b16 %v3219, %v3216
    %v3355 = vpack.c.b16 %v3220, %v3217
    %v3356 = vpack.c.b16 %v3224, %v3221
    %v3357 = vpack.c.b16 %v3225, %v3222
    %v3358 = vpack.c.b16 %v3226, %v3223
    %v3359 = vpack.c.b16 %v3230, %v3227
    %v3360 = vpack.c.b16 %v3231, %v3228
    %v3361 = vpack.c.b16 %v3232, %v3229
    %v3362 = vpack.c.b16 %v3236, %v3233
    %v3363 = vpack.c.b16 %v3237, %v3234
    %v3364 = vpack.c.b16 %v3238, %v3235
    %v3365 = vpack.c.b16 %v3242, %v3239
    %v3366 = vpack.c.b16 %v3243, %v3240
    %v3367 = vpack.c.b16 %v3244, %v3241
    %v3368 = vpack.c.b16 %v3248, %v3245
    %v3369 = vpack.c.b16 %v3249, %v3246
    %v3370 = vpack.c.b16 %v3250, %v3247
    %v3371 = vpack.c.b16 %v3254, %v3251
    %v3372 = vpack.c.b16 %v3255, %v3252
    %v3373 = vpack.c.b16 %v3256, %v3253
    %v3374 = vpack.c.b16 %v3260, %v3257
    %v3375 = vpack.c.b16 %v3261, %v3258
    %v3376 = vpack.c.b16 %v3262, %v3259
    %v3377 = vpack.c.b16 %v3266, %v3263
    %v3378 = vpack.c.b16 %v3267, %v3264
    %v3379 = vpack.c.b16 %v3268, %v3265
    %v3380 = vpack.c.b16 %v3272, %v3269
    %v3381 = vpack.c.b16 %v3273, %v3270
    %v3382 = vpack.c.b16 %v3274, %v3271
    %v3383 = vpack.c.b16 %v3278, %v3275
    %v3384 = vpack.c.b16 %v3279, %v3276
    %v3385 = vpack.c.b16 %v3280, %v3277
    %v3386 = vpack.c.b16 %v3284, %v3281
    %v3387 = vpack.c.b16 %v3285, %v3282
    %v3388 = vpack.c.b16 %v3286, %v3283
    %v3389 = vpack.c.b16 %v3290, %v3287
    %v3390 = vpack.c.b16 %v3291, %v3288
    %v3391 = vpack.c.b16 %v3292, %v3289
    %v3392 = vpack.c.b16 %v3296, %v3293
    %v3393 = vpack.c.b16 %v3297, %v3294
    %v3394 = vpack.c.b16 %v3298, %v3295
    %v3395 = vpack.c.b16 %v3302, %v3299
    %v3396 = vpack.c.b16 %v3303, %v3300
    %v3397 = vpack.c.b16 %v3304, %v3301
    %v3398 = vpack.c.b16 %v3308, %v3305
    %v3399 = vpack.c.b16 %v3309, %v3306
    %v3400 = vpack.c.b16 %v3310, %v3307
    %v3401 = vpack.c.b16 %v3314, %v3311
    %v3402 = vpack.c.b16 %v3315, %v3312
    %v3403 = vpack.c.b16 %v3316, %v3313
    %v3404 = vpack.c.b16 %v3320, %v3317
    %v3405 = vpack.c.b16 %v3321, %v3318
    %v3406 = vpack.c.b16 %v3322, %v3319
    %v3407 = vpack.c.b16 %v3326, %v3323
    %v3408 = vpack.c.b16 %v3327, %v3324
    %v3409 = vpack.c.b16 %v3328, %v3325
    %v3410 = vpack.c.b16 %v3332, %v3329
    %v3411 = vpack.c.b16 %v3333, %v3330
    %v3412 = vpack.c.b16 %v3334, %v3331
    %v3413 = vpack.c.b16 %v3338, %v3335
    %v3414 = vpack.c.b16 %v3339, %v3336
    %v3415 = vpack.c.b16 %v3340, %v3337
    %v3416 = vpack.c.b16 %v3344, %v3341
    %v3417 = vpack.c.b16 %v3345, %v3342
    %v3418 = vpack.c.b16 %v3346, %v3343
    %3491 = vmatprep.subr.bf16.mxu0 %v3348
    %3492 = vmatpush1.bf16.msra.mxu0 %v3347
    %3493 = vmatprep.subr.bf16.mxu0 %v3351
    %3494 = vmatpush1.bf16.msra.mxu0 %v3350
    %3495 = vmatprep.subr.bf16.mxu0 %v3354
    %3496 = vmatpush1.bf16.msra.mxu0 %v3353
    %3497 = vmatprep.subr.bf16.mxu0 %v3357
    %3498 = vmatpush1.bf16.msra.mxu0 %v3356
    %3499 = vmatprep.subr.bf16.mxu0 %v3360
    %3500 = vmatpush1.bf16.msra.mxu0 %v3359
    %3501 = vmatprep.subr.bf16.mxu0 %v3363
    %3502 = vmatpush1.bf16.msra.mxu0 %v3362
    %3503 = vmatprep.subr.bf16.mxu0 %v3366
    %3504 = vmatpush1.bf16.msra.mxu0 %v3365
    %3505 = vmatprep.subr.bf16.mxu0 %v3369
    %3506 = vmatpush1.bf16.msra.mxu0 %v3368
    %3507 = vmatprep.subr.bf16.mxu0 %v3372
    %3508 = vmatpush1.bf16.msra.mxu0 %v3371
    %3509 = vmatprep.subr.bf16.mxu0 %v3375
    %3510 = vmatpush1.bf16.msra.mxu0 %v3374
    %3511 = vmatprep.subr.bf16.mxu0 %v3378
    %3512 = vmatpush1.bf16.msra.mxu0 %v3377
    %3513 = vmatprep.subr.bf16.mxu0 %v3381
    %3514 = vmatpush1.bf16.msra.mxu0 %v3380
    %3515 = vmatprep.subr.bf16.mxu0 %v3384
    %3516 = vmatpush1.bf16.msra.mxu0 %v3383
    %3517 = vmatprep.subr.bf16.mxu0 %v3387
    %3518 = vmatpush1.bf16.msra.mxu0 %v3386
    %3519 = vmatprep.subr.bf16.mxu0 %v3390
    %3520 = vmatpush1.bf16.msra.mxu0 %v3389
    %3521 = vmatprep.subr.bf16.mxu0 %v3393
    %3522 = vmatpush1.bf16.msra.mxu0 %v3392
    %3523 = vmatprep.mubr.bf16.mxu0 %v3102
    %3524 = vmatmul.mubr.bf16.gmra.mrb[0].mxu0 %v3101
    %v3525 = vpop.f32.mrb[0].mxu0
    %v3526 = vadd.f32 0.0, %v3525
    %v3527 = vpop.f32.mrb[0].mxu0
    %v3528 = vadd.f32 0.0, %v3527
    %v3529 = vpop.f32.mrb[0].mxu0
    %v3530 = vadd.f32 0.0, %v3529
    %v3531 = vpop.f32.mrb[0].mxu0
    %v3532 = vadd.f32 0.0, %v3531
    %3533 = vdwg.mxu0
    %3534 = vmatprep.subr.bf16.mxu0 %v3396
    %3535 = vmatpush1.bf16.msra.mxu0 %v3395
    %3536 = vmatprep.subr.bf16.mxu0 %v3399
    %3537 = vmatpush1.bf16.msra.mxu0 %v3398
    %3538 = vmatprep.subr.bf16.mxu0 %v3402
    %3539 = vmatpush1.bf16.msra.mxu0 %v3401
    %3540 = vmatprep.subr.bf16.mxu0 %v3405
    %3541 = vmatpush1.bf16.msra.mxu0 %v3404
    %3542 = vmatprep.subr.bf16.mxu0 %v3408
    %3543 = vmatpush1.bf16.msra.mxu0 %v3407
    %3544 = vmatprep.subr.bf16.mxu0 %v3411
    %3545 = vmatpush1.bf16.msra.mxu0 %v3410
    %3546 = vmatprep.subr.bf16.mxu0 %v3414
    %3547 = vmatpush1.bf16.msra.mxu0 %v3413
    %3548 = vmatprep.subr.bf16.mxu0 %v3417
    %3549 = vmatpush1.bf16.msra.mxu0 %v3416
    %3550 = vmatprep.subr.bf16.mxu0 0
    %3551 = vmatpush1.bf16.msra.mxu0 0
    %3552 = vmatprep.subr.bf16.mxu0 0
    %3553 = vmatpush1.bf16.msra.mxu0 0
    %3554 = vmatprep.subr.bf16.mxu0 0
    %3555 = vmatpush1.bf16.msra.mxu0 0
    %3556 = vmatprep.subr.bf16.mxu0 0
    %3557 = vmatpush1.bf16.msra.mxu0 0
    %3558 = vmatprep.subr.bf16.mxu0 0
    %3559 = vmatpush1.bf16.msra.mxu0 0
    %3560 = vmatprep.subr.bf16.mxu0 0
    %3561 = vmatpush1.bf16.msra.mxu0 0
    %3562 = vmatprep.subr.bf16.mxu0 0
    %3563 = vmatpush1.bf16.msra.mxu0 0
    %3564 = vmatprep.subr.bf16.mxu0 0
    %3565 = vmatpush1.bf16.msra.mxu0 0
    %3566 = vmatprep.mubr.bf16.mxu0 0
    %3567 = vmatmul.mubr.bf16.gmra.mrb[0].mxu0 %v3103
    %v3568 = vpop.f32.mrb[0].mxu0
    %v3569 = vadd.f32 %v3526, %v3568
    %v3570 = vpop.f32.mrb[0].mxu0
    %v3571 = vadd.f32 %v3528, %v3570
    %v3572 = vpop.f32.mrb[0].mxu0
    %v3573 = vadd.f32 %v3530, %v3572
    %v3574 = vpop.f32.mrb[0].mxu0
    %v3575 = vadd.f32 %v3532, %v3574
    %3576 = vdwg.mxu0
    %3577 = vmatprep.subr.bf16.mxu0 0
    %3578 = vmatpush1.bf16.msra.mxu0 %v3349
    %3579 = vmatprep.subr.bf16.mxu0 0
    %3580 = vmatpush1.bf16.msra.mxu0 %v3352
    %3581 = vmatprep.subr.bf16.mxu0 0
    %3582 = vmatpush1.bf16.msra.mxu0 %v3355
    %3583 = vmatprep.subr.bf16.mxu0 0
    %3584 = vmatpush1.bf16.msra.mxu0 %v3358
    %3585 = vmatprep.subr.bf16.mxu0 0
    %3586 = vmatpush1.bf16.msra.mxu0 %v3361
    %3587 = vmatprep.subr.bf16.mxu0 0
    %3588 = vmatpush1.bf16.msra.mxu0 %v3364
    %3589 = vmatprep.subr.bf16.mxu0 0
    %3590 = vmatpush1.bf16.msra.mxu0 %v3367
    %3591 = vmatprep.subr.bf16.mxu0 0
    %3592 = vmatpush1.bf16.msra.mxu0 %v3370
    %3593 = vmatprep.subr.bf16.mxu0 0
    %3594 = vmatpush1.bf16.msra.mxu0 %v3373
    %3595 = vmatprep.subr.bf16.mxu0 0
    %3596 = vmatpush1.bf16.msra.mxu0 %v3376
    %3597 = vmatprep.subr.bf16.mxu0 0
    %3598 = vmatpush1.bf16.msra.mxu0 %v3379
    %3599 = vmatprep.subr.bf16.mxu0 0
    %3600 = vmatpush1.bf16.msra.mxu0 %v3382
    %3601 = vmatprep.subr.bf16.mxu0 0
    %3602 = vmatpush1.bf16.msra.mxu0 %v3385
    %3603 = vmatprep.subr.bf16.mxu0 0
    %3604 = vmatpush1.bf16.msra.mxu0 %v3388
    %3605 = vmatprep.subr.bf16.mxu0 0
    %3606 = vmatpush1.bf16.msra.mxu0 %v3391
    %3607 = vmatprep.subr.bf16.mxu0 0
    %3608 = vmatpush1.bf16.msra.mxu0 %v3394
    %3609 = vmatprep.mubr.bf16.mxu0 %v3102
    %3610 = vmatmul.mubr.bf16.gmra.mrb[0].mxu0 %v3101
    %v3611 = vpop.f32.mrb[0].mxu0
    %v3612 = vadd.f32 0.0, %v3611
    %v3613 = vpop.f32.mrb[0].mxu0
    %v3614 = vpop.f32.mrb[0].mxu0
    %v3615 = vadd.f32 0.0, %v3614
    %v3616 = vpop.f32.mrb[0].mxu0
    %3617 = vdwg.mxu0
    %3618 = vmatprep.subr.bf16.mxu0 0
    %3619 = vmatpush1.bf16.msra.mxu0 %v3397
    %3620 = vmatprep.subr.bf16.mxu0 0
    %3621 = vmatpush1.bf16.msra.mxu0 %v3400
    %3622 = vmatprep.subr.bf16.mxu0 0
    %3623 = vmatpush1.bf16.msra.mxu0 %v3403
    %3624 = vmatprep.subr.bf16.mxu0 0
    %3625 = vmatpush1.bf16.msra.mxu0 %v3406
    %3626 = vmatprep.subr.bf16.mxu0 0
    %3627 = vmatpush1.bf16.msra.mxu0 %v3409
    %3628 = vmatprep.subr.bf16.mxu0 0
    %3629 = vmatpush1.bf16.msra.mxu0 %v3412
    %3630 = vmatprep.subr.bf16.mxu0 0
    %3631 = vmatpush1.bf16.msra.mxu0 %v3415
    %3632 = vmatprep.subr.bf16.mxu0 0
    %3633 = vmatpush1.bf16.msra.mxu0 %v3418
    %3634 = vmatprep.subr.bf16.mxu0 0
    %3635 = vmatpush1.bf16.msra.mxu0 0
    %3636 = vmatprep.subr.bf16.mxu0 0
    %3637 = vmatpush1.bf16.msra.mxu0 0
    %3638 = vmatprep.subr.bf16.mxu0 0
    %3639 = vmatpush1.bf16.msra.mxu0 0
    %3640 = vmatprep.subr.bf16.mxu0 0
    %3641 = vmatpush1.bf16.msra.mxu0 0
    %3642 = vmatprep.subr.bf16.mxu0 0
    %3643 = vmatpush1.bf16.msra.mxu0 0
    %3644 = vmatprep.subr.bf16.mxu0 0
    %3645 = vmatpush1.bf16.msra.mxu0 0
    %3646 = vmatprep.subr.bf16.mxu0 0
    %3647 = vmatpush1.bf16.msra.mxu0 0
    %3648 = vmatprep.subr.bf16.mxu0 0
    %3649 = vmatpush1.bf16.msra.mxu0 0
    %3650 = vmatprep.mubr.bf16.mxu0 0
    %3651 = vmatmul.mubr.bf16.gmra.mrb[0].mxu0 %v3103
    %v3652 = vpop.f32.mrb[0].mxu0
    %v3653 = vadd.f32 %v3612, %v3652
    %v3654 = vpop.f32.mrb[0].mxu0
    %v3655 = vpop.f32.mrb[0].mxu0
    %v3656 = vadd.f32 %v3615, %v3655
    %v3657 = vpop.f32.mrb[0].mxu0
    %3658 = vdwg.mxu0
    %v3755 = vunpack.c.l.b16 %v2790
    %v3756 = vunpack.c.h.b16 %v2790
    %v3757 = vunpack.c.l.b16 %v2791
    %v3758 = vunpack.c.l.b16 %v2792
    %v3759 = vunpack.c.h.b16 %v2792
    %v3760 = vunpack.c.l.b16 %v2793
    %v3761 = vunpack.c.l.b16 %v2794
    %v3762 = vunpack.c.h.b16 %v2794
    %v3763 = vunpack.c.l.b16 %v2795
    %v3764 = vunpack.c.l.b16 %v2796
    %v3765 = vunpack.c.h.b16 %v2796
    %v3766 = vunpack.c.l.b16 %v2797
    %v3767 = vunpack.c.l.b16 %v2798
    %v3768 = vunpack.c.h.b16 %v2798
    %v3769 = vunpack.c.l.b16 %v2799
    %v3770 = vunpack.c.l.b16 %v2800
    %v3771 = vunpack.c.h.b16 %v2800
    %v3772 = vunpack.c.l.b16 %v2801
    %v3773 = vunpack.c.l.b16 %v2802
    %v3774 = vunpack.c.h.b16 %v2802
    %v3775 = vunpack.c.l.b16 %v2803
    %v3776 = vunpack.c.l.b16 %v2804
    %v3777 = vunpack.c.h.b16 %v2804
    %v3778 = vunpack.c.l.b16 %v2805
    %v3779 = vunpack.c.l.b16 %v2806
    %v3780 = vunpack.c.h.b16 %v2806
    %v3781 = vunpack.c.l.b16 %v2807
    %v3782 = vunpack.c.l.b16 %v2808
    %v3783 = vunpack.c.h.b16 %v2808
    %v3784 = vunpack.c.l.b16 %v2809
    %v3785 = vunpack.c.l.b16 %v2810
    %v3786 = vunpack.c.h.b16 %v2810
    %v3787 = vunpack.c.l.b16 %v2811
    %v3788 = vunpack.c.l.b16 %v2812
    %v3789 = vunpack.c.h.b16 %v2812
    %v3790 = vunpack.c.l.b16 %v2813
    %v3791 = vunpack.c.l.b16 %v2814
    %v3792 = vunpack.c.h.b16 %v2814
    %v3793 = vunpack.c.l.b16 %v2815
    %v3794 = vunpack.c.l.b16 %v2816
    %v3795 = vunpack.c.h.b16 %v2816
    %v3796 = vunpack.c.l.b16 %v2817
    %v3797 = vunpack.c.l.b16 %v2818
    %v3798 = vunpack.c.h.b16 %v2818
    %v3799 = vunpack.c.l.b16 %v2819
    %v3800 = vunpack.c.l.b16 %v2820
    %v3801 = vunpack.c.h.b16 %v2820
    %v3802 = vunpack.c.l.b16 %v2821
    %v3803 = vunpack.c.l.b16 %v2822
    %v3804 = vunpack.c.h.b16 %v2822
    %v3805 = vunpack.c.l.b16 %v2823
    %v3806 = vunpack.c.l.b16 %v2824
    %v3807 = vunpack.c.h.b16 %v2824
    %v3808 = vunpack.c.l.b16 %v2825
    %v3809 = vunpack.c.l.b16 %v2826
    %v3810 = vunpack.c.h.b16 %v2826
    %v3811 = vunpack.c.l.b16 %v2827
    %v3812 = vunpack.c.l.b16 %v2828
    %v3813 = vunpack.c.h.b16 %v2828
    %v3814 = vunpack.c.l.b16 %v2829
    %v3815 = vunpack.c.l.b16 %v2830
    %v3816 = vunpack.c.h.b16 %v2830
    %v3817 = vunpack.c.l.b16 %v2831
    %v3818 = vunpack.c.l.b16 %v2832
    %v3819 = vunpack.c.h.b16 %v2832
    %v3820 = vunpack.c.l.b16 %v2833
    %v3821 = vunpack.c.l.b16 %v2834
    %v3822 = vunpack.c.h.b16 %v2834
    %v3823 = vunpack.c.l.b16 %v2835
    %v3824 = vunpack.c.l.b16 %v2836
    %v3825 = vunpack.c.h.b16 %v2836
    %v3826 = vunpack.c.l.b16 %v2837
    %v3827 = vunpack.c.l.b16 %v2838
    %v3828 = vunpack.c.h.b16 %v2838
    %v3829 = vunpack.c.l.b16 %v2839
    %v3830 = vunpack.c.l.b16 %v2840
    %v3831 = vunpack.c.h.b16 %v2840
    %v3832 = vunpack.c.l.b16 %v2841
    %v3833 = vunpack.c.l.b16 %v2842
    %v3834 = vunpack.c.h.b16 %v2842
    %v3835 = vunpack.c.l.b16 %v2843
    %v3836 = vunpack.c.l.b16 %v2844
    %v3837 = vunpack.c.h.b16 %v2844
    %v3838 = vunpack.c.l.b16 %v2845
    %v3839 = vunpack.c.l.b16 %v2846
    %v3840 = vunpack.c.h.b16 %v2846
    %v3841 = vunpack.c.l.b16 %v2847
    %v3842 = vunpack.c.l.b16 %v2848
    %v3843 = vunpack.c.h.b16 %v2848
    %v3844 = vunpack.c.l.b16 %v2849
    %v3845 = vunpack.c.l.b16 %v2850
    %v3846 = vunpack.c.h.b16 %v2850
    %v3847 = vunpack.c.l.b16 %v2851
    %v3848 = vunpack.c.l.b16 %v2852
    %v3849 = vunpack.c.h.b16 %v2852
    %v3850 = vunpack.c.l.b16 %v2853
    %v3851 = vunpack.c.l.b16 %v2854
    %v3852 = vunpack.c.h.b16 %v2854
    %v3853 = vunpack.c.l.b16 %v2855
    %v3854 = vunpack.c.l.b16 %v2856
    %v3855 = vunpack.c.h.b16 %v2856
    %v3856 = vunpack.c.l.b16 %v2857
    %v3857 = vunpack.c.l.b16 %v2858
    %v3858 = vunpack.c.h.b16 %v2858
    %v3859 = vunpack.c.l.b16 %v2859
    %v3860 = vunpack.c.l.b16 %v2860
    %v3861 = vunpack.c.h.b16 %v2860
    %v3862 = vunpack.c.l.b16 %v2861
    %v3863 = vunpack.c.l.b16 %v2862
    %v3864 = vunpack.c.h.b16 %v2862
    %v3865 = vunpack.c.l.b16 %v2863
    %v3866 = vunpack.c.l.b16 %v2864
    %v3867 = vunpack.c.h.b16 %v2864
    %v3868 = vunpack.c.l.b16 %v2865
    %v3869 = vunpack.c.l.b16 %v2866
    %v3870 = vunpack.c.h.b16 %v2866
    %v3871 = vunpack.c.l.b16 %v2867
    %v3872 = vunpack.c.l.b16 %v2868
    %v3873 = vunpack.c.h.b16 %v2868
    %v3874 = vunpack.c.l.b16 %v2869
    %v3875 = vunpack.c.l.b16 %v2870
    %v3876 = vunpack.c.h.b16 %v2870
    %v3877 = vunpack.c.l.b16 %v2871
    %v3878 = vunpack.c.l.b16 %v2872
    %v3879 = vunpack.c.h.b16 %v2872
    %v3880 = vunpack.c.l.b16 %v2873
    %v3881 = vunpack.c.l.b16 %v2874
    %v3882 = vunpack.c.h.b16 %v2874
    %v3883 = vunpack.c.l.b16 %v2875
    %v3884 = vunpack.c.l.b16 %v2876
    %v3885 = vunpack.c.h.b16 %v2876
    %v3886 = vunpack.c.l.b16 %v2877
    %v3887 = vunpack.c.l.b16 %v2878
    %v3888 = vunpack.c.h.b16 %v2878
    %v3889 = vunpack.c.l.b16 %v2879
    %v3890 = vunpack.c.l.b16 %v2880
    %v3891 = vunpack.c.h.b16 %v2880
    %v3892 = vunpack.c.l.b16 %v2881
    %v3893 = vunpack.c.l.b16 %v2882
    %v3894 = vunpack.c.h.b16 %v2882
    %v3895 = vunpack.c.l.b16 %v2883
    %v3896 = vunpack.c.l.b16 %v2884
    %v3897 = vunpack.c.h.b16 %v2884
    %v3898 = vunpack.c.l.b16 %v2885
    %v3899 = vpack.c.b16 %v3758, %v3755
    %v3900 = vpack.c.b16 %v3759, %v3756
    %v3901 = vpack.c.b16 %v3760, %v3757
    %v3902 = vpack.c.b16 %v3764, %v3761
    %v3903 = vpack.c.b16 %v3765, %v3762
    %v3904 = vpack.c.b16 %v3766, %v3763
    %v3905 = vpack.c.b16 %v3770, %v3767
    %v3906 = vpack.c.b16 %v3771, %v3768
    %v3907 = vpack.c.b16 %v3772, %v3769
    %v3908 = vpack.c.b16 %v3776, %v3773
    %v3909 = vpack.c.b16 %v3777, %v3774
    %v3910 = vpack.c.b16 %v3778, %v3775
    %v3911 = vpack.c.b16 %v3782, %v3779
    %v3912 = vpack.c.b16 %v3783, %v3780
    %v3913 = vpack.c.b16 %v3784, %v3781
    %v3914 = vpack.c.b16 %v3788, %v3785
    %v3915 = vpack.c.b16 %v3789, %v3786
    %v3916 = vpack.c.b16 %v3790, %v3787
    %v3917 = vpack.c.b16 %v3794, %v3791
    %v3918 = vpack.c.b16 %v3795, %v3792
    %v3919 = vpack.c.b16 %v3796, %v3793
    %v3920 = vpack.c.b16 %v3800, %v3797
    %v3921 = vpack.c.b16 %v3801, %v3798
    %v3922 = vpack.c.b16 %v3802, %v3799
    %v3923 = vpack.c.b16 %v3806, %v3803
    %v3924 = vpack.c.b16 %v3807, %v3804
    %v3925 = vpack.c.b16 %v3808, %v3805
    %v3926 = vpack.c.b16 %v3812, %v3809
    %v3927 = vpack.c.b16 %v3813, %v3810
    %v3928 = vpack.c.b16 %v3814, %v3811
    %v3929 = vpack.c.b16 %v3818, %v3815
    %v3930 = vpack.c.b16 %v3819, %v3816
    %v3931 = vpack.c.b16 %v3820, %v3817
    %v3932 = vpack.c.b16 %v3824, %v3821
    %v3933 = vpack.c.b16 %v3825, %v3822
    %v3934 = vpack.c.b16 %v3826, %v3823
    %v3935 = vpack.c.b16 %v3830, %v3827
    %v3936 = vpack.c.b16 %v3831, %v3828
    %v3937 = vpack.c.b16 %v3832, %v3829
    %v3938 = vpack.c.b16 %v3836, %v3833
    %v3939 = vpack.c.b16 %v3837, %v3834
    %v3940 = vpack.c.b16 %v3838, %v3835
    %v3941 = vpack.c.b16 %v3842, %v3839
    %v3942 = vpack.c.b16 %v3843, %v3840
    %v3943 = vpack.c.b16 %v3844, %v3841
    %v3944 = vpack.c.b16 %v3848, %v3845
    %v3945 = vpack.c.b16 %v3849, %v3846
    %v3946 = vpack.c.b16 %v3850, %v3847
    %v3947 = vpack.c.b16 %v3854, %v3851
    %v3948 = vpack.c.b16 %v3855, %v3852
    %v3949 = vpack.c.b16 %v3856, %v3853
    %v3950 = vpack.c.b16 %v3860, %v3857
    %v3951 = vpack.c.b16 %v3861, %v3858
    %v3952 = vpack.c.b16 %v3862, %v3859
    %v3953 = vpack.c.b16 %v3866, %v3863
    %v3954 = vpack.c.b16 %v3867, %v3864
    %v3955 = vpack.c.b16 %v3868, %v3865
    %v3956 = vpack.c.b16 %v3872, %v3869
    %v3957 = vpack.c.b16 %v3873, %v3870
    %v3958 = vpack.c.b16 %v3874, %v3871
    %v3959 = vpack.c.b16 %v3878, %v3875
    %v3960 = vpack.c.b16 %v3879, %v3876
    %v3961 = vpack.c.b16 %v3880, %v3877
    %v3962 = vpack.c.b16 %v3884, %v3881
    %v3963 = vpack.c.b16 %v3885, %v3882
    %v3964 = vpack.c.b16 %v3886, %v3883
    %v3965 = vpack.c.b16 %v3890, %v3887
    %v3966 = vpack.c.b16 %v3891, %v3888
    %v3967 = vpack.c.b16 %v3892, %v3889
    %v3968 = vpack.c.b16 %v3896, %v3893
    %v3969 = vpack.c.b16 %v3897, %v3894
    %v3970 = vpack.c.b16 %v3898, %v3895
    %4043 = vmatprep.subr.bf16.mxu0 %v3900
    %4044 = vmatpush1.bf16.msra.mxu0 %v3899
    %4045 = vmatprep.subr.bf16.mxu0 %v3903
    %4046 = vmatpush1.bf16.msra.mxu0 %v3902
    %4047 = vmatprep.subr.bf16.mxu0 %v3906
    %4048 = vmatpush1.bf16.msra.mxu0 %v3905
    %4049 = vmatprep.subr.bf16.mxu0 %v3909
    %4050 = vmatpush1.bf16.msra.mxu0 %v3908
    %4051 = vmatprep.subr.bf16.mxu0 %v3912
    %4052 = vmatpush1.bf16.msra.mxu0 %v3911
    %4053 = vmatprep.subr.bf16.mxu0 %v3915
    %4054 = vmatpush1.bf16.msra.mxu0 %v3914
    %4055 = vmatprep.subr.bf16.mxu0 %v3918
    %4056 = vmatpush1.bf16.msra.mxu0 %v3917
    %4057 = vmatprep.subr.bf16.mxu0 %v3921
    %4058 = vmatpush1.bf16.msra.mxu0 %v3920
    %4059 = vmatprep.subr.bf16.mxu0 %v3924
    %4060 = vmatpush1.bf16.msra.mxu0 %v3923
    %4061 = vmatprep.subr.bf16.mxu0 %v3927
    %4062 = vmatpush1.bf16.msra.mxu0 %v3926
    %4063 = vmatprep.subr.bf16.mxu0 %v3930
    %4064 = vmatpush1.bf16.msra.mxu0 %v3929
    %4065 = vmatprep.subr.bf16.mxu0 %v3933
    %4066 = vmatpush1.bf16.msra.mxu0 %v3932
    %4067 = vmatprep.subr.bf16.mxu0 %v3936
    %4068 = vmatpush1.bf16.msra.mxu0 %v3935
    %4069 = vmatprep.subr.bf16.mxu0 %v3939
    %4070 = vmatpush1.bf16.msra.mxu0 %v3938
    %4071 = vmatprep.subr.bf16.mxu0 %v3942
    %4072 = vmatpush1.bf16.msra.mxu0 %v3941
    %4073 = vmatprep.subr.bf16.mxu0 %v3945
    %4074 = vmatpush1.bf16.msra.mxu0 %v3944
    %4075 = vmatprep.mubr.bf16.mxu0 %v2788
    %4076 = vmatmul.mubr.bf16.gmra.mrb[0].mxu0 %v2787
    %v4077 = vpop.f32.mrb[0].mxu0
    %v4078 = vadd.f32 %v3569, %v4077
    %v4079 = vpop.f32.mrb[0].mxu0
    %v4080 = vadd.f32 %v3571, %v4079
    %v4081 = vpop.f32.mrb[0].mxu0
    %v4082 = vadd.f32 %v3573, %v4081
    %v4083 = vpop.f32.mrb[0].mxu0
    %v4084 = vadd.f32 %v3575, %v4083
    %4085 = vdwg.mxu0
    %4086 = vmatprep.subr.bf16.mxu0 %v3948
    %4087 = vmatpush1.bf16.msra.mxu0 %v3947
    %4088 = vmatprep.subr.bf16.mxu0 %v3951
    %4089 = vmatpush1.bf16.msra.mxu0 %v3950
    %4090 = vmatprep.subr.bf16.mxu0 %v3954
    %4091 = vmatpush1.bf16.msra.mxu0 %v3953
    %4092 = vmatprep.subr.bf16.mxu0 %v3957
    %4093 = vmatpush1.bf16.msra.mxu0 %v3956
    %4094 = vmatprep.subr.bf16.mxu0 %v3960
    %4095 = vmatpush1.bf16.msra.mxu0 %v3959
    %4096 = vmatprep.subr.bf16.mxu0 %v3963
    %4097 = vmatpush1.bf16.msra.mxu0 %v3962
    %4098 = vmatprep.subr.bf16.mxu0 %v3966
    %4099 = vmatpush1.bf16.msra.mxu0 %v3965
    %4100 = vmatprep.subr.bf16.mxu0 %v3969
    %4101 = vmatpush1.bf16.msra.mxu0 %v3968
    %4102 = vmatprep.subr.bf16.mxu0 0
    %4103 = vmatpush1.bf16.msra.mxu0 0
    %4104 = vmatprep.subr.bf16.mxu0 0
    %4105 = vmatpush1.bf16.msra.mxu0 0
    %4106 = vmatprep.subr.bf16.mxu0 0
    %4107 = vmatpush1.bf16.msra.mxu0 0
    %4108 = vmatprep.subr.bf16.mxu0 0
    %4109 = vmatpush1.bf16.msra.mxu0 0
    %4110 = vmatprep.subr.bf16.mxu0 0
    %4111 = vmatpush1.bf16.msra.mxu0 0
    %4112 = vmatprep.subr.bf16.mxu0 0
    %4113 = vmatpush1.bf16.msra.mxu0 0
    %4114 = vmatprep.subr.bf16.mxu0 0
    %4115 = vmatpush1.bf16.msra.mxu0 0
    %4116 = vmatprep.subr.bf16.mxu0 0
    %4117 = vmatpush1.bf16.msra.mxu0 0
    %4118 = vmatprep.mubr.bf16.mxu0 0
    %4119 = vmatmul.mubr.bf16.gmra.mrb[0].mxu0 %v2789
    %v4120 = vpop.f32.mrb[0].mxu0
    %v4121 = vadd.f32 %v4078, %v4120
    %v4122 = vpop.f32.mrb[0].mxu0
    %v4123 = vadd.f32 %v4080, %v4122
    %v4124 = vpop.f32.mrb[0].mxu0
    %v4125 = vadd.f32 %v4082, %v4124
    %v4126 = vpop.f32.mrb[0].mxu0
    %v4127 = vadd.f32 %v4084, %v4126
    %4128 = vdwg.mxu0
    %4129 = vmatprep.subr.bf16.mxu0 0
    %4130 = vmatpush1.bf16.msra.mxu0 %v3901
    %4131 = vmatprep.subr.bf16.mxu0 0
    %4132 = vmatpush1.bf16.msra.mxu0 %v3904
    %4133 = vmatprep.subr.bf16.mxu0 0
    %4134 = vmatpush1.bf16.msra.mxu0 %v3907
    %4135 = vmatprep.subr.bf16.mxu0 0
    %4136 = vmatpush1.bf16.msra.mxu0 %v3910
    %4137 = vmatprep.subr.bf16.mxu0 0
    %4138 = vmatpush1.bf16.msra.mxu0 %v3913
    %4139 = vmatprep.subr.bf16.mxu0 0
    %4140 = vmatpush1.bf16.msra.mxu0 %v3916
    %4141 = vmatprep.subr.bf16.mxu0 0
    %4142 = vmatpush1.bf16.msra.mxu0 %v3919
    %4143 = vmatprep.subr.bf16.mxu0 0
    %4144 = vmatpush1.bf16.msra.mxu0 %v3922
    %4145 = vmatprep.subr.bf16.mxu0 0
    %4146 = vmatpush1.bf16.msra.mxu0 %v3925
    %4147 = vmatprep.subr.bf16.mxu0 0
    %4148 = vmatpush1.bf16.msra.mxu0 %v3928
    %4149 = vmatprep.subr.bf16.mxu0 0
    %4150 = vmatpush1.bf16.msra.mxu0 %v3931
    %4151 = vmatprep.subr.bf16.mxu0 0
    %4152 = vmatpush1.bf16.msra.mxu0 %v3934
    %4153 = vmatprep.subr.bf16.mxu0 0
    %4154 = vmatpush1.bf16.msra.mxu0 %v3937
    %4155 = vmatprep.subr.bf16.mxu0 0
    %4156 = vmatpush1.bf16.msra.mxu0 %v3940
    %4157 = vmatprep.subr.bf16.mxu0 0
    %4158 = vmatpush1.bf16.msra.mxu0 %v3943
    %4159 = vmatprep.subr.bf16.mxu0 0
    %4160 = vmatpush1.bf16.msra.mxu0 %v3946
    %4161 = vmatprep.mubr.bf16.mxu0 %v2788
    %4162 = vmatmul.mubr.bf16.gmra.mrb[0].mxu0 %v2787
    %v4163 = vpop.f32.mrb[0].mxu0
    %v4164 = vadd.f32 %v3653, %v4163
    %v4165 = vpop.f32.mrb[0].mxu0
    %v4166 = vpop.f32.mrb[0].mxu0
    %v4167 = vadd.f32 %v3656, %v4166
    %v4168 = vpop.f32.mrb[0].mxu0
    %4169 = vdwg.mxu0
    %4170 = vmatprep.subr.bf16.mxu0 0
    %4171 = vmatpush1.bf16.msra.mxu0 %v3949
    %4172 = vmatprep.subr.bf16.mxu0 0
    %4173 = vmatpush1.bf16.msra.mxu0 %v3952
    %4174 = vmatprep.subr.bf16.mxu0 0
    %4175 = vmatpush1.bf16.msra.mxu0 %v3955
    %4176 = vmatprep.subr.bf16.mxu0 0
    %4177 = vmatpush1.bf16.msra.mxu0 %v3958
    %4178 = vmatprep.subr.bf16.mxu0 0
    %4179 = vmatpush1.bf16.msra.mxu0 %v3961
    %4180 = vmatprep.subr.bf16.mxu0 0
    %4181 = vmatpush1.bf16.msra.mxu0 %v3964
    %4182 = vmatprep.subr.bf16.mxu0 0
    %4183 = vmatpush1.bf16.msra.mxu0 %v3967
    %4184 = vmatprep.subr.bf16.mxu0 0
    %4185 = vmatpush1.bf16.msra.mxu0 %v3970
    %4186 = vmatprep.subr.bf16.mxu0 0
    %4187 = vmatpush1.bf16.msra.mxu0 0
    %4188 = vmatprep.subr.bf16.mxu0 0
    %4189 = vmatpush1.bf16.msra.mxu0 0
    %4190 = vmatprep.subr.bf16.mxu0 0
    %4191 = vmatpush1.bf16.msra.mxu0 0
    %4192 = vmatprep.subr.bf16.mxu0 0
    %4193 = vmatpush1.bf16.msra.mxu0 0
    %4194 = vmatprep.subr.bf16.mxu0 0
    %4195 = vmatpush1.bf16.msra.mxu0 0
    %4196 = vmatprep.subr.bf16.mxu0 0
    %4197 = vmatpush1.bf16.msra.mxu0 0
    %4198 = vmatprep.subr.bf16.mxu0 0
    %4199 = vmatpush1.bf16.msra.mxu0 0
    %4200 = vmatprep.subr.bf16.mxu0 0
    %4201 = vmatpush1.bf16.msra.mxu0 0
    %4202 = vmatprep.mubr.bf16.mxu0 0
    %4203 = vmatmul.mubr.bf16.gmra.mrb[0].mxu0 %v2789
    %v4204 = vpop.f32.mrb[0].mxu0
    %v4205 = vadd.f32 %v4164, %v4204
    %v4206 = vpop.f32.mrb[0].mxu0
    %v4207 = vpop.f32.mrb[0].mxu0
    %v4208 = vadd.f32 %v4167, %v4207
    %v4209 = vpop.f32.mrb[0].mxu0
    %4210 = vdwg.mxu0
    %v4211 = vld [vmem:[#allocation2 + $0x18] sm:$0xc0]
    %v4212 = vld [vmem:[#allocation2 + $0x20] sm:$0xc0]
    %v4213 = vld [vmem:[#allocation2 + $0x28] sm:$0xc0]
    %v4214 = vld [vmem:[#allocation2 + $0x30] sm:$0xff]
    %v4215 = vld [vmem:[#allocation2 + $0x38] sm:$0xff]
    %v4216 = vld [vmem:[#allocation2 + $0x40] sm:$0xff]
    %v4217 = vpack.c.bf16 %v4214, %v4211
    %v4218 = vpack.c.bf16 %v4215, %v4212
    %v4219 = vpack.c.bf16 %v4216, %v4213
    %s4220 = scalar_lea.vmem %s2, 1728
    %v4221 = vld [vmem:[%s4220] sm:$0xff]
    %v4222 = vld [vmem:[%s4220 + $0x8] sm:$0xf]
    %v4223 = vld [vmem:[%s4220 + $0xc] sm:$0xff]
    %v4224 = vld [vmem:[%s4220 + $0x14] sm:$0xf]
    %v4225 = vld [vmem:[%s4220 + $0x18] sm:$0xff]
    %v4226 = vld [vmem:[%s4220 + $0x20] sm:$0xf]
    %v4227 = vld [vmem:[%s4220 + $0x24] sm:$0xff]
    %v4228 = vld [vmem:[%s4220 + $0x2c] sm:$0xf]
    %v4229 = vld [vmem:[%s4220 + $0x30] sm:$0xff]
    %v4230 = vld [vmem:[%s4220 + $0x38] sm:$0xf]
    %v4231 = vld [vmem:[%s4220 + $0x3c] sm:$0xff]
    %v4232 = vld [vmem:[%s4220 + $0x44] sm:$0xf]
    %v4233 = vld [vmem:[%s4220 + $0x48] sm:$0xff]
    %v4234 = vld [vmem:[%s4220 + $0x50] sm:$0xf]
    %v4235 = vld [vmem:[%s4220 + $0x54] sm:$0xff]
    %v4236 = vld [vmem:[%s4220 + $0x5c] sm:$0xf]
    %v4237 = vld [vmem:[%s4220 + $0x60] sm:$0xff]
    %v4238 = vld [vmem:[%s4220 + $0x68] sm:$0xf]
    %v4239 = vld [vmem:[%s4220 + $0x6c] sm:$0xff]
    %v4240 = vld [vmem:[%s4220 + $0x74] sm:$0xf]
    %v4241 = vld [vmem:[%s4220 + $0x78] sm:$0xff]
    %v4242 = vld [vmem:[%s4220 + $0x80] sm:$0xf]
    %v4243 = vld [vmem:[%s4220 + $0x84] sm:$0xff]
    %v4244 = vld [vmem:[%s4220 + $0x8c] sm:$0xf]
    %v4245 = vld [vmem:[%s4220 + $0x90] sm:$0xff]
    %v4246 = vld [vmem:[%s4220 + $0x98] sm:$0xf]
    %v4247 = vld [vmem:[%s4220 + $0x9c] sm:$0xff]
    %v4248 = vld [vmem:[%s4220 + $0xa4] sm:$0xf]
    %v4249 = vld [vmem:[%s4220 + $0xa8] sm:$0xff]
    %v4250 = vld [vmem:[%s4220 + $0xb0] sm:$0xf]
    %v4251 = vld [vmem:[%s4220 + $0xb4] sm:$0xff]
    %v4252 = vld [vmem:[%s4220 + $0xbc] sm:$0xf]
    %v4253 = vld [vmem:[%s4220 + $0xc0] sm:$0xff]
    %v4254 = vld [vmem:[%s4220 + $0xc8] sm:$0xf]
    %v4255 = vld [vmem:[%s4220 + $0xcc] sm:$0xff]
    %v4256 = vld [vmem:[%s4220 + $0xd4] sm:$0xf]
    %v4257 = vld [vmem:[%s4220 + $0xd8] sm:$0xff]
    %v4258 = vld [vmem:[%s4220 + $0xe0] sm:$0xf]
    %v4259 = vld [vmem:[%s4220 + $0xe4] sm:$0xff]
    %v4260 = vld [vmem:[%s4220 + $0xec] sm:$0xf]
    %v4261 = vld [vmem:[%s4220 + $0xf0] sm:$0xff]
    %v4262 = vld [vmem:[%s4220 + $0xf8] sm:$0xf]
    %v4263 = vld [vmem:[%s4220 + $0xfc] sm:$0xff]
    %v4264 = vld [vmem:[%s4220 + $0x104] sm:$0xf]
    %v4265 = vld [vmem:[%s4220 + $0x108] sm:$0xff]
    %v4266 = vld [vmem:[%s4220 + $0x110] sm:$0xf]
    %v4267 = vld [vmem:[%s4220 + $0x114] sm:$0xff]
    %v4268 = vld [vmem:[%s4220 + $0x11c] sm:$0xf]
    %v4269 = vld [vmem:[%s4220 + $0x120] sm:$0xff]
    %v4270 = vld [vmem:[%s4220 + $0x128] sm:$0xf]
    %v4271 = vld [vmem:[%s4220 + $0x12c] sm:$0xff]
    %v4272 = vld [vmem:[%s4220 + $0x134] sm:$0xf]
    %v4273 = vld [vmem:[%s4220 + $0x138] sm:$0xff]
    %v4274 = vld [vmem:[%s4220 + $0x140] sm:$0xf]
    %v4275 = vld [vmem:[%s4220 + $0x144] sm:$0xff]
    %v4276 = vld [vmem:[%s4220 + $0x14c] sm:$0xf]
    %v4277 = vld [vmem:[%s4220 + $0x150] sm:$0xff]
    %v4278 = vld [vmem:[%s4220 + $0x158] sm:$0xf]
    %v4279 = vld [vmem:[%s4220 + $0x15c] sm:$0xff]
    %v4280 = vld [vmem:[%s4220 + $0x164] sm:$0xf]
    %v4281 = vld [vmem:[%s4220 + $0x168] sm:$0xff]
    %v4282 = vld [vmem:[%s4220 + $0x170] sm:$0xf]
    %v4283 = vld [vmem:[%s4220 + $0x174] sm:$0xff]
    %v4284 = vld [vmem:[%s4220 + $0x17c] sm:$0xf]
    %v4285 = vld [vmem:[%s4220 + $0x180] sm:$0xff]
    %v4286 = vld [vmem:[%s4220 + $0x188] sm:$0xf]
    %v4287 = vld [vmem:[%s4220 + $0x18c] sm:$0xff]
    %v4288 = vld [vmem:[%s4220 + $0x194] sm:$0xf]
    %v4289 = vld [vmem:[%s4220 + $0x198] sm:$0xff]
    %v4290 = vld [vmem:[%s4220 + $0x1a0] sm:$0xf]
    %v4291 = vld [vmem:[%s4220 + $0x1a4] sm:$0xff]
    %v4292 = vld [vmem:[%s4220 + $0x1ac] sm:$0xf]
    %v4293 = vld [vmem:[%s4220 + $0x1b0] sm:$0xff]
    %v4294 = vld [vmem:[%s4220 + $0x1b8] sm:$0xf]
    %v4295 = vld [vmem:[%s4220 + $0x1bc] sm:$0xff]
    %v4296 = vld [vmem:[%s4220 + $0x1c4] sm:$0xf]
    %v4297 = vld [vmem:[%s4220 + $0x1c8] sm:$0xff]
    %v4298 = vld [vmem:[%s4220 + $0x1d0] sm:$0xf]
    %v4299 = vld [vmem:[%s4220 + $0x1d4] sm:$0xff]
    %v4300 = vld [vmem:[%s4220 + $0x1dc] sm:$0xf]
    %v4301 = vld [vmem:[%s4220 + $0x1e0] sm:$0xff]
    %v4302 = vld [vmem:[%s4220 + $0x1e8] sm:$0xf]
    %v4303 = vld [vmem:[%s4220 + $0x1ec] sm:$0xff]
    %v4304 = vld [vmem:[%s4220 + $0x1f4] sm:$0xf]
    %v4305 = vld [vmem:[%s4220 + $0x1f8] sm:$0xff]
    %v4306 = vld [vmem:[%s4220 + $0x200] sm:$0xf]
    %v4307 = vld [vmem:[%s4220 + $0x204] sm:$0xff]
    %v4308 = vld [vmem:[%s4220 + $0x20c] sm:$0xf]
    %v4309 = vld [vmem:[%s4220 + $0x210] sm:$0xff]
    %v4310 = vld [vmem:[%s4220 + $0x218] sm:$0xf]
    %v4311 = vld [vmem:[%s4220 + $0x21c] sm:$0xff]
    %v4312 = vld [vmem:[%s4220 + $0x224] sm:$0xf]
    %v4313 = vld [vmem:[%s4220 + $0x228] sm:$0xff]
    %v4314 = vld [vmem:[%s4220 + $0x230] sm:$0xf]
    %v4315 = vld [vmem:[%s4220 + $0x234] sm:$0xff]
    %v4316 = vld [vmem:[%s4220 + $0x23c] sm:$0xf]
    %v4320 = vrot.slane %v4217, 3
    %v4321 = vrot.slane %v4218, 3
    %v4322 = vrot.slane %v4219, 3
    %v4422 = vunpack.c.l.b16 %v4221
    %v4423 = vunpack.c.h.b16 %v4221
    %v4424 = vunpack.c.l.b16 %v4222
    %v4425 = vunpack.c.l.b16 %v4223
    %v4426 = vunpack.c.h.b16 %v4223
    %v4427 = vunpack.c.l.b16 %v4224
    %v4428 = vunpack.c.l.b16 %v4225
    %v4429 = vunpack.c.h.b16 %v4225
    %v4430 = vunpack.c.l.b16 %v4226
    %v4431 = vunpack.c.l.b16 %v4227
    %v4432 = vunpack.c.h.b16 %v4227
    %v4433 = vunpack.c.l.b16 %v4228
    %v4434 = vunpack.c.l.b16 %v4229
    %v4435 = vunpack.c.h.b16 %v4229
    %v4436 = vunpack.c.l.b16 %v4230
    %v4437 = vunpack.c.l.b16 %v4231
    %v4438 = vunpack.c.h.b16 %v4231
    %v4439 = vunpack.c.l.b16 %v4232
    %v4440 = vunpack.c.l.b16 %v4233
    %v4441 = vunpack.c.h.b16 %v4233
    %v4442 = vunpack.c.l.b16 %v4234
    %v4443 = vunpack.c.l.b16 %v4235
    %v4444 = vunpack.c.h.b16 %v4235
    %v4445 = vunpack.c.l.b16 %v4236
    %v4446 = vunpack.c.l.b16 %v4237
    %v4447 = vunpack.c.h.b16 %v4237
    %v4448 = vunpack.c.l.b16 %v4238
    %v4449 = vunpack.c.l.b16 %v4239
    %v4450 = vunpack.c.h.b16 %v4239
    %v4451 = vunpack.c.l.b16 %v4240
    %v4452 = vunpack.c.l.b16 %v4241
    %v4453 = vunpack.c.h.b16 %v4241
    %v4454 = vunpack.c.l.b16 %v4242
    %v4455 = vunpack.c.l.b16 %v4243
    %v4456 = vunpack.c.h.b16 %v4243
    %v4457 = vunpack.c.l.b16 %v4244
    %v4458 = vunpack.c.l.b16 %v4245
    %v4459 = vunpack.c.h.b16 %v4245
    %v4460 = vunpack.c.l.b16 %v4246
    %v4461 = vunpack.c.l.b16 %v4247
    %v4462 = vunpack.c.h.b16 %v4247
    %v4463 = vunpack.c.l.b16 %v4248
    %v4464 = vunpack.c.l.b16 %v4249
    %v4465 = vunpack.c.h.b16 %v4249
    %v4466 = vunpack.c.l.b16 %v4250
    %v4467 = vunpack.c.l.b16 %v4251
    %v4468 = vunpack.c.h.b16 %v4251
    %v4469 = vunpack.c.l.b16 %v4252
    %v4470 = vunpack.c.l.b16 %v4253
    %v4471 = vunpack.c.h.b16 %v4253
    %v4472 = vunpack.c.l.b16 %v4254
    %v4473 = vunpack.c.l.b16 %v4255
    %v4474 = vunpack.c.h.b16 %v4255
    %v4475 = vunpack.c.l.b16 %v4256
    %v4476 = vunpack.c.l.b16 %v4257
    %v4477 = vunpack.c.h.b16 %v4257
    %v4478 = vunpack.c.l.b16 %v4258
    %v4479 = vunpack.c.l.b16 %v4259
    %v4480 = vunpack.c.h.b16 %v4259
    %v4481 = vunpack.c.l.b16 %v4260
    %v4482 = vunpack.c.l.b16 %v4261
    %v4483 = vunpack.c.h.b16 %v4261
    %v4484 = vunpack.c.l.b16 %v4262
    %v4485 = vunpack.c.l.b16 %v4263
    %v4486 = vunpack.c.h.b16 %v4263
    %v4487 = vunpack.c.l.b16 %v4264
    %v4488 = vunpack.c.l.b16 %v4265
    %v4489 = vunpack.c.h.b16 %v4265
    %v4490 = vunpack.c.l.b16 %v4266
    %v4491 = vunpack.c.l.b16 %v4267
    %v4492 = vunpack.c.h.b16 %v4267
    %v4493 = vunpack.c.l.b16 %v4268
    %v4494 = vunpack.c.l.b16 %v4269
    %v4495 = vunpack.c.h.b16 %v4269
    %v4496 = vunpack.c.l.b16 %v4270
    %v4497 = vunpack.c.l.b16 %v4271
    %v4498 = vunpack.c.h.b16 %v4271
    %v4499 = vunpack.c.l.b16 %v4272
    %v4500 = vunpack.c.l.b16 %v4273
    %v4501 = vunpack.c.h.b16 %v4273
    %v4502 = vunpack.c.l.b16 %v4274
    %v4503 = vunpack.c.l.b16 %v4275
    %v4504 = vunpack.c.h.b16 %v4275
    %v4505 = vunpack.c.l.b16 %v4276
    %v4506 = vunpack.c.l.b16 %v4277
    %v4507 = vunpack.c.h.b16 %v4277
    %v4508 = vunpack.c.l.b16 %v4278
    %v4509 = vunpack.c.l.b16 %v4279
    %v4510 = vunpack.c.h.b16 %v4279
    %v4511 = vunpack.c.l.b16 %v4280
    %v4512 = vunpack.c.l.b16 %v4281
    %v4513 = vunpack.c.h.b16 %v4281
    %v4514 = vunpack.c.l.b16 %v4282
    %v4515 = vunpack.c.l.b16 %v4283
    %v4516 = vunpack.c.h.b16 %v4283
    %v4517 = vunpack.c.l.b16 %v4284
    %v4518 = vunpack.c.l.b16 %v4285
    %v4519 = vunpack.c.h.b16 %v4285
    %v4520 = vunpack.c.l.b16 %v4286
    %v4521 = vunpack.c.l.b16 %v4287
    %v4522 = vunpack.c.h.b16 %v4287
    %v4523 = vunpack.c.l.b16 %v4288
    %v4524 = vunpack.c.l.b16 %v4289
    %v4525 = vunpack.c.h.b16 %v4289
    %v4526 = vunpack.c.l.b16 %v4290
    %v4527 = vunpack.c.l.b16 %v4291
    %v4528 = vunpack.c.h.b16 %v4291
    %v4529 = vunpack.c.l.b16 %v4292
    %v4530 = vunpack.c.l.b16 %v4293
    %v4531 = vunpack.c.h.b16 %v4293
    %v4532 = vunpack.c.l.b16 %v4294
    %v4533 = vunpack.c.l.b16 %v4295
    %v4534 = vunpack.c.h.b16 %v4295
    %v4535 = vunpack.c.l.b16 %v4296
    %v4536 = vunpack.c.l.b16 %v4297
    %v4537 = vunpack.c.h.b16 %v4297
    %v4538 = vunpack.c.l.b16 %v4298
    %v4539 = vunpack.c.l.b16 %v4299
    %v4540 = vunpack.c.h.b16 %v4299
    %v4541 = vunpack.c.l.b16 %v4300
    %v4542 = vunpack.c.l.b16 %v4301
    %v4543 = vunpack.c.h.b16 %v4301
    %v4544 = vunpack.c.l.b16 %v4302
    %v4545 = vunpack.c.l.b16 %v4303
    %v4546 = vunpack.c.h.b16 %v4303
    %v4547 = vunpack.c.l.b16 %v4304
    %v4548 = vunpack.c.l.b16 %v4305
    %v4549 = vunpack.c.h.b16 %v4305
    %v4550 = vunpack.c.l.b16 %v4306
    %v4551 = vunpack.c.l.b16 %v4307
    %v4552 = vunpack.c.h.b16 %v4307
    %v4553 = vunpack.c.l.b16 %v4308
    %v4554 = vunpack.c.l.b16 %v4309
    %v4555 = vunpack.c.h.b16 %v4309
    %v4556 = vunpack.c.l.b16 %v4310
    %v4557 = vunpack.c.l.b16 %v4311
    %v4558 = vunpack.c.h.b16 %v4311
    %v4559 = vunpack.c.l.b16 %v4312
    %v4560 = vunpack.c.l.b16 %v4313
    %v4561 = vunpack.c.h.b16 %v4313
    %v4562 = vunpack.c.l.b16 %v4314
    %v4563 = vunpack.c.l.b16 %v4315
    %v4564 = vunpack.c.h.b16 %v4315
    %v4565 = vunpack.c.l.b16 %v4316
    %v4566 = vpack.c.b16 %v4425, %v4422
    %v4567 = vpack.c.b16 %v4426, %v4423
    %v4568 = vpack.c.b16 %v4427, %v4424
    %v4569 = vpack.c.b16 %v4431, %v4428
    %v4570 = vpack.c.b16 %v4432, %v4429
    %v4571 = vpack.c.b16 %v4433, %v4430
    %v4572 = vpack.c.b16 %v4437, %v4434
    %v4573 = vpack.c.b16 %v4438, %v4435
    %v4574 = vpack.c.b16 %v4439, %v4436
    %v4575 = vpack.c.b16 %v4443, %v4440
    %v4576 = vpack.c.b16 %v4444, %v4441
    %v4577 = vpack.c.b16 %v4445, %v4442
    %v4578 = vpack.c.b16 %v4449, %v4446
    %v4579 = vpack.c.b16 %v4450, %v4447
    %v4580 = vpack.c.b16 %v4451, %v4448
    %v4581 = vpack.c.b16 %v4455, %v4452
    %v4582 = vpack.c.b16 %v4456, %v4453
    %v4583 = vpack.c.b16 %v4457, %v4454
    %v4584 = vpack.c.b16 %v4461, %v4458
    %v4585 = vpack.c.b16 %v4462, %v4459
    %v4586 = vpack.c.b16 %v4463, %v4460
    %v4587 = vpack.c.b16 %v4467, %v4464
    %v4588 = vpack.c.b16 %v4468, %v4465
    %v4589 = vpack.c.b16 %v4469, %v4466
    %v4590 = vpack.c.b16 %v4473, %v4470
    %v4591 = vpack.c.b16 %v4474, %v4471
    %v4592 = vpack.c.b16 %v4475, %v4472
    %v4593 = vpack.c.b16 %v4479, %v4476
    %v4594 = vpack.c.b16 %v4480, %v4477
    %v4595 = vpack.c.b16 %v4481, %v4478
    %v4596 = vpack.c.b16 %v4485, %v4482
    %v4597 = vpack.c.b16 %v4486, %v4483
    %v4598 = vpack.c.b16 %v4487, %v4484
    %v4599 = vpack.c.b16 %v4491, %v4488
    %v4600 = vpack.c.b16 %v4492, %v4489
    %v4601 = vpack.c.b16 %v4493, %v4490
    %v4602 = vpack.c.b16 %v4497, %v4494
    %v4603 = vpack.c.b16 %v4498, %v4495
    %v4604 = vpack.c.b16 %v4499, %v4496
    %v4605 = vpack.c.b16 %v4503, %v4500
    %v4606 = vpack.c.b16 %v4504, %v4501
    %v4607 = vpack.c.b16 %v4505, %v4502
    %v4608 = vpack.c.b16 %v4509, %v4506
    %v4609 = vpack.c.b16 %v4510, %v4507
    %v4610 = vpack.c.b16 %v4511, %v4508
    %v4611 = vpack.c.b16 %v4515, %v4512
    %v4612 = vpack.c.b16 %v4516, %v4513
    %v4613 = vpack.c.b16 %v4517, %v4514
    %v4614 = vpack.c.b16 %v4521, %v4518
    %v4615 = vpack.c.b16 %v4522, %v4519
    %v4616 = vpack.c.b16 %v4523, %v4520
    %v4617 = vpack.c.b16 %v4527, %v4524
    %v4618 = vpack.c.b16 %v4528, %v4525
    %v4619 = vpack.c.b16 %v4529, %v4526
    %v4620 = vpack.c.b16 %v4533, %v4530
    %v4621 = vpack.c.b16 %v4534, %v4531
    %v4622 = vpack.c.b16 %v4535, %v4532
    %v4623 = vpack.c.b16 %v4539, %v4536
    %v4624 = vpack.c.b16 %v4540, %v4537
    %v4625 = vpack.c.b16 %v4541, %v4538
    %v4626 = vpack.c.b16 %v4545, %v4542
    %v4627 = vpack.c.b16 %v4546, %v4543
    %v4628 = vpack.c.b16 %v4547, %v4544
    %v4629 = vpack.c.b16 %v4551, %v4548
    %v4630 = vpack.c.b16 %v4552, %v4549
    %v4631 = vpack.c.b16 %v4553, %v4550
    %v4632 = vpack.c.b16 %v4557, %v4554
    %v4633 = vpack.c.b16 %v4558, %v4555
    %v4634 = vpack.c.b16 %v4559, %v4556
    %v4635 = vpack.c.b16 %v4563, %v4560
    %v4636 = vpack.c.b16 %v4564, %v4561
    %v4637 = vpack.c.b16 %v4565, %v4562
    %4710 = vmatprep.subr.bf16.mxu0 %v4567
    %4711 = vmatpush1.bf16.msra.mxu0 %v4566
    %4712 = vmatprep.subr.bf16.mxu0 %v4570
    %4713 = vmatpush1.bf16.msra.mxu0 %v4569
    %4714 = vmatprep.subr.bf16.mxu0 %v4573
    %4715 = vmatpush1.bf16.msra.mxu0 %v4572
    %4716 = vmatprep.subr.bf16.mxu0 %v4576
    %4717 = vmatpush1.bf16.msra.mxu0 %v4575
    %4718 = vmatprep.subr.bf16.mxu0 %v4579
    %4719 = vmatpush1.bf16.msra.mxu0 %v4578
    %4720 = vmatprep.subr.bf16.mxu0 %v4582
    %4721 = vmatpush1.bf16.msra.mxu0 %v4581
    %4722 = vmatprep.subr.bf16.mxu0 %v4585
    %4723 = vmatpush1.bf16.msra.mxu0 %v4584
    %4724 = vmatprep.subr.bf16.mxu0 %v4588
    %4725 = vmatpush1.bf16.msra.mxu0 %v4587
    %4726 = vmatprep.subr.bf16.mxu0 %v4591
    %4727 = vmatpush1.bf16.msra.mxu0 %v4590
    %4728 = vmatprep.subr.bf16.mxu0 %v4594
    %4729 = vmatpush1.bf16.msra.mxu0 %v4593
    %4730 = vmatprep.subr.bf16.mxu0 %v4597
    %4731 = vmatpush1.bf16.msra.mxu0 %v4596
    %4732 = vmatprep.subr.bf16.mxu0 %v4600
    %4733 = vmatpush1.bf16.msra.mxu0 %v4599
    %4734 = vmatprep.subr.bf16.mxu0 %v4603
    %4735 = vmatpush1.bf16.msra.mxu0 %v4602
    %4736 = vmatprep.subr.bf16.mxu0 %v4606
    %4737 = vmatpush1.bf16.msra.mxu0 %v4605
    %4738 = vmatprep.subr.bf16.mxu0 %v4609
    %4739 = vmatpush1.bf16.msra.mxu0 %v4608
    %4740 = vmatprep.subr.bf16.mxu0 %v4612
    %4741 = vmatpush1.bf16.msra.mxu0 %v4611
    %4742 = vmatprep.mubr.bf16.mxu0 %v4321
    %4743 = vmatmul.mubr.bf16.gmra.mrb[0].mxu0 %v4320
    %v4744 = vpop.f32.mrb[0].mxu0
    %v4745 = vadd.f32 0.0, %v4744
    %v4746 = vpop.f32.mrb[0].mxu0
    %v4747 = vadd.f32 0.0, %v4746
    %v4748 = vpop.f32.mrb[0].mxu0
    %v4749 = vadd.f32 0.0, %v4748
    %v4750 = vpop.f32.mrb[0].mxu0
    %v4751 = vadd.f32 0.0, %v4750
    %4752 = vdwg.mxu0
    %4753 = vmatprep.subr.bf16.mxu0 %v4615
    %4754 = vmatpush1.bf16.msra.mxu0 %v4614
    %4755 = vmatprep.subr.bf16.mxu0 %v4618
    %4756 = vmatpush1.bf16.msra.mxu0 %v4617
    %4757 = vmatprep.subr.bf16.mxu0 %v4621
    %4758 = vmatpush1.bf16.msra.mxu0 %v4620
    %4759 = vmatprep.subr.bf16.mxu0 %v4624
    %4760 = vmatpush1.bf16.msra.mxu0 %v4623
    %4761 = vmatprep.subr.bf16.mxu0 %v4627
    %4762 = vmatpush1.bf16.msra.mxu0 %v4626
    %4763 = vmatprep.subr.bf16.mxu0 %v4630
    %4764 = vmatpush1.bf16.msra.mxu0 %v4629
    %4765 = vmatprep.subr.bf16.mxu0 %v4633
    %4766 = vmatpush1.bf16.msra.mxu0 %v4632
    %4767 = vmatprep.subr.bf16.mxu0 %v4636
    %4768 = vmatpush1.bf16.msra.mxu0 %v4635
    %4769 = vmatprep.subr.bf16.mxu0 0
    %4770 = vmatpush1.bf16.msra.mxu0 0
    %4771 = vmatprep.subr.bf16.mxu0 0
    %4772 = vmatpush1.bf16.msra.mxu0 0
    %4773 = vmatprep.subr.bf16.mxu0 0
    %4774 = vmatpush1.bf16.msra.mxu0 0
    %4775 = vmatprep.subr.bf16.mxu0 0
    %4776 = vmatpush1.bf16.msra.mxu0 0
    %4777 = vmatprep.subr.bf16.mxu0 0
    %4778 = vmatpush1.bf16.msra.mxu0 0
    %4779 = vmatprep.subr.bf16.mxu0 0
    %4780 = vmatpush1.bf16.msra.mxu0 0
    %4781 = vmatprep.subr.bf16.mxu0 0
    %4782 = vmatpush1.bf16.msra.mxu0 0
    %4783 = vmatprep.subr.bf16.mxu0 0
    %4784 = vmatpush1.bf16.msra.mxu0 0
    %4785 = vmatprep.mubr.bf16.mxu0 0
    %4786 = vmatmul.mubr.bf16.gmra.mrb[0].mxu0 %v4322
    %v4787 = vpop.f32.mrb[0].mxu0
    %v4788 = vadd.f32 %v4745, %v4787
    %v4789 = vpop.f32.mrb[0].mxu0
    %v4790 = vadd.f32 %v4747, %v4789
    %v4791 = vpop.f32.mrb[0].mxu0
    %v4792 = vadd.f32 %v4749, %v4791
    %v4793 = vpop.f32.mrb[0].mxu0
    %v4794 = vadd.f32 %v4751, %v4793
    %4795 = vdwg.mxu0
    %4796 = vmatprep.subr.bf16.mxu0 0
    %4797 = vmatpush1.bf16.msra.mxu0 %v4568
    %4798 = vmatprep.subr.bf16.mxu0 0
    %4799 = vmatpush1.bf16.msra.mxu0 %v4571
    %4800 = vmatprep.subr.bf16.mxu0 0
    %4801 = vmatpush1.bf16.msra.mxu0 %v4574
    %4802 = vmatprep.subr.bf16.mxu0 0
    %4803 = vmatpush1.bf16.msra.mxu0 %v4577
    %4804 = vmatprep.subr.bf16.mxu0 0
    %4805 = vmatpush1.bf16.msra.mxu0 %v4580
    %4806 = vmatprep.subr.bf16.mxu0 0
    %4807 = vmatpush1.bf16.msra.mxu0 %v4583
    %4808 = vmatprep.subr.bf16.mxu0 0
    %4809 = vmatpush1.bf16.msra.mxu0 %v4586
    %4810 = vmatprep.subr.bf16.mxu0 0
    %4811 = vmatpush1.bf16.msra.mxu0 %v4589
    %4812 = vmatprep.subr.bf16.mxu0 0
    %4813 = vmatpush1.bf16.msra.mxu0 %v4592
    %4814 = vmatprep.subr.bf16.mxu0 0
    %4815 = vmatpush1.bf16.msra.mxu0 %v4595
    %4816 = vmatprep.subr.bf16.mxu0 0
    %4817 = vmatpush1.bf16.msra.mxu0 %v4598
    %4818 = vmatprep.subr.bf16.mxu0 0
    %4819 = vmatpush1.bf16.msra.mxu0 %v4601
    %4820 = vmatprep.subr.bf16.mxu0 0
    %4821 = vmatpush1.bf16.msra.mxu0 %v4604
    %4822 = vmatprep.subr.bf16.mxu0 0
    %4823 = vmatpush1.bf16.msra.mxu0 %v4607
    %4824 = vmatprep.subr.bf16.mxu0 0
    %4825 = vmatpush1.bf16.msra.mxu0 %v4610
    %4826 = vmatprep.subr.bf16.mxu0 0
    %4827 = vmatpush1.bf16.msra.mxu0 %v4613
    %4828 = vmatprep.mubr.bf16.mxu0 %v4321
    %4829 = vmatmul.mubr.bf16.gmra.mrb[0].mxu0 %v4320
    %v4830 = vpop.f32.mrb[0].mxu0
    %v4831 = vadd.f32 0.0, %v4830
    %v4832 = vpop.f32.mrb[0].mxu0
    %v4833 = vpop.f32.mrb[0].mxu0
    %v4834 = vadd.f32 0.0, %v4833
    %v4835 = vpop.f32.mrb[0].mxu0
    %4836 = vdwg.mxu0
    %4837 = vmatprep.subr.bf16.mxu0 0
    %4838 = vmatpush1.bf16.msra.mxu0 %v4616
    %4839 = vmatprep.subr.bf16.mxu0 0
    %4840 = vmatpush1.bf16.msra.mxu0 %v4619
    %4841 = vmatprep.subr.bf16.mxu0 0
    %4842 = vmatpush1.bf16.msra.mxu0 %v4622
    %4843 = vmatprep.subr.bf16.mxu0 0
    %4844 = vmatpush1.bf16.msra.mxu0 %v4625
    %4845 = vmatprep.subr.bf16.mxu0 0
    %4846 = vmatpush1.bf16.msra.mxu0 %v4628
    %4847 = vmatprep.subr.bf16.mxu0 0
    %4848 = vmatpush1.bf16.msra.mxu0 %v4631
    %4849 = vmatprep.subr.bf16.mxu0 0
    %4850 = vmatpush1.bf16.msra.mxu0 %v4634
    %4851 = vmatprep.subr.bf16.mxu0 0
    %4852 = vmatpush1.bf16.msra.mxu0 %v4637
    %4853 = vmatprep.subr.bf16.mxu0 0
    %4854 = vmatpush1.bf16.msra.mxu0 0
    %4855 = vmatprep.subr.bf16.mxu0 0
    %4856 = vmatpush1.bf16.msra.mxu0 0
    %4857 = vmatprep.subr.bf16.mxu0 0
    %4858 = vmatpush1.bf16.msra.mxu0 0
    %4859 = vmatprep.subr.bf16.mxu0 0
    %4860 = vmatpush1.bf16.msra.mxu0 0
    %4861 = vmatprep.subr.bf16.mxu0 0
    %4862 = vmatpush1.bf16.msra.mxu0 0
    %4863 = vmatprep.subr.bf16.mxu0 0
    %4864 = vmatpush1.bf16.msra.mxu0 0
    %4865 = vmatprep.subr.bf16.mxu0 0
    %4866 = vmatpush1.bf16.msra.mxu0 0
    %4867 = vmatprep.subr.bf16.mxu0 0
    %4868 = vmatpush1.bf16.msra.mxu0 0
    %4869 = vmatprep.mubr.bf16.mxu0 0
    %4870 = vmatmul.mubr.bf16.gmra.mrb[0].mxu0 %v4322
    %v4871 = vpop.f32.mrb[0].mxu0
    %v4872 = vadd.f32 %v4831, %v4871
    %v4873 = vpop.f32.mrb[0].mxu0
    %v4874 = vpop.f32.mrb[0].mxu0
    %v4875 = vadd.f32 %v4834, %v4874
    %v4876 = vpop.f32.mrb[0].mxu0
    %4877 = vdwg.mxu0
    %v4881 = vrot.slane %v2892, 2
    %v4882 = vrot.slane %v2893, 2
    %v4883 = vrot.slane %v2894, 2
    %v4983 = vunpack.c.l.b16 %v2896
    %v4984 = vunpack.c.h.b16 %v2896
    %v4985 = vunpack.c.l.b16 %v2897
    %v4986 = vunpack.c.l.b16 %v2898
    %v4987 = vunpack.c.h.b16 %v2898
    %v4988 = vunpack.c.l.b16 %v2899
    %v4989 = vunpack.c.l.b16 %v2900
    %v4990 = vunpack.c.h.b16 %v2900
    %v4991 = vunpack.c.l.b16 %v2901
    %v4992 = vunpack.c.l.b16 %v2902
    %v4993 = vunpack.c.h.b16 %v2902
    %v4994 = vunpack.c.l.b16 %v2903
    %v4995 = vunpack.c.l.b16 %v2904
    %v4996 = vunpack.c.h.b16 %v2904
    %v4997 = vunpack.c.l.b16 %v2905
    %v4998 = vunpack.c.l.b16 %v2906
    %v4999 = vunpack.c.h.b16 %v2906
    %v5000 = vunpack.c.l.b16 %v2907
    %v5001 = vunpack.c.l.b16 %v2908
    %v5002 = vunpack.c.h.b16 %v2908
    %v5003 = vunpack.c.l.b16 %v2909
    %v5004 = vunpack.c.l.b16 %v2910
    %v5005 = vunpack.c.h.b16 %v2910
    %v5006 = vunpack.c.l.b16 %v2911
    %v5007 = vunpack.c.l.b16 %v2912
    %v5008 = vunpack.c.h.b16 %v2912
    %v5009 = vunpack.c.l.b16 %v2913
    %v5010 = vunpack.c.l.b16 %v2914
    %v5011 = vunpack.c.h.b16 %v2914
    %v5012 = vunpack.c.l.b16 %v2915
    %v5013 = vunpack.c.l.b16 %v2916
    %v5014 = vunpack.c.h.b16 %v2916
    %v5015 = vunpack.c.l.b16 %v2917
    %v5016 = vunpack.c.l.b16 %v2918
    %v5017 = vunpack.c.h.b16 %v2918
    %v5018 = vunpack.c.l.b16 %v2919
    %v5019 = vunpack.c.l.b16 %v2920
    %v5020 = vunpack.c.h.b16 %v2920
    %v5021 = vunpack.c.l.b16 %v2921
    %v5022 = vunpack.c.l.b16 %v2922
    %v5023 = vunpack.c.h.b16 %v2922
    %v5024 = vunpack.c.l.b16 %v2923
    %v5025 = vunpack.c.l.b16 %v2924
    %v5026 = vunpack.c.h.b16 %v2924
    %v5027 = vunpack.c.l.b16 %v2925
    %v5028 = vunpack.c.l.b16 %v2926
    %v5029 = vunpack.c.h.b16 %v2926
    %v5030 = vunpack.c.l.b16 %v2927
    %v5031 = vunpack.c.l.b16 %v2928
    %v5032 = vunpack.c.h.b16 %v2928
    %v5033 = vunpack.c.l.b16 %v2929
    %v5034 = vunpack.c.l.b16 %v2930
    %v5035 = vunpack.c.h.b16 %v2930
    %v5036 = vunpack.c.l.b16 %v2931
    %v5037 = vunpack.c.l.b16 %v2932
    %v5038 = vunpack.c.h.b16 %v2932
    %v5039 = vunpack.c.l.b16 %v2933
    %v5040 = vunpack.c.l.b16 %v2934
    %v5041 = vunpack.c.h.b16 %v2934
    %v5042 = vunpack.c.l.b16 %v2935
    %v5043 = vunpack.c.l.b16 %v2936
    %v5044 = vunpack.c.h.b16 %v2936
    %v5045 = vunpack.c.l.b16 %v2937
    %v5046 = vunpack.c.l.b16 %v2938
    %v5047 = vunpack.c.h.b16 %v2938
    %v5048 = vunpack.c.l.b16 %v2939
    %v5049 = vunpack.c.l.b16 %v2940
    %v5050 = vunpack.c.h.b16 %v2940
    %v5051 = vunpack.c.l.b16 %v2941
    %v5052 = vunpack.c.l.b16 %v2942
    %v5053 = vunpack.c.h.b16 %v2942
    %v5054 = vunpack.c.l.b16 %v2943
    %v5055 = vunpack.c.l.b16 %v2944
    %v5056 = vunpack.c.h.b16 %v2944
    %v5057 = vunpack.c.l.b16 %v2945
    %v5058 = vunpack.c.l.b16 %v2946
    %v5059 = vunpack.c.h.b16 %v2946
    %v5060 = vunpack.c.l.b16 %v2947
    %v5061 = vunpack.c.l.b16 %v2948
    %v5062 = vunpack.c.h.b16 %v2948
    %v5063 = vunpack.c.l.b16 %v2949
    %v5064 = vunpack.c.l.b16 %v2950
    %v5065 = vunpack.c.h.b16 %v2950
    %v5066 = vunpack.c.l.b16 %v2951
    %v5067 = vunpack.c.l.b16 %v2952
    %v5068 = vunpack.c.h.b16 %v2952
    %v5069 = vunpack.c.l.b16 %v2953
    %v5070 = vunpack.c.l.b16 %v2954
    %v5071 = vunpack.c.h.b16 %v2954
    %v5072 = vunpack.c.l.b16 %v2955
    %v5073 = vunpack.c.l.b16 %v2956
    %v5074 = vunpack.c.h.b16 %v2956
    %v5075 = vunpack.c.l.b16 %v2957
    %v5076 = vunpack.c.l.b16 %v2958
    %v5077 = vunpack.c.h.b16 %v2958
    %v5078 = vunpack.c.l.b16 %v2959
    %v5079 = vunpack.c.l.b16 %v2960
    %v5080 = vunpack.c.h.b16 %v2960
    %v5081 = vunpack.c.l.b16 %v2961
    %v5082 = vunpack.c.l.b16 %v2962
    %v5083 = vunpack.c.h.b16 %v2962
    %v5084 = vunpack.c.l.b16 %v2963
    %v5085 = vunpack.c.l.b16 %v2964
    %v5086 = vunpack.c.h.b16 %v2964
    %v5087 = vunpack.c.l.b16 %v2965
    %v5088 = vunpack.c.l.b16 %v2966
    %v5089 = vunpack.c.h.b16 %v2966
    %v5090 = vunpack.c.l.b16 %v2967
    %v5091 = vunpack.c.l.b16 %v2968
    %v5092 = vunpack.c.h.b16 %v2968
    %v5093 = vunpack.c.l.b16 %v2969
    %v5094 = vunpack.c.l.b16 %v2970
    %v5095 = vunpack.c.h.b16 %v2970
    %v5096 = vunpack.c.l.b16 %v2971
    %v5097 = vunpack.c.l.b16 %v2972
    %v5098 = vunpack.c.h.b16 %v2972
    %v5099 = vunpack.c.l.b16 %v2973
    %v5100 = vunpack.c.l.b16 %v2974
    %v5101 = vunpack.c.h.b16 %v2974
    %v5102 = vunpack.c.l.b16 %v2975
    %v5103 = vunpack.c.l.b16 %v2976
    %v5104 = vunpack.c.h.b16 %v2976
    %v5105 = vunpack.c.l.b16 %v2977
    %v5106 = vunpack.c.l.b16 %v2978
    %v5107 = vunpack.c.h.b16 %v2978
    %v5108 = vunpack.c.l.b16 %v2979
    %v5109 = vunpack.c.l.b16 %v2980
    %v5110 = vunpack.c.h.b16 %v2980
    %v5111 = vunpack.c.l.b16 %v2981
    %v5112 = vunpack.c.l.b16 %v2982
    %v5113 = vunpack.c.h.b16 %v2982
    %v5114 = vunpack.c.l.b16 %v2983
    %v5115 = vunpack.c.l.b16 %v2984
    %v5116 = vunpack.c.h.b16 %v2984
    %v5117 = vunpack.c.l.b16 %v2985
    %v5118 = vunpack.c.l.b16 %v2986
    %v5119 = vunpack.c.h.b16 %v2986
    %v5120 = vunpack.c.l.b16 %v2987
    %v5121 = vunpack.c.l.b16 %v2988
    %v5122 = vunpack.c.h.b16 %v2988
    %v5123 = vunpack.c.l.b16 %v2989
    %v5124 = vunpack.c.l.b16 %v2990
    %v5125 = vunpack.c.h.b16 %v2990
    %v5126 = vunpack.c.l.b16 %v2991
    %v5127 = vpack.c.b16 %v4986, %v4983
    %v5128 = vpack.c.b16 %v4987, %v4984
    %v5129 = vpack.c.b16 %v4988, %v4985
    %v5130 = vpack.c.b16 %v4992, %v4989
    %v5131 = vpack.c.b16 %v4993, %v4990
    %v5132 = vpack.c.b16 %v4994, %v4991
    %v5133 = vpack.c.b16 %v4998, %v4995
    %v5134 = vpack.c.b16 %v4999, %v4996
    %v5135 = vpack.c.b16 %v5000, %v4997
    %v5136 = vpack.c.b16 %v5004, %v5001
    %v5137 = vpack.c.b16 %v5005, %v5002
    %v5138 = vpack.c.b16 %v5006, %v5003
    %v5139 = vpack.c.b16 %v5010, %v5007
    %v5140 = vpack.c.b16 %v5011, %v5008
    %v5141 = vpack.c.b16 %v5012, %v5009
    %v5142 = vpack.c.b16 %v5016, %v5013
    %v5143 = vpack.c.b16 %v5017, %v5014
    %v5144 = vpack.c.b16 %v5018, %v5015
    %v5145 = vpack.c.b16 %v5022, %v5019
    %v5146 = vpack.c.b16 %v5023, %v5020
    %v5147 = vpack.c.b16 %v5024, %v5021
    %v5148 = vpack.c.b16 %v5028, %v5025
    %v5149 = vpack.c.b16 %v5029, %v5026
    %v5150 = vpack.c.b16 %v5030, %v5027
    %v5151 = vpack.c.b16 %v5034, %v5031
    %v5152 = vpack.c.b16 %v5035, %v5032
    %v5153 = vpack.c.b16 %v5036, %v5033
    %v5154 = vpack.c.b16 %v5040, %v5037
    %v5155 = vpack.c.b16 %v5041, %v5038
    %v5156 = vpack.c.b16 %v5042, %v5039
    %v5157 = vpack.c.b16 %v5046, %v5043
    %v5158 = vpack.c.b16 %v5047, %v5044
    %v5159 = vpack.c.b16 %v5048, %v5045
    %v5160 = vpack.c.b16 %v5052, %v5049
    %v5161 = vpack.c.b16 %v5053, %v5050
    %v5162 = vpack.c.b16 %v5054, %v5051
    %v5163 = vpack.c.b16 %v5058, %v5055
    %v5164 = vpack.c.b16 %v5059, %v5056
    %v5165 = vpack.c.b16 %v5060, %v5057
    %v5166 = vpack.c.b16 %v5064, %v5061
    %v5167 = vpack.c.b16 %v5065, %v5062
    %v5168 = vpack.c.b16 %v5066, %v5063
    %v5169 = vpack.c.b16 %v5070, %v5067
    %v5170 = vpack.c.b16 %v5071, %v5068
    %v5171 = vpack.c.b16 %v5072, %v5069
    %v5172 = vpack.c.b16 %v5076, %v5073
    %v5173 = vpack.c.b16 %v5077, %v5074
    %v5174 = vpack.c.b16 %v5078, %v5075
    %v5175 = vpack.c.b16 %v5082, %v5079
    %v5176 = vpack.c.b16 %v5083, %v5080
    %v5177 = vpack.c.b16 %v5084, %v5081
    %v5178 = vpack.c.b16 %v5088, %v5085
    %v5179 = vpack.c.b16 %v5089, %v5086
    %v5180 = vpack.c.b16 %v5090, %v5087
    %v5181 = vpack.c.b16 %v5094, %v5091
    %v5182 = vpack.c.b16 %v5095, %v5092
    %v5183 = vpack.c.b16 %v5096, %v5093
    %v5184 = vpack.c.b16 %v5100, %v5097
    %v5185 = vpack.c.b16 %v5101, %v5098
    %v5186 = vpack.c.b16 %v5102, %v5099
    %v5187 = vpack.c.b16 %v5106, %v5103
    %v5188 = vpack.c.b16 %v5107, %v5104
    %v5189 = vpack.c.b16 %v5108, %v5105
    %v5190 = vpack.c.b16 %v5112, %v5109
    %v5191 = vpack.c.b16 %v5113, %v5110
    %v5192 = vpack.c.b16 %v5114, %v5111
    %v5193 = vpack.c.b16 %v5118, %v5115
    %v5194 = vpack.c.b16 %v5119, %v5116
    %v5195 = vpack.c.b16 %v5120, %v5117
    %v5196 = vpack.c.b16 %v5124, %v5121
    %v5197 = vpack.c.b16 %v5125, %v5122
    %v5198 = vpack.c.b16 %v5126, %v5123
    %5271 = vmatprep.subr.bf16.mxu0 %v5128
    %5272 = vmatpush1.bf16.msra.mxu0 %v5127
    %5273 = vmatprep.subr.bf16.mxu0 %v5131
    %5274 = vmatpush1.bf16.msra.mxu0 %v5130
    %5275 = vmatprep.subr.bf16.mxu0 %v5134
    %5276 = vmatpush1.bf16.msra.mxu0 %v5133
    %5277 = vmatprep.subr.bf16.mxu0 %v5137
    %5278 = vmatpush1.bf16.msra.mxu0 %v5136
    %5279 = vmatprep.subr.bf16.mxu0 %v5140
    %5280 = vmatpush1.bf16.msra.mxu0 %v5139
    %5281 = vmatprep.subr.bf16.mxu0 %v5143
    %5282 = vmatpush1.bf16.msra.mxu0 %v5142
    %5283 = vmatprep.subr.bf16.mxu0 %v5146
    %5284 = vmatpush1.bf16.msra.mxu0 %v5145
    %5285 = vmatprep.subr.bf16.mxu0 %v5149
    %5286 = vmatpush1.bf16.msra.mxu0 %v5148
    %5287 = vmatprep.subr.bf16.mxu0 %v5152
    %5288 = vmatpush1.bf16.msra.mxu0 %v5151
    %5289 = vmatprep.subr.bf16.mxu0 %v5155
    %5290 = vmatpush1.bf16.msra.mxu0 %v5154
    %5291 = vmatprep.subr.bf16.mxu0 %v5158
    %5292 = vmatpush1.bf16.msra.mxu0 %v5157
    %5293 = vmatprep.subr.bf16.mxu0 %v5161
    %5294 = vmatpush1.bf16.msra.mxu0 %v5160
    %5295 = vmatprep.subr.bf16.mxu0 %v5164
    %5296 = vmatpush1.bf16.msra.mxu0 %v5163
    %5297 = vmatprep.subr.bf16.mxu0 %v5167
    %5298 = vmatpush1.bf16.msra.mxu0 %v5166
    %5299 = vmatprep.subr.bf16.mxu0 %v5170
    %5300 = vmatpush1.bf16.msra.mxu0 %v5169
    %5301 = vmatprep.subr.bf16.mxu0 %v5173
    %5302 = vmatpush1.bf16.msra.mxu0 %v5172
    %5303 = vmatprep.mubr.bf16.mxu0 %v4882
    %5304 = vmatmul.mubr.bf16.gmra.mrb[0].mxu0 %v4881
    %v5305 = vpop.f32.mrb[0].mxu0
    %v5306 = vadd.f32 %v4788, %v5305
    %v5307 = vpop.f32.mrb[0].mxu0
    %v5308 = vadd.f32 %v4790, %v5307
    %v5309 = vpop.f32.mrb[0].mxu0
    %v5310 = vadd.f32 %v4792, %v5309
    %v5311 = vpop.f32.mrb[0].mxu0
    %v5312 = vadd.f32 %v4794, %v5311
    %5313 = vdwg.mxu0
    %5314 = vmatprep.subr.bf16.mxu0 %v5176
    %5315 = vmatpush1.bf16.msra.mxu0 %v5175
    %5316 = vmatprep.subr.bf16.mxu0 %v5179
    %5317 = vmatpush1.bf16.msra.mxu0 %v5178
    %5318 = vmatprep.subr.bf16.mxu0 %v5182
    %5319 = vmatpush1.bf16.msra.mxu0 %v5181
    %5320 = vmatprep.subr.bf16.mxu0 %v5185
    %5321 = vmatpush1.bf16.msra.mxu0 %v5184
    %5322 = vmatprep.subr.bf16.mxu0 %v5188
    %5323 = vmatpush1.bf16.msra.mxu0 %v5187
    %5324 = vmatprep.subr.bf16.mxu0 %v5191
    %5325 = vmatpush1.bf16.msra.mxu0 %v5190
    %5326 = vmatprep.subr.bf16.mxu0 %v5194
    %5327 = vmatpush1.bf16.msra.mxu0 %v5193
    %5328 = vmatprep.subr.bf16.mxu0 %v5197
    %5329 = vmatpush1.bf16.msra.mxu0 %v5196
    %5330 = vmatprep.subr.bf16.mxu0 0
    %5331 = vmatpush1.bf16.msra.mxu0 0
    %5332 = vmatprep.subr.bf16.mxu0 0
    %5333 = vmatpush1.bf16.msra.mxu0 0
    %5334 = vmatprep.subr.bf16.mxu0 0
    %5335 = vmatpush1.bf16.msra.mxu0 0
    %5336 = vmatprep.subr.bf16.mxu0 0
    %5337 = vmatpush1.bf16.msra.mxu0 0
    %5338 = vmatprep.subr.bf16.mxu0 0
    %5339 = vmatpush1.bf16.msra.mxu0 0
    %5340 = vmatprep.subr.bf16.mxu0 0
    %5341 = vmatpush1.bf16.msra.mxu0 0
    %5342 = vmatprep.subr.bf16.mxu0 0
    %5343 = vmatpush1.bf16.msra.mxu0 0
    %5344 = vmatprep.subr.bf16.mxu0 0
    %5345 = vmatpush1.bf16.msra.mxu0 0
    %5346 = vmatprep.mubr.bf16.mxu0 0
    %5347 = vmatmul.mubr.bf16.gmra.mrb[0].mxu0 %v4883
    %v5348 = vpop.f32.mrb[0].mxu0
    %v5349 = vadd.f32 %v5306, %v5348
    %v5350 = vpop.f32.mrb[0].mxu0
    %v5351 = vadd.f32 %v5308, %v5350
    %v5352 = vpop.f32.mrb[0].mxu0
    %v5353 = vadd.f32 %v5310, %v5352
    %v5354 = vpop.f32.mrb[0].mxu0
    %v5355 = vadd.f32 %v5312, %v5354
    %5356 = vdwg.mxu0
    %5357 = vmatprep.subr.bf16.mxu0 0
    %5358 = vmatpush1.bf16.msra.mxu0 %v5129
    %5359 = vmatprep.subr.bf16.mxu0 0
    %5360 = vmatpush1.bf16.msra.mxu0 %v5132
    %5361 = vmatprep.subr.bf16.mxu0 0
    %5362 = vmatpush1.bf16.msra.mxu0 %v5135
    %5363 = vmatprep.subr.bf16.mxu0 0
    %5364 = vmatpush1.bf16.msra.mxu0 %v5138
    %5365 = vmatprep.subr.bf16.mxu0 0
    %5366 = vmatpush1.bf16.msra.mxu0 %v5141
    %5367 = vmatprep.subr.bf16.mxu0 0
    %5368 = vmatpush1.bf16.msra.mxu0 %v5144
    %5369 = vmatprep.subr.bf16.mxu0 0
    %5370 = vmatpush1.bf16.msra.mxu0 %v5147
    %5371 = vmatprep.subr.bf16.mxu0 0
    %5372 = vmatpush1.bf16.msra.mxu0 %v5150
    %5373 = vmatprep.subr.bf16.mxu0 0
    %5374 = vmatpush1.bf16.msra.mxu0 %v5153
    %5375 = vmatprep.subr.bf16.mxu0 0
    %5376 = vmatpush1.bf16.msra.mxu0 %v5156
    %5377 = vmatprep.subr.bf16.mxu0 0
    %5378 = vmatpush1.bf16.msra.mxu0 %v5159
    %5379 = vmatprep.subr.bf16.mxu0 0
    %5380 = vmatpush1.bf16.msra.mxu0 %v5162
    %5381 = vmatprep.subr.bf16.mxu0 0
    %5382 = vmatpush1.bf16.msra.mxu0 %v5165
    %5383 = vmatprep.subr.bf16.mxu0 0
    %5384 = vmatpush1.bf16.msra.mxu0 %v5168
    %5385 = vmatprep.subr.bf16.mxu0 0
    %5386 = vmatpush1.bf16.msra.mxu0 %v5171
    %5387 = vmatprep.subr.bf16.mxu0 0
    %5388 = vmatpush1.bf16.msra.mxu0 %v5174
    %5389 = vmatprep.mubr.bf16.mxu0 %v4882
    %5390 = vmatmul.mubr.bf16.gmra.mrb[0].mxu0 %v4881
    %v5391 = vpop.f32.mrb[0].mxu0
    %v5392 = vadd.f32 %v4872, %v5391
    %v5393 = vpop.f32.mrb[0].mxu0
    %v5394 = vpop.f32.mrb[0].mxu0
    %v5395 = vadd.f32 %v4875, %v5394
    %v5396 = vpop.f32.mrb[0].mxu0
    %5397 = vdwg.mxu0
    %5398 = vmatprep.subr.bf16.mxu0 0
    %5399 = vmatpush1.bf16.msra.mxu0 %v5177
    %5400 = vmatprep.subr.bf16.mxu0 0
    %5401 = vmatpush1.bf16.msra.mxu0 %v5180
    %5402 = vmatprep.subr.bf16.mxu0 0
    %5403 = vmatpush1.bf16.msra.mxu0 %v5183
    %5404 = vmatprep.subr.bf16.mxu0 0
    %5405 = vmatpush1.bf16.msra.mxu0 %v5186
    %5406 = vmatprep.subr.bf16.mxu0 0
    %5407 = vmatpush1.bf16.msra.mxu0 %v5189
    %5408 = vmatprep.subr.bf16.mxu0 0
    %5409 = vmatpush1.bf16.msra.mxu0 %v5192
    %5410 = vmatprep.subr.bf16.mxu0 0
    %5411 = vmatpush1.bf16.msra.mxu0 %v5195
    %5412 = vmatprep.subr.bf16.mxu0 0
    %5413 = vmatpush1.bf16.msra.mxu0 %v5198
    %5414 = vmatprep.subr.bf16.mxu0 0
    %5415 = vmatpush1.bf16.msra.mxu0 0
    %5416 = vmatprep.subr.bf16.mxu0 0
    %5417 = vmatpush1.bf16.msra.mxu0 0
    %5418 = vmatprep.subr.bf16.mxu0 0
    %5419 = vmatpush1.bf16.msra.mxu0 0
    %5420 = vmatprep.subr.bf16.mxu0 0
    %5421 = vmatpush1.bf16.msra.mxu0 0
    %5422 = vmatprep.subr.bf16.mxu0 0
    %5423 = vmatpush1.bf16.msra.mxu0 0
    %5424 = vmatprep.subr.bf16.mxu0 0
    %5425 = vmatpush1.bf16.msra.mxu0 0
    %5426 = vmatprep.subr.bf16.mxu0 0
    %5427 = vmatpush1.bf16.msra.mxu0 0
    %5428 = vmatprep.subr.bf16.mxu0 0
    %5429 = vmatpush1.bf16.msra.mxu0 0
    %5430 = vmatprep.mubr.bf16.mxu0 0
    %5431 = vmatmul.mubr.bf16.gmra.mrb[0].mxu0 %v4883
    %v5432 = vpop.f32.mrb[0].mxu0
    %v5433 = vadd.f32 %v5392, %v5432
    %v5434 = vpop.f32.mrb[0].mxu0
    %v5435 = vpop.f32.mrb[0].mxu0
    %v5436 = vadd.f32 %v5395, %v5435
    %v5437 = vpop.f32.mrb[0].mxu0
    %5438 = vdwg.mxu0
    %v5439 = vadd.f32 %v4121, %v5349
    %v5440 = vadd.f32 %v4123, %v5351
    %v5441 = vadd.f32 %v4205, %v5433
    %v5442 = vadd.f32 %v4125, %v5353
    %v5443 = vadd.f32 %v4127, %v5355
    %v5444 = vadd.f32 %v4208, %v5436
    %v5445 = vld [vmem:[%s3] sm:$0x7]
    %v5447 = vlaneseq
    %v5448 = vshrl.u32 %v5447, 7
    %v5449 = vsub.s32 0, %v5448
    %v5450 = vrot.slane %v5445, %v5449
    %v5451 = vlaneseq
    %v5452 = vshrl.u32 %v5451, 7
    %v5453 = vsub.s32 1, %v5452
    %v5454 = vrot.slane %v5445, %v5453
    %v5455 = vlaneseq
    %v5456 = vshrl.u32 %v5455, 7
    %v5457 = vsub.s32 2, %v5456
    %v5458 = vrot.slane %v5445, %v5457
    %v5462 = vadd.f32 %v5439, %v5450
    %v5463 = vadd.f32 %v5440, %v5454
    %v5464 = vadd.f32 %v5441, %v5458
    %v5465 = vadd.f32 %v5442, %v5450
    %v5466 = vadd.f32 %v5443, %v5454
    %v5467 = vadd.f32 %v5444, %v5458
    %v5468 = vmax.f32 %v5462, 0.0
    %v5469 = vmax.f32 %v5463, 0.0
    %v5470 = vmax.f32 %v5464, 0.0
    %v5471 = vmax.f32 %v5465, 0.0
    %v5472 = vmax.f32 %v5466, 0.0
    %v5473 = vmax.f32 %v5467, 0.0
    %5474 = vst [vmem:[#allocation3] sm:$0xff] 0.0
    %5475 = vst [vmem:[#allocation3 + $0x8] sm:$0xff] 0.0
    %5476 = vst [vmem:[#allocation3 + $0x10] sm:$0xff] 0.0
    %vm5477 = vcmask 523264
    %5478 = vst.msk [vmem:[#allocation3 + $0x18] sm:$0xff] %vm5477, 0.0
    %5479 = vst [vmem:[#allocation3 + $0x20] sm:$0x3f] 0.0
    %5480 = vst [vmem:[#allocation3 + $0x28] sm:$0x3f] 0.0
    %5481 = vst [vmem:[#allocation3 + $0x30] sm:$0x3f] 0.0
    %vm5482 = vcmask 521216
    %5483 = vst.msk [vmem:[#allocation3 + $0x38] sm:$0x3f] %vm5482, 0.0
    %vm5490 = vcmask 1041408
    %v5491 = vrot.slane %v5468, 6
    %v5492 = vrot.slane %v5469, 6
    %v5493 = vrot.slane %v5470, 6
    %v5494 = vrot.slane %v5471, 6
    %v5495 = vsel %vm5490, %v5491, %v5494
    %v5496 = vrot.slane %v5472, 6
    %v5497 = vsel %vm5490, %v5492, %v5496
    %v5498 = vrot.slane %v5473, 6
    %v5499 = vsel %vm5490, %v5493, %v5498
    %5500 = vrot.lane.b32.xlu0 %v5491, 64
    %v5501 = vpop.permute.xlu0 %5500
    %5502 = vrot.lane.b32.xlu0 %v5492, 64
    %v5503 = vpop.permute.xlu0 %5502
    %5504 = vrot.lane.b32.xlu0 %v5493, 64
    %v5505 = vpop.permute.xlu0 %5504
    %5506 = vrot.lane.b32.xlu0 %v5495, 64
    %v5507 = vpop.permute.xlu0 %5506
    %5508 = vrot.lane.b32.xlu0 %v5497, 64
    %v5509 = vpop.permute.xlu0 %5508
    %5510 = vrot.lane.b32.xlu0 %v5499, 64
    %v5511 = vpop.permute.xlu0 %5510
    %v5512 = vsel %vm5477, %v5501, %v5503
    %v5513 = vsel %vm5477, %v5503, %v5505
    %v5514 = vsel %vm5477, %v5507, %v5509
    %v5515 = vsel %vm5477, %v5509, %v5511
    %vm5522 = vcmask 1048066
    %5523 = vst.msk [vmem:[#allocation3] sm:$0xfc] %vm5522, %v5501
    %5524 = vst [vmem:[#allocation3 + $0x8] sm:$0xfc] %v5512
    %5525 = vst [vmem:[#allocation3 + $0x10] sm:$0xfc] %v5513
    %vm5526 = vcmask 1043968
    %5527 = vst.msk [vmem:[#allocation3 + $0x20] sm:$0xf] %vm5526, %v5507
    %5528 = vst [vmem:[#allocation3 + $0x28] sm:$0xf] %v5514
    %5529 = vst [vmem:[#allocation3 + $0x30] sm:$0xf] %v5515
    %v5530 = vld [vmem:[#allocation3] sm:$0xff]
    %v5531 = vld [vmem:[#allocation3 + $0x8] sm:$0xff]
    %v5532 = vld [vmem:[#allocation3 + $0x10] sm:$0xff]
    %v5533 = vld [vmem:[#allocation3 + $0x18] sm:$0xff]
    %v5534 = vld [vmem:[#allocation3 + $0x20] sm:$0x3]
    %v5535 = vld [vmem:[#allocation3 + $0x28] sm:$0x3]
    %v5536 = vld [vmem:[#allocation3 + $0x30] sm:$0x3]
    %v5537 = vld [vmem:[#allocation3 + $0x38] sm:$0x3]
    %v5538 = vpack.c.bf16 %v5534, %v5530
    %v5539 = vpack.c.bf16 %v5535, %v5531
    %v5540 = vpack.c.bf16 %v5536, %v5532
    %v5541 = vpack.c.bf16 %v5537, %v5533
    %v5542 = vld [vmem:[%s4] sm:$0xff]
    %v5543 = vld [vmem:[%s4 + $0x8] sm:$0xf]
    %v5544 = vld [vmem:[%s4 + $0xc] sm:$0xff]
    %v5545 = vld [vmem:[%s4 + $0x14] sm:$0xf]
    %v5546 = vld [vmem:[%s4 + $0x18] sm:$0xff]
    %v5547 = vld [vmem:[%s4 + $0x20] sm:$0xf]
    %v5548 = vld [vmem:[%s4 + $0x24] sm:$0xff]
    %v5549 = vld [vmem:[%s4 + $0x2c] sm:$0xf]
    %v5550 = vld [vmem:[%s4 + $0x30] sm:$0xff]
    %v5551 = vld [vmem:[%s4 + $0x38] sm:$0xf]
    %v5552 = vld [vmem:[%s4 + $0x3c] sm:$0xff]
    %v5553 = vld [vmem:[%s4 + $0x44] sm:$0xf]
    %v5554 = vld [vmem:[%s4 + $0x48] sm:$0xff]
    %v5555 = vld [vmem:[%s4 + $0x50] sm:$0xf]
    %v5556 = vld [vmem:[%s4 + $0x54] sm:$0xff]
    %v5557 = vld [vmem:[%s4 + $0x5c] sm:$0xf]
    %v5558 = vld [vmem:[%s4 + $0x60] sm:$0xff]
    %v5559 = vld [vmem:[%s4 + $0x68] sm:$0xf]
    %v5560 = vld [vmem:[%s4 + $0x6c] sm:$0xff]
    %v5561 = vld [vmem:[%s4 + $0x74] sm:$0xf]
    %v5562 = vld [vmem:[%s4 + $0x78] sm:$0xff]
    %v5563 = vld [vmem:[%s4 + $0x80] sm:$0xf]
    %v5564 = vld [vmem:[%s4 + $0x84] sm:$0xff]
    %v5565 = vld [vmem:[%s4 + $0x8c] sm:$0xf]
    %v5566 = vld [vmem:[%s4 + $0x90] sm:$0xff]
    %v5567 = vld [vmem:[%s4 + $0x98] sm:$0xf]
    %v5568 = vld [vmem:[%s4 + $0x9c] sm:$0xff]
    %v5569 = vld [vmem:[%s4 + $0xa4] sm:$0xf]
    %v5570 = vld [vmem:[%s4 + $0xa8] sm:$0xff]
    %v5571 = vld [vmem:[%s4 + $0xb0] sm:$0xf]
    %v5572 = vld [vmem:[%s4 + $0xb4] sm:$0xff]
    %v5573 = vld [vmem:[%s4 + $0xbc] sm:$0xf]
    %v5574 = vld [vmem:[%s4 + $0xc0] sm:$0xff]
    %v5575 = vld [vmem:[%s4 + $0xc8] sm:$0xf]
    %v5576 = vld [vmem:[%s4 + $0xcc] sm:$0xff]
    %v5577 = vld [vmem:[%s4 + $0xd4] sm:$0xf]
    %v5578 = vld [vmem:[%s4 + $0xd8] sm:$0xff]
    %v5579 = vld [vmem:[%s4 + $0xe0] sm:$0xf]
    %v5580 = vld [vmem:[%s4 + $0xe4] sm:$0xff]
    %v5581 = vld [vmem:[%s4 + $0xec] sm:$0xf]
    %v5582 = vld [vmem:[%s4 + $0xf0] sm:$0xff]
    %v5583 = vld [vmem:[%s4 + $0xf8] sm:$0xf]
    %v5584 = vld [vmem:[%s4 + $0xfc] sm:$0xff]
    %v5585 = vld [vmem:[%s4 + $0x104] sm:$0xf]
    %v5586 = vld [vmem:[%s4 + $0x108] sm:$0xff]
    %v5587 = vld [vmem:[%s4 + $0x110] sm:$0xf]
    %v5588 = vld [vmem:[%s4 + $0x114] sm:$0xff]
    %v5589 = vld [vmem:[%s4 + $0x11c] sm:$0xf]
    %v5590 = vld [vmem:[%s4 + $0x120] sm:$0xff]
    %v5591 = vld [vmem:[%s4 + $0x128] sm:$0xf]
    %v5592 = vld [vmem:[%s4 + $0x12c] sm:$0xff]
    %v5593 = vld [vmem:[%s4 + $0x134] sm:$0xf]
    %v5594 = vld [vmem:[%s4 + $0x138] sm:$0xff]
    %v5595 = vld [vmem:[%s4 + $0x140] sm:$0xf]
    %v5596 = vld [vmem:[%s4 + $0x144] sm:$0xff]
    %v5597 = vld [vmem:[%s4 + $0x14c] sm:$0xf]
    %v5598 = vld [vmem:[%s4 + $0x150] sm:$0xff]
    %v5599 = vld [vmem:[%s4 + $0x158] sm:$0xf]
    %v5600 = vld [vmem:[%s4 + $0x15c] sm:$0xff]
    %v5601 = vld [vmem:[%s4 + $0x164] sm:$0xf]
    %v5602 = vld [vmem:[%s4 + $0x168] sm:$0xff]
    %v5603 = vld [vmem:[%s4 + $0x170] sm:$0xf]
    %v5604 = vld [vmem:[%s4 + $0x174] sm:$0xff]
    %v5605 = vld [vmem:[%s4 + $0x17c] sm:$0xf]
    %v5606 = vld [vmem:[%s4 + $0x180] sm:$0xff]
    %v5607 = vld [vmem:[%s4 + $0x188] sm:$0xf]
    %v5608 = vld [vmem:[%s4 + $0x18c] sm:$0xff]
    %v5609 = vld [vmem:[%s4 + $0x194] sm:$0xf]
    %v5610 = vld [vmem:[%s4 + $0x198] sm:$0xff]
    %v5611 = vld [vmem:[%s4 + $0x1a0] sm:$0xf]
    %v5612 = vld [vmem:[%s4 + $0x1a4] sm:$0xff]
    %v5613 = vld [vmem:[%s4 + $0x1ac] sm:$0xf]
    %v5614 = vld [vmem:[%s4 + $0x1b0] sm:$0xff]
    %v5615 = vld [vmem:[%s4 + $0x1b8] sm:$0xf]
    %v5616 = vld [vmem:[%s4 + $0x1bc] sm:$0xff]
    %v5617 = vld [vmem:[%s4 + $0x1c4] sm:$0xf]
    %v5618 = vld [vmem:[%s4 + $0x1c8] sm:$0xff]
    %v5619 = vld [vmem:[%s4 + $0x1d0] sm:$0xf]
    %v5620 = vld [vmem:[%s4 + $0x1d4] sm:$0xff]
    %v5621 = vld [vmem:[%s4 + $0x1dc] sm:$0xf]
    %v5622 = vld [vmem:[%s4 + $0x1e0] sm:$0xff]
    %v5623 = vld [vmem:[%s4 + $0x1e8] sm:$0xf]
    %v5624 = vld [vmem:[%s4 + $0x1ec] sm:$0xff]
    %v5625 = vld [vmem:[%s4 + $0x1f4] sm:$0xf]
    %v5626 = vld [vmem:[%s4 + $0x1f8] sm:$0xff]
    %v5627 = vld [vmem:[%s4 + $0x200] sm:$0xf]
    %v5628 = vld [vmem:[%s4 + $0x204] sm:$0xff]
    %v5629 = vld [vmem:[%s4 + $0x20c] sm:$0xf]
    %v5630 = vld [vmem:[%s4 + $0x210] sm:$0xff]
    %v5631 = vld [vmem:[%s4 + $0x218] sm:$0xf]
    %v5632 = vld [vmem:[%s4 + $0x21c] sm:$0xff]
    %v5633 = vld [vmem:[%s4 + $0x224] sm:$0xf]
    %v5634 = vld [vmem:[%s4 + $0x228] sm:$0xff]
    %v5635 = vld [vmem:[%s4 + $0x230] sm:$0xf]
    %v5636 = vld [vmem:[%s4 + $0x234] sm:$0xff]
    %v5637 = vld [vmem:[%s4 + $0x23c] sm:$0xf]
    %v5638 = vld [vmem:[%s4 + $0x240] sm:$0xff]
    %v5639 = vld [vmem:[%s4 + $0x248] sm:$0xf]
    %v5640 = vld [vmem:[%s4 + $0x24c] sm:$0xff]
    %v5641 = vld [vmem:[%s4 + $0x254] sm:$0xf]
    %v5642 = vld [vmem:[%s4 + $0x258] sm:$0xff]
    %v5643 = vld [vmem:[%s4 + $0x260] sm:$0xf]
    %v5644 = vld [vmem:[%s4 + $0x264] sm:$0xff]
    %v5645 = vld [vmem:[%s4 + $0x26c] sm:$0xf]
    %v5646 = vld [vmem:[%s4 + $0x270] sm:$0xff]
    %v5647 = vld [vmem:[%s4 + $0x278] sm:$0xf]
    %v5648 = vld [vmem:[%s4 + $0x27c] sm:$0xff]
    %v5649 = vld [vmem:[%s4 + $0x284] sm:$0xf]
    %v5650 = vld [vmem:[%s4 + $0x288] sm:$0xff]
    %v5651 = vld [vmem:[%s4 + $0x290] sm:$0xf]
    %v5652 = vld [vmem:[%s4 + $0x294] sm:$0xff]
    %v5653 = vld [vmem:[%s4 + $0x29c] sm:$0xf]
    %v5654 = vld [vmem:[#allocation3] sm:$0xfc]
    %v5655 = vld [vmem:[#allocation3 + $0x8] sm:$0xfc]
    %v5656 = vld [vmem:[#allocation3 + $0x10] sm:$0xfc]
    %v5657 = vld [vmem:[#allocation3 + $0x18] sm:$0xfc]
    %v5658 = vld [vmem:[#allocation3 + $0x20] sm:$0xf]
    %v5659 = vld [vmem:[#allocation3 + $0x28] sm:$0xf]
    %v5660 = vld [vmem:[#allocation3 + $0x30] sm:$0xf]
    %v5661 = vld [vmem:[#allocation3 + $0x38] sm:$0xf]
    %v5662 = vpack.c.bf16 %v5658, %v5654
    %v5663 = vpack.c.bf16 %v5659, %v5655
    %v5664 = vpack.c.bf16 %v5660, %v5656
    %v5665 = vpack.c.bf16 %v5661, %v5657
    %s5666 = scalar_lea.vmem %s4, 672
    %v5667 = vld [vmem:[%s5666] sm:$0xff]
    %v5668 = vld [vmem:[%s5666 + $0x8] sm:$0xf]
    %v5669 = vld [vmem:[%s5666 + $0xc] sm:$0xff]
    %v5670 = vld [vmem:[%s5666 + $0x14] sm:$0xf]
    %v5671 = vld [vmem:[%s5666 + $0x18] sm:$0xff]
    %v5672 = vld [vmem:[%s5666 + $0x20] sm:$0xf]
    %v5673 = vld [vmem:[%s5666 + $0x24] sm:$0xff]
    %v5674 = vld [vmem:[%s5666 + $0x2c] sm:$0xf]
    %v5675 = vld [vmem:[%s5666 + $0x30] sm:$0xff]
    %v5676 = vld [vmem:[%s5666 + $0x38] sm:$0xf]
    %v5677 = vld [vmem:[%s5666 + $0x3c] sm:$0xff]
    %v5678 = vld [vmem:[%s5666 + $0x44] sm:$0xf]
    %v5679 = vld [vmem:[%s5666 + $0x48] sm:$0xff]
    %v5680 = vld [vmem:[%s5666 + $0x50] sm:$0xf]
    %v5681 = vld [vmem:[%s5666 + $0x54] sm:$0xff]
    %v5682 = vld [vmem:[%s5666 + $0x5c] sm:$0xf]
    %v5683 = vld [vmem:[%s5666 + $0x60] sm:$0xff]
    %v5684 = vld [vmem:[%s5666 + $0x68] sm:$0xf]
    %v5685 = vld [vmem:[%s5666 + $0x6c] sm:$0xff]
    %v5686 = vld [vmem:[%s5666 + $0x74] sm:$0xf]
    %v5687 = vld [vmem:[%s5666 + $0x78] sm:$0xff]
    %v5688 = vld [vmem:[%s5666 + $0x80] sm:$0xf]
    %v5689 = vld [vmem:[%s5666 + $0x84] sm:$0xff]
    %v5690 = vld [vmem:[%s5666 + $0x8c] sm:$0xf]
    %v5691 = vld [vmem:[%s5666 + $0x90] sm:$0xff]
    %v5692 = vld [vmem:[%s5666 + $0x98] sm:$0xf]
    %v5693 = vld [vmem:[%s5666 + $0x9c] sm:$0xff]
    %v5694 = vld [vmem:[%s5666 + $0xa4] sm:$0xf]
    %v5695 = vld [vmem:[%s5666 + $0xa8] sm:$0xff]
    %v5696 = vld [vmem:[%s5666 + $0xb0] sm:$0xf]
    %v5697 = vld [vmem:[%s5666 + $0xb4] sm:$0xff]
    %v5698 = vld [vmem:[%s5666 + $0xbc] sm:$0xf]
    %v5699 = vld [vmem:[%s5666 + $0xc0] sm:$0xff]
    %v5700 = vld [vmem:[%s5666 + $0xc8] sm:$0xf]
    %v5701 = vld [vmem:[%s5666 + $0xcc] sm:$0xff]
    %v5702 = vld [vmem:[%s5666 + $0xd4] sm:$0xf]
    %v5703 = vld [vmem:[%s5666 + $0xd8] sm:$0xff]
    %v5704 = vld [vmem:[%s5666 + $0xe0] sm:$0xf]
    %v5705 = vld [vmem:[%s5666 + $0xe4] sm:$0xff]
    %v5706 = vld [vmem:[%s5666 + $0xec] sm:$0xf]
    %v5707 = vld [vmem:[%s5666 + $0xf0] sm:$0xff]
    %v5708 = vld [vmem:[%s5666 + $0xf8] sm:$0xf]
    %v5709 = vld [vmem:[%s5666 + $0xfc] sm:$0xff]
    %v5710 = vld [vmem:[%s5666 + $0x104] sm:$0xf]
    %v5711 = vld [vmem:[%s5666 + $0x108] sm:$0xff]
    %v5712 = vld [vmem:[%s5666 + $0x110] sm:$0xf]
    %v5713 = vld [vmem:[%s5666 + $0x114] sm:$0xff]
    %v5714 = vld [vmem:[%s5666 + $0x11c] sm:$0xf]
    %v5715 = vld [vmem:[%s5666 + $0x120] sm:$0xff]
    %v5716 = vld [vmem:[%s5666 + $0x128] sm:$0xf]
    %v5717 = vld [vmem:[%s5666 + $0x12c] sm:$0xff]
    %v5718 = vld [vmem:[%s5666 + $0x134] sm:$0xf]
    %v5719 = vld [vmem:[%s5666 + $0x138] sm:$0xff]
    %v5720 = vld [vmem:[%s5666 + $0x140] sm:$0xf]
    %v5721 = vld [vmem:[%s5666 + $0x144] sm:$0xff]
    %v5722 = vld [vmem:[%s5666 + $0x14c] sm:$0xf]
    %v5723 = vld [vmem:[%s5666 + $0x150] sm:$0xff]
    %v5724 = vld [vmem:[%s5666 + $0x158] sm:$0xf]
    %v5725 = vld [vmem:[%s5666 + $0x15c] sm:$0xff]
    %v5726 = vld [vmem:[%s5666 + $0x164] sm:$0xf]
    %v5727 = vld [vmem:[%s5666 + $0x168] sm:$0xff]
    %v5728 = vld [vmem:[%s5666 + $0x170] sm:$0xf]
    %v5729 = vld [vmem:[%s5666 + $0x174] sm:$0xff]
    %v5730 = vld [vmem:[%s5666 + $0x17c] sm:$0xf]
    %v5731 = vld [vmem:[%s5666 + $0x180] sm:$0xff]
    %v5732 = vld [vmem:[%s5666 + $0x188] sm:$0xf]
    %v5733 = vld [vmem:[%s5666 + $0x18c] sm:$0xff]
    %v5734 = vld [vmem:[%s5666 + $0x194] sm:$0xf]
    %v5735 = vld [vmem:[%s5666 + $0x198] sm:$0xff]
    %v5736 = vld [vmem:[%s5666 + $0x1a0] sm:$0xf]
    %v5737 = vld [vmem:[%s5666 + $0x1a4] sm:$0xff]
    %v5738 = vld [vmem:[%s5666 + $0x1ac] sm:$0xf]
    %v5739 = vld [vmem:[%s5666 + $0x1b0] sm:$0xff]
    %v5740 = vld [vmem:[%s5666 + $0x1b8] sm:$0xf]
    %v5741 = vld [vmem:[%s5666 + $0x1bc] sm:$0xff]
    %v5742 = vld [vmem:[%s5666 + $0x1c4] sm:$0xf]
    %v5743 = vld [vmem:[%s5666 + $0x1c8] sm:$0xff]
    %v5744 = vld [vmem:[%s5666 + $0x1d0] sm:$0xf]
    %v5745 = vld [vmem:[%s5666 + $0x1d4] sm:$0xff]
    %v5746 = vld [vmem:[%s5666 + $0x1dc] sm:$0xf]
    %v5747 = vld [vmem:[%s5666 + $0x1e0] sm:$0xff]
    %v5748 = vld [vmem:[%s5666 + $0x1e8] sm:$0xf]
    %v5749 = vld [vmem:[%s5666 + $0x1ec] sm:$0xff]
    %v5750 = vld [vmem:[%s5666 + $0x1f4] sm:$0xf]
    %v5751 = vld [vmem:[%s5666 + $0x1f8] sm:$0xff]
    %v5752 = vld [vmem:[%s5666 + $0x200] sm:$0xf]
    %v5753 = vld [vmem:[%s5666 + $0x204] sm:$0xff]
    %v5754 = vld [vmem:[%s5666 + $0x20c] sm:$0xf]
    %v5755 = vld [vmem:[%s5666 + $0x210] sm:$0xff]
    %v5756 = vld [vmem:[%s5666 + $0x218] sm:$0xf]
    %v5757 = vld [vmem:[%s5666 + $0x21c] sm:$0xff]
    %v5758 = vld [vmem:[%s5666 + $0x224] sm:$0xf]
    %v5759 = vld [vmem:[%s5666 + $0x228] sm:$0xff]
    %v5760 = vld [vmem:[%s5666 + $0x230] sm:$0xf]
    %v5761 = vld [vmem:[%s5666 + $0x234] sm:$0xff]
    %v5762 = vld [vmem:[%s5666 + $0x23c] sm:$0xf]
    %v5763 = vld [vmem:[%s5666 + $0x240] sm:$0xff]
    %v5764 = vld [vmem:[%s5666 + $0x248] sm:$0xf]
    %v5765 = vld [vmem:[%s5666 + $0x24c] sm:$0xff]
    %v5766 = vld [vmem:[%s5666 + $0x254] sm:$0xf]
    %v5767 = vld [vmem:[%s5666 + $0x258] sm:$0xff]
    %v5768 = vld [vmem:[%s5666 + $0x260] sm:$0xf]
    %v5769 = vld [vmem:[%s5666 + $0x264] sm:$0xff]
    %v5770 = vld [vmem:[%s5666 + $0x26c] sm:$0xf]
    %v5771 = vld [vmem:[%s5666 + $0x270] sm:$0xff]
    %v5772 = vld [vmem:[%s5666 + $0x278] sm:$0xf]
    %v5773 = vld [vmem:[%s5666 + $0x27c] sm:$0xff]
    %v5774 = vld [vmem:[%s5666 + $0x284] sm:$0xf]
    %v5775 = vld [vmem:[%s5666 + $0x288] sm:$0xff]
    %v5776 = vld [vmem:[%s5666 + $0x290] sm:$0xf]
    %v5777 = vld [vmem:[%s5666 + $0x294] sm:$0xff]
    %v5778 = vld [vmem:[%s5666 + $0x29c] sm:$0xf]
    %v5783 = vrot.slane %v5662, 1
    %v5784 = vrot.slane %v5663, 1
    %v5785 = vrot.slane %v5664, 1
    %v5786 = vrot.slane %v5665, 1
    %v5902 = vunpack.c.l.b16 %v5667
    %v5903 = vunpack.c.h.b16 %v5667
    %v5904 = vunpack.c.l.b16 %v5668
    %v5905 = vunpack.c.l.b16 %v5669
    %v5906 = vunpack.c.h.b16 %v5669
    %v5907 = vunpack.c.l.b16 %v5670
    %v5908 = vunpack.c.l.b16 %v5671
    %v5909 = vunpack.c.h.b16 %v5671
    %v5910 = vunpack.c.l.b16 %v5672
    %v5911 = vunpack.c.l.b16 %v5673
    %v5912 = vunpack.c.h.b16 %v5673
    %v5913 = vunpack.c.l.b16 %v5674
    %v5914 = vunpack.c.l.b16 %v5675
    %v5915 = vunpack.c.h.b16 %v5675
    %v5916 = vunpack.c.l.b16 %v5676
    %v5917 = vunpack.c.l.b16 %v5677
    %v5918 = vunpack.c.h.b16 %v5677
    %v5919 = vunpack.c.l.b16 %v5678
    %v5920 = vunpack.c.l.b16 %v5679
    %v5921 = vunpack.c.h.b16 %v5679
    %v5922 = vunpack.c.l.b16 %v5680
    %v5923 = vunpack.c.l.b16 %v5681
    %v5924 = vunpack.c.h.b16 %v5681
    %v5925 = vunpack.c.l.b16 %v5682
    %v5926 = vunpack.c.l.b16 %v5683
    %v5927 = vunpack.c.h.b16 %v5683
    %v5928 = vunpack.c.l.b16 %v5684
    %v5929 = vunpack.c.l.b16 %v5685
    %v5930 = vunpack.c.h.b16 %v5685
    %v5931 = vunpack.c.l.b16 %v5686
    %v5932 = vunpack.c.l.b16 %v5687
    %v5933 = vunpack.c.h.b16 %v5687
    %v5934 = vunpack.c.l.b16 %v5688
    %v5935 = vunpack.c.l.b16 %v5689
    %v5936 = vunpack.c.h.b16 %v5689
    %v5937 = vunpack.c.l.b16 %v5690
    %v5938 = vunpack.c.l.b16 %v5691
    %v5939 = vunpack.c.h.b16 %v5691
    %v5940 = vunpack.c.l.b16 %v5692
    %v5941 = vunpack.c.l.b16 %v5693
    %v5942 = vunpack.c.h.b16 %v5693
    %v5943 = vunpack.c.l.b16 %v5694
    %v5944 = vunpack.c.l.b16 %v5695
    %v5945 = vunpack.c.h.b16 %v5695
    %v5946 = vunpack.c.l.b16 %v5696
    %v5947 = vunpack.c.l.b16 %v5697
    %v5948 = vunpack.c.h.b16 %v5697
    %v5949 = vunpack.c.l.b16 %v5698
    %v5950 = vunpack.c.l.b16 %v5699
    %v5951 = vunpack.c.h.b16 %v5699
    %v5952 = vunpack.c.l.b16 %v5700
    %v5953 = vunpack.c.l.b16 %v5701
    %v5954 = vunpack.c.h.b16 %v5701
    %v5955 = vunpack.c.l.b16 %v5702
    %v5956 = vunpack.c.l.b16 %v5703
    %v5957 = vunpack.c.h.b16 %v5703
    %v5958 = vunpack.c.l.b16 %v5704
    %v5959 = vunpack.c.l.b16 %v5705
    %v5960 = vunpack.c.h.b16 %v5705
    %v5961 = vunpack.c.l.b16 %v5706
    %v5962 = vunpack.c.l.b16 %v5707
    %v5963 = vunpack.c.h.b16 %v5707
    %v5964 = vunpack.c.l.b16 %v5708
    %v5965 = vunpack.c.l.b16 %v5709
    %v5966 = vunpack.c.h.b16 %v5709
    %v5967 = vunpack.c.l.b16 %v5710
    %v5968 = vunpack.c.l.b16 %v5711
    %v5969 = vunpack.c.h.b16 %v5711
    %v5970 = vunpack.c.l.b16 %v5712
    %v5971 = vunpack.c.l.b16 %v5713
    %v5972 = vunpack.c.h.b16 %v5713
    %v5973 = vunpack.c.l.b16 %v5714
    %v5974 = vunpack.c.l.b16 %v5715
    %v5975 = vunpack.c.h.b16 %v5715
    %v5976 = vunpack.c.l.b16 %v5716
    %v5977 = vunpack.c.l.b16 %v5717
    %v5978 = vunpack.c.h.b16 %v5717
    %v5979 = vunpack.c.l.b16 %v5718
    %v5980 = vunpack.c.l.b16 %v5719
    %v5981 = vunpack.c.h.b16 %v5719
    %v5982 = vunpack.c.l.b16 %v5720
    %v5983 = vunpack.c.l.b16 %v5721
    %v5984 = vunpack.c.h.b16 %v5721
    %v5985 = vunpack.c.l.b16 %v5722
    %v5986 = vunpack.c.l.b16 %v5723
    %v5987 = vunpack.c.h.b16 %v5723
    %v5988 = vunpack.c.l.b16 %v5724
    %v5989 = vunpack.c.l.b16 %v5725
    %v5990 = vunpack.c.h.b16 %v5725
    %v5991 = vunpack.c.l.b16 %v5726
    %v5992 = vunpack.c.l.b16 %v5727
    %v5993 = vunpack.c.h.b16 %v5727
    %v5994 = vunpack.c.l.b16 %v5728
    %v5995 = vunpack.c.l.b16 %v5729
    %v5996 = vunpack.c.h.b16 %v5729
    %v5997 = vunpack.c.l.b16 %v5730
    %v5998 = vunpack.c.l.b16 %v5731
    %v5999 = vunpack.c.h.b16 %v5731
    %v6000 = vunpack.c.l.b16 %v5732
    %v6001 = vunpack.c.l.b16 %v5733
    %v6002 = vunpack.c.h.b16 %v5733
    %v6003 = vunpack.c.l.b16 %v5734
    %v6004 = vunpack.c.l.b16 %v5735
    %v6005 = vunpack.c.h.b16 %v5735
    %v6006 = vunpack.c.l.b16 %v5736
    %v6007 = vunpack.c.l.b16 %v5737
    %v6008 = vunpack.c.h.b16 %v5737
    %v6009 = vunpack.c.l.b16 %v5738
    %v6010 = vunpack.c.l.b16 %v5739
    %v6011 = vunpack.c.h.b16 %v5739
    %v6012 = vunpack.c.l.b16 %v5740
    %v6013 = vunpack.c.l.b16 %v5741
    %v6014 = vunpack.c.h.b16 %v5741
    %v6015 = vunpack.c.l.b16 %v5742
    %v6016 = vunpack.c.l.b16 %v5743
    %v6017 = vunpack.c.h.b16 %v5743
    %v6018 = vunpack.c.l.b16 %v5744
    %v6019 = vunpack.c.l.b16 %v5745
    %v6020 = vunpack.c.h.b16 %v5745
    %v6021 = vunpack.c.l.b16 %v5746
    %v6022 = vunpack.c.l.b16 %v5747
    %v6023 = vunpack.c.h.b16 %v5747
    %v6024 = vunpack.c.l.b16 %v5748
    %v6025 = vunpack.c.l.b16 %v5749
    %v6026 = vunpack.c.h.b16 %v5749
    %v6027 = vunpack.c.l.b16 %v5750
    %v6028 = vunpack.c.l.b16 %v5751
    %v6029 = vunpack.c.h.b16 %v5751
    %v6030 = vunpack.c.l.b16 %v5752
    %v6031 = vunpack.c.l.b16 %v5753
    %v6032 = vunpack.c.h.b16 %v5753
    %v6033 = vunpack.c.l.b16 %v5754
    %v6034 = vunpack.c.l.b16 %v5755
    %v6035 = vunpack.c.h.b16 %v5755
    %v6036 = vunpack.c.l.b16 %v5756
    %v6037 = vunpack.c.l.b16 %v5757
    %v6038 = vunpack.c.h.b16 %v5757
    %v6039 = vunpack.c.l.b16 %v5758
    %v6040 = vunpack.c.l.b16 %v5759
    %v6041 = vunpack.c.h.b16 %v5759
    %v6042 = vunpack.c.l.b16 %v5760
    %v6043 = vunpack.c.l.b16 %v5761
    %v6044 = vunpack.c.h.b16 %v5761
    %v6045 = vunpack.c.l.b16 %v5762
    %v6046 = vunpack.c.l.b16 %v5763
    %v6047 = vunpack.c.h.b16 %v5763
    %v6048 = vunpack.c.l.b16 %v5764
    %v6049 = vunpack.c.l.b16 %v5765
    %v6050 = vunpack.c.h.b16 %v5765
    %v6051 = vunpack.c.l.b16 %v5766
    %v6052 = vunpack.c.l.b16 %v5767
    %v6053 = vunpack.c.h.b16 %v5767
    %v6054 = vunpack.c.l.b16 %v5768
    %v6055 = vunpack.c.l.b16 %v5769
    %v6056 = vunpack.c.h.b16 %v5769
    %v6057 = vunpack.c.l.b16 %v5770
    %v6058 = vunpack.c.l.b16 %v5771
    %v6059 = vunpack.c.h.b16 %v5771
    %v6060 = vunpack.c.l.b16 %v5772
    %v6061 = vunpack.c.l.b16 %v5773
    %v6062 = vunpack.c.h.b16 %v5773
    %v6063 = vunpack.c.l.b16 %v5774
    %v6064 = vunpack.c.l.b16 %v5775
    %v6065 = vunpack.c.h.b16 %v5775
    %v6066 = vunpack.c.l.b16 %v5776
    %v6067 = vunpack.c.l.b16 %v5777
    %v6068 = vunpack.c.h.b16 %v5777
    %v6069 = vunpack.c.l.b16 %v5778
    %v6070 = vpack.c.b16 %v5905, %v5902
    %v6071 = vpack.c.b16 %v5906, %v5903
    %v6072 = vpack.c.b16 %v5907, %v5904
    %v6073 = vpack.c.b16 %v5911, %v5908
    %v6074 = vpack.c.b16 %v5912, %v5909
    %v6075 = vpack.c.b16 %v5913, %v5910
    %v6076 = vpack.c.b16 %v5917, %v5914
    %v6077 = vpack.c.b16 %v5918, %v5915
    %v6078 = vpack.c.b16 %v5919, %v5916
    %v6079 = vpack.c.b16 %v5923, %v5920
    %v6080 = vpack.c.b16 %v5924, %v5921
    %v6081 = vpack.c.b16 %v5925, %v5922
    %v6082 = vpack.c.b16 %v5929, %v5926
    %v6083 = vpack.c.b16 %v5930, %v5927
    %v6084 = vpack.c.b16 %v5931, %v5928
    %v6085 = vpack.c.b16 %v5935, %v5932
    %v6086 = vpack.c.b16 %v5936, %v5933
    %v6087 = vpack.c.b16 %v5937, %v5934
    %v6088 = vpack.c.b16 %v5941, %v5938
    %v6089 = vpack.c.b16 %v5942, %v5939
    %v6090 = vpack.c.b16 %v5943, %v5940
    %v6091 = vpack.c.b16 %v5947, %v5944
    %v6092 = vpack.c.b16 %v5948, %v5945
    %v6093 = vpack.c.b16 %v5949, %v5946
    %v6094 = vpack.c.b16 %v5953, %v5950
    %v6095 = vpack.c.b16 %v5954, %v5951
    %v6096 = vpack.c.b16 %v5955, %v5952
    %v6097 = vpack.c.b16 %v5959, %v5956
    %v6098 = vpack.c.b16 %v5960, %v5957
    %v6099 = vpack.c.b16 %v5961, %v5958
    %v6100 = vpack.c.b16 %v5965, %v5962
    %v6101 = vpack.c.b16 %v5966, %v5963
    %v6102 = vpack.c.b16 %v5967, %v5964
    %v6103 = vpack.c.b16 %v5971, %v5968
    %v6104 = vpack.c.b16 %v5972, %v5969
    %v6105 = vpack.c.b16 %v5973, %v5970
    %v6106 = vpack.c.b16 %v5977, %v5974
    %v6107 = vpack.c.b16 %v5978, %v5975
    %v6108 = vpack.c.b16 %v5979, %v5976
    %v6109 = vpack.c.b16 %v5983, %v5980
    %v6110 = vpack.c.b16 %v5984, %v5981
    %v6111 = vpack.c.b16 %v5985, %v5982
    %v6112 = vpack.c.b16 %v5989, %v5986
    %v6113 = vpack.c.b16 %v5990, %v5987
    %v6114 = vpack.c.b16 %v5991, %v5988
    %v6115 = vpack.c.b16 %v5995, %v5992
    %v6116 = vpack.c.b16 %v5996, %v5993
    %v6117 = vpack.c.b16 %v5997, %v5994
    %v6118 = vpack.c.b16 %v6001, %v5998
    %v6119 = vpack.c.b16 %v6002, %v5999
    %v6120 = vpack.c.b16 %v6003, %v6000
    %v6121 = vpack.c.b16 %v6007, %v6004
    %v6122 = vpack.c.b16 %v6008, %v6005
    %v6123 = vpack.c.b16 %v6009, %v6006
    %v6124 = vpack.c.b16 %v6013, %v6010
    %v6125 = vpack.c.b16 %v6014, %v6011
    %v6126 = vpack.c.b16 %v6015, %v6012
    %v6127 = vpack.c.b16 %v6019, %v6016
    %v6128 = vpack.c.b16 %v6020, %v6017
    %v6129 = vpack.c.b16 %v6021, %v6018
    %v6130 = vpack.c.b16 %v6025, %v6022
    %v6131 = vpack.c.b16 %v6026, %v6023
    %v6132 = vpack.c.b16 %v6027, %v6024
    %v6133 = vpack.c.b16 %v6031, %v6028
    %v6134 = vpack.c.b16 %v6032, %v6029
    %v6135 = vpack.c.b16 %v6033, %v6030
    %v6136 = vpack.c.b16 %v6037, %v6034
    %v6137 = vpack.c.b16 %v6038, %v6035
    %v6138 = vpack.c.b16 %v6039, %v6036
    %v6139 = vpack.c.b16 %v6043, %v6040
    %v6140 = vpack.c.b16 %v6044, %v6041
    %v6141 = vpack.c.b16 %v6045, %v6042
    %v6142 = vpack.c.b16 %v6049, %v6046
    %v6143 = vpack.c.b16 %v6050, %v6047
    %v6144 = vpack.c.b16 %v6051, %v6048
    %v6145 = vpack.c.b16 %v6055, %v6052
    %v6146 = vpack.c.b16 %v6056, %v6053
    %v6147 = vpack.c.b16 %v6057, %v6054
    %v6148 = vpack.c.b16 %v6061, %v6058
    %v6149 = vpack.c.b16 %v6062, %v6059
    %v6150 = vpack.c.b16 %v6063, %v6060
    %v6151 = vpack.c.b16 %v6067, %v6064
    %v6152 = vpack.c.b16 %v6068, %v6065
    %v6153 = vpack.c.b16 %v6069, %v6066
    %v6239 = vsel %vm5477, %v5786, 0
    %6241 = vmatprep.subr.bf16.mxu0 %v6071
    %6242 = vmatpush1.bf16.msra.mxu0 %v6070
    %6243 = vmatprep.subr.bf16.mxu0 %v6074
    %6244 = vmatpush1.bf16.msra.mxu0 %v6073
    %6245 = vmatprep.subr.bf16.mxu0 %v6077
    %6246 = vmatpush1.bf16.msra.mxu0 %v6076
    %6247 = vmatprep.subr.bf16.mxu0 %v6080
    %6248 = vmatpush1.bf16.msra.mxu0 %v6079
    %6249 = vmatprep.subr.bf16.mxu0 %v6083
    %6250 = vmatpush1.bf16.msra.mxu0 %v6082
    %6251 = vmatprep.subr.bf16.mxu0 %v6086
    %6252 = vmatpush1.bf16.msra.mxu0 %v6085
    %6253 = vmatprep.subr.bf16.mxu0 %v6089
    %6254 = vmatpush1.bf16.msra.mxu0 %v6088
    %6255 = vmatprep.subr.bf16.mxu0 %v6092
    %6256 = vmatpush1.bf16.msra.mxu0 %v6091
    %6257 = vmatprep.subr.bf16.mxu0 %v6095
    %6258 = vmatpush1.bf16.msra.mxu0 %v6094
    %6259 = vmatprep.subr.bf16.mxu0 %v6098
    %6260 = vmatpush1.bf16.msra.mxu0 %v6097
    %6261 = vmatprep.subr.bf16.mxu0 %v6101
    %6262 = vmatpush1.bf16.msra.mxu0 %v6100
    %6263 = vmatprep.subr.bf16.mxu0 %v6104
    %6264 = vmatpush1.bf16.msra.mxu0 %v6103
    %6265 = vmatprep.subr.bf16.mxu0 %v6107
    %6266 = vmatpush1.bf16.msra.mxu0 %v6106
    %6267 = vmatprep.subr.bf16.mxu0 %v6110
    %6268 = vmatpush1.bf16.msra.mxu0 %v6109
    %6269 = vmatprep.subr.bf16.mxu0 %v6113
    %6270 = vmatpush1.bf16.msra.mxu0 %v6112
    %6271 = vmatprep.subr.bf16.mxu0 %v6116
    %6272 = vmatpush1.bf16.msra.mxu0 %v6115
    %6273 = vmatprep.mubr.bf16.mxu0 %v5784
    %6274 = vmatmul.mubr.bf16.gmra.mrb[0].mxu0 %v5783
    %v6275 = vpop.f32.mrb[0].mxu0
    %v6276 = vadd.f32 0.0, %v6275
    %v6277 = vpop.f32.mrb[0].mxu0
    %v6278 = vadd.f32 0.0, %v6277
    %v6279 = vpop.f32.mrb[0].mxu0
    %v6280 = vadd.f32 0.0, %v6279
    %v6281 = vpop.f32.mrb[0].mxu0
    %v6282 = vadd.f32 0.0, %v6281
    %6283 = vdwg.mxu0
    %6284 = vmatprep.subr.bf16.mxu0 %v6119
    %6285 = vmatpush1.bf16.msra.mxu0 %v6118
    %6286 = vmatprep.subr.bf16.mxu0 %v6122
    %6287 = vmatpush1.bf16.msra.mxu0 %v6121
    %6288 = vmatprep.subr.bf16.mxu0 %v6125
    %6289 = vmatpush1.bf16.msra.mxu0 %v6124
    %6290 = vmatprep.subr.bf16.mxu0 %v6128
    %6291 = vmatpush1.bf16.msra.mxu0 %v6127
    %6292 = vmatprep.subr.bf16.mxu0 %v6131
    %6293 = vmatpush1.bf16.msra.mxu0 %v6130
    %6294 = vmatprep.subr.bf16.mxu0 %v6134
    %6295 = vmatpush1.bf16.msra.mxu0 %v6133
    %6296 = vmatprep.subr.bf16.mxu0 %v6137
    %6297 = vmatpush1.bf16.msra.mxu0 %v6136
    %6298 = vmatprep.subr.bf16.mxu0 %v6140
    %6299 = vmatpush1.bf16.msra.mxu0 %v6139
    %6300 = vmatprep.subr.bf16.mxu0 %v6143
    %6301 = vmatpush1.bf16.msra.mxu0 %v6142
    %6302 = vmatprep.subr.bf16.mxu0 %v6146
    %6303 = vmatpush1.bf16.msra.mxu0 %v6145
    %6304 = vmatprep.subr.bf16.mxu0 %v6149
    %6305 = vmatpush1.bf16.msra.mxu0 %v6148
    %6306 = vmatprep.subr.bf16.mxu0 %v6152
    %6307 = vmatpush1.bf16.msra.mxu0 %v6151
    %6308 = vmatprep.subr.bf16.mxu0 0
    %6309 = vmatpush1.bf16.msra.mxu0 0
    %6310 = vmatprep.subr.bf16.mxu0 0
    %6311 = vmatpush1.bf16.msra.mxu0 0
    %6312 = vmatprep.subr.bf16.mxu0 0
    %6313 = vmatpush1.bf16.msra.mxu0 0
    %6314 = vmatprep.subr.bf16.mxu0 0
    %6315 = vmatpush1.bf16.msra.mxu0 0
    %6316 = vmatprep.mubr.bf16.mxu0 %v6239
    %6317 = vmatmul.mubr.bf16.gmra.mrb[0].mxu0 %v5785
    %v6318 = vpop.f32.mrb[0].mxu0
    %v6319 = vadd.f32 %v6276, %v6318
    %v6320 = vpop.f32.mrb[0].mxu0
    %v6321 = vadd.f32 %v6278, %v6320
    %v6322 = vpop.f32.mrb[0].mxu0
    %v6323 = vadd.f32 %v6280, %v6322
    %v6324 = vpop.f32.mrb[0].mxu0
    %v6325 = vadd.f32 %v6282, %v6324
    %6326 = vdwg.mxu0
    %6327 = vmatprep.subr.bf16.mxu0 0
    %6328 = vmatpush1.bf16.msra.mxu0 %v6072
    %6329 = vmatprep.subr.bf16.mxu0 0
    %6330 = vmatpush1.bf16.msra.mxu0 %v6075
    %6331 = vmatprep.subr.bf16.mxu0 0
    %6332 = vmatpush1.bf16.msra.mxu0 %v6078
    %6333 = vmatprep.subr.bf16.mxu0 0
    %6334 = vmatpush1.bf16.msra.mxu0 %v6081
    %6335 = vmatprep.subr.bf16.mxu0 0
    %6336 = vmatpush1.bf16.msra.mxu0 %v6084
    %6337 = vmatprep.subr.bf16.mxu0 0
    %6338 = vmatpush1.bf16.msra.mxu0 %v6087
    %6339 = vmatprep.subr.bf16.mxu0 0
    %6340 = vmatpush1.bf16.msra.mxu0 %v6090
    %6341 = vmatprep.subr.bf16.mxu0 0
    %6342 = vmatpush1.bf16.msra.mxu0 %v6093
    %6343 = vmatprep.subr.bf16.mxu0 0
    %6344 = vmatpush1.bf16.msra.mxu0 %v6096
    %6345 = vmatprep.subr.bf16.mxu0 0
    %6346 = vmatpush1.bf16.msra.mxu0 %v6099
    %6347 = vmatprep.subr.bf16.mxu0 0
    %6348 = vmatpush1.bf16.msra.mxu0 %v6102
    %6349 = vmatprep.subr.bf16.mxu0 0
    %6350 = vmatpush1.bf16.msra.mxu0 %v6105
    %6351 = vmatprep.subr.bf16.mxu0 0
    %6352 = vmatpush1.bf16.msra.mxu0 %v6108
    %6353 = vmatprep.subr.bf16.mxu0 0
    %6354 = vmatpush1.bf16.msra.mxu0 %v6111
    %6355 = vmatprep.subr.bf16.mxu0 0
    %6356 = vmatpush1.bf16.msra.mxu0 %v6114
    %6357 = vmatprep.subr.bf16.mxu0 0
    %6358 = vmatpush1.bf16.msra.mxu0 %v6117
    %6359 = vmatprep.mubr.bf16.mxu0 %v5784
    %6360 = vmatmul.mubr.bf16.gmra.mrb[0].mxu0 %v5783
    %v6361 = vpop.f32.mrb[0].mxu0
    %v6362 = vadd.f32 0.0, %v6361
    %v6363 = vpop.f32.mrb[0].mxu0
    %v6364 = vpop.f32.mrb[0].mxu0
    %v6365 = vadd.f32 0.0, %v6364
    %v6366 = vpop.f32.mrb[0].mxu0
    %6367 = vdwg.mxu0
    %6368 = vmatprep.subr.bf16.mxu0 0
    %6369 = vmatpush1.bf16.msra.mxu0 %v6120
    %6370 = vmatprep.subr.bf16.mxu0 0
    %6371 = vmatpush1.bf16.msra.mxu0 %v6123
    %6372 = vmatprep.subr.bf16.mxu0 0
    %6373 = vmatpush1.bf16.msra.mxu0 %v6126
    %6374 = vmatprep.subr.bf16.mxu0 0
    %6375 = vmatpush1.bf16.msra.mxu0 %v6129
    %6376 = vmatprep.subr.bf16.mxu0 0
    %6377 = vmatpush1.bf16.msra.mxu0 %v6132
    %6378 = vmatprep.subr.bf16.mxu0 0
    %6379 = vmatpush1.bf16.msra.mxu0 %v6135
    %6380 = vmatprep.subr.bf16.mxu0 0
    %6381 = vmatpush1.bf16.msra.mxu0 %v6138
    %6382 = vmatprep.subr.bf16.mxu0 0
    %6383 = vmatpush1.bf16.msra.mxu0 %v6141
    %6384 = vmatprep.subr.bf16.mxu0 0
    %6385 = vmatpush1.bf16.msra.mxu0 %v6144
    %6386 = vmatprep.subr.bf16.mxu0 0
    %6387 = vmatpush1.bf16.msra.mxu0 %v6147
    %6388 = vmatprep.subr.bf16.mxu0 0
    %6389 = vmatpush1.bf16.msra.mxu0 %v6150
    %6390 = vmatprep.subr.bf16.mxu0 0
    %6391 = vmatpush1.bf16.msra.mxu0 %v6153
    %6392 = vmatprep.subr.bf16.mxu0 0
    %6393 = vmatpush1.bf16.msra.mxu0 0
    %6394 = vmatprep.subr.bf16.mxu0 0
    %6395 = vmatpush1.bf16.msra.mxu0 0
    %6396 = vmatprep.subr.bf16.mxu0 0
    %6397 = vmatpush1.bf16.msra.mxu0 0
    %6398 = vmatprep.subr.bf16.mxu0 0
    %6399 = vmatpush1.bf16.msra.mxu0 0
    %6400 = vmatprep.mubr.bf16.mxu0 %v6239
    %6401 = vmatmul.mubr.bf16.gmra.mrb[0].mxu0 %v5785
    %v6402 = vpop.f32.mrb[0].mxu0
    %v6403 = vadd.f32 %v6362, %v6402
    %v6404 = vpop.f32.mrb[0].mxu0
    %v6405 = vpop.f32.mrb[0].mxu0
    %v6406 = vadd.f32 %v6365, %v6405
    %v6407 = vpop.f32.mrb[0].mxu0
    %6408 = vdwg.mxu0
    %v6409 = vld [vmem:[#allocation3] sm:$0xf0]
    %v6410 = vld [vmem:[#allocation3 + $0x8] sm:$0xf0]
    %v6411 = vld [vmem:[#allocation3 + $0x10] sm:$0xf0]
    %v6412 = vld [vmem:[#allocation3 + $0x18] sm:$0xf0]
    %v6413 = vld [vmem:[#allocation3 + $0x20] sm:$0x3f]
    %v6414 = vld [vmem:[#allocation3 + $0x28] sm:$0x3f]
    %v6415 = vld [vmem:[#allocation3 + $0x30] sm:$0x3f]
    %v6416 = vld [vmem:[#allocation3 + $0x38] sm:$0x3f]
    %v6417 = vpack.c.bf16 %v6413, %v6409
    %v6418 = vpack.c.bf16 %v6414, %v6410
    %v6419 = vpack.c.bf16 %v6415, %v6411
    %v6420 = vpack.c.bf16 %v6416, %v6412
    %s6421 = scalar_lea.vmem %s4, 1344
    %v6422 = vld [vmem:[%s6421] sm:$0xff]
    %v6423 = vld [vmem:[%s6421 + $0x8] sm:$0xf]
    %v6424 = vld [vmem:[%s6421 + $0xc] sm:$0xff]
    %v6425 = vld [vmem:[%s6421 + $0x14] sm:$0xf]
    %v6426 = vld [vmem:[%s6421 + $0x18] sm:$0xff]
    %v6427 = vld [vmem:[%s6421 + $0x20] sm:$0xf]
    %v6428 = vld [vmem:[%s6421 + $0x24] sm:$0xff]
    %v6429 = vld [vmem:[%s6421 + $0x2c] sm:$0xf]
    %v6430 = vld [vmem:[%s6421 + $0x30] sm:$0xff]
    %v6431 = vld [vmem:[%s6421 + $0x38] sm:$0xf]
    %v6432 = vld [vmem:[%s6421 + $0x3c] sm:$0xff]
    %v6433 = vld [vmem:[%s6421 + $0x44] sm:$0xf]
    %v6434 = vld [vmem:[%s6421 + $0x48] sm:$0xff]
    %v6435 = vld [vmem:[%s6421 + $0x50] sm:$0xf]
    %v6436 = vld [vmem:[%s6421 + $0x54] sm:$0xff]
    %v6437 = vld [vmem:[%s6421 + $0x5c] sm:$0xf]
    %v6438 = vld [vmem:[%s6421 + $0x60] sm:$0xff]
    %v6439 = vld [vmem:[%s6421 + $0x68] sm:$0xf]
    %v6440 = vld [vmem:[%s6421 + $0x6c] sm:$0xff]
    %v6441 = vld [vmem:[%s6421 + $0x74] sm:$0xf]
    %v6442 = vld [vmem:[%s6421 + $0x78] sm:$0xff]
    %v6443 = vld [vmem:[%s6421 + $0x80] sm:$0xf]
    %v6444 = vld [vmem:[%s6421 + $0x84] sm:$0xff]
    %v6445 = vld [vmem:[%s6421 + $0x8c] sm:$0xf]
    %v6446 = vld [vmem:[%s6421 + $0x90] sm:$0xff]
    %v6447 = vld [vmem:[%s6421 + $0x98] sm:$0xf]
    %v6448 = vld [vmem:[%s6421 + $0x9c] sm:$0xff]
    %v6449 = vld [vmem:[%s6421 + $0xa4] sm:$0xf]
    %v6450 = vld [vmem:[%s6421 + $0xa8] sm:$0xff]
    %v6451 = vld [vmem:[%s6421 + $0xb0] sm:$0xf]
    %v6452 = vld [vmem:[%s6421 + $0xb4] sm:$0xff]
    %v6453 = vld [vmem:[%s6421 + $0xbc] sm:$0xf]
    %v6454 = vld [vmem:[%s6421 + $0xc0] sm:$0xff]
    %v6455 = vld [vmem:[%s6421 + $0xc8] sm:$0xf]
    %v6456 = vld [vmem:[%s6421 + $0xcc] sm:$0xff]
    %v6457 = vld [vmem:[%s6421 + $0xd4] sm:$0xf]
    %v6458 = vld [vmem:[%s6421 + $0xd8] sm:$0xff]
    %v6459 = vld [vmem:[%s6421 + $0xe0] sm:$0xf]
    %v6460 = vld [vmem:[%s6421 + $0xe4] sm:$0xff]
    %v6461 = vld [vmem:[%s6421 + $0xec] sm:$0xf]
    %v6462 = vld [vmem:[%s6421 + $0xf0] sm:$0xff]
    %v6463 = vld [vmem:[%s6421 + $0xf8] sm:$0xf]
    %v6464 = vld [vmem:[%s6421 + $0xfc] sm:$0xff]
    %v6465 = vld [vmem:[%s6421 + $0x104] sm:$0xf]
    %v6466 = vld [vmem:[%s6421 + $0x108] sm:$0xff]
    %v6467 = vld [vmem:[%s6421 + $0x110] sm:$0xf]
    %v6468 = vld [vmem:[%s6421 + $0x114] sm:$0xff]
    %v6469 = vld [vmem:[%s6421 + $0x11c] sm:$0xf]
    %v6470 = vld [vmem:[%s6421 + $0x120] sm:$0xff]
    %v6471 = vld [vmem:[%s6421 + $0x128] sm:$0xf]
    %v6472 = vld [vmem:[%s6421 + $0x12c] sm:$0xff]
    %v6473 = vld [vmem:[%s6421 + $0x134] sm:$0xf]
    %v6474 = vld [vmem:[%s6421 + $0x138] sm:$0xff]
    %v6475 = vld [vmem:[%s6421 + $0x140] sm:$0xf]
    %v6476 = vld [vmem:[%s6421 + $0x144] sm:$0xff]
    %v6477 = vld [vmem:[%s6421 + $0x14c] sm:$0xf]
    %v6478 = vld [vmem:[%s6421 + $0x150] sm:$0xff]
    %v6479 = vld [vmem:[%s6421 + $0x158] sm:$0xf]
    %v6480 = vld [vmem:[%s6421 + $0x15c] sm:$0xff]
    %v6481 = vld [vmem:[%s6421 + $0x164] sm:$0xf]
    %v6482 = vld [vmem:[%s6421 + $0x168] sm:$0xff]
    %v6483 = vld [vmem:[%s6421 + $0x170] sm:$0xf]
    %v6484 = vld [vmem:[%s6421 + $0x174] sm:$0xff]
    %v6485 = vld [vmem:[%s6421 + $0x17c] sm:$0xf]
    %v6486 = vld [vmem:[%s6421 + $0x180] sm:$0xff]
    %v6487 = vld [vmem:[%s6421 + $0x188] sm:$0xf]
    %v6488 = vld [vmem:[%s6421 + $0x18c] sm:$0xff]
    %v6489 = vld [vmem:[%s6421 + $0x194] sm:$0xf]
    %v6490 = vld [vmem:[%s6421 + $0x198] sm:$0xff]
    %v6491 = vld [vmem:[%s6421 + $0x1a0] sm:$0xf]
    %v6492 = vld [vmem:[%s6421 + $0x1a4] sm:$0xff]
    %v6493 = vld [vmem:[%s6421 + $0x1ac] sm:$0xf]
    %v6494 = vld [vmem:[%s6421 + $0x1b0] sm:$0xff]
    %v6495 = vld [vmem:[%s6421 + $0x1b8] sm:$0xf]
    %v6496 = vld [vmem:[%s6421 + $0x1bc] sm:$0xff]
    %v6497 = vld [vmem:[%s6421 + $0x1c4] sm:$0xf]
    %v6498 = vld [vmem:[%s6421 + $0x1c8] sm:$0xff]
    %v6499 = vld [vmem:[%s6421 + $0x1d0] sm:$0xf]
    %v6500 = vld [vmem:[%s6421 + $0x1d4] sm:$0xff]
    %v6501 = vld [vmem:[%s6421 + $0x1dc] sm:$0xf]
    %v6502 = vld [vmem:[%s6421 + $0x1e0] sm:$0xff]
    %v6503 = vld [vmem:[%s6421 + $0x1e8] sm:$0xf]
    %v6504 = vld [vmem:[%s6421 + $0x1ec] sm:$0xff]
    %v6505 = vld [vmem:[%s6421 + $0x1f4] sm:$0xf]
    %v6506 = vld [vmem:[%s6421 + $0x1f8] sm:$0xff]
    %v6507 = vld [vmem:[%s6421 + $0x200] sm:$0xf]
    %v6508 = vld [vmem:[%s6421 + $0x204] sm:$0xff]
    %v6509 = vld [vmem:[%s6421 + $0x20c] sm:$0xf]
    %v6510 = vld [vmem:[%s6421 + $0x210] sm:$0xff]
    %v6511 = vld [vmem:[%s6421 + $0x218] sm:$0xf]
    %v6512 = vld [vmem:[%s6421 + $0x21c] sm:$0xff]
    %v6513 = vld [vmem:[%s6421 + $0x224] sm:$0xf]
    %v6514 = vld [vmem:[%s6421 + $0x228] sm:$0xff]
    %v6515 = vld [vmem:[%s6421 + $0x230] sm:$0xf]
    %v6516 = vld [vmem:[%s6421 + $0x234] sm:$0xff]
    %v6517 = vld [vmem:[%s6421 + $0x23c] sm:$0xf]
    %v6518 = vld [vmem:[%s6421 + $0x240] sm:$0xff]
    %v6519 = vld [vmem:[%s6421 + $0x248] sm:$0xf]
    %v6520 = vld [vmem:[%s6421 + $0x24c] sm:$0xff]
    %v6521 = vld [vmem:[%s6421 + $0x254] sm:$0xf]
    %v6522 = vld [vmem:[%s6421 + $0x258] sm:$0xff]
    %v6523 = vld [vmem:[%s6421 + $0x260] sm:$0xf]
    %v6524 = vld [vmem:[%s6421 + $0x264] sm:$0xff]
    %v6525 = vld [vmem:[%s6421 + $0x26c] sm:$0xf]
    %v6526 = vld [vmem:[%s6421 + $0x270] sm:$0xff]
    %v6527 = vld [vmem:[%s6421 + $0x278] sm:$0xf]
    %v6528 = vld [vmem:[%s6421 + $0x27c] sm:$0xff]
    %v6529 = vld [vmem:[%s6421 + $0x284] sm:$0xf]
    %v6530 = vld [vmem:[%s6421 + $0x288] sm:$0xff]
    %v6531 = vld [vmem:[%s6421 + $0x290] sm:$0xf]
    %v6532 = vld [vmem:[%s6421 + $0x294] sm:$0xff]
    %v6533 = vld [vmem:[%s6421 + $0x29c] sm:$0xf]
    %v6538 = vrot.slane %v6417, 2
    %v6539 = vrot.slane %v6418, 2
    %v6540 = vrot.slane %v6419, 2
    %v6541 = vrot.slane %v6420, 2
    %v6657 = vunpack.c.l.b16 %v6422
    %v6658 = vunpack.c.h.b16 %v6422
    %v6659 = vunpack.c.l.b16 %v6423
    %v6660 = vunpack.c.l.b16 %v6424
    %v6661 = vunpack.c.h.b16 %v6424
    %v6662 = vunpack.c.l.b16 %v6425
    %v6663 = vunpack.c.l.b16 %v6426
    %v6664 = vunpack.c.h.b16 %v6426
    %v6665 = vunpack.c.l.b16 %v6427
    %v6666 = vunpack.c.l.b16 %v6428
    %v6667 = vunpack.c.h.b16 %v6428
    %v6668 = vunpack.c.l.b16 %v6429
    %v6669 = vunpack.c.l.b16 %v6430
    %v6670 = vunpack.c.h.b16 %v6430
    %v6671 = vunpack.c.l.b16 %v6431
    %v6672 = vunpack.c.l.b16 %v6432
    %v6673 = vunpack.c.h.b16 %v6432
    %v6674 = vunpack.c.l.b16 %v6433
    %v6675 = vunpack.c.l.b16 %v6434
    %v6676 = vunpack.c.h.b16 %v6434
    %v6677 = vunpack.c.l.b16 %v6435
    %v6678 = vunpack.c.l.b16 %v6436
    %v6679 = vunpack.c.h.b16 %v6436
    %v6680 = vunpack.c.l.b16 %v6437
    %v6681 = vunpack.c.l.b16 %v6438
    %v6682 = vunpack.c.h.b16 %v6438
    %v6683 = vunpack.c.l.b16 %v6439
    %v6684 = vunpack.c.l.b16 %v6440
    %v6685 = vunpack.c.h.b16 %v6440
    %v6686 = vunpack.c.l.b16 %v6441
    %v6687 = vunpack.c.l.b16 %v6442
    %v6688 = vunpack.c.h.b16 %v6442
    %v6689 = vunpack.c.l.b16 %v6443
    %v6690 = vunpack.c.l.b16 %v6444
    %v6691 = vunpack.c.h.b16 %v6444
    %v6692 = vunpack.c.l.b16 %v6445
    %v6693 = vunpack.c.l.b16 %v6446
    %v6694 = vunpack.c.h.b16 %v6446
    %v6695 = vunpack.c.l.b16 %v6447
    %v6696 = vunpack.c.l.b16 %v6448
    %v6697 = vunpack.c.h.b16 %v6448
    %v6698 = vunpack.c.l.b16 %v6449
    %v6699 = vunpack.c.l.b16 %v6450
    %v6700 = vunpack.c.h.b16 %v6450
    %v6701 = vunpack.c.l.b16 %v6451
    %v6702 = vunpack.c.l.b16 %v6452
    %v6703 = vunpack.c.h.b16 %v6452
    %v6704 = vunpack.c.l.b16 %v6453
    %v6705 = vunpack.c.l.b16 %v6454
    %v6706 = vunpack.c.h.b16 %v6454
    %v6707 = vunpack.c.l.b16 %v6455
    %v6708 = vunpack.c.l.b16 %v6456
    %v6709 = vunpack.c.h.b16 %v6456
    %v6710 = vunpack.c.l.b16 %v6457
    %v6711 = vunpack.c.l.b16 %v6458
    %v6712 = vunpack.c.h.b16 %v6458
    %v6713 = vunpack.c.l.b16 %v6459
    %v6714 = vunpack.c.l.b16 %v6460
    %v6715 = vunpack.c.h.b16 %v6460
    %v6716 = vunpack.c.l.b16 %v6461
    %v6717 = vunpack.c.l.b16 %v6462
    %v6718 = vunpack.c.h.b16 %v6462
    %v6719 = vunpack.c.l.b16 %v6463
    %v6720 = vunpack.c.l.b16 %v6464
    %v6721 = vunpack.c.h.b16 %v6464
    %v6722 = vunpack.c.l.b16 %v6465
    %v6723 = vunpack.c.l.b16 %v6466
    %v6724 = vunpack.c.h.b16 %v6466
    %v6725 = vunpack.c.l.b16 %v6467
    %v6726 = vunpack.c.l.b16 %v6468
    %v6727 = vunpack.c.h.b16 %v6468
    %v6728 = vunpack.c.l.b16 %v6469
    %v6729 = vunpack.c.l.b16 %v6470
    %v6730 = vunpack.c.h.b16 %v6470
    %v6731 = vunpack.c.l.b16 %v6471
    %v6732 = vunpack.c.l.b16 %v6472
    %v6733 = vunpack.c.h.b16 %v6472
    %v6734 = vunpack.c.l.b16 %v6473
    %v6735 = vunpack.c.l.b16 %v6474
    %v6736 = vunpack.c.h.b16 %v6474
    %v6737 = vunpack.c.l.b16 %v6475
    %v6738 = vunpack.c.l.b16 %v6476
    %v6739 = vunpack.c.h.b16 %v6476
    %v6740 = vunpack.c.l.b16 %v6477
    %v6741 = vunpack.c.l.b16 %v6478
    %v6742 = vunpack.c.h.b16 %v6478
    %v6743 = vunpack.c.l.b16 %v6479
    %v6744 = vunpack.c.l.b16 %v6480
    %v6745 = vunpack.c.h.b16 %v6480
    %v6746 = vunpack.c.l.b16 %v6481
    %v6747 = vunpack.c.l.b16 %v6482
    %v6748 = vunpack.c.h.b16 %v6482
    %v6749 = vunpack.c.l.b16 %v6483
    %v6750 = vunpack.c.l.b16 %v6484
    %v6751 = vunpack.c.h.b16 %v6484
    %v6752 = vunpack.c.l.b16 %v6485
    %v6753 = vunpack.c.l.b16 %v6486
    %v6754 = vunpack.c.h.b16 %v6486
    %v6755 = vunpack.c.l.b16 %v6487
    %v6756 = vunpack.c.l.b16 %v6488
    %v6757 = vunpack.c.h.b16 %v6488
    %v6758 = vunpack.c.l.b16 %v6489
    %v6759 = vunpack.c.l.b16 %v6490
    %v6760 = vunpack.c.h.b16 %v6490
    %v6761 = vunpack.c.l.b16 %v6491
    %v6762 = vunpack.c.l.b16 %v6492
    %v6763 = vunpack.c.h.b16 %v6492
    %v6764 = vunpack.c.l.b16 %v6493
    %v6765 = vunpack.c.l.b16 %v6494
    %v6766 = vunpack.c.h.b16 %v6494
    %v6767 = vunpack.c.l.b16 %v6495
    %v6768 = vunpack.c.l.b16 %v6496
    %v6769 = vunpack.c.h.b16 %v6496
    %v6770 = vunpack.c.l.b16 %v6497
    %v6771 = vunpack.c.l.b16 %v6498
    %v6772 = vunpack.c.h.b16 %v6498
    %v6773 = vunpack.c.l.b16 %v6499
    %v6774 = vunpack.c.l.b16 %v6500
    %v6775 = vunpack.c.h.b16 %v6500
    %v6776 = vunpack.c.l.b16 %v6501
    %v6777 = vunpack.c.l.b16 %v6502
    %v6778 = vunpack.c.h.b16 %v6502
    %v6779 = vunpack.c.l.b16 %v6503
    %v6780 = vunpack.c.l.b16 %v6504
    %v6781 = vunpack.c.h.b16 %v6504
    %v6782 = vunpack.c.l.b16 %v6505
    %v6783 = vunpack.c.l.b16 %v6506
    %v6784 = vunpack.c.h.b16 %v6506
    %v6785 = vunpack.c.l.b16 %v6507
    %v6786 = vunpack.c.l.b16 %v6508
    %v6787 = vunpack.c.h.b16 %v6508
    %v6788 = vunpack.c.l.b16 %v6509
    %v6789 = vunpack.c.l.b16 %v6510
    %v6790 = vunpack.c.h.b16 %v6510
    %v6791 = vunpack.c.l.b16 %v6511
    %v6792 = vunpack.c.l.b16 %v6512
    %v6793 = vunpack.c.h.b16 %v6512
    %v6794 = vunpack.c.l.b16 %v6513
    %v6795 = vunpack.c.l.b16 %v6514
    %v6796 = vunpack.c.h.b16 %v6514
    %v6797 = vunpack.c.l.b16 %v6515
    %v6798 = vunpack.c.l.b16 %v6516
    %v6799 = vunpack.c.h.b16 %v6516
    %v6800 = vunpack.c.l.b16 %v6517
    %v6801 = vunpack.c.l.b16 %v6518
    %v6802 = vunpack.c.h.b16 %v6518
    %v6803 = vunpack.c.l.b16 %v6519
    %v6804 = vunpack.c.l.b16 %v6520
    %v6805 = vunpack.c.h.b16 %v6520
    %v6806 = vunpack.c.l.b16 %v6521
    %v6807 = vunpack.c.l.b16 %v6522
    %v6808 = vunpack.c.h.b16 %v6522
    %v6809 = vunpack.c.l.b16 %v6523
    %v6810 = vunpack.c.l.b16 %v6524
    %v6811 = vunpack.c.h.b16 %v6524
    %v6812 = vunpack.c.l.b16 %v6525
    %v6813 = vunpack.c.l.b16 %v6526
    %v6814 = vunpack.c.h.b16 %v6526
    %v6815 = vunpack.c.l.b16 %v6527
    %v6816 = vunpack.c.l.b16 %v6528
    %v6817 = vunpack.c.h.b16 %v6528
    %v6818 = vunpack.c.l.b16 %v6529
    %v6819 = vunpack.c.l.b16 %v6530
    %v6820 = vunpack.c.h.b16 %v6530
    %v6821 = vunpack.c.l.b16 %v6531
    %v6822 = vunpack.c.l.b16 %v6532
    %v6823 = vunpack.c.h.b16 %v6532
    %v6824 = vunpack.c.l.b16 %v6533
    %v6825 = vpack.c.b16 %v6660, %v6657
    %v6826 = vpack.c.b16 %v6661, %v6658
    %v6827 = vpack.c.b16 %v6662, %v6659
    %v6828 = vpack.c.b16 %v6666, %v6663
    %v6829 = vpack.c.b16 %v6667, %v6664
    %v6830 = vpack.c.b16 %v6668, %v6665
    %v6831 = vpack.c.b16 %v6672, %v6669
    %v6832 = vpack.c.b16 %v6673, %v6670
    %v6833 = vpack.c.b16 %v6674, %v6671
    %v6834 = vpack.c.b16 %v6678, %v6675
    %v6835 = vpack.c.b16 %v6679, %v6676
    %v6836 = vpack.c.b16 %v6680, %v6677
    %v6837 = vpack.c.b16 %v6684, %v6681
    %v6838 = vpack.c.b16 %v6685, %v6682
    %v6839 = vpack.c.b16 %v6686, %v6683
    %v6840 = vpack.c.b16 %v6690, %v6687
    %v6841 = vpack.c.b16 %v6691, %v6688
    %v6842 = vpack.c.b16 %v6692, %v6689
    %v6843 = vpack.c.b16 %v6696, %v6693
    %v6844 = vpack.c.b16 %v6697, %v6694
    %v6845 = vpack.c.b16 %v6698, %v6695
    %v6846 = vpack.c.b16 %v6702, %v6699
    %v6847 = vpack.c.b16 %v6703, %v6700
    %v6848 = vpack.c.b16 %v6704, %v6701
    %v6849 = vpack.c.b16 %v6708, %v6705
    %v6850 = vpack.c.b16 %v6709, %v6706
    %v6851 = vpack.c.b16 %v6710, %v6707
    %v6852 = vpack.c.b16 %v6714, %v6711
    %v6853 = vpack.c.b16 %v6715, %v6712
    %v6854 = vpack.c.b16 %v6716, %v6713
    %v6855 = vpack.c.b16 %v6720, %v6717
    %v6856 = vpack.c.b16 %v6721, %v6718
    %v6857 = vpack.c.b16 %v6722, %v6719
    %v6858 = vpack.c.b16 %v6726, %v6723
    %v6859 = vpack.c.b16 %v6727, %v6724
    %v6860 = vpack.c.b16 %v6728, %v6725
    %v6861 = vpack.c.b16 %v6732, %v6729
    %v6862 = vpack.c.b16 %v6733, %v6730
    %v6863 = vpack.c.b16 %v6734, %v6731
    %v6864 = vpack.c.b16 %v6738, %v6735
    %v6865 = vpack.c.b16 %v6739, %v6736
    %v6866 = vpack.c.b16 %v6740, %v6737
    %v6867 = vpack.c.b16 %v6744, %v6741
    %v6868 = vpack.c.b16 %v6745, %v6742
    %v6869 = vpack.c.b16 %v6746, %v6743
    %v6870 = vpack.c.b16 %v6750, %v6747
    %v6871 = vpack.c.b16 %v6751, %v6748
    %v6872 = vpack.c.b16 %v6752, %v6749
    %v6873 = vpack.c.b16 %v6756, %v6753
    %v6874 = vpack.c.b16 %v6757, %v6754
    %v6875 = vpack.c.b16 %v6758, %v6755
    %v6876 = vpack.c.b16 %v6762, %v6759
    %v6877 = vpack.c.b16 %v6763, %v6760
    %v6878 = vpack.c.b16 %v6764, %v6761
    %v6879 = vpack.c.b16 %v6768, %v6765
    %v6880 = vpack.c.b16 %v6769, %v6766
    %v6881 = vpack.c.b16 %v6770, %v6767
    %v6882 = vpack.c.b16 %v6774, %v6771
    %v6883 = vpack.c.b16 %v6775, %v6772
    %v6884 = vpack.c.b16 %v6776, %v6773
    %v6885 = vpack.c.b16 %v6780, %v6777
    %v6886 = vpack.c.b16 %v6781, %v6778
    %v6887 = vpack.c.b16 %v6782, %v6779
    %v6888 = vpack.c.b16 %v6786, %v6783
    %v6889 = vpack.c.b16 %v6787, %v6784
    %v6890 = vpack.c.b16 %v6788, %v6785
    %v6891 = vpack.c.b16 %v6792, %v6789
    %v6892 = vpack.c.b16 %v6793, %v6790
    %v6893 = vpack.c.b16 %v6794, %v6791
    %v6894 = vpack.c.b16 %v6798, %v6795
    %v6895 = vpack.c.b16 %v6799, %v6796
    %v6896 = vpack.c.b16 %v6800, %v6797
    %v6897 = vpack.c.b16 %v6804, %v6801
    %v6898 = vpack.c.b16 %v6805, %v6802
    %v6899 = vpack.c.b16 %v6806, %v6803
    %v6900 = vpack.c.b16 %v6810, %v6807
    %v6901 = vpack.c.b16 %v6811, %v6808
    %v6902 = vpack.c.b16 %v6812, %v6809
    %v6903 = vpack.c.b16 %v6816, %v6813
    %v6904 = vpack.c.b16 %v6817, %v6814
    %v6905 = vpack.c.b16 %v6818, %v6815
    %v6906 = vpack.c.b16 %v6822, %v6819
    %v6907 = vpack.c.b16 %v6823, %v6820
    %v6908 = vpack.c.b16 %v6824, %v6821
    %v6994 = vsel %vm5477, %v6541, 0
    %6996 = vmatprep.subr.bf16.mxu0 %v6826
    %6997 = vmatpush1.bf16.msra.mxu0 %v6825
    %6998 = vmatprep.subr.bf16.mxu0 %v6829
    %6999 = vmatpush1.bf16.msra.mxu0 %v6828
    %7000 = vmatprep.subr.bf16.mxu0 %v6832
    %7001 = vmatpush1.bf16.msra.mxu0 %v6831
    %7002 = vmatprep.subr.bf16.mxu0 %v6835
    %7003 = vmatpush1.bf16.msra.mxu0 %v6834
    %7004 = vmatprep.subr.bf16.mxu0 %v6838
    %7005 = vmatpush1.bf16.msra.mxu0 %v6837
    %7006 = vmatprep.subr.bf16.mxu0 %v6841
    %7007 = vmatpush1.bf16.msra.mxu0 %v6840
    %7008 = vmatprep.subr.bf16.mxu0 %v6844
    %7009 = vmatpush1.bf16.msra.mxu0 %v6843
    %7010 = vmatprep.subr.bf16.mxu0 %v6847
    %7011 = vmatpush1.bf16.msra.mxu0 %v6846
    %7012 = vmatprep.subr.bf16.mxu0 %v6850
    %7013 = vmatpush1.bf16.msra.mxu0 %v6849
    %7014 = vmatprep.subr.bf16.mxu0 %v6853
    %7015 = vmatpush1.bf16.msra.mxu0 %v6852
    %7016 = vmatprep.subr.bf16.mxu0 %v6856
    %7017 = vmatpush1.bf16.msra.mxu0 %v6855
    %7018 = vmatprep.subr.bf16.mxu0 %v6859
    %7019 = vmatpush1.bf16.msra.mxu0 %v6858
    %7020 = vmatprep.subr.bf16.mxu0 %v6862
    %7021 = vmatpush1.bf16.msra.mxu0 %v6861
    %7022 = vmatprep.subr.bf16.mxu0 %v6865
    %7023 = vmatpush1.bf16.msra.mxu0 %v6864
    %7024 = vmatprep.subr.bf16.mxu0 %v6868
    %7025 = vmatpush1.bf16.msra.mxu0 %v6867
    %7026 = vmatprep.subr.bf16.mxu0 %v6871
    %7027 = vmatpush1.bf16.msra.mxu0 %v6870
    %7028 = vmatprep.mubr.bf16.mxu0 %v6539
    %7029 = vmatmul.mubr.bf16.gmra.mrb[0].mxu0 %v6538
    %v7030 = vpop.f32.mrb[0].mxu0
    %v7031 = vadd.f32 0.0, %v7030
    %v7032 = vpop.f32.mrb[0].mxu0
    %v7033 = vadd.f32 0.0, %v7032
    %v7034 = vpop.f32.mrb[0].mxu0
    %v7035 = vadd.f32 0.0, %v7034
    %v7036 = vpop.f32.mrb[0].mxu0
    %v7037 = vadd.f32 0.0, %v7036
    %7038 = vdwg.mxu0
    %7039 = vmatprep.subr.bf16.mxu0 %v6874
    %7040 = vmatpush1.bf16.msra.mxu0 %v6873
    %7041 = vmatprep.subr.bf16.mxu0 %v6877
    %7042 = vmatpush1.bf16.msra.mxu0 %v6876
    %7043 = vmatprep.subr.bf16.mxu0 %v6880
    %7044 = vmatpush1.bf16.msra.mxu0 %v6879
    %7045 = vmatprep.subr.bf16.mxu0 %v6883
    %7046 = vmatpush1.bf16.msra.mxu0 %v6882
    %7047 = vmatprep.subr.bf16.mxu0 %v6886
    %7048 = vmatpush1.bf16.msra.mxu0 %v6885
    %7049 = vmatprep.subr.bf16.mxu0 %v6889
    %7050 = vmatpush1.bf16.msra.mxu0 %v6888
    %7051 = vmatprep.subr.bf16.mxu0 %v6892
    %7052 = vmatpush1.bf16.msra.mxu0 %v6891
    %7053 = vmatprep.subr.bf16.mxu0 %v6895
    %7054 = vmatpush1.bf16.msra.mxu0 %v6894
    %7055 = vmatprep.subr.bf16.mxu0 %v6898
    %7056 = vmatpush1.bf16.msra.mxu0 %v6897
    %7057 = vmatprep.subr.bf16.mxu0 %v6901
    %7058 = vmatpush1.bf16.msra.mxu0 %v6900
    %7059 = vmatprep.subr.bf16.mxu0 %v6904
    %7060 = vmatpush1.bf16.msra.mxu0 %v6903
    %7061 = vmatprep.subr.bf16.mxu0 %v6907
    %7062 = vmatpush1.bf16.msra.mxu0 %v6906
    %7063 = vmatprep.subr.bf16.mxu0 0
    %7064 = vmatpush1.bf16.msra.mxu0 0
    %7065 = vmatprep.subr.bf16.mxu0 0
    %7066 = vmatpush1.bf16.msra.mxu0 0
    %7067 = vmatprep.subr.bf16.mxu0 0
    %7068 = vmatpush1.bf16.msra.mxu0 0
    %7069 = vmatprep.subr.bf16.mxu0 0
    %7070 = vmatpush1.bf16.msra.mxu0 0
    %7071 = vmatprep.mubr.bf16.mxu0 %v6994
    %7072 = vmatmul.mubr.bf16.gmra.mrb[0].mxu0 %v6540
    %v7073 = vpop.f32.mrb[0].mxu0
    %v7074 = vadd.f32 %v7031, %v7073
    %v7075 = vpop.f32.mrb[0].mxu0
    %v7076 = vadd.f32 %v7033, %v7075
    %v7077 = vpop.f32.mrb[0].mxu0
    %v7078 = vadd.f32 %v7035, %v7077
    %v7079 = vpop.f32.mrb[0].mxu0
    %v7080 = vadd.f32 %v7037, %v7079
    %7081 = vdwg.mxu0
    %7082 = vmatprep.subr.bf16.mxu0 0
    %7083 = vmatpush1.bf16.msra.mxu0 %v6827
    %7084 = vmatprep.subr.bf16.mxu0 0
    %7085 = vmatpush1.bf16.msra.mxu0 %v6830
    %7086 = vmatprep.subr.bf16.mxu0 0
    %7087 = vmatpush1.bf16.msra.mxu0 %v6833
    %7088 = vmatprep.subr.bf16.mxu0 0
    %7089 = vmatpush1.bf16.msra.mxu0 %v6836
    %7090 = vmatprep.subr.bf16.mxu0 0
    %7091 = vmatpush1.bf16.msra.mxu0 %v6839
    %7092 = vmatprep.subr.bf16.mxu0 0
    %7093 = vmatpush1.bf16.msra.mxu0 %v6842
    %7094 = vmatprep.subr.bf16.mxu0 0
    %7095 = vmatpush1.bf16.msra.mxu0 %v6845
    %7096 = vmatprep.subr.bf16.mxu0 0
    %7097 = vmatpush1.bf16.msra.mxu0 %v6848
    %7098 = vmatprep.subr.bf16.mxu0 0
    %7099 = vmatpush1.bf16.msra.mxu0 %v6851
    %7100 = vmatprep.subr.bf16.mxu0 0
    %7101 = vmatpush1.bf16.msra.mxu0 %v6854
    %7102 = vmatprep.subr.bf16.mxu0 0
    %7103 = vmatpush1.bf16.msra.mxu0 %v6857
    %7104 = vmatprep.subr.bf16.mxu0 0
    %7105 = vmatpush1.bf16.msra.mxu0 %v6860
    %7106 = vmatprep.subr.bf16.mxu0 0
    %7107 = vmatpush1.bf16.msra.mxu0 %v6863
    %7108 = vmatprep.subr.bf16.mxu0 0
    %7109 = vmatpush1.bf16.msra.mxu0 %v6866
    %7110 = vmatprep.subr.bf16.mxu0 0
    %7111 = vmatpush1.bf16.msra.mxu0 %v6869
    %7112 = vmatprep.subr.bf16.mxu0 0
    %7113 = vmatpush1.bf16.msra.mxu0 %v6872
    %7114 = vmatprep.mubr.bf16.mxu0 %v6539
    %7115 = vmatmul.mubr.bf16.gmra.mrb[0].mxu0 %v6538
    %v7116 = vpop.f32.mrb[0].mxu0
    %v7117 = vadd.f32 0.0, %v7116
    %v7118 = vpop.f32.mrb[0].mxu0
    %v7119 = vpop.f32.mrb[0].mxu0
    %v7120 = vadd.f32 0.0, %v7119
    %v7121 = vpop.f32.mrb[0].mxu0
    %7122 = vdwg.mxu0
    %7123 = vmatprep.subr.bf16.mxu0 0
    %7124 = vmatpush1.bf16.msra.mxu0 %v6875
    %7125 = vmatprep.subr.bf16.mxu0 0
    %7126 = vmatpush1.bf16.msra.mxu0 %v6878
    %7127 = vmatprep.subr.bf16.mxu0 0
    %7128 = vmatpush1.bf16.msra.mxu0 %v6881
    %7129 = vmatprep.subr.bf16.mxu0 0
    %7130 = vmatpush1.bf16.msra.mxu0 %v6884
    %7131 = vmatprep.subr.bf16.mxu0 0
    %7132 = vmatpush1.bf16.msra.mxu0 %v6887
    %7133 = vmatprep.subr.bf16.mxu0 0
    %7134 = vmatpush1.bf16.msra.mxu0 %v6890
    %7135 = vmatprep.subr.bf16.mxu0 0
    %7136 = vmatpush1.bf16.msra.mxu0 %v6893
    %7137 = vmatprep.subr.bf16.mxu0 0
    %7138 = vmatpush1.bf16.msra.mxu0 %v6896
    %7139 = vmatprep.subr.bf16.mxu0 0
    %7140 = vmatpush1.bf16.msra.mxu0 %v6899
    %7141 = vmatprep.subr.bf16.mxu0 0
    %7142 = vmatpush1.bf16.msra.mxu0 %v6902
    %7143 = vmatprep.subr.bf16.mxu0 0
    %7144 = vmatpush1.bf16.msra.mxu0 %v6905
    %7145 = vmatprep.subr.bf16.mxu0 0
    %7146 = vmatpush1.bf16.msra.mxu0 %v6908
    %7147 = vmatprep.subr.bf16.mxu0 0
    %7148 = vmatpush1.bf16.msra.mxu0 0
    %7149 = vmatprep.subr.bf16.mxu0 0
    %7150 = vmatpush1.bf16.msra.mxu0 0
    %7151 = vmatprep.subr.bf16.mxu0 0
    %7152 = vmatpush1.bf16.msra.mxu0 0
    %7153 = vmatprep.subr.bf16.mxu0 0
    %7154 = vmatpush1.bf16.msra.mxu0 0
    %7155 = vmatprep.mubr.bf16.mxu0 %v6994
    %7156 = vmatmul.mubr.bf16.gmra.mrb[0].mxu0 %v6540
    %v7157 = vpop.f32.mrb[0].mxu0
    %v7158 = vadd.f32 %v7117, %v7157
    %v7159 = vpop.f32.mrb[0].mxu0
    %v7160 = vpop.f32.mrb[0].mxu0
    %v7161 = vadd.f32 %v7120, %v7160
    %v7162 = vpop.f32.mrb[0].mxu0
    %7163 = vdwg.mxu0
    %v7276 = vunpack.c.l.b16 %v5542
    %v7277 = vunpack.c.h.b16 %v5542
    %v7278 = vunpack.c.l.b16 %v5543
    %v7279 = vunpack.c.l.b16 %v5544
    %v7280 = vunpack.c.h.b16 %v5544
    %v7281 = vunpack.c.l.b16 %v5545
    %v7282 = vunpack.c.l.b16 %v5546
    %v7283 = vunpack.c.h.b16 %v5546
    %v7284 = vunpack.c.l.b16 %v5547
    %v7285 = vunpack.c.l.b16 %v5548
    %v7286 = vunpack.c.h.b16 %v5548
    %v7287 = vunpack.c.l.b16 %v5549
    %v7288 = vunpack.c.l.b16 %v5550
    %v7289 = vunpack.c.h.b16 %v5550
    %v7290 = vunpack.c.l.b16 %v5551
    %v7291 = vunpack.c.l.b16 %v5552
    %v7292 = vunpack.c.h.b16 %v5552
    %v7293 = vunpack.c.l.b16 %v5553
    %v7294 = vunpack.c.l.b16 %v5554
    %v7295 = vunpack.c.h.b16 %v5554
    %v7296 = vunpack.c.l.b16 %v5555
    %v7297 = vunpack.c.l.b16 %v5556
    %v7298 = vunpack.c.h.b16 %v5556
    %v7299 = vunpack.c.l.b16 %v5557
    %v7300 = vunpack.c.l.b16 %v5558
    %v7301 = vunpack.c.h.b16 %v5558
    %v7302 = vunpack.c.l.b16 %v5559
    %v7303 = vunpack.c.l.b16 %v5560
    %v7304 = vunpack.c.h.b16 %v5560
    %v7305 = vunpack.c.l.b16 %v5561
    %v7306 = vunpack.c.l.b16 %v5562
    %v7307 = vunpack.c.h.b16 %v5562
    %v7308 = vunpack.c.l.b16 %v5563
    %v7309 = vunpack.c.l.b16 %v5564
    %v7310 = vunpack.c.h.b16 %v5564
    %v7311 = vunpack.c.l.b16 %v5565
    %v7312 = vunpack.c.l.b16 %v5566
    %v7313 = vunpack.c.h.b16 %v5566
    %v7314 = vunpack.c.l.b16 %v5567
    %v7315 = vunpack.c.l.b16 %v5568
    %v7316 = vunpack.c.h.b16 %v5568
    %v7317 = vunpack.c.l.b16 %v5569
    %v7318 = vunpack.c.l.b16 %v5570
    %v7319 = vunpack.c.h.b16 %v5570
    %v7320 = vunpack.c.l.b16 %v5571
    %v7321 = vunpack.c.l.b16 %v5572
    %v7322 = vunpack.c.h.b16 %v5572
    %v7323 = vunpack.c.l.b16 %v5573
    %v7324 = vunpack.c.l.b16 %v5574
    %v7325 = vunpack.c.h.b16 %v5574
    %v7326 = vunpack.c.l.b16 %v5575
    %v7327 = vunpack.c.l.b16 %v5576
    %v7328 = vunpack.c.h.b16 %v5576
    %v7329 = vunpack.c.l.b16 %v5577
    %v7330 = vunpack.c.l.b16 %v5578
    %v7331 = vunpack.c.h.b16 %v5578
    %v7332 = vunpack.c.l.b16 %v5579
    %v7333 = vunpack.c.l.b16 %v5580
    %v7334 = vunpack.c.h.b16 %v5580
    %v7335 = vunpack.c.l.b16 %v5581
    %v7336 = vunpack.c.l.b16 %v5582
    %v7337 = vunpack.c.h.b16 %v5582
    %v7338 = vunpack.c.l.b16 %v5583
    %v7339 = vunpack.c.l.b16 %v5584
    %v7340 = vunpack.c.h.b16 %v5584
    %v7341 = vunpack.c.l.b16 %v5585
    %v7342 = vunpack.c.l.b16 %v5586
    %v7343 = vunpack.c.h.b16 %v5586
    %v7344 = vunpack.c.l.b16 %v5587
    %v7345 = vunpack.c.l.b16 %v5588
    %v7346 = vunpack.c.h.b16 %v5588
    %v7347 = vunpack.c.l.b16 %v5589
    %v7348 = vunpack.c.l.b16 %v5590
    %v7349 = vunpack.c.h.b16 %v5590
    %v7350 = vunpack.c.l.b16 %v5591
    %v7351 = vunpack.c.l.b16 %v5592
    %v7352 = vunpack.c.h.b16 %v5592
    %v7353 = vunpack.c.l.b16 %v5593
    %v7354 = vunpack.c.l.b16 %v5594
    %v7355 = vunpack.c.h.b16 %v5594
    %v7356 = vunpack.c.l.b16 %v5595
    %v7357 = vunpack.c.l.b16 %v5596
    %v7358 = vunpack.c.h.b16 %v5596
    %v7359 = vunpack.c.l.b16 %v5597
    %v7360 = vunpack.c.l.b16 %v5598
    %v7361 = vunpack.c.h.b16 %v5598
    %v7362 = vunpack.c.l.b16 %v5599
    %v7363 = vunpack.c.l.b16 %v5600
    %v7364 = vunpack.c.h.b16 %v5600
    %v7365 = vunpack.c.l.b16 %v5601
    %v7366 = vunpack.c.l.b16 %v5602
    %v7367 = vunpack.c.h.b16 %v5602
    %v7368 = vunpack.c.l.b16 %v5603
    %v7369 = vunpack.c.l.b16 %v5604
    %v7370 = vunpack.c.h.b16 %v5604
    %v7371 = vunpack.c.l.b16 %v5605
    %v7372 = vunpack.c.l.b16 %v5606
    %v7373 = vunpack.c.h.b16 %v5606
    %v7374 = vunpack.c.l.b16 %v5607
    %v7375 = vunpack.c.l.b16 %v5608
    %v7376 = vunpack.c.h.b16 %v5608
    %v7377 = vunpack.c.l.b16 %v5609
    %v7378 = vunpack.c.l.b16 %v5610
    %v7379 = vunpack.c.h.b16 %v5610
    %v7380 = vunpack.c.l.b16 %v5611
    %v7381 = vunpack.c.l.b16 %v5612
    %v7382 = vunpack.c.h.b16 %v5612
    %v7383 = vunpack.c.l.b16 %v5613
    %v7384 = vunpack.c.l.b16 %v5614
    %v7385 = vunpack.c.h.b16 %v5614
    %v7386 = vunpack.c.l.b16 %v5615
    %v7387 = vunpack.c.l.b16 %v5616
    %v7388 = vunpack.c.h.b16 %v5616
    %v7389 = vunpack.c.l.b16 %v5617
    %v7390 = vunpack.c.l.b16 %v5618
    %v7391 = vunpack.c.h.b16 %v5618
    %v7392 = vunpack.c.l.b16 %v5619
    %v7393 = vunpack.c.l.b16 %v5620
    %v7394 = vunpack.c.h.b16 %v5620
    %v7395 = vunpack.c.l.b16 %v5621
    %v7396 = vunpack.c.l.b16 %v5622
    %v7397 = vunpack.c.h.b16 %v5622
    %v7398 = vunpack.c.l.b16 %v5623
    %v7399 = vunpack.c.l.b16 %v5624
    %v7400 = vunpack.c.h.b16 %v5624
    %v7401 = vunpack.c.l.b16 %v5625
    %v7402 = vunpack.c.l.b16 %v5626
    %v7403 = vunpack.c.h.b16 %v5626
    %v7404 = vunpack.c.l.b16 %v5627
    %v7405 = vunpack.c.l.b16 %v5628
    %v7406 = vunpack.c.h.b16 %v5628
    %v7407 = vunpack.c.l.b16 %v5629
    %v7408 = vunpack.c.l.b16 %v5630
    %v7409 = vunpack.c.h.b16 %v5630
    %v7410 = vunpack.c.l.b16 %v5631
    %v7411 = vunpack.c.l.b16 %v5632
    %v7412 = vunpack.c.h.b16 %v5632
    %v7413 = vunpack.c.l.b16 %v5633
    %v7414 = vunpack.c.l.b16 %v5634
    %v7415 = vunpack.c.h.b16 %v5634
    %v7416 = vunpack.c.l.b16 %v5635
    %v7417 = vunpack.c.l.b16 %v5636
    %v7418 = vunpack.c.h.b16 %v5636
    %v7419 = vunpack.c.l.b16 %v5637
    %v7420 = vunpack.c.l.b16 %v5638
    %v7421 = vunpack.c.h.b16 %v5638
    %v7422 = vunpack.c.l.b16 %v5639
    %v7423 = vunpack.c.l.b16 %v5640
    %v7424 = vunpack.c.h.b16 %v5640
    %v7425 = vunpack.c.l.b16 %v5641
    %v7426 = vunpack.c.l.b16 %v5642
    %v7427 = vunpack.c.h.b16 %v5642
    %v7428 = vunpack.c.l.b16 %v5643
    %v7429 = vunpack.c.l.b16 %v5644
    %v7430 = vunpack.c.h.b16 %v5644
    %v7431 = vunpack.c.l.b16 %v5645
    %v7432 = vunpack.c.l.b16 %v5646
    %v7433 = vunpack.c.h.b16 %v5646
    %v7434 = vunpack.c.l.b16 %v5647
    %v7435 = vunpack.c.l.b16 %v5648
    %v7436 = vunpack.c.h.b16 %v5648
    %v7437 = vunpack.c.l.b16 %v5649
    %v7438 = vunpack.c.l.b16 %v5650
    %v7439 = vunpack.c.h.b16 %v5650
    %v7440 = vunpack.c.l.b16 %v5651
    %v7441 = vunpack.c.l.b16 %v5652
    %v7442 = vunpack.c.h.b16 %v5652
    %v7443 = vunpack.c.l.b16 %v5653
    %v7444 = vpack.c.b16 %v7279, %v7276
    %v7445 = vpack.c.b16 %v7280, %v7277
    %v7446 = vpack.c.b16 %v7281, %v7278
    %v7447 = vpack.c.b16 %v7285, %v7282
    %v7448 = vpack.c.b16 %v7286, %v7283
    %v7449 = vpack.c.b16 %v7287, %v7284
    %v7450 = vpack.c.b16 %v7291, %v7288
    %v7451 = vpack.c.b16 %v7292, %v7289
    %v7452 = vpack.c.b16 %v7293, %v7290
    %v7453 = vpack.c.b16 %v7297, %v7294
    %v7454 = vpack.c.b16 %v7298, %v7295
    %v7455 = vpack.c.b16 %v7299, %v7296
    %v7456 = vpack.c.b16 %v7303, %v7300
    %v7457 = vpack.c.b16 %v7304, %v7301
    %v7458 = vpack.c.b16 %v7305, %v7302
    %v7459 = vpack.c.b16 %v7309, %v7306
    %v7460 = vpack.c.b16 %v7310, %v7307
    %v7461 = vpack.c.b16 %v7311, %v7308
    %v7462 = vpack.c.b16 %v7315, %v7312
    %v7463 = vpack.c.b16 %v7316, %v7313
    %v7464 = vpack.c.b16 %v7317, %v7314
    %v7465 = vpack.c.b16 %v7321, %v7318
    %v7466 = vpack.c.b16 %v7322, %v7319
    %v7467 = vpack.c.b16 %v7323, %v7320
    %v7468 = vpack.c.b16 %v7327, %v7324
    %v7469 = vpack.c.b16 %v7328, %v7325
    %v7470 = vpack.c.b16 %v7329, %v7326
    %v7471 = vpack.c.b16 %v7333, %v7330
    %v7472 = vpack.c.b16 %v7334, %v7331
    %v7473 = vpack.c.b16 %v7335, %v7332
    %v7474 = vpack.c.b16 %v7339, %v7336
    %v7475 = vpack.c.b16 %v7340, %v7337
    %v7476 = vpack.c.b16 %v7341, %v7338
    %v7477 = vpack.c.b16 %v7345, %v7342
    %v7478 = vpack.c.b16 %v7346, %v7343
    %v7479 = vpack.c.b16 %v7347, %v7344
    %v7480 = vpack.c.b16 %v7351, %v7348
    %v7481 = vpack.c.b16 %v7352, %v7349
    %v7482 = vpack.c.b16 %v7353, %v7350
    %v7483 = vpack.c.b16 %v7357, %v7354
    %v7484 = vpack.c.b16 %v7358, %v7355
    %v7485 = vpack.c.b16 %v7359, %v7356
    %v7486 = vpack.c.b16 %v7363, %v7360
    %v7487 = vpack.c.b16 %v7364, %v7361
    %v7488 = vpack.c.b16 %v7365, %v7362
    %v7489 = vpack.c.b16 %v7369, %v7366
    %v7490 = vpack.c.b16 %v7370, %v7367
    %v7491 = vpack.c.b16 %v7371, %v7368
    %v7492 = vpack.c.b16 %v7375, %v7372
    %v7493 = vpack.c.b16 %v7376, %v7373
    %v7494 = vpack.c.b16 %v7377, %v7374
    %v7495 = vpack.c.b16 %v7381, %v7378
    %v7496 = vpack.c.b16 %v7382, %v7379
    %v7497 = vpack.c.b16 %v7383, %v7380
    %v7498 = vpack.c.b16 %v7387, %v7384
    %v7499 = vpack.c.b16 %v7388, %v7385
    %v7500 = vpack.c.b16 %v7389, %v7386
    %v7501 = vpack.c.b16 %v7393, %v7390
    %v7502 = vpack.c.b16 %v7394, %v7391
    %v7503 = vpack.c.b16 %v7395, %v7392
    %v7504 = vpack.c.b16 %v7399, %v7396
    %v7505 = vpack.c.b16 %v7400, %v7397
    %v7506 = vpack.c.b16 %v7401, %v7398
    %v7507 = vpack.c.b16 %v7405, %v7402
    %v7508 = vpack.c.b16 %v7406, %v7403
    %v7509 = vpack.c.b16 %v7407, %v7404
    %v7510 = vpack.c.b16 %v7411, %v7408
    %v7511 = vpack.c.b16 %v7412, %v7409
    %v7512 = vpack.c.b16 %v7413, %v7410
    %v7513 = vpack.c.b16 %v7417, %v7414
    %v7514 = vpack.c.b16 %v7418, %v7415
    %v7515 = vpack.c.b16 %v7419, %v7416
    %v7516 = vpack.c.b16 %v7423, %v7420
    %v7517 = vpack.c.b16 %v7424, %v7421
    %v7518 = vpack.c.b16 %v7425, %v7422
    %v7519 = vpack.c.b16 %v7429, %v7426
    %v7520 = vpack.c.b16 %v7430, %v7427
    %v7521 = vpack.c.b16 %v7431, %v7428
    %v7522 = vpack.c.b16 %v7435, %v7432
    %v7523 = vpack.c.b16 %v7436, %v7433
    %v7524 = vpack.c.b16 %v7437, %v7434
    %v7525 = vpack.c.b16 %v7441, %v7438
    %v7526 = vpack.c.b16 %v7442, %v7439
    %v7527 = vpack.c.b16 %v7443, %v7440
    %v7613 = vsel %vm5477, %v5541, 0
    %7615 = vmatprep.subr.bf16.mxu0 %v7445
    %7616 = vmatpush1.bf16.msra.mxu0 %v7444
    %7617 = vmatprep.subr.bf16.mxu0 %v7448
    %7618 = vmatpush1.bf16.msra.mxu0 %v7447
    %7619 = vmatprep.subr.bf16.mxu0 %v7451
    %7620 = vmatpush1.bf16.msra.mxu0 %v7450
    %7621 = vmatprep.subr.bf16.mxu0 %v7454
    %7622 = vmatpush1.bf16.msra.mxu0 %v7453
    %7623 = vmatprep.subr.bf16.mxu0 %v7457
    %7624 = vmatpush1.bf16.msra.mxu0 %v7456
    %7625 = vmatprep.subr.bf16.mxu0 %v7460
    %7626 = vmatpush1.bf16.msra.mxu0 %v7459
    %7627 = vmatprep.subr.bf16.mxu0 %v7463
    %7628 = vmatpush1.bf16.msra.mxu0 %v7462
    %7629 = vmatprep.subr.bf16.mxu0 %v7466
    %7630 = vmatpush1.bf16.msra.mxu0 %v7465
    %7631 = vmatprep.subr.bf16.mxu0 %v7469
    %7632 = vmatpush1.bf16.msra.mxu0 %v7468
    %7633 = vmatprep.subr.bf16.mxu0 %v7472
    %7634 = vmatpush1.bf16.msra.mxu0 %v7471
    %7635 = vmatprep.subr.bf16.mxu0 %v7475
    %7636 = vmatpush1.bf16.msra.mxu0 %v7474
    %7637 = vmatprep.subr.bf16.mxu0 %v7478
    %7638 = vmatpush1.bf16.msra.mxu0 %v7477
    %7639 = vmatprep.subr.bf16.mxu0 %v7481
    %7640 = vmatpush1.bf16.msra.mxu0 %v7480
    %7641 = vmatprep.subr.bf16.mxu0 %v7484
    %7642 = vmatpush1.bf16.msra.mxu0 %v7483
    %7643 = vmatprep.subr.bf16.mxu0 %v7487
    %7644 = vmatpush1.bf16.msra.mxu0 %v7486
    %7645 = vmatprep.subr.bf16.mxu0 %v7490
    %7646 = vmatpush1.bf16.msra.mxu0 %v7489
    %7647 = vmatprep.mubr.bf16.mxu0 %v5539
    %7648 = vmatmul.mubr.bf16.gmra.mrb[0].mxu0 %v5538
    %v7649 = vpop.f32.mrb[0].mxu0
    %v7650 = vadd.f32 %v7074, %v7649
    %v7651 = vpop.f32.mrb[0].mxu0
    %v7652 = vadd.f32 %v7076, %v7651
    %v7653 = vpop.f32.mrb[0].mxu0
    %v7654 = vadd.f32 %v7078, %v7653
    %v7655 = vpop.f32.mrb[0].mxu0
    %v7656 = vadd.f32 %v7080, %v7655
    %7657 = vdwg.mxu0
    %7658 = vmatprep.subr.bf16.mxu0 %v7493
    %7659 = vmatpush1.bf16.msra.mxu0 %v7492
    %7660 = vmatprep.subr.bf16.mxu0 %v7496
    %7661 = vmatpush1.bf16.msra.mxu0 %v7495
    %7662 = vmatprep.subr.bf16.mxu0 %v7499
    %7663 = vmatpush1.bf16.msra.mxu0 %v7498
    %7664 = vmatprep.subr.bf16.mxu0 %v7502
    %7665 = vmatpush1.bf16.msra.mxu0 %v7501
    %7666 = vmatprep.subr.bf16.mxu0 %v7505
    %7667 = vmatpush1.bf16.msra.mxu0 %v7504
    %7668 = vmatprep.subr.bf16.mxu0 %v7508
    %7669 = vmatpush1.bf16.msra.mxu0 %v7507
    %7670 = vmatprep.subr.bf16.mxu0 %v7511
    %7671 = vmatpush1.bf16.msra.mxu0 %v7510
    %7672 = vmatprep.subr.bf16.mxu0 %v7514
    %7673 = vmatpush1.bf16.msra.mxu0 %v7513
    %7674 = vmatprep.subr.bf16.mxu0 %v7517
    %7675 = vmatpush1.bf16.msra.mxu0 %v7516
    %7676 = vmatprep.subr.bf16.mxu0 %v7520
    %7677 = vmatpush1.bf16.msra.mxu0 %v7519
    %7678 = vmatprep.subr.bf16.mxu0 %v7523
    %7679 = vmatpush1.bf16.msra.mxu0 %v7522
    %7680 = vmatprep.subr.bf16.mxu0 %v7526
    %7681 = vmatpush1.bf16.msra.mxu0 %v7525
    %7682 = vmatprep.subr.bf16.mxu0 0
    %7683 = vmatpush1.bf16.msra.mxu0 0
    %7684 = vmatprep.subr.bf16.mxu0 0
    %7685 = vmatpush1.bf16.msra.mxu0 0
    %7686 = vmatprep.subr.bf16.mxu0 0
    %7687 = vmatpush1.bf16.msra.mxu0 0
    %7688 = vmatprep.subr.bf16.mxu0 0
    %7689 = vmatpush1.bf16.msra.mxu0 0
    %7690 = vmatprep.mubr.bf16.mxu0 %v7613
    %7691 = vmatmul.mubr.bf16.gmra.mrb[0].mxu0 %v5540
    %v7692 = vpop.f32.mrb[0].mxu0
    %v7693 = vadd.f32 %v7650, %v7692
    %v7694 = vpop.f32.mrb[0].mxu0
    %v7695 = vadd.f32 %v7652, %v7694
    %v7696 = vpop.f32.mrb[0].mxu0
    %v7697 = vadd.f32 %v7654, %v7696
    %v7698 = vpop.f32.mrb[0].mxu0
    %v7699 = vadd.f32 %v7656, %v7698
    %7700 = vdwg.mxu0
    %7701 = vmatprep.subr.bf16.mxu0 0
    %7702 = vmatpush1.bf16.msra.mxu0 %v7446
    %7703 = vmatprep.subr.bf16.mxu0 0
    %7704 = vmatpush1.bf16.msra.mxu0 %v7449
    %7705 = vmatprep.subr.bf16.mxu0 0
    %7706 = vmatpush1.bf16.msra.mxu0 %v7452
    %7707 = vmatprep.subr.bf16.mxu0 0
    %7708 = vmatpush1.bf16.msra.mxu0 %v7455
    %7709 = vmatprep.subr.bf16.mxu0 0
    %7710 = vmatpush1.bf16.msra.mxu0 %v7458
    %7711 = vmatprep.subr.bf16.mxu0 0
    %7712 = vmatpush1.bf16.msra.mxu0 %v7461
    %7713 = vmatprep.subr.bf16.mxu0 0
    %7714 = vmatpush1.bf16.msra.mxu0 %v7464
    %7715 = vmatprep.subr.bf16.mxu0 0
    %7716 = vmatpush1.bf16.msra.mxu0 %v7467
    %7717 = vmatprep.subr.bf16.mxu0 0
    %7718 = vmatpush1.bf16.msra.mxu0 %v7470
    %7719 = vmatprep.subr.bf16.mxu0 0
    %7720 = vmatpush1.bf16.msra.mxu0 %v7473
    %7721 = vmatprep.subr.bf16.mxu0 0
    %7722 = vmatpush1.bf16.msra.mxu0 %v7476
    %7723 = vmatprep.subr.bf16.mxu0 0
    %7724 = vmatpush1.bf16.msra.mxu0 %v7479
    %7725 = vmatprep.subr.bf16.mxu0 0
    %7726 = vmatpush1.bf16.msra.mxu0 %v7482
    %7727 = vmatprep.subr.bf16.mxu0 0
    %7728 = vmatpush1.bf16.msra.mxu0 %v7485
    %7729 = vmatprep.subr.bf16.mxu0 0
    %7730 = vmatpush1.bf16.msra.mxu0 %v7488
    %7731 = vmatprep.subr.bf16.mxu0 0
    %7732 = vmatpush1.bf16.msra.mxu0 %v7491
    %7733 = vmatprep.mubr.bf16.mxu0 %v5539
    %7734 = vmatmul.mubr.bf16.gmra.mrb[0].mxu0 %v5538
    %v7735 = vpop.f32.mrb[0].mxu0
    %v7736 = vadd.f32 %v7158, %v7735
    %v7737 = vpop.f32.mrb[0].mxu0
    %v7738 = vpop.f32.mrb[0].mxu0
    %v7739 = vadd.f32 %v7161, %v7738
    %v7740 = vpop.f32.mrb[0].mxu0
    %7741 = vdwg.mxu0
    %7742 = vmatprep.subr.bf16.mxu0 0
    %7743 = vmatpush1.bf16.msra.mxu0 %v7494
    %7744 = vmatprep.subr.bf16.mxu0 0
    %7745 = vmatpush1.bf16.msra.mxu0 %v7497
    %7746 = vmatprep.subr.bf16.mxu0 0
    %7747 = vmatpush1.bf16.msra.mxu0 %v7500
    %7748 = vmatprep.subr.bf16.mxu0 0
    %7749 = vmatpush1.bf16.msra.mxu0 %v7503
    %7750 = vmatprep.subr.bf16.mxu0 0
    %7751 = vmatpush1.bf16.msra.mxu0 %v7506
    %7752 = vmatprep.subr.bf16.mxu0 0
    %7753 = vmatpush1.bf16.msra.mxu0 %v7509
    %7754 = vmatprep.subr.bf16.mxu0 0
    %7755 = vmatpush1.bf16.msra.mxu0 %v7512
    %7756 = vmatprep.subr.bf16.mxu0 0
    %7757 = vmatpush1.bf16.msra.mxu0 %v7515
    %7758 = vmatprep.subr.bf16.mxu0 0
    %7759 = vmatpush1.bf16.msra.mxu0 %v7518
    %7760 = vmatprep.subr.bf16.mxu0 0
    %7761 = vmatpush1.bf16.msra.mxu0 %v7521
    %7762 = vmatprep.subr.bf16.mxu0 0
    %7763 = vmatpush1.bf16.msra.mxu0 %v7524
    %7764 = vmatprep.subr.bf16.mxu0 0
    %7765 = vmatpush1.bf16.msra.mxu0 %v7527
    %7766 = vmatprep.subr.bf16.mxu0 0
    %7767 = vmatpush1.bf16.msra.mxu0 0
    %7768 = vmatprep.subr.bf16.mxu0 0
    %7769 = vmatpush1.bf16.msra.mxu0 0
    %7770 = vmatprep.subr.bf16.mxu0 0
    %7771 = vmatpush1.bf16.msra.mxu0 0
    %7772 = vmatprep.subr.bf16.mxu0 0
    %7773 = vmatpush1.bf16.msra.mxu0 0
    %7774 = vmatprep.mubr.bf16.mxu0 %v7613
    %7775 = vmatmul.mubr.bf16.gmra.mrb[0].mxu0 %v5540
    %v7776 = vpop.f32.mrb[0].mxu0
    %v7777 = vadd.f32 %v7736, %v7776
    %v7778 = vpop.f32.mrb[0].mxu0
    %v7779 = vpop.f32.mrb[0].mxu0
    %v7780 = vadd.f32 %v7739, %v7779
    %v7781 = vpop.f32.mrb[0].mxu0
    %7782 = vdwg.mxu0
    %v7783 = vadd.f32 %v7693, %v6319
    %v7784 = vadd.f32 %v7695, %v6321
    %v7785 = vadd.f32 %v7777, %v6403
    %v7786 = vadd.f32 %v7697, %v6323
    %v7787 = vadd.f32 %v7699, %v6325
    %v7788 = vadd.f32 %v7780, %v6406
    %v7789 = vld [vmem:[%s5] sm:$0x7]
    %v7791 = vlaneseq
    %v7792 = vshrl.u32 %v7791, 7
    %v7793 = vsub.s32 0, %v7792
    %v7794 = vrot.slane %v7789, %v7793
    %v7795 = vlaneseq
    %v7796 = vshrl.u32 %v7795, 7
    %v7797 = vsub.s32 1, %v7796
    %v7798 = vrot.slane %v7789, %v7797
    %v7799 = vlaneseq
    %v7800 = vshrl.u32 %v7799, 7
    %v7801 = vsub.s32 2, %v7800
    %v7802 = vrot.slane %v7789, %v7801
    %v7806 = vadd.f32 %v7783, %v7794
    %v7807 = vadd.f32 %v7784, %v7798
    %v7808 = vadd.f32 %v7785, %v7802
    %v7809 = vadd.f32 %v7786, %v7794
    %v7810 = vadd.f32 %v7787, %v7798
    %v7811 = vadd.f32 %v7788, %v7802
    %v7812 = vmax.f32 %v7806, 0.0
    %v7813 = vmax.f32 %v7807, 0.0
    %v7814 = vmax.f32 %v7808, 0.0
    %v7815 = vmax.f32 %v7809, 0.0
    %v7816 = vmax.f32 %v7810, 0.0
    %v7817 = vmax.f32 %v7811, 0.0
    %v7818 = vpack.c.bf16 %v7812, %v7812
    %v7819 = vpack.c.bf16 %v7813, %v7813
    %v7820 = vpack.c.bf16 %v7814, %v7814
    %v7821 = vld [vmem:[%s6] sm:$0xff]
    %v7822 = vld [vmem:[%s6 + $0x8] sm:$0xff]
    %v7823 = vld [vmem:[%s6 + $0x10] sm:$0xff]
    %v7824 = vld [vmem:[%s6 + $0x18] sm:$0xff]
    %v7825 = vld [vmem:[%s6 + $0x20] sm:$0xff]
    %v7826 = vld [vmem:[%s6 + $0x28] sm:$0xff]
    %v7827 = vld [vmem:[%s6 + $0x30] sm:$0xff]
    %v7828 = vld [vmem:[%s6 + $0x38] sm:$0xff]
    %v7829 = vld [vmem:[%s6 + $0x40] sm:$0xff]
    %v7830 = vld [vmem:[%s6 + $0x48] sm:$0xff]
    %v7831 = vld [vmem:[%s6 + $0x50] sm:$0xff]
    %v7832 = vld [vmem:[%s6 + $0x58] sm:$0xff]
    %v7833 = vld [vmem:[%s6 + $0x60] sm:$0xff]
    %v7834 = vld [vmem:[%s6 + $0x68] sm:$0xff]
    %v7835 = vld [vmem:[%s6 + $0x70] sm:$0xff]
    %v7836 = vld [vmem:[%s6 + $0x78] sm:$0xff]
    %v7837 = vld [vmem:[%s6 + $0x80] sm:$0xff]
    %v7838 = vld [vmem:[%s6 + $0x88] sm:$0xff]
    %v7839 = vld [vmem:[%s6 + $0x90] sm:$0xff]
    %v7840 = vld [vmem:[%s6 + $0x98] sm:$0xff]
    %v7841 = vld [vmem:[%s6 + $0xa0] sm:$0xff]
    %v7842 = vld [vmem:[%s6 + $0xa8] sm:$0xff]
    %v7843 = vld [vmem:[%s6 + $0xb0] sm:$0xff]
    %v7844 = vld [vmem:[%s6 + $0xb8] sm:$0xff]
    %v7845 = vld [vmem:[%s6 + $0xc0] sm:$0xff]
    %v7846 = vld [vmem:[%s6 + $0xc8] sm:$0xff]
    %v7847 = vld [vmem:[%s6 + $0xd0] sm:$0xff]
    %v7848 = vld [vmem:[%s6 + $0xd8] sm:$0xff]
    %v7849 = vld [vmem:[%s6 + $0xe0] sm:$0xff]
    %v7850 = vld [vmem:[%s6 + $0xe8] sm:$0xff]
    %v7851 = vld [vmem:[%s6 + $0xf0] sm:$0xff]
    %v7852 = vld [vmem:[%s6 + $0xf8] sm:$0xff]
    %v7853 = vld [vmem:[%s6 + $0x100] sm:$0xff]
    %v7854 = vld [vmem:[%s6 + $0x108] sm:$0xff]
    %v7855 = vld [vmem:[%s6 + $0x110] sm:$0xff]
    %v7856 = vld [vmem:[%s6 + $0x118] sm:$0xff]
    %v7857 = vld [vmem:[%s6 + $0x120] sm:$0xff]
    %v7858 = vld [vmem:[%s6 + $0x128] sm:$0xff]
    %v7859 = vld [vmem:[%s6 + $0x130] sm:$0xff]
    %v7860 = vld [vmem:[%s6 + $0x138] sm:$0xff]
    %s7861 = scalar_lea.vmem %s6, 320
    %v7862 = vld [vmem:[%s7861] sm:$0xff]
    %v7863 = vld [vmem:[%s7861 + $0x8] sm:$0xff]
    %v7864 = vld [vmem:[%s7861 + $0x10] sm:$0xff]
    %v7865 = vld [vmem:[%s7861 + $0x18] sm:$0xff]
    %v7866 = vld [vmem:[%s7861 + $0x20] sm:$0xff]
    %v7867 = vld [vmem:[%s7861 + $0x28] sm:$0xff]
    %v7868 = vld [vmem:[%s7861 + $0x30] sm:$0xff]
    %v7869 = vld [vmem:[%s7861 + $0x38] sm:$0xff]
    %v7870 = vld [vmem:[%s7861 + $0x40] sm:$0xff]
    %v7871 = vld [vmem:[%s7861 + $0x48] sm:$0xff]
    %v7872 = vld [vmem:[%s7861 + $0x50] sm:$0xff]
    %v7873 = vld [vmem:[%s7861 + $0x58] sm:$0xff]
    %v7874 = vld [vmem:[%s7861 + $0x60] sm:$0xff]
    %v7875 = vld [vmem:[%s7861 + $0x68] sm:$0xff]
    %v7876 = vld [vmem:[%s7861 + $0x70] sm:$0xff]
    %v7877 = vld [vmem:[%s7861 + $0x78] sm:$0xff]
    %v7878 = vld [vmem:[%s7861 + $0x80] sm:$0xff]
    %v7879 = vld [vmem:[%s7861 + $0x88] sm:$0xff]
    %v7880 = vld [vmem:[%s7861 + $0x90] sm:$0xff]
    %v7881 = vld [vmem:[%s7861 + $0x98] sm:$0xff]
    %v7882 = vld [vmem:[%s7861 + $0xa0] sm:$0xff]
    %v7883 = vld [vmem:[%s7861 + $0xa8] sm:$0xff]
    %v7884 = vld [vmem:[%s7861 + $0xb0] sm:$0xff]
    %v7885 = vld [vmem:[%s7861 + $0xb8] sm:$0xff]
    %v7886 = vld [vmem:[%s7861 + $0xc0] sm:$0xff]
    %v7887 = vld [vmem:[%s7861 + $0xc8] sm:$0xff]
    %v7888 = vld [vmem:[%s7861 + $0xd0] sm:$0xff]
    %v7889 = vld [vmem:[%s7861 + $0xd8] sm:$0xff]
    %v7890 = vld [vmem:[%s7861 + $0xe0] sm:$0xff]
    %v7891 = vld [vmem:[%s7861 + $0xe8] sm:$0xff]
    %v7892 = vld [vmem:[%s7861 + $0xf0] sm:$0xff]
    %v7893 = vld [vmem:[%s7861 + $0xf8] sm:$0xff]
    %v7894 = vld [vmem:[%s7861 + $0x100] sm:$0xff]
    %v7895 = vld [vmem:[%s7861 + $0x108] sm:$0xff]
    %v7896 = vld [vmem:[%s7861 + $0x110] sm:$0xff]
    %v7897 = vld [vmem:[%s7861 + $0x118] sm:$0xff]
    %v7898 = vld [vmem:[%s7861 + $0x120] sm:$0xff]
    %v7899 = vld [vmem:[%s7861 + $0x128] sm:$0xff]
    %v7900 = vld [vmem:[%s7861 + $0x130] sm:$0xff]
    %v7901 = vld [vmem:[%s7861 + $0x138] sm:$0xff]
    %s7902 = scalar_lea.vmem %s6, 640
    %v7903 = vld [vmem:[%s7902] sm:$0xff]
    %v7904 = vld [vmem:[%s7902 + $0x8] sm:$0xff]
    %v7905 = vld [vmem:[%s7902 + $0x10] sm:$0xff]
    %v7906 = vld [vmem:[%s7902 + $0x18] sm:$0xff]
    %v7907 = vld [vmem:[%s7902 + $0x20] sm:$0xff]
    %v7908 = vld [vmem:[%s7902 + $0x28] sm:$0xff]
    %v7909 = vld [vmem:[%s7902 + $0x30] sm:$0xff]
    %v7910 = vld [vmem:[%s7902 + $0x38] sm:$0xff]
    %v7911 = vld [vmem:[%s7902 + $0x40] sm:$0xff]
    %v7912 = vld [vmem:[%s7902 + $0x48] sm:$0xff]
    %v7913 = vld [vmem:[%s7902 + $0x50] sm:$0xff]
    %v7914 = vld [vmem:[%s7902 + $0x58] sm:$0xff]
    %v7915 = vld [vmem:[%s7902 + $0x60] sm:$0xff]
    %v7916 = vld [vmem:[%s7902 + $0x68] sm:$0xff]
    %v7917 = vld [vmem:[%s7902 + $0x70] sm:$0xff]
    %v7918 = vld [vmem:[%s7902 + $0x78] sm:$0xff]
    %v7919 = vld [vmem:[%s7902 + $0x80] sm:$0xff]
    %v7920 = vld [vmem:[%s7902 + $0x88] sm:$0xff]
    %v7921 = vld [vmem:[%s7902 + $0x90] sm:$0xff]
    %v7922 = vld [vmem:[%s7902 + $0x98] sm:$0xff]
    %v7923 = vld [vmem:[%s7902 + $0xa0] sm:$0xff]
    %v7924 = vld [vmem:[%s7902 + $0xa8] sm:$0xff]
    %v7925 = vld [vmem:[%s7902 + $0xb0] sm:$0xff]
    %v7926 = vld [vmem:[%s7902 + $0xb8] sm:$0xff]
    %v7927 = vld [vmem:[%s7902 + $0xc0] sm:$0xff]
    %v7928 = vld [vmem:[%s7902 + $0xc8] sm:$0xff]
    %v7929 = vld [vmem:[%s7902 + $0xd0] sm:$0xff]
    %v7930 = vld [vmem:[%s7902 + $0xd8] sm:$0xff]
    %v7931 = vld [vmem:[%s7902 + $0xe0] sm:$0xff]
    %v7932 = vld [vmem:[%s7902 + $0xe8] sm:$0xff]
    %v7933 = vld [vmem:[%s7902 + $0xf0] sm:$0xff]
    %v7934 = vld [vmem:[%s7902 + $0xf8] sm:$0xff]
    %v7935 = vld [vmem:[%s7902 + $0x100] sm:$0xff]
    %v7936 = vld [vmem:[%s7902 + $0x108] sm:$0xff]
    %v7937 = vld [vmem:[%s7902 + $0x110] sm:$0xff]
    %v7938 = vld [vmem:[%s7902 + $0x118] sm:$0xff]
    %v7939 = vld [vmem:[%s7902 + $0x120] sm:$0xff]
    %v7940 = vld [vmem:[%s7902 + $0x128] sm:$0xff]
    %v7941 = vld [vmem:[%s7902 + $0x130] sm:$0xff]
    %v7942 = vld [vmem:[%s7902 + $0x138] sm:$0xff]
    %v7946 = vrot.slane %v7818, 2
    %v7947 = vrot.slane %v7819, 2
    %v7948 = vrot.slane %v7820, 2
    %v7991 = vunpack.c.l.b16 %v7903
    %v7992 = vunpack.c.h.b16 %v7903
    %v7993 = vunpack.c.l.b16 %v7904
    %v7994 = vunpack.c.h.b16 %v7904
    %v7995 = vunpack.c.l.b16 %v7905
    %v7996 = vunpack.c.h.b16 %v7905
    %v7997 = vunpack.c.l.b16 %v7906
    %v7998 = vunpack.c.h.b16 %v7906
    %v7999 = vunpack.c.l.b16 %v7907
    %v8000 = vunpack.c.h.b16 %v7907
    %v8001 = vunpack.c.l.b16 %v7908
    %v8002 = vunpack.c.h.b16 %v7908
    %v8003 = vunpack.c.l.b16 %v7909
    %v8004 = vunpack.c.h.b16 %v7909
    %v8005 = vunpack.c.l.b16 %v7910
    %v8006 = vunpack.c.h.b16 %v7910
    %v8007 = vunpack.c.l.b16 %v7911
    %v8008 = vunpack.c.h.b16 %v7911
    %v8009 = vunpack.c.l.b16 %v7912
    %v8010 = vunpack.c.h.b16 %v7912
    %v8011 = vunpack.c.l.b16 %v7913
    %v8012 = vunpack.c.h.b16 %v7913
    %v8013 = vunpack.c.l.b16 %v7914
    %v8014 = vunpack.c.h.b16 %v7914
    %v8015 = vunpack.c.l.b16 %v7915
    %v8016 = vunpack.c.h.b16 %v7915
    %v8017 = vunpack.c.l.b16 %v7916
    %v8018 = vunpack.c.h.b16 %v7916
    %v8019 = vunpack.c.l.b16 %v7917
    %v8020 = vunpack.c.h.b16 %v7917
    %v8021 = vunpack.c.l.b16 %v7918
    %v8022 = vunpack.c.h.b16 %v7918
    %v8023 = vunpack.c.l.b16 %v7919
    %v8024 = vunpack.c.h.b16 %v7919
    %v8025 = vunpack.c.l.b16 %v7920
    %v8026 = vunpack.c.h.b16 %v7920
    %v8027 = vunpack.c.l.b16 %v7921
    %v8028 = vunpack.c.h.b16 %v7921
    %v8029 = vunpack.c.l.b16 %v7922
    %v8030 = vunpack.c.h.b16 %v7922
    %v8031 = vunpack.c.l.b16 %v7923
    %v8032 = vunpack.c.h.b16 %v7923
    %v8033 = vunpack.c.l.b16 %v7924
    %v8034 = vunpack.c.h.b16 %v7924
    %v8035 = vunpack.c.l.b16 %v7925
    %v8036 = vunpack.c.h.b16 %v7925
    %v8037 = vunpack.c.l.b16 %v7926
    %v8038 = vunpack.c.h.b16 %v7926
    %v8039 = vunpack.c.l.b16 %v7927
    %v8040 = vunpack.c.h.b16 %v7927
    %v8041 = vunpack.c.l.b16 %v7928
    %v8042 = vunpack.c.h.b16 %v7928
    %v8043 = vunpack.c.l.b16 %v7929
    %v8044 = vunpack.c.h.b16 %v7929
    %v8045 = vunpack.c.l.b16 %v7930
    %v8046 = vunpack.c.h.b16 %v7930
    %v8047 = vunpack.c.l.b16 %v7931
    %v8048 = vunpack.c.h.b16 %v7931
    %v8049 = vunpack.c.l.b16 %v7932
    %v8050 = vunpack.c.h.b16 %v7932
    %v8051 = vunpack.c.l.b16 %v7933
    %v8052 = vunpack.c.h.b16 %v7933
    %v8053 = vunpack.c.l.b16 %v7934
    %v8054 = vunpack.c.h.b16 %v7934
    %v8055 = vunpack.c.l.b16 %v7935
    %v8056 = vunpack.c.h.b16 %v7935
    %v8057 = vunpack.c.l.b16 %v7936
    %v8058 = vunpack.c.h.b16 %v7936
    %v8059 = vunpack.c.l.b16 %v7937
    %v8060 = vunpack.c.h.b16 %v7937
    %v8061 = vunpack.c.l.b16 %v7938
    %v8062 = vunpack.c.h.b16 %v7938
    %v8063 = vunpack.c.l.b16 %v7939
    %v8064 = vunpack.c.h.b16 %v7939
    %v8065 = vunpack.c.l.b16 %v7940
    %v8066 = vunpack.c.h.b16 %v7940
    %v8067 = vunpack.c.l.b16 %v7941
    %v8068 = vunpack.c.h.b16 %v7941
    %v8069 = vunpack.c.l.b16 %v7942
    %v8070 = vunpack.c.h.b16 %v7942
    %v8071 = vpack.c.b16 %v7993, %v7991
    %v8072 = vpack.c.b16 %v7994, %v7992
    %v8073 = vpack.c.b16 %v7997, %v7995
    %v8074 = vpack.c.b16 %v7998, %v7996
    %v8075 = vpack.c.b16 %v8001, %v7999
    %v8076 = vpack.c.b16 %v8002, %v8000
    %v8077 = vpack.c.b16 %v8005, %v8003
    %v8078 = vpack.c.b16 %v8006, %v8004
    %v8079 = vpack.c.b16 %v8009, %v8007
    %v8080 = vpack.c.b16 %v8010, %v8008
    %v8081 = vpack.c.b16 %v8013, %v8011
    %v8082 = vpack.c.b16 %v8014, %v8012
    %v8083 = vpack.c.b16 %v8017, %v8015
    %v8084 = vpack.c.b16 %v8018, %v8016
    %v8085 = vpack.c.b16 %v8021, %v8019
    %v8086 = vpack.c.b16 %v8022, %v8020
    %v8087 = vpack.c.b16 %v8025, %v8023
    %v8088 = vpack.c.b16 %v8026, %v8024
    %v8089 = vpack.c.b16 %v8029, %v8027
    %v8090 = vpack.c.b16 %v8030, %v8028
    %v8091 = vpack.c.b16 %v8033, %v8031
    %v8092 = vpack.c.b16 %v8034, %v8032
    %v8093 = vpack.c.b16 %v8037, %v8035
    %v8094 = vpack.c.b16 %v8038, %v8036
    %v8095 = vpack.c.b16 %v8041, %v8039
    %v8096 = vpack.c.b16 %v8042, %v8040
    %v8097 = vpack.c.b16 %v8045, %v8043
    %v8098 = vpack.c.b16 %v8046, %v8044
    %v8099 = vpack.c.b16 %v8049, %v8047
    %v8100 = vpack.c.b16 %v8050, %v8048
    %v8101 = vpack.c.b16 %v8053, %v8051
    %v8102 = vpack.c.b16 %v8054, %v8052
    %v8103 = vpack.c.b16 %v8057, %v8055
    %v8104 = vpack.c.b16 %v8058, %v8056
    %v8105 = vpack.c.b16 %v8061, %v8059
    %v8106 = vpack.c.b16 %v8062, %v8060
    %v8107 = vpack.c.b16 %v8065, %v8063
    %v8108 = vpack.c.b16 %v8066, %v8064
    %v8109 = vpack.c.b16 %v8069, %v8067
    %v8110 = vpack.c.b16 %v8070, %v8068
    %v8152 = vsel %vm5477, %v7948, 0
    %8154 = vmatprep.subr.bf16.mxu0 %v8072
    %8155 = vmatpush1.bf16.msra.mxu0 %v8071
    %8156 = vmatprep.subr.bf16.mxu0 %v8074
    %8157 = vmatpush1.bf16.msra.mxu0 %v8073
    %8158 = vmatprep.subr.bf16.mxu0 %v8076
    %8159 = vmatpush1.bf16.msra.mxu0 %v8075
    %8160 = vmatprep.subr.bf16.mxu0 %v8078
    %8161 = vmatpush1.bf16.msra.mxu0 %v8077
    %8162 = vmatprep.subr.bf16.mxu0 %v8080
    %8163 = vmatpush1.bf16.msra.mxu0 %v8079
    %8164 = vmatprep.subr.bf16.mxu0 %v8082
    %8165 = vmatpush1.bf16.msra.mxu0 %v8081
    %8166 = vmatprep.subr.bf16.mxu0 %v8084
    %8167 = vmatpush1.bf16.msra.mxu0 %v8083
    %8168 = vmatprep.subr.bf16.mxu0 %v8086
    %8169 = vmatpush1.bf16.msra.mxu0 %v8085
    %8170 = vmatprep.subr.bf16.mxu0 %v8088
    %8171 = vmatpush1.bf16.msra.mxu0 %v8087
    %8172 = vmatprep.subr.bf16.mxu0 %v8090
    %8173 = vmatpush1.bf16.msra.mxu0 %v8089
    %8174 = vmatprep.subr.bf16.mxu0 %v8092
    %8175 = vmatpush1.bf16.msra.mxu0 %v8091
    %8176 = vmatprep.subr.bf16.mxu0 %v8094
    %8177 = vmatpush1.bf16.msra.mxu0 %v8093
    %8178 = vmatprep.subr.bf16.mxu0 %v8096
    %8179 = vmatpush1.bf16.msra.mxu0 %v8095
    %8180 = vmatprep.subr.bf16.mxu0 %v8098
    %8181 = vmatpush1.bf16.msra.mxu0 %v8097
    %8182 = vmatprep.subr.bf16.mxu0 %v8100
    %8183 = vmatpush1.bf16.msra.mxu0 %v8099
    %8184 = vmatprep.subr.bf16.mxu0 %v8102
    %8185 = vmatpush1.bf16.msra.mxu0 %v8101
    %8186 = vmatprep.mubr.bf16.mxu0 %v7947
    %8187 = vmatmul.mubr.bf16.gmra.mrb[0].mxu0 %v7946
    %v8188 = vpop.f32.mrb[0].mxu0
    %v8189 = vadd.f32 0.0, %v8188
    %v8190 = vpop.f32.mrb[0].mxu0
    %v8191 = vadd.f32 0.0, %v8190
    %v8192 = vpop.f32.mrb[0].mxu0
    %v8193 = vpop.f32.mrb[0].mxu0
    %8194 = vdwg.mxu0
    %8195 = vmatprep.subr.bf16.mxu0 %v8104
    %8196 = vmatpush1.bf16.msra.mxu0 %v8103
    %8197 = vmatprep.subr.bf16.mxu0 %v8106
    %8198 = vmatpush1.bf16.msra.mxu0 %v8105
    %8199 = vmatprep.subr.bf16.mxu0 %v8108
    %8200 = vmatpush1.bf16.msra.mxu0 %v8107
    %8201 = vmatprep.subr.bf16.mxu0 %v8110
    %8202 = vmatpush1.bf16.msra.mxu0 %v8109
    %8203 = vmatprep.subr.bf16.mxu0 0
    %8204 = vmatpush1.bf16.msra.mxu0 0
    %8205 = vmatprep.subr.bf16.mxu0 0
    %8206 = vmatpush1.bf16.msra.mxu0 0
    %8207 = vmatprep.subr.bf16.mxu0 0
    %8208 = vmatpush1.bf16.msra.mxu0 0
    %8209 = vmatprep.subr.bf16.mxu0 0
    %8210 = vmatpush1.bf16.msra.mxu0 0
    %8211 = vmatprep.subr.bf16.mxu0 0
    %8212 = vmatpush1.bf16.msra.mxu0 0
    %8213 = vmatprep.subr.bf16.mxu0 0
    %8214 = vmatpush1.bf16.msra.mxu0 0
    %8215 = vmatprep.subr.bf16.mxu0 0
    %8216 = vmatpush1.bf16.msra.mxu0 0
    %8217 = vmatprep.subr.bf16.mxu0 0
    %8218 = vmatpush1.bf16.msra.mxu0 0
    %8219 = vmatprep.subr.bf16.mxu0 0
    %8220 = vmatpush1.bf16.msra.mxu0 0
    %8221 = vmatprep.subr.bf16.mxu0 0
    %8222 = vmatpush1.bf16.msra.mxu0 0
    %8223 = vmatprep.subr.bf16.mxu0 0
    %8224 = vmatpush1.bf16.msra.mxu0 0
    %8225 = vmatprep.subr.bf16.mxu0 0
    %8226 = vmatpush1.bf16.msra.mxu0 0
    %8227 = vmatprep.mubr.bf16.mxu0 0
    %8228 = vmatmul.mubr.bf16.gmra.mrb[0].mxu0 %v8152
    %v8229 = vpop.f32.mrb[0].mxu0
    %v8230 = vadd.f32 %v8189, %v8229
    %v8231 = vpop.f32.mrb[0].mxu0
    %v8232 = vadd.f32 %v8191, %v8231
    %v8233 = vpop.f32.mrb[0].mxu0
    %v8234 = vpop.f32.mrb[0].mxu0
    %8235 = vdwg.mxu0
    %v8276 = vunpack.c.l.b16 %v7821
    %v8277 = vunpack.c.h.b16 %v7821
    %v8278 = vunpack.c.l.b16 %v7822
    %v8279 = vunpack.c.h.b16 %v7822
    %v8280 = vunpack.c.l.b16 %v7823
    %v8281 = vunpack.c.h.b16 %v7823
    %v8282 = vunpack.c.l.b16 %v7824
    %v8283 = vunpack.c.h.b16 %v7824
    %v8284 = vunpack.c.l.b16 %v7825
    %v8285 = vunpack.c.h.b16 %v7825
    %v8286 = vunpack.c.l.b16 %v7826
    %v8287 = vunpack.c.h.b16 %v7826
    %v8288 = vunpack.c.l.b16 %v7827
    %v8289 = vunpack.c.h.b16 %v7827
    %v8290 = vunpack.c.l.b16 %v7828
    %v8291 = vunpack.c.h.b16 %v7828
    %v8292 = vunpack.c.l.b16 %v7829
    %v8293 = vunpack.c.h.b16 %v7829
    %v8294 = vunpack.c.l.b16 %v7830
    %v8295 = vunpack.c.h.b16 %v7830
    %v8296 = vunpack.c.l.b16 %v7831
    %v8297 = vunpack.c.h.b16 %v7831
    %v8298 = vunpack.c.l.b16 %v7832
    %v8299 = vunpack.c.h.b16 %v7832
    %v8300 = vunpack.c.l.b16 %v7833
    %v8301 = vunpack.c.h.b16 %v7833
    %v8302 = vunpack.c.l.b16 %v7834
    %v8303 = vunpack.c.h.b16 %v7834
    %v8304 = vunpack.c.l.b16 %v7835
    %v8305 = vunpack.c.h.b16 %v7835
    %v8306 = vunpack.c.l.b16 %v7836
    %v8307 = vunpack.c.h.b16 %v7836
    %v8308 = vunpack.c.l.b16 %v7837
    %v8309 = vunpack.c.h.b16 %v7837
    %v8310 = vunpack.c.l.b16 %v7838
    %v8311 = vunpack.c.h.b16 %v7838
    %v8312 = vunpack.c.l.b16 %v7839
    %v8313 = vunpack.c.h.b16 %v7839
    %v8314 = vunpack.c.l.b16 %v7840
    %v8315 = vunpack.c.h.b16 %v7840
    %v8316 = vunpack.c.l.b16 %v7841
    %v8317 = vunpack.c.h.b16 %v7841
    %v8318 = vunpack.c.l.b16 %v7842
    %v8319 = vunpack.c.h.b16 %v7842
    %v8320 = vunpack.c.l.b16 %v7843
    %v8321 = vunpack.c.h.b16 %v7843
    %v8322 = vunpack.c.l.b16 %v7844
    %v8323 = vunpack.c.h.b16 %v7844
    %v8324 = vunpack.c.l.b16 %v7845
    %v8325 = vunpack.c.h.b16 %v7845
    %v8326 = vunpack.c.l.b16 %v7846
    %v8327 = vunpack.c.h.b16 %v7846
    %v8328 = vunpack.c.l.b16 %v7847
    %v8329 = vunpack.c.h.b16 %v7847
    %v8330 = vunpack.c.l.b16 %v7848
    %v8331 = vunpack.c.h.b16 %v7848
    %v8332 = vunpack.c.l.b16 %v7849
    %v8333 = vunpack.c.h.b16 %v7849
    %v8334 = vunpack.c.l.b16 %v7850
    %v8335 = vunpack.c.h.b16 %v7850
    %v8336 = vunpack.c.l.b16 %v7851
    %v8337 = vunpack.c.h.b16 %v7851
    %v8338 = vunpack.c.l.b16 %v7852
    %v8339 = vunpack.c.h.b16 %v7852
    %v8340 = vunpack.c.l.b16 %v7853
    %v8341 = vunpack.c.h.b16 %v7853
    %v8342 = vunpack.c.l.b16 %v7854
    %v8343 = vunpack.c.h.b16 %v7854
    %v8344 = vunpack.c.l.b16 %v7855
    %v8345 = vunpack.c.h.b16 %v7855
    %v8346 = vunpack.c.l.b16 %v7856
    %v8347 = vunpack.c.h.b16 %v7856
    %v8348 = vunpack.c.l.b16 %v7857
    %v8349 = vunpack.c.h.b16 %v7857
    %v8350 = vunpack.c.l.b16 %v7858
    %v8351 = vunpack.c.h.b16 %v7858
    %v8352 = vunpack.c.l.b16 %v7859
    %v8353 = vunpack.c.h.b16 %v7859
    %v8354 = vunpack.c.l.b16 %v7860
    %v8355 = vunpack.c.h.b16 %v7860
    %v8356 = vpack.c.b16 %v8278, %v8276
    %v8357 = vpack.c.b16 %v8279, %v8277
    %v8358 = vpack.c.b16 %v8282, %v8280
    %v8359 = vpack.c.b16 %v8283, %v8281
    %v8360 = vpack.c.b16 %v8286, %v8284
    %v8361 = vpack.c.b16 %v8287, %v8285
    %v8362 = vpack.c.b16 %v8290, %v8288
    %v8363 = vpack.c.b16 %v8291, %v8289
    %v8364 = vpack.c.b16 %v8294, %v8292
    %v8365 = vpack.c.b16 %v8295, %v8293
    %v8366 = vpack.c.b16 %v8298, %v8296
    %v8367 = vpack.c.b16 %v8299, %v8297
    %v8368 = vpack.c.b16 %v8302, %v8300
    %v8369 = vpack.c.b16 %v8303, %v8301
    %v8370 = vpack.c.b16 %v8306, %v8304
    %v8371 = vpack.c.b16 %v8307, %v8305
    %v8372 = vpack.c.b16 %v8310, %v8308
    %v8373 = vpack.c.b16 %v8311, %v8309
    %v8374 = vpack.c.b16 %v8314, %v8312
    %v8375 = vpack.c.b16 %v8315, %v8313
    %v8376 = vpack.c.b16 %v8318, %v8316
    %v8377 = vpack.c.b16 %v8319, %v8317
    %v8378 = vpack.c.b16 %v8322, %v8320
    %v8379 = vpack.c.b16 %v8323, %v8321
    %v8380 = vpack.c.b16 %v8326, %v8324
    %v8381 = vpack.c.b16 %v8327, %v8325
    %v8382 = vpack.c.b16 %v8330, %v8328
    %v8383 = vpack.c.b16 %v8331, %v8329
    %v8384 = vpack.c.b16 %v8334, %v8332
    %v8385 = vpack.c.b16 %v8335, %v8333
    %v8386 = vpack.c.b16 %v8338, %v8336
    %v8387 = vpack.c.b16 %v8339, %v8337
    %v8388 = vpack.c.b16 %v8342, %v8340
    %v8389 = vpack.c.b16 %v8343, %v8341
    %v8390 = vpack.c.b16 %v8346, %v8344
    %v8391 = vpack.c.b16 %v8347, %v8345
    %v8392 = vpack.c.b16 %v8350, %v8348
    %v8393 = vpack.c.b16 %v8351, %v8349
    %v8394 = vpack.c.b16 %v8354, %v8352
    %v8395 = vpack.c.b16 %v8355, %v8353
    %v8437 = vsel %vm5477, %v7820, 0
    %8439 = vmatprep.subr.bf16.mxu0 %v8357
    %8440 = vmatpush1.bf16.msra.mxu0 %v8356
    %8441 = vmatprep.subr.bf16.mxu0 %v8359
    %8442 = vmatpush1.bf16.msra.mxu0 %v8358
    %8443 = vmatprep.subr.bf16.mxu0 %v8361
    %8444 = vmatpush1.bf16.msra.mxu0 %v8360
    %8445 = vmatprep.subr.bf16.mxu0 %v8363
    %8446 = vmatpush1.bf16.msra.mxu0 %v8362
    %8447 = vmatprep.subr.bf16.mxu0 %v8365
    %8448 = vmatpush1.bf16.msra.mxu0 %v8364
    %8449 = vmatprep.subr.bf16.mxu0 %v8367
    %8450 = vmatpush1.bf16.msra.mxu0 %v8366
    %8451 = vmatprep.subr.bf16.mxu0 %v8369
    %8452 = vmatpush1.bf16.msra.mxu0 %v8368
    %8453 = vmatprep.subr.bf16.mxu0 %v8371
    %8454 = vmatpush1.bf16.msra.mxu0 %v8370
    %8455 = vmatprep.subr.bf16.mxu0 %v8373
    %8456 = vmatpush1.bf16.msra.mxu0 %v8372
    %8457 = vmatprep.subr.bf16.mxu0 %v8375
    %8458 = vmatpush1.bf16.msra.mxu0 %v8374
    %8459 = vmatprep.subr.bf16.mxu0 %v8377
    %8460 = vmatpush1.bf16.msra.mxu0 %v8376
    %8461 = vmatprep.subr.bf16.mxu0 %v8379
    %8462 = vmatpush1.bf16.msra.mxu0 %v8378
    %8463 = vmatprep.subr.bf16.mxu0 %v8381
    %8464 = vmatpush1.bf16.msra.mxu0 %v8380
    %8465 = vmatprep.subr.bf16.mxu0 %v8383
    %8466 = vmatpush1.bf16.msra.mxu0 %v8382
    %8467 = vmatprep.subr.bf16.mxu0 %v8385
    %8468 = vmatpush1.bf16.msra.mxu0 %v8384
    %8469 = vmatprep.subr.bf16.mxu0 %v8387
    %8470 = vmatpush1.bf16.msra.mxu0 %v8386
    %8471 = vmatprep.mubr.bf16.mxu0 %v7819
    %8472 = vmatmul.mubr.bf16.gmra.mrb[0].mxu0 %v7818
    %v8473 = vpop.f32.mrb[0].mxu0
    %v8474 = vadd.f32 %v8230, %v8473
    %v8475 = vpop.f32.mrb[0].mxu0
    %v8476 = vadd.f32 %v8232, %v8475
    %v8477 = vpop.f32.mrb[0].mxu0
    %v8478 = vpop.f32.mrb[0].mxu0
    %8479 = vdwg.mxu0
    %8480 = vmatprep.subr.bf16.mxu0 %v8389
    %8481 = vmatpush1.bf16.msra.mxu0 %v8388
    %8482 = vmatprep.subr.bf16.mxu0 %v8391
    %8483 = vmatpush1.bf16.msra.mxu0 %v8390
    %8484 = vmatprep.subr.bf16.mxu0 %v8393
    %8485 = vmatpush1.bf16.msra.mxu0 %v8392
    %8486 = vmatprep.subr.bf16.mxu0 %v8395
    %8487 = vmatpush1.bf16.msra.mxu0 %v8394
    %8488 = vmatprep.subr.bf16.mxu0 0
    %8489 = vmatpush1.bf16.msra.mxu0 0
    %8490 = vmatprep.subr.bf16.mxu0 0
    %8491 = vmatpush1.bf16.msra.mxu0 0
    %8492 = vmatprep.subr.bf16.mxu0 0
    %8493 = vmatpush1.bf16.msra.mxu0 0
    %8494 = vmatprep.subr.bf16.mxu0 0
    %8495 = vmatpush1.bf16.msra.mxu0 0
    %8496 = vmatprep.subr.bf16.mxu0 0
    %8497 = vmatpush1.bf16.msra.mxu0 0
    %8498 = vmatprep.subr.bf16.mxu0 0
    %8499 = vmatpush1.bf16.msra.mxu0 0
    %8500 = vmatprep.subr.bf16.mxu0 0
    %8501 = vmatpush1.bf16.msra.mxu0 0
    %8502 = vmatprep.subr.bf16.mxu0 0
    %8503 = vmatpush1.bf16.msra.mxu0 0
    %8504 = vmatprep.subr.bf16.mxu0 0
    %8505 = vmatpush1.bf16.msra.mxu0 0
    %8506 = vmatprep.subr.bf16.mxu0 0
    %8507 = vmatpush1.bf16.msra.mxu0 0
    %8508 = vmatprep.subr.bf16.mxu0 0
    %8509 = vmatpush1.bf16.msra.mxu0 0
    %8510 = vmatprep.subr.bf16.mxu0 0
    %8511 = vmatpush1.bf16.msra.mxu0 0
    %8512 = vmatprep.mubr.bf16.mxu0 0
    %8513 = vmatmul.mubr.bf16.gmra.mrb[0].mxu0 %v8437
    %v8514 = vpop.f32.mrb[0].mxu0
    %v8515 = vadd.f32 %v8474, %v8514
    %v8516 = vpop.f32.mrb[0].mxu0
    %v8517 = vadd.f32 %v8476, %v8516
    %v8518 = vpop.f32.mrb[0].mxu0
    %v8519 = vpop.f32.mrb[0].mxu0
    %8520 = vdwg.mxu0
    %s8521 = scalar_lea.vmem %s6, 960
    %v8522 = vld [vmem:[%s8521] sm:$0xff]
    %v8523 = vld [vmem:[%s8521 + $0x8] sm:$0xff]
    %v8524 = vld [vmem:[%s8521 + $0x10] sm:$0xff]
    %v8525 = vld [vmem:[%s8521 + $0x18] sm:$0xff]
    %v8526 = vld [vmem:[%s8521 + $0x20] sm:$0xff]
    %v8527 = vld [vmem:[%s8521 + $0x28] sm:$0xff]
    %v8528 = vld [vmem:[%s8521 + $0x30] sm:$0xff]
    %v8529 = vld [vmem:[%s8521 + $0x38] sm:$0xff]
    %v8530 = vld [vmem:[%s8521 + $0x40] sm:$0xff]
    %v8531 = vld [vmem:[%s8521 + $0x48] sm:$0xff]
    %v8532 = vld [vmem:[%s8521 + $0x50] sm:$0xff]
    %v8533 = vld [vmem:[%s8521 + $0x58] sm:$0xff]
    %v8534 = vld [vmem:[%s8521 + $0x60] sm:$0xff]
    %v8535 = vld [vmem:[%s8521 + $0x68] sm:$0xff]
    %v8536 = vld [vmem:[%s8521 + $0x70] sm:$0xff]
    %v8537 = vld [vmem:[%s8521 + $0x78] sm:$0xff]
    %v8538 = vld [vmem:[%s8521 + $0x80] sm:$0xff]
    %v8539 = vld [vmem:[%s8521 + $0x88] sm:$0xff]
    %v8540 = vld [vmem:[%s8521 + $0x90] sm:$0xff]
    %v8541 = vld [vmem:[%s8521 + $0x98] sm:$0xff]
    %v8542 = vld [vmem:[%s8521 + $0xa0] sm:$0xff]
    %v8543 = vld [vmem:[%s8521 + $0xa8] sm:$0xff]
    %v8544 = vld [vmem:[%s8521 + $0xb0] sm:$0xff]
    %v8545 = vld [vmem:[%s8521 + $0xb8] sm:$0xff]
    %v8546 = vld [vmem:[%s8521 + $0xc0] sm:$0xff]
    %v8547 = vld [vmem:[%s8521 + $0xc8] sm:$0xff]
    %v8548 = vld [vmem:[%s8521 + $0xd0] sm:$0xff]
    %v8549 = vld [vmem:[%s8521 + $0xd8] sm:$0xff]
    %v8550 = vld [vmem:[%s8521 + $0xe0] sm:$0xff]
    %v8551 = vld [vmem:[%s8521 + $0xe8] sm:$0xff]
    %v8552 = vld [vmem:[%s8521 + $0xf0] sm:$0xff]
    %v8553 = vld [vmem:[%s8521 + $0xf8] sm:$0xff]
    %v8554 = vld [vmem:[%s8521 + $0x100] sm:$0xff]
    %v8555 = vld [vmem:[%s8521 + $0x108] sm:$0xff]
    %v8556 = vld [vmem:[%s8521 + $0x110] sm:$0xff]
    %v8557 = vld [vmem:[%s8521 + $0x118] sm:$0xff]
    %v8558 = vld [vmem:[%s8521 + $0x120] sm:$0xff]
    %v8559 = vld [vmem:[%s8521 + $0x128] sm:$0xff]
    %v8560 = vld [vmem:[%s8521 + $0x130] sm:$0xff]
    %v8561 = vld [vmem:[%s8521 + $0x138] sm:$0xff]
    %v8562 = vrot.slane %v7818, 3
    %v8563 = vrot.slane %v7819, 3
    %v8564 = vrot.slane %v7820, 3
    %v8607 = vunpack.c.l.b16 %v8522
    %v8608 = vunpack.c.h.b16 %v8522
    %v8609 = vunpack.c.l.b16 %v8523
    %v8610 = vunpack.c.h.b16 %v8523
    %v8611 = vunpack.c.l.b16 %v8524
    %v8612 = vunpack.c.h.b16 %v8524
    %v8613 = vunpack.c.l.b16 %v8525
    %v8614 = vunpack.c.h.b16 %v8525
    %v8615 = vunpack.c.l.b16 %v8526
    %v8616 = vunpack.c.h.b16 %v8526
    %v8617 = vunpack.c.l.b16 %v8527
    %v8618 = vunpack.c.h.b16 %v8527
    %v8619 = vunpack.c.l.b16 %v8528
    %v8620 = vunpack.c.h.b16 %v8528
    %v8621 = vunpack.c.l.b16 %v8529
    %v8622 = vunpack.c.h.b16 %v8529
    %v8623 = vunpack.c.l.b16 %v8530
    %v8624 = vunpack.c.h.b16 %v8530
    %v8625 = vunpack.c.l.b16 %v8531
    %v8626 = vunpack.c.h.b16 %v8531
    %v8627 = vunpack.c.l.b16 %v8532
    %v8628 = vunpack.c.h.b16 %v8532
    %v8629 = vunpack.c.l.b16 %v8533
    %v8630 = vunpack.c.h.b16 %v8533
    %v8631 = vunpack.c.l.b16 %v8534
    %v8632 = vunpack.c.h.b16 %v8534
    %v8633 = vunpack.c.l.b16 %v8535
    %v8634 = vunpack.c.h.b16 %v8535
    %v8635 = vunpack.c.l.b16 %v8536
    %v8636 = vunpack.c.h.b16 %v8536
    %v8637 = vunpack.c.l.b16 %v8537
    %v8638 = vunpack.c.h.b16 %v8537
    %v8639 = vunpack.c.l.b16 %v8538
    %v8640 = vunpack.c.h.b16 %v8538
    %v8641 = vunpack.c.l.b16 %v8539
    %v8642 = vunpack.c.h.b16 %v8539
    %v8643 = vunpack.c.l.b16 %v8540
    %v8644 = vunpack.c.h.b16 %v8540
    %v8645 = vunpack.c.l.b16 %v8541
    %v8646 = vunpack.c.h.b16 %v8541
    %v8647 = vunpack.c.l.b16 %v8542
    %v8648 = vunpack.c.h.b16 %v8542
    %v8649 = vunpack.c.l.b16 %v8543
    %v8650 = vunpack.c.h.b16 %v8543
    %v8651 = vunpack.c.l.b16 %v8544
    %v8652 = vunpack.c.h.b16 %v8544
    %v8653 = vunpack.c.l.b16 %v8545
    %v8654 = vunpack.c.h.b16 %v8545
    %v8655 = vunpack.c.l.b16 %v8546
    %v8656 = vunpack.c.h.b16 %v8546
    %v8657 = vunpack.c.l.b16 %v8547
    %v8658 = vunpack.c.h.b16 %v8547
    %v8659 = vunpack.c.l.b16 %v8548
    %v8660 = vunpack.c.h.b16 %v8548
    %v8661 = vunpack.c.l.b16 %v8549
    %v8662 = vunpack.c.h.b16 %v8549
    %v8663 = vunpack.c.l.b16 %v8550
    %v8664 = vunpack.c.h.b16 %v8550
    %v8665 = vunpack.c.l.b16 %v8551
    %v8666 = vunpack.c.h.b16 %v8551
    %v8667 = vunpack.c.l.b16 %v8552
    %v8668 = vunpack.c.h.b16 %v8552
    %v8669 = vunpack.c.l.b16 %v8553
    %v8670 = vunpack.c.h.b16 %v8553
    %v8671 = vunpack.c.l.b16 %v8554
    %v8672 = vunpack.c.h.b16 %v8554
    %v8673 = vunpack.c.l.b16 %v8555
    %v8674 = vunpack.c.h.b16 %v8555
    %v8675 = vunpack.c.l.b16 %v8556
    %v8676 = vunpack.c.h.b16 %v8556
    %v8677 = vunpack.c.l.b16 %v8557
    %v8678 = vunpack.c.h.b16 %v8557
    %v8679 = vunpack.c.l.b16 %v8558
    %v8680 = vunpack.c.h.b16 %v8558
    %v8681 = vunpack.c.l.b16 %v8559
    %v8682 = vunpack.c.h.b16 %v8559
    %v8683 = vunpack.c.l.b16 %v8560
    %v8684 = vunpack.c.h.b16 %v8560
    %v8685 = vunpack.c.l.b16 %v8561
    %v8686 = vunpack.c.h.b16 %v8561
    %v8687 = vpack.c.b16 %v8609, %v8607
    %v8688 = vpack.c.b16 %v8610, %v8608
    %v8689 = vpack.c.b16 %v8613, %v8611
    %v8690 = vpack.c.b16 %v8614, %v8612
    %v8691 = vpack.c.b16 %v8617, %v8615
    %v8692 = vpack.c.b16 %v8618, %v8616
    %v8693 = vpack.c.b16 %v8621, %v8619
    %v8694 = vpack.c.b16 %v8622, %v8620
    %v8695 = vpack.c.b16 %v8625, %v8623
    %v8696 = vpack.c.b16 %v8626, %v8624
    %v8697 = vpack.c.b16 %v8629, %v8627
    %v8698 = vpack.c.b16 %v8630, %v8628
    %v8699 = vpack.c.b16 %v8633, %v8631
    %v8700 = vpack.c.b16 %v8634, %v8632
    %v8701 = vpack.c.b16 %v8637, %v8635
    %v8702 = vpack.c.b16 %v8638, %v8636
    %v8703 = vpack.c.b16 %v8641, %v8639
    %v8704 = vpack.c.b16 %v8642, %v8640
    %v8705 = vpack.c.b16 %v8645, %v8643
    %v8706 = vpack.c.b16 %v8646, %v8644
    %v8707 = vpack.c.b16 %v8649, %v8647
    %v8708 = vpack.c.b16 %v8650, %v8648
    %v8709 = vpack.c.b16 %v8653, %v8651
    %v8710 = vpack.c.b16 %v8654, %v8652
    %v8711 = vpack.c.b16 %v8657, %v8655
    %v8712 = vpack.c.b16 %v8658, %v8656
    %v8713 = vpack.c.b16 %v8661, %v8659
    %v8714 = vpack.c.b16 %v8662, %v8660
    %v8715 = vpack.c.b16 %v8665, %v8663
    %v8716 = vpack.c.b16 %v8666, %v8664
    %v8717 = vpack.c.b16 %v8669, %v8667
    %v8718 = vpack.c.b16 %v8670, %v8668
    %v8719 = vpack.c.b16 %v8673, %v8671
    %v8720 = vpack.c.b16 %v8674, %v8672
    %v8721 = vpack.c.b16 %v8677, %v8675
    %v8722 = vpack.c.b16 %v8678, %v8676
    %v8723 = vpack.c.b16 %v8681, %v8679
    %v8724 = vpack.c.b16 %v8682, %v8680
    %v8725 = vpack.c.b16 %v8685, %v8683
    %v8726 = vpack.c.b16 %v8686, %v8684
    %v8768 = vsel %vm5477, %v8564, 0
    %8770 = vmatprep.subr.bf16.mxu0 %v8688
    %8771 = vmatpush1.bf16.msra.mxu0 %v8687
    %8772 = vmatprep.subr.bf16.mxu0 %v8690
    %8773 = vmatpush1.bf16.msra.mxu0 %v8689
    %8774 = vmatprep.subr.bf16.mxu0 %v8692
    %8775 = vmatpush1.bf16.msra.mxu0 %v8691
    %8776 = vmatprep.subr.bf16.mxu0 %v8694
    %8777 = vmatpush1.bf16.msra.mxu0 %v8693
    %8778 = vmatprep.subr.bf16.mxu0 %v8696
    %8779 = vmatpush1.bf16.msra.mxu0 %v8695
    %8780 = vmatprep.subr.bf16.mxu0 %v8698
    %8781 = vmatpush1.bf16.msra.mxu0 %v8697
    %8782 = vmatprep.subr.bf16.mxu0 %v8700
    %8783 = vmatpush1.bf16.msra.mxu0 %v8699
    %8784 = vmatprep.subr.bf16.mxu0 %v8702
    %8785 = vmatpush1.bf16.msra.mxu0 %v8701
    %8786 = vmatprep.subr.bf16.mxu0 %v8704
    %8787 = vmatpush1.bf16.msra.mxu0 %v8703
    %8788 = vmatprep.subr.bf16.mxu0 %v8706
    %8789 = vmatpush1.bf16.msra.mxu0 %v8705
    %8790 = vmatprep.subr.bf16.mxu0 %v8708
    %8791 = vmatpush1.bf16.msra.mxu0 %v8707
    %8792 = vmatprep.subr.bf16.mxu0 %v8710
    %8793 = vmatpush1.bf16.msra.mxu0 %v8709
    %8794 = vmatprep.subr.bf16.mxu0 %v8712
    %8795 = vmatpush1.bf16.msra.mxu0 %v8711
    %8796 = vmatprep.subr.bf16.mxu0 %v8714
    %8797 = vmatpush1.bf16.msra.mxu0 %v8713
    %8798 = vmatprep.subr.bf16.mxu0 %v8716
    %8799 = vmatpush1.bf16.msra.mxu0 %v8715
    %8800 = vmatprep.subr.bf16.mxu0 %v8718
    %8801 = vmatpush1.bf16.msra.mxu0 %v8717
    %8802 = vmatprep.mubr.bf16.mxu0 %v8563
    %8803 = vmatmul.mubr.bf16.gmra.mrb[0].mxu0 %v8562
    %v8804 = vpop.f32.mrb[0].mxu0
    %v8805 = vadd.f32 0.0, %v8804
    %v8806 = vpop.f32.mrb[0].mxu0
    %v8807 = vadd.f32 0.0, %v8806
    %v8808 = vpop.f32.mrb[0].mxu0
    %v8809 = vpop.f32.mrb[0].mxu0
    %8810 = vdwg.mxu0
    %8811 = vmatprep.subr.bf16.mxu0 %v8720
    %8812 = vmatpush1.bf16.msra.mxu0 %v8719
    %8813 = vmatprep.subr.bf16.mxu0 %v8722
    %8814 = vmatpush1.bf16.msra.mxu0 %v8721
    %8815 = vmatprep.subr.bf16.mxu0 %v8724
    %8816 = vmatpush1.bf16.msra.mxu0 %v8723
    %8817 = vmatprep.subr.bf16.mxu0 %v8726
    %8818 = vmatpush1.bf16.msra.mxu0 %v8725
    %8819 = vmatprep.subr.bf16.mxu0 0
    %8820 = vmatpush1.bf16.msra.mxu0 0
    %8821 = vmatprep.subr.bf16.mxu0 0
    %8822 = vmatpush1.bf16.msra.mxu0 0
    %8823 = vmatprep.subr.bf16.mxu0 0
    %8824 = vmatpush1.bf16.msra.mxu0 0
    %8825 = vmatprep.subr.bf16.mxu0 0
    %8826 = vmatpush1.bf16.msra.mxu0 0
    %8827 = vmatprep.subr.bf16.mxu0 0
    %8828 = vmatpush1.bf16.msra.mxu0 0
    %8829 = vmatprep.subr.bf16.mxu0 0
    %8830 = vmatpush1.bf16.msra.mxu0 0
    %8831 = vmatprep.subr.bf16.mxu0 0
    %8832 = vmatpush1.bf16.msra.mxu0 0
    %8833 = vmatprep.subr.bf16.mxu0 0
    %8834 = vmatpush1.bf16.msra.mxu0 0
    %8835 = vmatprep.subr.bf16.mxu0 0
    %8836 = vmatpush1.bf16.msra.mxu0 0
    %8837 = vmatprep.subr.bf16.mxu0 0
    %8838 = vmatpush1.bf16.msra.mxu0 0
    %8839 = vmatprep.subr.bf16.mxu0 0
    %8840 = vmatpush1.bf16.msra.mxu0 0
    %8841 = vmatprep.subr.bf16.mxu0 0
    %8842 = vmatpush1.bf16.msra.mxu0 0
    %8843 = vmatprep.mubr.bf16.mxu0 0
    %8844 = vmatmul.mubr.bf16.gmra.mrb[0].mxu0 %v8768
    %v8845 = vpop.f32.mrb[0].mxu0
    %v8846 = vadd.f32 %v8805, %v8845
    %v8847 = vpop.f32.mrb[0].mxu0
    %v8848 = vadd.f32 %v8807, %v8847
    %v8849 = vpop.f32.mrb[0].mxu0
    %v8850 = vpop.f32.mrb[0].mxu0
    %8851 = vdwg.mxu0
    %v8852 = vrot.slane %v7818, 1
    %v8853 = vrot.slane %v7819, 1
    %v8854 = vrot.slane %v7820, 1
    %v8897 = vunpack.c.l.b16 %v7862
    %v8898 = vunpack.c.h.b16 %v7862
    %v8899 = vunpack.c.l.b16 %v7863
    %v8900 = vunpack.c.h.b16 %v7863
    %v8901 = vunpack.c.l.b16 %v7864
    %v8902 = vunpack.c.h.b16 %v7864
    %v8903 = vunpack.c.l.b16 %v7865
    %v8904 = vunpack.c.h.b16 %v7865
    %v8905 = vunpack.c.l.b16 %v7866
    %v8906 = vunpack.c.h.b16 %v7866
    %v8907 = vunpack.c.l.b16 %v7867
    %v8908 = vunpack.c.h.b16 %v7867
    %v8909 = vunpack.c.l.b16 %v7868
    %v8910 = vunpack.c.h.b16 %v7868
    %v8911 = vunpack.c.l.b16 %v7869
    %v8912 = vunpack.c.h.b16 %v7869
    %v8913 = vunpack.c.l.b16 %v7870
    %v8914 = vunpack.c.h.b16 %v7870
    %v8915 = vunpack.c.l.b16 %v7871
    %v8916 = vunpack.c.h.b16 %v7871
    %v8917 = vunpack.c.l.b16 %v7872
    %v8918 = vunpack.c.h.b16 %v7872
    %v8919 = vunpack.c.l.b16 %v7873
    %v8920 = vunpack.c.h.b16 %v7873
    %v8921 = vunpack.c.l.b16 %v7874
    %v8922 = vunpack.c.h.b16 %v7874
    %v8923 = vunpack.c.l.b16 %v7875
    %v8924 = vunpack.c.h.b16 %v7875
    %v8925 = vunpack.c.l.b16 %v7876
    %v8926 = vunpack.c.h.b16 %v7876
    %v8927 = vunpack.c.l.b16 %v7877
    %v8928 = vunpack.c.h.b16 %v7877
    %v8929 = vunpack.c.l.b16 %v7878
    %v8930 = vunpack.c.h.b16 %v7878
    %v8931 = vunpack.c.l.b16 %v7879
    %v8932 = vunpack.c.h.b16 %v7879
    %v8933 = vunpack.c.l.b16 %v7880
    %v8934 = vunpack.c.h.b16 %v7880
    %v8935 = vunpack.c.l.b16 %v7881
    %v8936 = vunpack.c.h.b16 %v7881
    %v8937 = vunpack.c.l.b16 %v7882
    %v8938 = vunpack.c.h.b16 %v7882
    %v8939 = vunpack.c.l.b16 %v7883
    %v8940 = vunpack.c.h.b16 %v7883
    %v8941 = vunpack.c.l.b16 %v7884
    %v8942 = vunpack.c.h.b16 %v7884
    %v8943 = vunpack.c.l.b16 %v7885
    %v8944 = vunpack.c.h.b16 %v7885
    %v8945 = vunpack.c.l.b16 %v7886
    %v8946 = vunpack.c.h.b16 %v7886
    %v8947 = vunpack.c.l.b16 %v7887
    %v8948 = vunpack.c.h.b16 %v7887
    %v8949 = vunpack.c.l.b16 %v7888
    %v8950 = vunpack.c.h.b16 %v7888
    %v8951 = vunpack.c.l.b16 %v7889
    %v8952 = vunpack.c.h.b16 %v7889
    %v8953 = vunpack.c.l.b16 %v7890
    %v8954 = vunpack.c.h.b16 %v7890
    %v8955 = vunpack.c.l.b16 %v7891
    %v8956 = vunpack.c.h.b16 %v7891
    %v8957 = vunpack.c.l.b16 %v7892
    %v8958 = vunpack.c.h.b16 %v7892
    %v8959 = vunpack.c.l.b16 %v7893
    %v8960 = vunpack.c.h.b16 %v7893
    %v8961 = vunpack.c.l.b16 %v7894
    %v8962 = vunpack.c.h.b16 %v7894
    %v8963 = vunpack.c.l.b16 %v7895
    %v8964 = vunpack.c.h.b16 %v7895
    %v8965 = vunpack.c.l.b16 %v7896
    %v8966 = vunpack.c.h.b16 %v7896
    %v8967 = vunpack.c.l.b16 %v7897
    %v8968 = vunpack.c.h.b16 %v7897
    %v8969 = vunpack.c.l.b16 %v7898
    %v8970 = vunpack.c.h.b16 %v7898
    %v8971 = vunpack.c.l.b16 %v7899
    %v8972 = vunpack.c.h.b16 %v7899
    %v8973 = vunpack.c.l.b16 %v7900
    %v8974 = vunpack.c.h.b16 %v7900
    %v8975 = vunpack.c.l.b16 %v7901
    %v8976 = vunpack.c.h.b16 %v7901
    %v8977 = vpack.c.b16 %v8899, %v8897
    %v8978 = vpack.c.b16 %v8900, %v8898
    %v8979 = vpack.c.b16 %v8903, %v8901
    %v8980 = vpack.c.b16 %v8904, %v8902
    %v8981 = vpack.c.b16 %v8907, %v8905
    %v8982 = vpack.c.b16 %v8908, %v8906
    %v8983 = vpack.c.b16 %v8911, %v8909
    %v8984 = vpack.c.b16 %v8912, %v8910
    %v8985 = vpack.c.b16 %v8915, %v8913
    %v8986 = vpack.c.b16 %v8916, %v8914
    %v8987 = vpack.c.b16 %v8919, %v8917
    %v8988 = vpack.c.b16 %v8920, %v8918
    %v8989 = vpack.c.b16 %v8923, %v8921
    %v8990 = vpack.c.b16 %v8924, %v8922
    %v8991 = vpack.c.b16 %v8927, %v8925
    %v8992 = vpack.c.b16 %v8928, %v8926
    %v8993 = vpack.c.b16 %v8931, %v8929
    %v8994 = vpack.c.b16 %v8932, %v8930
    %v8995 = vpack.c.b16 %v8935, %v8933
    %v8996 = vpack.c.b16 %v8936, %v8934
    %v8997 = vpack.c.b16 %v8939, %v8937
    %v8998 = vpack.c.b16 %v8940, %v8938
    %v8999 = vpack.c.b16 %v8943, %v8941
    %v9000 = vpack.c.b16 %v8944, %v8942
    %v9001 = vpack.c.b16 %v8947, %v8945
    %v9002 = vpack.c.b16 %v8948, %v8946
    %v9003 = vpack.c.b16 %v8951, %v8949
    %v9004 = vpack.c.b16 %v8952, %v8950
    %v9005 = vpack.c.b16 %v8955, %v8953
    %v9006 = vpack.c.b16 %v8956, %v8954
    %v9007 = vpack.c.b16 %v8959, %v8957
    %v9008 = vpack.c.b16 %v8960, %v8958
    %v9009 = vpack.c.b16 %v8963, %v8961
    %v9010 = vpack.c.b16 %v8964, %v8962
    %v9011 = vpack.c.b16 %v8967, %v8965
    %v9012 = vpack.c.b16 %v8968, %v8966
    %v9013 = vpack.c.b16 %v8971, %v8969
    %v9014 = vpack.c.b16 %v8972, %v8970
    %v9015 = vpack.c.b16 %v8975, %v8973
    %v9016 = vpack.c.b16 %v8976, %v8974
    %v9058 = vsel %vm5477, %v8854, 0
    %9060 = vmatprep.subr.bf16.mxu0 %v8978
    %9061 = vmatpush1.bf16.msra.mxu0 %v8977
    %9062 = vmatprep.subr.bf16.mxu0 %v8980
    %9063 = vmatpush1.bf16.msra.mxu0 %v8979
    %9064 = vmatprep.subr.bf16.mxu0 %v8982
    %9065 = vmatpush1.bf16.msra.mxu0 %v8981
    %9066 = vmatprep.subr.bf16.mxu0 %v8984
    %9067 = vmatpush1.bf16.msra.mxu0 %v8983
    %9068 = vmatprep.subr.bf16.mxu0 %v8986
    %9069 = vmatpush1.bf16.msra.mxu0 %v8985
    %9070 = vmatprep.subr.bf16.mxu0 %v8988
    %9071 = vmatpush1.bf16.msra.mxu0 %v8987
    %9072 = vmatprep.subr.bf16.mxu0 %v8990
    %9073 = vmatpush1.bf16.msra.mxu0 %v8989
    %9074 = vmatprep.subr.bf16.mxu0 %v8992
    %9075 = vmatpush1.bf16.msra.mxu0 %v8991
    %9076 = vmatprep.subr.bf16.mxu0 %v8994
    %9077 = vmatpush1.bf16.msra.mxu0 %v8993
    %9078 = vmatprep.subr.bf16.mxu0 %v8996
    %9079 = vmatpush1.bf16.msra.mxu0 %v8995
    %9080 = vmatprep.subr.bf16.mxu0 %v8998
    %9081 = vmatpush1.bf16.msra.mxu0 %v8997
    %9082 = vmatprep.subr.bf16.mxu0 %v9000
    %9083 = vmatpush1.bf16.msra.mxu0 %v8999
    %9084 = vmatprep.subr.bf16.mxu0 %v9002
    %9085 = vmatpush1.bf16.msra.mxu0 %v9001
    %9086 = vmatprep.subr.bf16.mxu0 %v9004
    %9087 = vmatpush1.bf16.msra.mxu0 %v9003
    %9088 = vmatprep.subr.bf16.mxu0 %v9006
    %9089 = vmatpush1.bf16.msra.mxu0 %v9005
    %9090 = vmatprep.subr.bf16.mxu0 %v9008
    %9091 = vmatpush1.bf16.msra.mxu0 %v9007
    %9092 = vmatprep.mubr.bf16.mxu0 %v8853
    %9093 = vmatmul.mubr.bf16.gmra.mrb[0].mxu0 %v8852
    %v9094 = vpop.f32.mrb[0].mxu0
    %v9095 = vadd.f32 %v8846, %v9094
    %v9096 = vpop.f32.mrb[0].mxu0
    %v9097 = vadd.f32 %v8848, %v9096
    %v9098 = vpop.f32.mrb[0].mxu0
    %v9099 = vpop.f32.mrb[0].mxu0
    %9100 = vdwg.mxu0
    %9101 = vmatprep.subr.bf16.mxu0 %v9010
    %9102 = vmatpush1.bf16.msra.mxu0 %v9009
    %9103 = vmatprep.subr.bf16.mxu0 %v9012
    %9104 = vmatpush1.bf16.msra.mxu0 %v9011
    %9105 = vmatprep.subr.bf16.mxu0 %v9014
    %9106 = vmatpush1.bf16.msra.mxu0 %v9013
    %9107 = vmatprep.subr.bf16.mxu0 %v9016
    %9108 = vmatpush1.bf16.msra.mxu0 %v9015
    %9109 = vmatprep.subr.bf16.mxu0 0
    %9110 = vmatpush1.bf16.msra.mxu0 0
    %9111 = vmatprep.subr.bf16.mxu0 0
    %9112 = vmatpush1.bf16.msra.mxu0 0
    %9113 = vmatprep.subr.bf16.mxu0 0
    %9114 = vmatpush1.bf16.msra.mxu0 0
    %9115 = vmatprep.subr.bf16.mxu0 0
    %9116 = vmatpush1.bf16.msra.mxu0 0
    %9117 = vmatprep.subr.bf16.mxu0 0
    %9118 = vmatpush1.bf16.msra.mxu0 0
    %9119 = vmatprep.subr.bf16.mxu0 0
    %9120 = vmatpush1.bf16.msra.mxu0 0
    %9121 = vmatprep.subr.bf16.mxu0 0
    %9122 = vmatpush1.bf16.msra.mxu0 0
    %9123 = vmatprep.subr.bf16.mxu0 0
    %9124 = vmatpush1.bf16.msra.mxu0 0
    %9125 = vmatprep.subr.bf16.mxu0 0
    %9126 = vmatpush1.bf16.msra.mxu0 0
    %9127 = vmatprep.subr.bf16.mxu0 0
    %9128 = vmatpush1.bf16.msra.mxu0 0
    %9129 = vmatprep.subr.bf16.mxu0 0
    %9130 = vmatpush1.bf16.msra.mxu0 0
    %9131 = vmatprep.subr.bf16.mxu0 0
    %9132 = vmatpush1.bf16.msra.mxu0 0
    %9133 = vmatprep.mubr.bf16.mxu0 0
    %9134 = vmatmul.mubr.bf16.gmra.mrb[0].mxu0 %v9058
    %v9135 = vpop.f32.mrb[0].mxu0
    %v9136 = vadd.f32 %v9095, %v9135
    %v9137 = vpop.f32.mrb[0].mxu0
    %v9138 = vadd.f32 %v9097, %v9137
    %v9139 = vpop.f32.mrb[0].mxu0
    %v9140 = vpop.f32.mrb[0].mxu0
    %9141 = vdwg.mxu0
    %v9142 = vpack.c.bf16 %v7815, %v7815
    %v9143 = vpack.c.bf16 %v7816, %v7816
    %v9144 = vpack.c.bf16 %v7817, %v7817
    %s9145 = scalar_lea.vmem %s6, 1280
    %v9146 = vld [vmem:[%s9145] sm:$0xff]
    %v9147 = vld [vmem:[%s9145 + $0x8] sm:$0xff]
    %v9148 = vld [vmem:[%s9145 + $0x10] sm:$0xff]
    %v9149 = vld [vmem:[%s9145 + $0x18] sm:$0xff]
    %v9150 = vld [vmem:[%s9145 + $0x20] sm:$0xff]
    %v9151 = vld [vmem:[%s9145 + $0x28] sm:$0xff]
    %v9152 = vld [vmem:[%s9145 + $0x30] sm:$0xff]
    %v9153 = vld [vmem:[%s9145 + $0x38] sm:$0xff]
    %v9154 = vld [vmem:[%s9145 + $0x40] sm:$0xff]
    %v9155 = vld [vmem:[%s9145 + $0x48] sm:$0xff]
    %v9156 = vld [vmem:[%s9145 + $0x50] sm:$0xff]
    %v9157 = vld [vmem:[%s9145 + $0x58] sm:$0xff]
    %v9158 = vld [vmem:[%s9145 + $0x60] sm:$0xff]
    %v9159 = vld [vmem:[%s9145 + $0x68] sm:$0xff]
    %v9160 = vld [vmem:[%s9145 + $0x70] sm:$0xff]
    %v9161 = vld [vmem:[%s9145 + $0x78] sm:$0xff]
    %v9162 = vld [vmem:[%s9145 + $0x80] sm:$0xff]
    %v9163 = vld [vmem:[%s9145 + $0x88] sm:$0xff]
    %v9164 = vld [vmem:[%s9145 + $0x90] sm:$0xff]
    %v9165 = vld [vmem:[%s9145 + $0x98] sm:$0xff]
    %v9166 = vld [vmem:[%s9145 + $0xa0] sm:$0xff]
    %v9167 = vld [vmem:[%s9145 + $0xa8] sm:$0xff]
    %v9168 = vld [vmem:[%s9145 + $0xb0] sm:$0xff]
    %v9169 = vld [vmem:[%s9145 + $0xb8] sm:$0xff]
    %v9170 = vld [vmem:[%s9145 + $0xc0] sm:$0xff]
    %v9171 = vld [vmem:[%s9145 + $0xc8] sm:$0xff]
    %v9172 = vld [vmem:[%s9145 + $0xd0] sm:$0xff]
    %v9173 = vld [vmem:[%s9145 + $0xd8] sm:$0xff]
    %v9174 = vld [vmem:[%s9145 + $0xe0] sm:$0xff]
    %v9175 = vld [vmem:[%s9145 + $0xe8] sm:$0xff]
    %v9176 = vld [vmem:[%s9145 + $0xf0] sm:$0xff]
    %v9177 = vld [vmem:[%s9145 + $0xf8] sm:$0xff]
    %v9178 = vld [vmem:[%s9145 + $0x100] sm:$0xff]
    %v9179 = vld [vmem:[%s9145 + $0x108] sm:$0xff]
    %v9180 = vld [vmem:[%s9145 + $0x110] sm:$0xff]
    %v9181 = vld [vmem:[%s9145 + $0x118] sm:$0xff]
    %v9182 = vld [vmem:[%s9145 + $0x120] sm:$0xff]
    %v9183 = vld [vmem:[%s9145 + $0x128] sm:$0xff]
    %v9184 = vld [vmem:[%s9145 + $0x130] sm:$0xff]
    %v9185 = vld [vmem:[%s9145 + $0x138] sm:$0xff]
    %v9226 = vunpack.c.l.b16 %v9146
    %v9227 = vunpack.c.h.b16 %v9146
    %v9228 = vunpack.c.l.b16 %v9147
    %v9229 = vunpack.c.h.b16 %v9147
    %v9230 = vunpack.c.l.b16 %v9148
    %v9231 = vunpack.c.h.b16 %v9148
    %v9232 = vunpack.c.l.b16 %v9149
    %v9233 = vunpack.c.h.b16 %v9149
    %v9234 = vunpack.c.l.b16 %v9150
    %v9235 = vunpack.c.h.b16 %v9150
    %v9236 = vunpack.c.l.b16 %v9151
    %v9237 = vunpack.c.h.b16 %v9151
    %v9238 = vunpack.c.l.b16 %v9152
    %v9239 = vunpack.c.h.b16 %v9152
    %v9240 = vunpack.c.l.b16 %v9153
    %v9241 = vunpack.c.h.b16 %v9153
    %v9242 = vunpack.c.l.b16 %v9154
    %v9243 = vunpack.c.h.b16 %v9154
    %v9244 = vunpack.c.l.b16 %v9155
    %v9245 = vunpack.c.h.b16 %v9155
    %v9246 = vunpack.c.l.b16 %v9156
    %v9247 = vunpack.c.h.b16 %v9156
    %v9248 = vunpack.c.l.b16 %v9157
    %v9249 = vunpack.c.h.b16 %v9157
    %v9250 = vunpack.c.l.b16 %v9158
    %v9251 = vunpack.c.h.b16 %v9158
    %v9252 = vunpack.c.l.b16 %v9159
    %v9253 = vunpack.c.h.b16 %v9159
    %v9254 = vunpack.c.l.b16 %v9160
    %v9255 = vunpack.c.h.b16 %v9160
    %v9256 = vunpack.c.l.b16 %v9161
    %v9257 = vunpack.c.h.b16 %v9161
    %v9258 = vunpack.c.l.b16 %v9162
    %v9259 = vunpack.c.h.b16 %v9162
    %v9260 = vunpack.c.l.b16 %v9163
    %v9261 = vunpack.c.h.b16 %v9163
    %v9262 = vunpack.c.l.b16 %v9164
    %v9263 = vunpack.c.h.b16 %v9164
    %v9264 = vunpack.c.l.b16 %v9165
    %v9265 = vunpack.c.h.b16 %v9165
    %v9266 = vunpack.c.l.b16 %v9166
    %v9267 = vunpack.c.h.b16 %v9166
    %v9268 = vunpack.c.l.b16 %v9167
    %v9269 = vunpack.c.h.b16 %v9167
    %v9270 = vunpack.c.l.b16 %v9168
    %v9271 = vunpack.c.h.b16 %v9168
    %v9272 = vunpack.c.l.b16 %v9169
    %v9273 = vunpack.c.h.b16 %v9169
    %v9274 = vunpack.c.l.b16 %v9170
    %v9275 = vunpack.c.h.b16 %v9170
    %v9276 = vunpack.c.l.b16 %v9171
    %v9277 = vunpack.c.h.b16 %v9171
    %v9278 = vunpack.c.l.b16 %v9172
    %v9279 = vunpack.c.h.b16 %v9172
    %v9280 = vunpack.c.l.b16 %v9173
    %v9281 = vunpack.c.h.b16 %v9173
    %v9282 = vunpack.c.l.b16 %v9174
    %v9283 = vunpack.c.h.b16 %v9174
    %v9284 = vunpack.c.l.b16 %v9175
    %v9285 = vunpack.c.h.b16 %v9175
    %v9286 = vunpack.c.l.b16 %v9176
    %v9287 = vunpack.c.h.b16 %v9176
    %v9288 = vunpack.c.l.b16 %v9177
    %v9289 = vunpack.c.h.b16 %v9177
    %v9290 = vunpack.c.l.b16 %v9178
    %v9291 = vunpack.c.h.b16 %v9178
    %v9292 = vunpack.c.l.b16 %v9179
    %v9293 = vunpack.c.h.b16 %v9179
    %v9294 = vunpack.c.l.b16 %v9180
    %v9295 = vunpack.c.h.b16 %v9180
    %v9296 = vunpack.c.l.b16 %v9181
    %v9297 = vunpack.c.h.b16 %v9181
    %v9298 = vunpack.c.l.b16 %v9182
    %v9299 = vunpack.c.h.b16 %v9182
    %v9300 = vunpack.c.l.b16 %v9183
    %v9301 = vunpack.c.h.b16 %v9183
    %v9302 = vunpack.c.l.b16 %v9184
    %v9303 = vunpack.c.h.b16 %v9184
    %v9304 = vunpack.c.l.b16 %v9185
    %v9305 = vunpack.c.h.b16 %v9185
    %v9306 = vpack.c.b16 %v9228, %v9226
    %v9307 = vpack.c.b16 %v9229, %v9227
    %v9308 = vpack.c.b16 %v9232, %v9230
    %v9309 = vpack.c.b16 %v9233, %v9231
    %v9310 = vpack.c.b16 %v9236, %v9234
    %v9311 = vpack.c.b16 %v9237, %v9235
    %v9312 = vpack.c.b16 %v9240, %v9238
    %v9313 = vpack.c.b16 %v9241, %v9239
    %v9314 = vpack.c.b16 %v9244, %v9242
    %v9315 = vpack.c.b16 %v9245, %v9243
    %v9316 = vpack.c.b16 %v9248, %v9246
    %v9317 = vpack.c.b16 %v9249, %v9247
    %v9318 = vpack.c.b16 %v9252, %v9250
    %v9319 = vpack.c.b16 %v9253, %v9251
    %v9320 = vpack.c.b16 %v9256, %v9254
    %v9321 = vpack.c.b16 %v9257, %v9255
    %v9322 = vpack.c.b16 %v9260, %v9258
    %v9323 = vpack.c.b16 %v9261, %v9259
    %v9324 = vpack.c.b16 %v9264, %v9262
    %v9325 = vpack.c.b16 %v9265, %v9263
    %v9326 = vpack.c.b16 %v9268, %v9266
    %v9327 = vpack.c.b16 %v9269, %v9267
    %v9328 = vpack.c.b16 %v9272, %v9270
    %v9329 = vpack.c.b16 %v9273, %v9271
    %v9330 = vpack.c.b16 %v9276, %v9274
    %v9331 = vpack.c.b16 %v9277, %v9275
    %v9332 = vpack.c.b16 %v9280, %v9278
    %v9333 = vpack.c.b16 %v9281, %v9279
    %v9334 = vpack.c.b16 %v9284, %v9282
    %v9335 = vpack.c.b16 %v9285, %v9283
    %v9336 = vpack.c.b16 %v9288, %v9286
    %v9337 = vpack.c.b16 %v9289, %v9287
    %v9338 = vpack.c.b16 %v9292, %v9290
    %v9339 = vpack.c.b16 %v9293, %v9291
    %v9340 = vpack.c.b16 %v9296, %v9294
    %v9341 = vpack.c.b16 %v9297, %v9295
    %v9342 = vpack.c.b16 %v9300, %v9298
    %v9343 = vpack.c.b16 %v9301, %v9299
    %v9344 = vpack.c.b16 %v9304, %v9302
    %v9345 = vpack.c.b16 %v9305, %v9303
    %v9387 = vsel %vm5477, %v9144, 0
    %9389 = vmatprep.subr.bf16.mxu0 %v9307
    %9390 = vmatpush1.bf16.msra.mxu0 %v9306
    %9391 = vmatprep.subr.bf16.mxu0 %v9309
    %9392 = vmatpush1.bf16.msra.mxu0 %v9308
    %9393 = vmatprep.subr.bf16.mxu0 %v9311
    %9394 = vmatpush1.bf16.msra.mxu0 %v9310
    %9395 = vmatprep.subr.bf16.mxu0 %v9313
    %9396 = vmatpush1.bf16.msra.mxu0 %v9312
    %9397 = vmatprep.subr.bf16.mxu0 %v9315
    %9398 = vmatpush1.bf16.msra.mxu0 %v9314
    %9399 = vmatprep.subr.bf16.mxu0 %v9317
    %9400 = vmatpush1.bf16.msra.mxu0 %v9316
    %9401 = vmatprep.subr.bf16.mxu0 %v9319
    %9402 = vmatpush1.bf16.msra.mxu0 %v9318
    %9403 = vmatprep.subr.bf16.mxu0 %v9321
    %9404 = vmatpush1.bf16.msra.mxu0 %v9320
    %9405 = vmatprep.subr.bf16.mxu0 %v9323
    %9406 = vmatpush1.bf16.msra.mxu0 %v9322
    %9407 = vmatprep.subr.bf16.mxu0 %v9325
    %9408 = vmatpush1.bf16.msra.mxu0 %v9324
    %9409 = vmatprep.subr.bf16.mxu0 %v9327
    %9410 = vmatpush1.bf16.msra.mxu0 %v9326
    %9411 = vmatprep.subr.bf16.mxu0 %v9329
    %9412 = vmatpush1.bf16.msra.mxu0 %v9328
    %9413 = vmatprep.subr.bf16.mxu0 %v9331
    %9414 = vmatpush1.bf16.msra.mxu0 %v9330
    %9415 = vmatprep.subr.bf16.mxu0 %v9333
    %9416 = vmatpush1.bf16.msra.mxu0 %v9332
    %9417 = vmatprep.subr.bf16.mxu0 %v9335
    %9418 = vmatpush1.bf16.msra.mxu0 %v9334
    %9419 = vmatprep.subr.bf16.mxu0 %v9337
    %9420 = vmatpush1.bf16.msra.mxu0 %v9336
    %9421 = vmatprep.mubr.bf16.mxu0 %v9143
    %9422 = vmatmul.mubr.bf16.gmra.mrb[0].mxu0 %v9142
    %v9423 = vpop.f32.mrb[0].mxu0
    %v9424 = vadd.f32 0.0, %v9423
    %v9425 = vpop.f32.mrb[0].mxu0
    %v9426 = vadd.f32 0.0, %v9425
    %v9427 = vpop.f32.mrb[0].mxu0
    %v9428 = vpop.f32.mrb[0].mxu0
    %9429 = vdwg.mxu0
    %9430 = vmatprep.subr.bf16.mxu0 %v9339
    %9431 = vmatpush1.bf16.msra.mxu0 %v9338
    %9432 = vmatprep.subr.bf16.mxu0 %v9341
    %9433 = vmatpush1.bf16.msra.mxu0 %v9340
    %9434 = vmatprep.subr.bf16.mxu0 %v9343
    %9435 = vmatpush1.bf16.msra.mxu0 %v9342
    %9436 = vmatprep.subr.bf16.mxu0 %v9345
    %9437 = vmatpush1.bf16.msra.mxu0 %v9344
    %9438 = vmatprep.subr.bf16.mxu0 0
    %9439 = vmatpush1.bf16.msra.mxu0 0
    %9440 = vmatprep.subr.bf16.mxu0 0
    %9441 = vmatpush1.bf16.msra.mxu0 0
    %9442 = vmatprep.subr.bf16.mxu0 0
    %9443 = vmatpush1.bf16.msra.mxu0 0
    %9444 = vmatprep.subr.bf16.mxu0 0
    %9445 = vmatpush1.bf16.msra.mxu0 0
    %9446 = vmatprep.subr.bf16.mxu0 0
    %9447 = vmatpush1.bf16.msra.mxu0 0
    %9448 = vmatprep.subr.bf16.mxu0 0
    %9449 = vmatpush1.bf16.msra.mxu0 0
    %9450 = vmatprep.subr.bf16.mxu0 0
    %9451 = vmatpush1.bf16.msra.mxu0 0
    %9452 = vmatprep.subr.bf16.mxu0 0
    %9453 = vmatpush1.bf16.msra.mxu0 0
    %9454 = vmatprep.subr.bf16.mxu0 0
    %9455 = vmatpush1.bf16.msra.mxu0 0
    %9456 = vmatprep.subr.bf16.mxu0 0
    %9457 = vmatpush1.bf16.msra.mxu0 0
    %9458 = vmatprep.subr.bf16.mxu0 0
    %9459 = vmatpush1.bf16.msra.mxu0 0
    %9460 = vmatprep.subr.bf16.mxu0 0
    %9461 = vmatpush1.bf16.msra.mxu0 0
    %9462 = vmatprep.mubr.bf16.mxu0 0
    %9463 = vmatmul.mubr.bf16.gmra.mrb[0].mxu0 %v9387
    %v9464 = vpop.f32.mrb[0].mxu0
    %v9465 = vadd.f32 %v9424, %v9464
    %v9466 = vpop.f32.mrb[0].mxu0
    %v9467 = vadd.f32 %v9426, %v9466
    %v9468 = vpop.f32.mrb[0].mxu0
    %v9469 = vpop.f32.mrb[0].mxu0
    %9470 = vdwg.mxu0
    %v9471 = vadd.f32 %v8515, %v9465
    %v9472 = vadd.f32 %v8517, %v9467
    %v9473 = vadd.f32 %v9471, %v9136
    %v9474 = vadd.f32 %v9472, %v9138
    %v9475 = vld [vmem:[%s7] sm:$0x3]
    %v9477 = vlaneseq
    %v9478 = vshrl.u32 %v9477, 7
    %v9479 = vsub.s32 0, %v9478
    %v9480 = vrot.slane %v9475, %v9479
    %v9481 = vlaneseq
    %v9482 = vshrl.u32 %v9481, 7
    %v9483 = vsub.s32 1, %v9482
    %v9484 = vrot.slane %v9475, %v9483
    %v9487 = vadd.f32 %v9473, %v9480
    %v9488 = vadd.f32 %v9474, %v9484
    %v9489 = vmax.f32 %v9487, 0.0
    %v9490 = vmax.f32 %v9488, 0.0
    %v9491 = vpack.c.bf16 %v9489, %v9489
    %v9492 = vpack.c.bf16 %v9490, %v9490
    %v9493 = vld [vmem:[%s8] sm:$0xf]
    %v9494 = vld [vmem:[%s8 + $0x4] sm:$0xf]
    %v9495 = vld [vmem:[%s8 + $0x8] sm:$0xf]
    %v9496 = vld [vmem:[%s8 + $0xc] sm:$0xf]
    %v9497 = vld [vmem:[%s8 + $0x10] sm:$0xf]
    %v9498 = vld [vmem:[%s8 + $0x14] sm:$0xf]
    %v9499 = vld [vmem:[%s8 + $0x18] sm:$0xf]
    %v9500 = vld [vmem:[%s8 + $0x1c] sm:$0xf]
    %v9501 = vld [vmem:[%s8 + $0x20] sm:$0xf]
    %v9502 = vld [vmem:[%s8 + $0x24] sm:$0xf]
    %v9503 = vld [vmem:[%s8 + $0x28] sm:$0xf]
    %v9504 = vld [vmem:[%s8 + $0x2c] sm:$0xf]
    %v9505 = vld [vmem:[%s8 + $0x30] sm:$0xf]
    %v9506 = vld [vmem:[%s8 + $0x34] sm:$0xf]
    %v9507 = vld [vmem:[%s8 + $0x38] sm:$0xf]
    %v9508 = vld [vmem:[%s8 + $0x3c] sm:$0xf]
    %v9509 = vld [vmem:[%s8 + $0x40] sm:$0xf]
    %v9510 = vld [vmem:[%s8 + $0x44] sm:$0xf]
    %v9511 = vld [vmem:[%s8 + $0x48] sm:$0xf]
    %v9512 = vld [vmem:[%s8 + $0x4c] sm:$0xf]
    %v9513 = vld [vmem:[%s8 + $0x50] sm:$0xf]
    %v9514 = vld [vmem:[%s8 + $0x54] sm:$0xf]
    %v9515 = vld [vmem:[%s8 + $0x58] sm:$0xf]
    %v9516 = vld [vmem:[%s8 + $0x5c] sm:$0xf]
    %v9517 = vld [vmem:[%s8 + $0x60] sm:$0xf]
    %v9518 = vld [vmem:[%s8 + $0x64] sm:$0xf]
    %v9519 = vld [vmem:[%s8 + $0x68] sm:$0xf]
    %v9520 = vld [vmem:[%s8 + $0x6c] sm:$0xf]
    %v9521 = vld [vmem:[%s8 + $0x70] sm:$0xf]
    %v9522 = vld [vmem:[%s8 + $0x74] sm:$0xf]
    %v9523 = vld [vmem:[%s8 + $0x78] sm:$0xf]
    %v9524 = vld [vmem:[%s8 + $0x7c] sm:$0xf]
    %v9525 = vld [vmem:[%s9] sm:$0x1]
    %v9527 = vlaneseq
    %v9528 = vshrl.u32 %v9527, 7
    %v9529 = vsub.s32 0, %v9528
    %v9530 = vrot.slane %v9525, %v9529
    %v9564 = vunpack.c.l.b16 %v9493
    %v9565 = vunpack.c.l.b16 %v9494
    %v9566 = vunpack.c.l.b16 %v9495
    %v9567 = vunpack.c.l.b16 %v9496
    %v9568 = vunpack.c.l.b16 %v9497
    %v9569 = vunpack.c.l.b16 %v9498
    %v9570 = vunpack.c.l.b16 %v9499
    %v9571 = vunpack.c.l.b16 %v9500
    %v9572 = vunpack.c.l.b16 %v9501
    %v9573 = vunpack.c.l.b16 %v9502
    %v9574 = vunpack.c.l.b16 %v9503
    %v9575 = vunpack.c.l.b16 %v9504
    %v9576 = vunpack.c.l.b16 %v9505
    %v9577 = vunpack.c.l.b16 %v9506
    %v9578 = vunpack.c.l.b16 %v9507
    %v9579 = vunpack.c.l.b16 %v9508
    %v9580 = vunpack.c.l.b16 %v9509
    %v9581 = vunpack.c.l.b16 %v9510
    %v9582 = vunpack.c.l.b16 %v9511
    %v9583 = vunpack.c.l.b16 %v9512
    %v9584 = vunpack.c.l.b16 %v9513
    %v9585 = vunpack.c.l.b16 %v9514
    %v9586 = vunpack.c.l.b16 %v9515
    %v9587 = vunpack.c.l.b16 %v9516
    %v9588 = vunpack.c.l.b16 %v9517
    %v9589 = vunpack.c.l.b16 %v9518
    %v9590 = vunpack.c.l.b16 %v9519
    %v9591 = vunpack.c.l.b16 %v9520
    %v9592 = vunpack.c.l.b16 %v9521
    %v9593 = vunpack.c.l.b16 %v9522
    %v9594 = vunpack.c.l.b16 %v9523
    %v9595 = vunpack.c.l.b16 %v9524
    %v9596 = vpack.c.b16 %v9565, %v9564
    %v9597 = vpack.c.b16 %v9567, %v9566
    %v9598 = vpack.c.b16 %v9569, %v9568
    %v9599 = vpack.c.b16 %v9571, %v9570
    %v9600 = vpack.c.b16 %v9573, %v9572
    %v9601 = vpack.c.b16 %v9575, %v9574
    %v9602 = vpack.c.b16 %v9577, %v9576
    %v9603 = vpack.c.b16 %v9579, %v9578
    %v9604 = vpack.c.b16 %v9581, %v9580
    %v9605 = vpack.c.b16 %v9583, %v9582
    %v9606 = vpack.c.b16 %v9585, %v9584
    %v9607 = vpack.c.b16 %v9587, %v9586
    %v9608 = vpack.c.b16 %v9589, %v9588
    %v9609 = vpack.c.b16 %v9591, %v9590
    %v9610 = vpack.c.b16 %v9593, %v9592
    %v9611 = vpack.c.b16 %v9595, %v9594
    %9628 = vmatprep.subr.bf16.mxu0 0
    %9629 = vmatpush1.bf16.msra.mxu0 %v9596
    %9630 = vmatprep.subr.bf16.mxu0 0
    %9631 = vmatpush1.bf16.msra.mxu0 %v9597
    %9632 = vmatprep.subr.bf16.mxu0 0
    %9633 = vmatpush1.bf16.msra.mxu0 %v9598
    %9634 = vmatprep.subr.bf16.mxu0 0
    %9635 = vmatpush1.bf16.msra.mxu0 %v9599
    %9636 = vmatprep.subr.bf16.mxu0 0
    %9637 = vmatpush1.bf16.msra.mxu0 %v9600
    %9638 = vmatprep.subr.bf16.mxu0 0
    %9639 = vmatpush1.bf16.msra.mxu0 %v9601
    %9640 = vmatprep.subr.bf16.mxu0 0
    %9641 = vmatpush1.bf16.msra.mxu0 %v9602
    %9642 = vmatprep.subr.bf16.mxu0 0
    %9643 = vmatpush1.bf16.msra.mxu0 %v9603
    %9644 = vmatprep.subr.bf16.mxu0 0
    %9645 = vmatpush1.bf16.msra.mxu0 %v9604
    %9646 = vmatprep.subr.bf16.mxu0 0
    %9647 = vmatpush1.bf16.msra.mxu0 %v9605
    %9648 = vmatprep.subr.bf16.mxu0 0
    %9649 = vmatpush1.bf16.msra.mxu0 %v9606
    %9650 = vmatprep.subr.bf16.mxu0 0
    %9651 = vmatpush1.bf16.msra.mxu0 %v9607
    %9652 = vmatprep.subr.bf16.mxu0 0
    %9653 = vmatpush1.bf16.msra.mxu0 %v9608
    %9654 = vmatprep.subr.bf16.mxu0 0
    %9655 = vmatpush1.bf16.msra.mxu0 %v9609
    %9656 = vmatprep.subr.bf16.mxu0 0
    %9657 = vmatpush1.bf16.msra.mxu0 %v9610
    %9658 = vmatprep.subr.bf16.mxu0 0
    %9659 = vmatpush1.bf16.msra.mxu0 %v9611
    %9660 = vmatprep.mubr.bf16.mxu0 %v9492
    %9661 = vmatmul.mubr.bf16.gmra.mrb[0].mxu0 %v9491
    %v9662 = vpop.f32.mrb[0].mxu0
    %v9663 = vadd.f32 %v9530, %v9662
    %v9664 = vpop.f32.mrb[0].mxu0
    %v9665 = vpop.f32.mrb[0].mxu0
    %v9666 = vpop.f32.mrb[0].mxu0
    %9667 = vdwg.mxu0
    %9668 = vst [vmem:[#allocation4] sm:$0x3] %v9663
    // Predicated region
    $region42: #{deep_network_forward.1} parent=1 // pred_check
      _
    $region43: #{deep_network_forward.1} parent=1 // pred_check_branch
      %9670 = sbr.rel (0) target = $region45
    $region44: #{deep_network_forward.1} parent=1 // pred_region
      %s9672 = ssub.s32 32, 32
      %9673 = vsyncadd [#allocation5], %s9672
      %s9675 = sshll.u32 [#allocation4], 4
      %s9676 = int_to_ptr.vmem [resolvable:$true] %s9675
      %9678 = dma.vmem_to_hbm [thread:$0]  %s9676, 32, %s10, [#allocation5]
    $region45: #{deep_network_forward.1} parent=1 // pred_fallthru
      _
    // Predicated region
    $region46: #{deep_network_forward.1} parent=1 // pred_check
      _
    $region47: #{deep_network_forward.1} parent=1 // pred_check_branch
      %9680 = sbr.rel (0) target = $region49
    $region48: #{deep_network_forward.1} parent=1 // pred_region
      %9681 = dma.done [#allocation5], 32
    $region49: #{deep_network_forward.1} parent=1 // pred_fallthru
      _
    %9682 = vsyncpa [#allocation5], 1

</llo_original>
